<compile_context>
chip_gen: v6e
topology: v6e:2x2x1
jax: 0.10.0
libtpu: 0.0.40
codegen_flags: <defaults>
</compile_context>

<pallas_src>
import functools
import math

import jax
import jax.numpy as jnp
import numpy as np
from jax.experimental import pallas as pl
from jax.experimental.pallas import tpu as pltpu


_TAPS = tuple((dy, dx) for dy in (-1, 0, 1) for dx in (-1, 0, 1))  # t = ky*3+kx


def _round_up(v, m):
    return (v + m - 1) // m * m


# ----------------------------------------------------------------------------
# Fused RRDB kernel: one grid step == one image; everything stays in VMEM.
# ----------------------------------------------------------------------------
def _rrdb_kernel(x_ref, w_ref, b_ref, mask_ref, o_ref, roll_ref, *,
                 nf, gc, H, W, ci_pad):
    # x_ref:    (nf, H*W)                 input image, channel-major
    # w_ref:    (15, co_pad, 9*ci_pad)    per-conv weights, columns = tap-major
    # b_ref:    (15, co_pad, 1)           biases (broadcast over lanes)
    # mask_ref: (9, 1, H*W)               0/1 border-validity mask per tap
    # o_ref:    (nf, H*W)                 output
    # roll_ref: (9*ci_pad, H*W) VMEM      tap-rolled, border-masked dense buffer
    HW = H * W
    couts = (gc, gc, gc, gc, nf)

    # Zero once so zero-padded weight columns never multiply NaN garbage.
    roll_ref[...] = jnp.zeros_like(roll_ref)

    def store_rolled(chunk, off):
        """Write a (cnt, HW) activation chunk into all 9 tap slots."""
        cnt = chunk.shape[0]
        for t, (dy, dx) in enumerate(_TAPS):
            shift = dy * W + dx
            if shift == 0:
                patch = chunk
            else:
                # patch[:, h*W+w] = chunk[:, (h+dy)*W + (w+dx)], 0 outside.
                patch = pltpu.roll(chunk, shift=(-shift) % HW, axis=1)
                patch = patch * mask_ref[t, :, :]          # kill wrap-around
            base = t * ci_pad + off
            roll_ref[base:base + cnt, :] = patch

    def conv3x3(conv_idx, cout, apply_lrelu):
        """PyTorch Conv2d(cin, cout, 3, padding=1) as one MXU matmul."""
        wt = w_ref[conv_idx, 0:cout, :]                    # (cout, 9*ci_pad)
        acc = jnp.dot(wt, roll_ref[...],
                      preferred_element_type=jnp.float32)  # (cout, HW)
        acc = acc + b_ref[conv_idx, 0:cout, :]
        if apply_lrelu:
            acc = jnp.maximum(acc, acc * 0.2)              # LeakyReLU(0.2)
        return acc

    x = x_ref[...]
    store_rolled(x, 0)
    out = x
    for r in range(3):                                     # RDB1, RDB2, RDB3
        base = 5 * r
        for j in range(4):                                 # conv1..conv4 + lrelu
            xj = conv3x3(base + j, couts[j], apply_lrelu=True)
            store_rolled(xj, nf + j * gc)
        x5 = conv3x3(base + 4, couts[4], apply_lrelu=False)
        out = x5 * 0.2 + out                               # RDB residual
        if r < 2:
            store_rolled(out, 0)                           # feeds next RDB
    o_ref[...] = (out * 0.2 + x_ref[...]).astype(o_ref.dtype)  # RRDB residual


# ----------------------------------------------------------------------------
# Host-side packing / wrapper
# ----------------------------------------------------------------------------
def _tap_masks(H, W):
    hh, ww = np.meshgrid(np.arange(H), np.arange(W), indexing="ij")
    masks = []
    for dy, dx in _TAPS:
        valid = ((hh + dy >= 0) & (hh + dy < H) &
                 (ww + dx >= 0) & (ww + dx < W))
        masks.append(valid.reshape(1, H * W))
    return jnp.asarray(np.stack(masks).astype(np.float32))      # (9, 1, H*W)


def _pack_params(params, nf, gc):
    """Pack the 15 conv weights into (15, co_pad, 9*ci_pad) tap-major mats."""
    co_pad = _round_up(max(nf, gc), 8)
    ci_pad = _round_up(nf + 4 * gc, 8)
    ws, bs = [], []
    for rdb in ("rdb1", "rdb2", "rdb3"):
        p = params[rdb]
        for i in range(1, 6):
            w = p[f"w{i}"]                                   # (cout, cin, 3, 3) OIHW
            b = p[f"b{i}"]                                   # (cout,)
            cout, cin = w.shape[0], w.shape[1]
            # (cout,cin,3,3) -> (3,3,cout,cin) -> (9,cout,cin): t = ky*3+kx
            w9 = jnp.transpose(w, (2, 3, 0, 1)).reshape(9, cout, cin)
            w9 = jnp.pad(w9, ((0, 0), (0, co_pad - cout), (0, ci_pad - cin)))
            # (9, co_pad, ci_pad) -> (co_pad, 9, ci_pad) -> (co_pad, 9*ci_pad)
            wf = jnp.transpose(w9, (1, 0, 2)).reshape(co_pad, 9 * ci_pad)
            ws.append(wf)
            bs.append(jnp.pad(b, (0, co_pad - cout)).reshape(co_pad, 1))
    return jnp.stack(ws), jnp.stack(bs)   # (15,co_pad,9*ci_pad), (15,co_pad,1)


def rrdb_forward(x_nchw, params):
    """PyTorch-compatible RRDB forward: x is NCHW, params hold OIHW weights."""
    N, nf, H, W = x_nchw.shape
    gc = params["rdb1"]["w1"].shape[0]
    HW = H * W
    w_all, b_all = _pack_params(params, nf, gc)
    masks = _tap_masks(H, W)
    x_flat = x_nchw.reshape(N, nf, HW)       # NCHW is already channel-major

    co_pad = w_all.shape[1]
    ci_pad = w_all.shape[2] // 9
    kernel = functools.partial(_rrdb_kernel, nf=nf, gc=gc, H=H, W=W,
                               ci_pad=ci_pad)

    cins = (nf, nf + gc, nf + 2 * gc, nf + 3 * gc, nf + 4 * gc)
    couts = (gc, gc, gc, gc, nf)
    flops = 2 * N * 3 * 9 * HW * sum(ci * co for ci, co in zip(cins, couts))
    bytes_accessed = 4 * (2 * x_flat.size + w_all.size + b_all.size + masks.size)

    out = pl.pallas_call(
        kernel,
        out_shape=jax.ShapeDtypeStruct((N, nf, HW), x_flat.dtype),
        grid=(N,),
        in_specs=[
            pl.BlockSpec((None, nf, HW), lambda n: (n, 0, 0)),
            pl.BlockSpec((15, co_pad, 9 * ci_pad), lambda n: (0, 0, 0)),
            pl.BlockSpec((15, co_pad, 1), lambda n: (0, 0, 0)),
            pl.BlockSpec((9, 1, HW), lambda n: (0, 0, 0)),
        ],
        out_specs=pl.BlockSpec((None, nf, HW), lambda n: (n, 0, 0)),
        scratch_shapes=[pltpu.VMEM((9 * ci_pad, HW), jnp.float32)],
        compiler_params=pltpu.CompilerParams(
            dimension_semantics=("parallel",)),
        cost_estimate=pl.CostEstimate(
            flops=flops, transcendentals=0, bytes_accessed=bytes_accessed),
    )(x_flat, w_all, b_all, masks)
    return out.reshape(N, nf, H, W)


# ----------------------------------------------------------------------------
# Parameter init (Kaiming normal fan_in scaled by 0.1, zero bias) — OIHW layout
# ----------------------------------------------------------------------------
def init_conv(key, cin, cout, scale=0.1):
    fan_in = cin * 3 * 3
    std = math.sqrt(2.0 / fan_in)            # kaiming_normal_, a=0, fan_in
    w = jax.random.normal(key, (cout, cin, 3, 3), dtype=jnp.float32) * std * scale
    b = jnp.zeros((cout,), dtype=jnp.float32)
    return w, b


def init_rdb(key, nf, gc):
    keys = jax.random.split(key, 5)
    cins = [nf, nf + gc, nf + 2 * gc, nf + 3 * gc, nf + 4 * gc]
    couts = [gc, gc, gc, gc, nf]
    params = {}
    for i, (k, ci, co) in enumerate(zip(keys, cins, couts), start=1):
        w, b = init_conv(k, ci, co)
        params[f"w{i}"] = w
        params[f"b{i}"] = b
    return params


def init_rrdb(key, nf, gc):
    k1, k2, k3 = jax.random.split(key, 3)
    return {"rdb1": init_rdb(k1, nf, gc),
            "rdb2": init_rdb(k2, nf, gc),
            "rdb3": init_rdb(k3, nf, gc)}


# ----------------------------------------------------------------------------
# Pure-JAX reference (lax.conv) of the PyTorch module, for correctness check
# ----------------------------------------------------------------------------
def _rrdb_reference(x, params):
    def conv(v, w, b):
        y = jax.lax.conv_general_dilated(
            v, w, window_strides=(1, 1), padding=((1, 1), (1, 1)),
            dimension_numbers=("NCHW", "OIHW", "NCHW"),
            precision=jax.lax.Precision.HIGHEST)
        return y + b[None, :, None, None]

    def lrelu(v):
        return jnp.where(v >= 0, v, 0.2 * v)

    def rdb(v, p):
        x1 = lrelu(conv(v, p["w1"], p["b1"]))
        x2 = lrelu(conv(jnp.concatenate([v, x1], 1), p["w2"], p["b2"]))
        x3 = lrelu(conv(jnp.concatenate([v, x1, x2], 1), p["w3"], p["b3"]))
        x4 = lrelu(conv(jnp.concatenate([v, x1, x2, x3], 1), p["w4"], p["b4"]))
        x5 = conv(jnp.concatenate([v, x1, x2, x3, x4], 1), p["w5"], p["b5"])
        return x5 * 0.2 + v

    out = rdb(x, params["rdb1"])
    out = rdb(out, params["rdb2"])
    out = rdb(out, params["rdb3"])
    return out * 0.2 + x


# ----------------------------------------------------------------------------
if __name__ == "__main__":
    nf, gc = 16, 8
    N, H, W = 2, 16, 16

    key = jax.random.PRNGKey(0)
    kx, kp = jax.random.split(key)
    x = jax.random.normal(kx, (N, nf, H, W), dtype=jnp.float32)  # NCHW
    params = init_rrdb(kp, nf, gc)

    out = jax.jit(rrdb_forward)(x, params)
    out = jax.block_until_ready(out)

    assert out.shape == (N, nf, H, W), out.shape
    assert out.dtype == jnp.float32
    assert bool(jnp.all(jnp.isfinite(out)))

    # Numerical check against the pure-JAX reference of the PyTorch module.
    ref = jax.block_until_ready(jax.jit(_rrdb_reference)(x, params))
    max_err = float(jnp.max(jnp.abs(out - ref)))
    assert max_err < 1e-3, f"max abs error vs reference: {max_err}"

    print("KERNEL_OK")
</pallas_src>

<mosaic_0001>
module attributes {stable_mosaic.version = 11 : i64} {
  func.func @_rrdb_kernel(%arg0: i32, %arg1: memref<1x16x256xf32, #tpu.memory_space<vmem>>, %arg2: memref<15x16x432xf32, #tpu.memory_space<vmem>>, %arg3: memref<15x16x1xf32, #tpu.memory_space<vmem>>, %arg4: memref<9x1x256xf32, #tpu.memory_space<vmem>>, %arg5: memref<1x16x256xf32, #tpu.memory_space<vmem>>, %arg6: memref<432x256xf32, #tpu.memory_space<vmem>>) attributes {dimension_semantics = [#tpu.dimension_semantics<parallel>], iteration_bounds = array<i64: 2>, scalar_prefetch = 0 : i64, scratch_operands = 1 : i64, tpu.core_type = #tpu.core_type<tc>, window_params = [{transform_indices = @transform_0, window_bounds = array<i64: 1, 16, 256>}, {pipeline_mode = #tpu.pipeline_mode<synchronous>, transform_indices = @transform_1, window_bounds = array<i64: 15, 16, 432>}, {pipeline_mode = #tpu.pipeline_mode<synchronous>, transform_indices = @transform_2, window_bounds = array<i64: 15, 16, 1>}, {pipeline_mode = #tpu.pipeline_mode<synchronous>, transform_indices = @transform_3, window_bounds = array<i64: 9, 1, 256>}, {transform_indices = @transform_4, window_bounds = array<i64: 1, 16, 256>}]} {
    %cst = arith.constant 0.000000e+00 : f32
    %0 = vector.broadcast %cst : f32 to vector<432x256xf32>
    %c0 = arith.constant 0 : index
    %c0_0 = arith.constant 0 : index
    %1 = vector.load %arg6[%c0, %c0_0] : memref<432x256xf32, #tpu.memory_space<vmem>>, vector<432x256xf32>
    tpu.vector_store %arg6[%c0, %c0_0], %0 {strides = array<i32>} : memref<432x256xf32, #tpu.memory_space<vmem>>, vector<432x256xf32>,
    %c0_1 = arith.constant 0 : index
    %c0_2 = arith.constant 0 : index
    %c0_3 = arith.constant 0 : index
    %2 = vector.load %arg1[%c0_1, %c0_2, %c0_3] : memref<1x16x256xf32, #tpu.memory_space<vmem>>, vector<1x16x256xf32>
    %3 = vector.shape_cast %2 : vector<1x16x256xf32> to vector<16x256xf32>
    %c17_i32 = arith.constant 17 : i32
    %4 = tpu.dynamic_rotate %3 by %c17_i32 dim 1 : vector<16x256xf32>, i32 -> vector<16x256xf32>
    %c0_4 = arith.constant 0 : index
    %c0_5 = arith.constant 0 : index
    %c0_6 = arith.constant 0 : index
    %5 = vector.load %arg4[%c0_4, %c0_5, %c0_6] : memref<9x1x256xf32, #tpu.memory_space<vmem>>, vector<1x1x256xf32>
    %6 = vector.shape_cast %5 : vector<1x1x256xf32> to vector<1x256xf32>
    %7 = vector.broadcast %6 : vector<1x256xf32> to vector<16x256xf32>
    %8 = arith.mulf %4, %7 : vector<16x256xf32>
    %c0_7 = arith.constant 0 : index
    %c0_8 = arith.constant 0 : index
    %9 = vector.load %arg6[%c0_7, %c0_8] : memref<432x256xf32, #tpu.memory_space<vmem>>, vector<16x256xf32>
    tpu.vector_store %arg6[%c0_7, %c0_8], %8 {strides = array<i32>} : memref<432x256xf32, #tpu.memory_space<vmem>>, vector<16x256xf32>,
    %c16_i32 = arith.constant 16 : i32
    %10 = tpu.dynamic_rotate %3 by %c16_i32 dim 1 : vector<16x256xf32>, i32 -> vector<16x256xf32>
    %c1 = arith.constant 1 : index
    %c0_9 = arith.constant 0 : index
    %c0_10 = arith.constant 0 : index
    %11 = vector.load %arg4[%c1, %c0_9, %c0_10] : memref<9x1x256xf32, #tpu.memory_space<vmem>>, vector<1x1x256xf32>
    %12 = vector.shape_cast %11 : vector<1x1x256xf32> to vector<1x256xf32>
    %13 = vector.broadcast %12 : vector<1x256xf32> to vector<16x256xf32>
    %14 = arith.mulf %10, %13 : vector<16x256xf32>
    %c48 = arith.constant 48 : index
    %c0_11 = arith.constant 0 : index
    %15 = vector.load %arg6[%c48, %c0_11] : memref<432x256xf32, #tpu.memory_space<vmem>>, vector<16x256xf32>
    tpu.vector_store %arg6[%c48, %c0_11], %14 {strides = array<i32>} : memref<432x256xf32, #tpu.memory_space<vmem>>, vector<16x256xf32>,
    %c15_i32 = arith.constant 15 : i32
    %16 = tpu.dynamic_rotate %3 by %c15_i32 dim 1 : vector<16x256xf32>, i32 -> vector<16x256xf32>
    %c2 = arith.constant 2 : index
    %c0_12 = arith.constant 0 : index
    %c0_13 = arith.constant 0 : index
    %17 = vector.load %arg4[%c2, %c0_12, %c0_13] : memref<9x1x256xf32, #tpu.memory_space<vmem>>, vector<1x1x256xf32>
    %18 = vector.shape_cast %17 : vector<1x1x256xf32> to vector<1x256xf32>
    %19 = vector.broadcast %18 : vector<1x256xf32> to vector<16x256xf32>
    %20 = arith.mulf %16, %19 : vector<16x256xf32>
    %c96 = arith.constant 96 : index
    %c0_14 = arith.constant 0 : index
    %21 = vector.load %arg6[%c96, %c0_14] : memref<432x256xf32, #tpu.memory_space<vmem>>, vector<16x256xf32>
    tpu.vector_store %arg6[%c96, %c0_14], %20 {strides = array<i32>} : memref<432x256xf32, #tpu.memory_space<vmem>>, vector<16x256xf32>,
    %c1_i32 = arith.constant 1 : i32
    %22 = tpu.dynamic_rotate %3 by %c1_i32 dim 1 : vector<16x256xf32>, i32 -> vector<16x256xf32>
    %c3 = arith.constant 3 : index
    %c0_15 = arith.constant 0 : index
    %c0_16 = arith.constant 0 : index
    %23 = vector.load %arg4[%c3, %c0_15, %c0_16] : memref<9x1x256xf32, #tpu.memory_space<vmem>>, vector<1x1x256xf32>
    %24 = vector.shape_cast %23 : vector<1x1x256xf32> to vector<1x256xf32>
    %25 = vector.broadcast %24 : vector<1x256xf32> to vector<16x256xf32>
    %26 = arith.mulf %22, %25 : vector<16x256xf32>
    %c144 = arith.constant 144 : index
    %c0_17 = arith.constant 0 : index
    %27 = vector.load %arg6[%c144, %c0_17] : memref<432x256xf32, #tpu.memory_space<vmem>>, vector<16x256xf32>
    tpu.vector_store %arg6[%c144, %c0_17], %26 {strides = array<i32>} : memref<432x256xf32, #tpu.memory_space<vmem>>, vector<16x256xf32>,
    %c192 = arith.constant 192 : index
    %c0_18 = arith.constant 0 : index
    %28 = vector.load %arg6[%c192, %c0_18] : memref<432x256xf32, #tpu.memory_space<vmem>>, vector<16x256xf32>
    tpu.vector_store %arg6[%c192, %c0_18], %3 {strides = array<i32>} : memref<432x256xf32, #tpu.memory_space<vmem>>, vector<16x256xf32>,
    %c255_i32 = arith.constant 255 : i32
    %29 = tpu.dynamic_rotate %3 by %c255_i32 dim 1 : vector<16x256xf32>, i32 -> vector<16x256xf32>
    %c5 = arith.constant 5 : index
    %c0_19 = arith.constant 0 : index
    %c0_20 = arith.constant 0 : index
    %30 = vector.load %arg4[%c5, %c0_19, %c0_20] : memref<9x1x256xf32, #tpu.memory_space<vmem>>, vector<1x1x256xf32>
    %31 = vector.shape_cast %30 : vector<1x1x256xf32> to vector<1x256xf32>
    %32 = vector.broadcast %31 : vector<1x256xf32> to vector<16x256xf32>
    %33 = arith.mulf %29, %32 : vector<16x256xf32>
    %c240 = arith.constant 240 : index
    %c0_21 = arith.constant 0 : index
    %34 = vector.load %arg6[%c240, %c0_21] : memref<432x256xf32, #tpu.memory_space<vmem>>, vector<16x256xf32>
    tpu.vector_store %arg6[%c240, %c0_21], %33 {strides = array<i32>} : memref<432x256xf32, #tpu.memory_space<vmem>>, vector<16x256xf32>,
    %c241_i32 = arith.constant 241 : i32
    %35 = tpu.dynamic_rotate %3 by %c241_i32 dim 1 : vector<16x256xf32>, i32 -> vector<16x256xf32>
    %c6 = arith.constant 6 : index
    %c0_22 = arith.constant 0 : index
    %c0_23 = arith.constant 0 : index
    %36 = vector.load %arg4[%c6, %c0_22, %c0_23] : memref<9x1x256xf32, #tpu.memory_space<vmem>>, vector<1x1x256xf32>
    %37 = vector.shape_cast %36 : vector<1x1x256xf32> to vector<1x256xf32>
    %38 = vector.broadcast %37 : vector<1x256xf32> to vector<16x256xf32>
    %39 = arith.mulf %35, %38 : vector<16x256xf32>
    %c288 = arith.constant 288 : index
    %c0_24 = arith.constant 0 : index
    %40 = vector.load %arg6[%c288, %c0_24] : memref<432x256xf32, #tpu.memory_space<vmem>>, vector<16x256xf32>
    tpu.vector_store %arg6[%c288, %c0_24], %39 {strides = array<i32>} : memref<432x256xf32, #tpu.memory_space<vmem>>, vector<16x256xf32>,
    %c240_i32 = arith.constant 240 : i32
    %41 = tpu.dynamic_rotate %3 by %c240_i32 dim 1 : vector<16x256xf32>, i32 -> vector<16x256xf32>
    %c7 = arith.constant 7 : index
    %c0_25 = arith.constant 0 : index
    %c0_26 = arith.constant 0 : index
    %42 = vector.load %arg4[%c7, %c0_25, %c0_26] : memref<9x1x256xf32, #tpu.memory_space<vmem>>, vector<1x1x256xf32>
    %43 = vector.shape_cast %42 : vector<1x1x256xf32> to vector<1x256xf32>
    %44 = vector.broadcast %43 : vector<1x256xf32> to vector<16x256xf32>
    %45 = arith.mulf %41, %44 : vector<16x256xf32>
    %c336 = arith.constant 336 : index
    %c0_27 = arith.constant 0 : index
    %46 = vector.load %arg6[%c336, %c0_27] : memref<432x256xf32, #tpu.memory_space<vmem>>, vector<16x256xf32>
    tpu.vector_store %arg6[%c336, %c0_27], %45 {strides = array<i32>} : memref<432x256xf32, #tpu.memory_space<vmem>>, vector<16x256xf32>,
    %c239_i32 = arith.constant 239 : i32
    %47 = tpu.dynamic_rotate %3 by %c239_i32 dim 1 : vector<16x256xf32>, i32 -> vector<16x256xf32>
    %c8 = arith.constant 8 : index
    %c0_28 = arith.constant 0 : index
    %c0_29 = arith.constant 0 : index
    %48 = vector.load %arg4[%c8, %c0_28, %c0_29] : memref<9x1x256xf32, #tpu.memory_space<vmem>>, vector<1x1x256xf32>
    %49 = vector.shape_cast %48 : vector<1x1x256xf32> to vector<1x256xf32>
    %50 = vector.broadcast %49 : vector<1x256xf32> to vector<16x256xf32>
    %51 = arith.mulf %47, %50 : vector<16x256xf32>
    %c384 = arith.constant 384 : index
    %c0_30 = arith.constant 0 : index
    %52 = vector.load %arg6[%c384, %c0_30] : memref<432x256xf32, #tpu.memory_space<vmem>>, vector<16x256xf32>
    tpu.vector_store %arg6[%c384, %c0_30], %51 {strides = array<i32>} : memref<432x256xf32, #tpu.memory_space<vmem>>, vector<16x256xf32>,
    %c0_31 = arith.constant 0 : index
    %c0_32 = arith.constant 0 : index
    %c0_33 = arith.constant 0 : index
    %53 = vector.load %arg2[%c0_31, %c0_32, %c0_33] : memref<15x16x432xf32, #tpu.memory_space<vmem>>, vector<1x8x432xf32>
    %54 = vector.shape_cast %53 : vector<1x8x432xf32> to vector<8x432xf32>
    %c0_34 = arith.constant 0 : index
    %c0_35 = arith.constant 0 : index
    %55 = vector.load %arg6[%c0_34, %c0_35] : memref<432x256xf32, #tpu.memory_space<vmem>>, vector<432x256xf32>
    %cst_36 = arith.constant dense<0.000000e+00> : vector<8x256xf32>
    %56 = tpu.matmul %54, %55, %cst_36 {dimension_numbers = #tpu.dot_dimension_numbers<[1], [0], [0], [1], [0, 0, 1, 1], [], []>} : vector<8x432xf32>, vector<432x256xf32>, vector<8x256xf32> -> vector<8x256xf32>
    %c0_37 = arith.constant 0 : index
    %c0_38 = arith.constant 0 : index
    %c0_39 = arith.constant 0 : index
    %57 = vector.load %arg3[%c0_37, %c0_38, %c0_39] : memref<15x16x1xf32, #tpu.memory_space<vmem>>, vector<1x8x1xf32>
    %58 = vector.shape_cast %57 : vector<1x8x1xf32> to vector<8x1xf32>
    %59 = vector.broadcast %58 : vector<8x1xf32> to vector<8x256xf32>
    %60 = arith.addf %56, %59 : vector<8x256xf32>
    %cst_40 = arith.constant 2.000000e-01 : f32
    %61 = vector.broadcast %cst_40 : f32 to vector<8x256xf32>
    %62 = arith.mulf %60, %61 : vector<8x256xf32>
    %63 = arith.maximumf %60, %62 : vector<8x256xf32>
    %c17_i32_41 = arith.constant 17 : i32
    %64 = tpu.dynamic_rotate %63 by %c17_i32_41 dim 1 : vector<8x256xf32>, i32 -> vector<8x256xf32>
    %c0_42 = arith.constant 0 : index
    %c0_43 = arith.constant 0 : index
    %c0_44 = arith.constant 0 : index
    %65 = vector.load %arg4[%c0_42, %c0_43, %c0_44] : memref<9x1x256xf32, #tpu.memory_space<vmem>>, vector<1x1x256xf32>
    %66 = vector.shape_cast %65 : vector<1x1x256xf32> to vector<1x256xf32>
    %67 = vector.broadcast %66 : vector<1x256xf32> to vector<8x256xf32>
    %68 = arith.mulf %64, %67 : vector<8x256xf32>
    %c16 = arith.constant 16 : index
    %c0_45 = arith.constant 0 : index
    %69 = vector.load %arg6[%c16, %c0_45] : memref<432x256xf32, #tpu.memory_space<vmem>>, vector<8x256xf32>
    tpu.vector_store %arg6[%c16, %c0_45], %68 {strides = array<i32>} : memref<432x256xf32, #tpu.memory_space<vmem>>, vector<8x256xf32>,
    %c16_i32_46 = arith.constant 16 : i32
    %70 = tpu.dynamic_rotate %63 by %c16_i32_46 dim 1 : vector<8x256xf32>, i32 -> vector<8x256xf32>
    %c1_47 = arith.constant 1 : index
    %c0_48 = arith.constant 0 : index
    %c0_49 = arith.constant 0 : index
    %71 = vector.load %arg4[%c1_47, %c0_48, %c0_49] : memref<9x1x256xf32, #tpu.memory_space<vmem>>, vector<1x1x256xf32>
    %72 = vector.shape_cast %71 : vector<1x1x256xf32> to vector<1x256xf32>
    %73 = vector.broadcast %72 : vector<1x256xf32> to vector<8x256xf32>
    %74 = arith.mulf %70, %73 : vector<8x256xf32>
    %c64 = arith.constant 64 : index
    %c0_50 = arith.constant 0 : index
    %75 = vector.load %arg6[%c64, %c0_50] : memref<432x256xf32, #tpu.memory_space<vmem>>, vector<8x256xf32>
    tpu.vector_store %arg6[%c64, %c0_50], %74 {strides = array<i32>} : memref<432x256xf32, #tpu.memory_space<vmem>>, vector<8x256xf32>,
    %c15_i32_51 = arith.constant 15 : i32
    %76 = tpu.dynamic_rotate %63 by %c15_i32_51 dim 1 : vector<8x256xf32>, i32 -> vector<8x256xf32>
    %c2_52 = arith.constant 2 : index
    %c0_53 = arith.constant 0 : index
    %c0_54 = arith.constant 0 : index
    %77 = vector.load %arg4[%c2_52, %c0_53, %c0_54] : memref<9x1x256xf32, #tpu.memory_space<vmem>>, vector<1x1x256xf32>
    %78 = vector.shape_cast %77 : vector<1x1x256xf32> to vector<1x256xf32>
    %79 = vector.broadcast %78 : vector<1x256xf32> to vector<8x256xf32>
    %80 = arith.mulf %76, %79 : vector<8x256xf32>
    %c112 = arith.constant 112 : index
    %c0_55 = arith.constant 0 : index
    %81 = vector.load %arg6[%c112, %c0_55] : memref<432x256xf32, #tpu.memory_space<vmem>>, vector<8x256xf32>
    tpu.vector_store %arg6[%c112, %c0_55], %80 {strides = array<i32>} : memref<432x256xf32, #tpu.memory_space<vmem>>, vector<8x256xf32>,
    %c1_i32_56 = arith.constant 1 : i32
    %82 = tpu.dynamic_rotate %63 by %c1_i32_56 dim 1 : vector<8x256xf32>, i32 -> vector<8x256xf32>
    %c3_57 = arith.constant 3 : index
    %c0_58 = arith.constant 0 : index
    %c0_59 = arith.constant 0 : index
    %83 = vector.load %arg4[%c3_57, %c0_58, %c0_59] : memref<9x1x256xf32, #tpu.memory_space<vmem>>, vector<1x1x256xf32>
    %84 = vector.shape_cast %83 : vector<1x1x256xf32> to vector<1x256xf32>
    %85 = vector.broadcast %84 : vector<1x256xf32> to vector<8x256xf32>
    %86 = arith.mulf %82, %85 : vector<8x256xf32>
    %c160 = arith.constant 160 : index
    %c0_60 = arith.constant 0 : index
    %87 = vector.load %arg6[%c160, %c0_60] : memref<432x256xf32, #tpu.memory_space<vmem>>, vector<8x256xf32>
    tpu.vector_store %arg6[%c160, %c0_60], %86 {strides = array<i32>} : memref<432x256xf32, #tpu.memory_space<vmem>>, vector<8x256xf32>,
    %c208 = arith.constant 208 : index
    %c0_61 = arith.constant 0 : index
    %88 = vector.load %arg6[%c208, %c0_61] : memref<432x256xf32, #tpu.memory_space<vmem>>, vector<8x256xf32>
    tpu.vector_store %arg6[%c208, %c0_61], %63 {strides = array<i32>} : memref<432x256xf32, #tpu.memory_space<vmem>>, vector<8x256xf32>,
    %c255_i32_62 = arith.constant 255 : i32
    %89 = tpu.dynamic_rotate %63 by %c255_i32_62 dim 1 : vector<8x256xf32>, i32 -> vector<8x256xf32>
    %c5_63 = arith.constant 5 : index
    %c0_64 = arith.constant 0 : index
    %c0_65 = arith.constant 0 : index
    %90 = vector.load %arg4[%c5_63, %c0_64, %c0_65] : memref<9x1x256xf32, #tpu.memory_space<vmem>>, vector<1x1x256xf32>
    %91 = vector.shape_cast %90 : vector<1x1x256xf32> to vector<1x256xf32>
    %92 = vector.broadcast %91 : vector<1x256xf32> to vector<8x256xf32>
    %93 = arith.mulf %89, %92 : vector<8x256xf32>
    %c256 = arith.constant 256 : index
    %c0_66 = arith.constant 0 : index
    %94 = vector.load %arg6[%c256, %c0_66] : memref<432x256xf32, #tpu.memory_space<vmem>>, vector<8x256xf32>
    tpu.vector_store %arg6[%c256, %c0_66], %93 {strides = array<i32>} : memref<432x256xf32, #tpu.memory_space<vmem>>, vector<8x256xf32>,
    %c241_i32_67 = arith.constant 241 : i32
    %95 = tpu.dynamic_rotate %63 by %c241_i32_67 dim 1 : vector<8x256xf32>, i32 -> vector<8x256xf32>
    %c6_68 = arith.constant 6 : index
    %c0_69 = arith.constant 0 : index
    %c0_70 = arith.constant 0 : index
    %96 = vector.load %arg4[%c6_68, %c0_69, %c0_70] : memref<9x1x256xf32, #tpu.memory_space<vmem>>, vector<1x1x256xf32>
    %97 = vector.shape_cast %96 : vector<1x1x256xf32> to vector<1x256xf32>
    %98 = vector.broadcast %97 : vector<1x256xf32> to vector<8x256xf32>
    %99 = arith.mulf %95, %98 : vector<8x256xf32>
    %c304 = arith.constant 304 : index
    %c0_71 = arith.constant 0 : index
    %100 = vector.load %arg6[%c304, %c0_71] : memref<432x256xf32, #tpu.memory_space<vmem>>, vector<8x256xf32>
    tpu.vector_store %arg6[%c304, %c0_71], %99 {strides = array<i32>} : memref<432x256xf32, #tpu.memory_space<vmem>>, vector<8x256xf32>,
    %c240_i32_72 = arith.constant 240 : i32
    %101 = tpu.dynamic_rotate %63 by %c240_i32_72 dim 1 : vector<8x256xf32>, i32 -> vector<8x256xf32>
    %c7_73 = arith.constant 7 : index
    %c0_74 = arith.constant 0 : index
    %c0_75 = arith.constant 0 : index
    %102 = vector.load %arg4[%c7_73, %c0_74, %c0_75] : memref<9x1x256xf32, #tpu.memory_space<vmem>>, vector<1x1x256xf32>
    %103 = vector.shape_cast %102 : vector<1x1x256xf32> to vector<1x256xf32>
    %104 = vector.broadcast %103 : vector<1x256xf32> to vector<8x256xf32>
    %105 = arith.mulf %101, %104 : vector<8x256xf32>
    %c352 = arith.constant 352 : index
    %c0_76 = arith.constant 0 : index
    %106 = vector.load %arg6[%c352, %c0_76] : memref<432x256xf32, #tpu.memory_space<vmem>>, vector<8x256xf32>
    tpu.vector_store %arg6[%c352, %c0_76], %105 {strides = array<i32>} : memref<432x256xf32, #tpu.memory_space<vmem>>, vector<8x256xf32>,
    %c239_i32_77 = arith.constant 239 : i32
    %107 = tpu.dynamic_rotate %63 by %c239_i32_77 dim 1 : vector<8x256xf32>, i32 -> vector<8x256xf32>
    %c8_78 = arith.constant 8 : index
    %c0_79 = arith.constant 0 : index
    %c0_80 = arith.constant 0 : index
    %108 = vector.load %arg4[%c8_78, %c0_79, %c0_80] : memref<9x1x256xf32, #tpu.memory_space<vmem>>, vector<1x1x256xf32>
    %109 = vector.shape_cast %108 : vector<1x1x256xf32> to vector<1x256xf32>
    %110 = vector.broadcast %109 : vector<1x256xf32> to vector<8x256xf32>
    %111 = arith.mulf %107, %110 : vector<8x256xf32>
    %c400 = arith.constant 400 : index
    %c0_81 = arith.constant 0 : index
    %112 = vector.load %arg6[%c400, %c0_81] : memref<432x256xf32, #tpu.memory_space<vmem>>, vector<8x256xf32>
    tpu.vector_store %arg6[%c400, %c0_81], %111 {strides = array<i32>} : memref<432x256xf32, #tpu.memory_space<vmem>>, vector<8x256xf32>,
    %c1_82 = arith.constant 1 : index
    %c0_83 = arith.constant 0 : index
    %c0_84 = arith.constant 0 : index
    %113 = vector.load %arg2[%c1_82, %c0_83, %c0_84] : memref<15x16x432xf32, #tpu.memory_space<vmem>>, vector<1x8x432xf32>
    %114 = vector.shape_cast %113 : vector<1x8x432xf32> to vector<8x432xf32>
    %c0_85 = arith.constant 0 : index
    %c0_86 = arith.constant 0 : index
    %115 = vector.load %arg6[%c0_85, %c0_86] : memref<432x256xf32, #tpu.memory_space<vmem>>, vector<432x256xf32>
    %cst_87 = arith.constant dense<0.000000e+00> : vector<8x256xf32>
    %116 = tpu.matmul %114, %115, %cst_87 {dimension_numbers = #tpu.dot_dimension_numbers<[1], [0], [0], [1], [0, 0, 1, 1], [], []>} : vector<8x432xf32>, vector<432x256xf32>, vector<8x256xf32> -> vector<8x256xf32>
    %c1_88 = arith.constant 1 : index
    %c0_89 = arith.constant 0 : index
    %c0_90 = arith.constant 0 : index
    %117 = vector.load %arg3[%c1_88, %c0_89, %c0_90] : memref<15x16x1xf32, #tpu.memory_space<vmem>>, vector<1x8x1xf32>
    %118 = vector.shape_cast %117 : vector<1x8x1xf32> to vector<8x1xf32>
    %119 = vector.broadcast %118 : vector<8x1xf32> to vector<8x256xf32>
    %120 = arith.addf %116, %119 : vector<8x256xf32>
    %cst_91 = arith.constant 2.000000e-01 : f32
    %121 = vector.broadcast %cst_91 : f32 to vector<8x256xf32>
    %122 = arith.mulf %120, %121 : vector<8x256xf32>
    %123 = arith.maximumf %120, %122 : vector<8x256xf32>
    %c17_i32_92 = arith.constant 17 : i32
    %124 = tpu.dynamic_rotate %123 by %c17_i32_92 dim 1 : vector<8x256xf32>, i32 -> vector<8x256xf32>
    %c0_93 = arith.constant 0 : index
    %c0_94 = arith.constant 0 : index
    %c0_95 = arith.constant 0 : index
    %125 = vector.load %arg4[%c0_93, %c0_94, %c0_95] : memref<9x1x256xf32, #tpu.memory_space<vmem>>, vector<1x1x256xf32>
    %126 = vector.shape_cast %125 : vector<1x1x256xf32> to vector<1x256xf32>
    %127 = vector.broadcast %126 : vector<1x256xf32> to vector<8x256xf32>
    %128 = arith.mulf %124, %127 : vector<8x256xf32>
    %c24 = arith.constant 24 : index
    %c0_96 = arith.constant 0 : index
    %129 = vector.load %arg6[%c24, %c0_96] : memref<432x256xf32, #tpu.memory_space<vmem>>, vector<8x256xf32>
    tpu.vector_store %arg6[%c24, %c0_96], %128 {strides = array<i32>} : memref<432x256xf32, #tpu.memory_space<vmem>>, vector<8x256xf32>,
    %c16_i32_97 = arith.constant 16 : i32
    %130 = tpu.dynamic_rotate %123 by %c16_i32_97 dim 1 : vector<8x256xf32>, i32 -> vector<8x256xf32>
    %c1_98 = arith.constant 1 : index
    %c0_99 = arith.constant 0 : index
    %c0_100 = arith.constant 0 : index
    %131 = vector.load %arg4[%c1_98, %c0_99, %c0_100] : memref<9x1x256xf32, #tpu.memory_space<vmem>>, vector<1x1x256xf32>
    %132 = vector.shape_cast %131 : vector<1x1x256xf32> to vector<1x256xf32>
    %133 = vector.broadcast %132 : vector<1x256xf32> to vector<8x256xf32>
    %134 = arith.mulf %130, %133 : vector<8x256xf32>
    %c72 = arith.constant 72 : index
    %c0_101 = arith.constant 0 : index
    %135 = vector.load %arg6[%c72, %c0_101] : memref<432x256xf32, #tpu.memory_space<vmem>>, vector<8x256xf32>
    tpu.vector_store %arg6[%c72, %c0_101], %134 {strides = array<i32>} : memref<432x256xf32, #tpu.memory_space<vmem>>, vector<8x256xf32>,
    %c15_i32_102 = arith.constant 15 : i32
    %136 = tpu.dynamic_rotate %123 by %c15_i32_102 dim 1 : vector<8x256xf32>, i32 -> vector<8x256xf32>
    %c2_103 = arith.constant 2 : index
    %c0_104 = arith.constant 0 : index
    %c0_105 = arith.constant 0 : index
    %137 = vector.load %arg4[%c2_103, %c0_104, %c0_105] : memref<9x1x256xf32, #tpu.memory_space<vmem>>, vector<1x1x256xf32>
    %138 = vector.shape_cast %137 : vector<1x1x256xf32> to vector<1x256xf32>
    %139 = vector.broadcast %138 : vector<1x256xf32> to vector<8x256xf32>
    %140 = arith.mulf %136, %139 : vector<8x256xf32>
    %c120 = arith.constant 120 : index
    %c0_106 = arith.constant 0 : index
    %141 = vector.load %arg6[%c120, %c0_106] : memref<432x256xf32, #tpu.memory_space<vmem>>, vector<8x256xf32>
    tpu.vector_store %arg6[%c120, %c0_106], %140 {strides = array<i32>} : memref<432x256xf32, #tpu.memory_space<vmem>>, vector<8x256xf32>,
    %c1_i32_107 = arith.constant 1 : i32
    %142 = tpu.dynamic_rotate %123 by %c1_i32_107 dim 1 : vector<8x256xf32>, i32 -> vector<8x256xf32>
    %c3_108 = arith.constant 3 : index
    %c0_109 = arith.constant 0 : index
    %c0_110 = arith.constant 0 : index
    %143 = vector.load %arg4[%c3_108, %c0_109, %c0_110] : memref<9x1x256xf32, #tpu.memory_space<vmem>>, vector<1x1x256xf32>
    %144 = vector.shape_cast %143 : vector<1x1x256xf32> to vector<1x256xf32>
    %145 = vector.broadcast %144 : vector<1x256xf32> to vector<8x256xf32>
    %146 = arith.mulf %142, %145 : vector<8x256xf32>
    %c168 = arith.constant 168 : index
    %c0_111 = arith.constant 0 : index
    %147 = vector.load %arg6[%c168, %c0_111] : memref<432x256xf32, #tpu.memory_space<vmem>>, vector<8x256xf32>
    tpu.vector_store %arg6[%c168, %c0_111], %146 {strides = array<i32>} : memref<432x256xf32, #tpu.memory_space<vmem>>, vector<8x256xf32>,
    %c216 = arith.constant 216 : index
    %c0_112 = arith.constant 0 : index
    %148 = vector.load %arg6[%c216, %c0_112] : memref<432x256xf32, #tpu.memory_space<vmem>>, vector<8x256xf32>
    tpu.vector_store %arg6[%c216, %c0_112], %123 {strides = array<i32>} : memref<432x256xf32, #tpu.memory_space<vmem>>, vector<8x256xf32>,
    %c255_i32_113 = arith.constant 255 : i32
    %149 = tpu.dynamic_rotate %123 by %c255_i32_113 dim 1 : vector<8x256xf32>, i32 -> vector<8x256xf32>
    %c5_114 = arith.constant 5 : index
    %c0_115 = arith.constant 0 : index
    %c0_116 = arith.constant 0 : index
    %150 = vector.load %arg4[%c5_114, %c0_115, %c0_116] : memref<9x1x256xf32, #tpu.memory_space<vmem>>, vector<1x1x256xf32>
    %151 = vector.shape_cast %150 : vector<1x1x256xf32> to vector<1x256xf32>
    %152 = vector.broadcast %151 : vector<1x256xf32> to vector<8x256xf32>
    %153 = arith.mulf %149, %152 : vector<8x256xf32>
    %c264 = arith.constant 264 : index
    %c0_117 = arith.constant 0 : index
    %154 = vector.load %arg6[%c264, %c0_117] : memref<432x256xf32, #tpu.memory_space<vmem>>, vector<8x256xf32>
    tpu.vector_store %arg6[%c264, %c0_117], %153 {strides = array<i32>} : memref<432x256xf32, #tpu.memory_space<vmem>>, vector<8x256xf32>,
    %c241_i32_118 = arith.constant 241 : i32
    %155 = tpu.dynamic_rotate %123 by %c241_i32_118 dim 1 : vector<8x256xf32>, i32 -> vector<8x256xf32>
    %c6_119 = arith.constant 6 : index
    %c0_120 = arith.constant 0 : index
    %c0_121 = arith.constant 0 : index
    %156 = vector.load %arg4[%c6_119, %c0_120, %c0_121] : memref<9x1x256xf32, #tpu.memory_space<vmem>>, vector<1x1x256xf32>
    %157 = vector.shape_cast %156 : vector<1x1x256xf32> to vector<1x256xf32>
    %158 = vector.broadcast %157 : vector<1x256xf32> to vector<8x256xf32>
    %159 = arith.mulf %155, %158 : vector<8x256xf32>
    %c312 = arith.constant 312 : index
    %c0_122 = arith.constant 0 : index
    %160 = vector.load %arg6[%c312, %c0_122] : memref<432x256xf32, #tpu.memory_space<vmem>>, vector<8x256xf32>
    tpu.vector_store %arg6[%c312, %c0_122], %159 {strides = array<i32>} : memref<432x256xf32, #tpu.memory_space<vmem>>, vector<8x256xf32>,
    %c240_i32_123 = arith.constant 240 : i32
    %161 = tpu.dynamic_rotate %123 by %c240_i32_123 dim 1 : vector<8x256xf32>, i32 -> vector<8x256xf32>
    %c7_124 = arith.constant 7 : index
    %c0_125 = arith.constant 0 : index
    %c0_126 = arith.constant 0 : index
    %162 = vector.load %arg4[%c7_124, %c0_125, %c0_126] : memref<9x1x256xf32, #tpu.memory_space<vmem>>, vector<1x1x256xf32>
    %163 = vector.shape_cast %162 : vector<1x1x256xf32> to vector<1x256xf32>
    %164 = vector.broadcast %163 : vector<1x256xf32> to vector<8x256xf32>
    %165 = arith.mulf %161, %164 : vector<8x256xf32>
    %c360 = arith.constant 360 : index
    %c0_127 = arith.constant 0 : index
    %166 = vector.load %arg6[%c360, %c0_127] : memref<432x256xf32, #tpu.memory_space<vmem>>, vector<8x256xf32>
    tpu.vector_store %arg6[%c360, %c0_127], %165 {strides = array<i32>} : memref<432x256xf32, #tpu.memory_space<vmem>>, vector<8x256xf32>,
    %c239_i32_128 = arith.constant 239 : i32
    %167 = tpu.dynamic_rotate %123 by %c239_i32_128 dim 1 : vector<8x256xf32>, i32 -> vector<8x256xf32>
    %c8_129 = arith.constant 8 : index
    %c0_130 = arith.constant 0 : index
    %c0_131 = arith.constant 0 : index
    %168 = vector.load %arg4[%c8_129, %c0_130, %c0_131] : memref<9x1x256xf32, #tpu.memory_space<vmem>>, vector<1x1x256xf32>
    %169 = vector.shape_cast %168 : vector<1x1x256xf32> to vector<1x256xf32>
    %170 = vector.broadcast %169 : vector<1x256xf32> to vector<8x256xf32>
    %171 = arith.mulf %167, %170 : vector<8x256xf32>
    %c408 = arith.constant 408 : index
    %c0_132 = arith.constant 0 : index
    %172 = vector.load %arg6[%c408, %c0_132] : memref<432x256xf32, #tpu.memory_space<vmem>>, vector<8x256xf32>
    tpu.vector_store %arg6[%c408, %c0_132], %171 {strides = array<i32>} : memref<432x256xf32, #tpu.memory_space<vmem>>, vector<8x256xf32>,
    %c2_133 = arith.constant 2 : index
    %c0_134 = arith.constant 0 : index
    %c0_135 = arith.constant 0 : index
    %173 = vector.load %arg2[%c2_133, %c0_134, %c0_135] : memref<15x16x432xf32, #tpu.memory_space<vmem>>, vector<1x8x432xf32>
    %174 = vector.shape_cast %173 : vector<1x8x432xf32> to vector<8x432xf32>
    %c0_136 = arith.constant 0 : index
    %c0_137 = arith.constant 0 : index
    %175 = vector.load %arg6[%c0_136, %c0_137] : memref<432x256xf32, #tpu.memory_space<vmem>>, vector<432x256xf32>
    %cst_138 = arith.constant dense<0.000000e+00> : vector<8x256xf32>
    %176 = tpu.matmul %174, %175, %cst_138 {dimension_numbers = #tpu.dot_dimension_numbers<[1], [0], [0], [1], [0, 0, 1, 1], [], []>} : vector<8x432xf32>, vector<432x256xf32>, vector<8x256xf32> -> vector<8x256xf32>
    %c2_139 = arith.constant 2 : index
    %c0_140 = arith.constant 0 : index
    %c0_141 = arith.constant 0 : index
    %177 = vector.load %arg3[%c2_139, %c0_140, %c0_141] : memref<15x16x1xf32, #tpu.memory_space<vmem>>, vector<1x8x1xf32>
    %178 = vector.shape_cast %177 : vector<1x8x1xf32> to vector<8x1xf32>
    %179 = vector.broadcast %178 : vector<8x1xf32> to vector<8x256xf32>
    %180 = arith.addf %176, %179 : vector<8x256xf32>
    %cst_142 = arith.constant 2.000000e-01 : f32
    %181 = vector.broadcast %cst_142 : f32 to vector<8x256xf32>
    %182 = arith.mulf %180, %181 : vector<8x256xf32>
    %183 = arith.maximumf %180, %182 : vector<8x256xf32>
    %c17_i32_143 = arith.constant 17 : i32
    %184 = tpu.dynamic_rotate %183 by %c17_i32_143 dim 1 : vector<8x256xf32>, i32 -> vector<8x256xf32>
    %c0_144 = arith.constant 0 : index
    %c0_145 = arith.constant 0 : index
    %c0_146 = arith.constant 0 : index
    %185 = vector.load %arg4[%c0_144, %c0_145, %c0_146] : memref<9x1x256xf32, #tpu.memory_space<vmem>>, vector<1x1x256xf32>
    %186 = vector.shape_cast %185 : vector<1x1x256xf32> to vector<1x256xf32>
    %187 = vector.broadcast %186 : vector<1x256xf32> to vector<8x256xf32>
    %188 = arith.mulf %184, %187 : vector<8x256xf32>
    %c32 = arith.constant 32 : index
    %c0_147 = arith.constant 0 : index
    %189 = vector.load %arg6[%c32, %c0_147] : memref<432x256xf32, #tpu.memory_space<vmem>>, vector<8x256xf32>
    tpu.vector_store %arg6[%c32, %c0_147], %188 {strides = array<i32>} : memref<432x256xf32, #tpu.memory_space<vmem>>, vector<8x256xf32>,
    %c16_i32_148 = arith.constant 16 : i32
    %190 = tpu.dynamic_rotate %183 by %c16_i32_148 dim 1 : vector<8x256xf32>, i32 -> vector<8x256xf32>
    %c1_149 = arith.constant 1 : index
    %c0_150 = arith.constant 0 : index
    %c0_151 = arith.constant 0 : index
    %191 = vector.load %arg4[%c1_149, %c0_150, %c0_151] : memref<9x1x256xf32, #tpu.memory_space<vmem>>, vector<1x1x256xf32>
    %192 = vector.shape_cast %191 : vector<1x1x256xf32> to vector<1x256xf32>
    %193 = vector.broadcast %192 : vector<1x256xf32> to vector<8x256xf32>
    %194 = arith.mulf %190, %193 : vector<8x256xf32>
    %c80 = arith.constant 80 : index
    %c0_152 = arith.constant 0 : index
    %195 = vector.load %arg6[%c80, %c0_152] : memref<432x256xf32, #tpu.memory_space<vmem>>, vector<8x256xf32>
    tpu.vector_store %arg6[%c80, %c0_152], %194 {strides = array<i32>} : memref<432x256xf32, #tpu.memory_space<vmem>>, vector<8x256xf32>,
    %c15_i32_153 = arith.constant 15 : i32
    %196 = tpu.dynamic_rotate %183 by %c15_i32_153 dim 1 : vector<8x256xf32>, i32 -> vector<8x256xf32>
    %c2_154 = arith.constant 2 : index
    %c0_155 = arith.constant 0 : index
    %c0_156 = arith.constant 0 : index
    %197 = vector.load %arg4[%c2_154, %c0_155, %c0_156] : memref<9x1x256xf32, #tpu.memory_space<vmem>>, vector<1x1x256xf32>
    %198 = vector.shape_cast %197 : vector<1x1x256xf32> to vector<1x256xf32>
    %199 = vector.broadcast %198 : vector<1x256xf32> to vector<8x256xf32>
    %200 = arith.mulf %196, %199 : vector<8x256xf32>
    %c128 = arith.constant 128 : index
    %c0_157 = arith.constant 0 : index
    %201 = vector.load %arg6[%c128, %c0_157] : memref<432x256xf32, #tpu.memory_space<vmem>>, vector<8x256xf32>
    tpu.vector_store %arg6[%c128, %c0_157], %200 {strides = array<i32>} : memref<432x256xf32, #tpu.memory_space<vmem>>, vector<8x256xf32>,
    %c1_i32_158 = arith.constant 1 : i32
    %202 = tpu.dynamic_rotate %183 by %c1_i32_158 dim 1 : vector<8x256xf32>, i32 -> vector<8x256xf32>
    %c3_159 = arith.constant 3 : index
    %c0_160 = arith.constant 0 : index
    %c0_161 = arith.constant 0 : index
    %203 = vector.load %arg4[%c3_159, %c0_160, %c0_161] : memref<9x1x256xf32, #tpu.memory_space<vmem>>, vector<1x1x256xf32>
    %204 = vector.shape_cast %203 : vector<1x1x256xf32> to vector<1x256xf32>
    %205 = vector.broadcast %204 : vector<1x256xf32> to vector<8x256xf32>
    %206 = arith.mulf %202, %205 : vector<8x256xf32>
    %c176 = arith.constant 176 : index
    %c0_162 = arith.constant 0 : index
    %207 = vector.load %arg6[%c176, %c0_162] : memref<432x256xf32, #tpu.memory_space<vmem>>, vector<8x256xf32>
    tpu.vector_store %arg6[%c176, %c0_162], %206 {strides = array<i32>} : memref<432x256xf32, #tpu.memory_space<vmem>>, vector<8x256xf32>,
    %c224 = arith.constant 224 : index
    %c0_163 = arith.constant 0 : index
    %208 = vector.load %arg6[%c224, %c0_163] : memref<432x256xf32, #tpu.memory_space<vmem>>, vector<8x256xf32>
    tpu.vector_store %arg6[%c224, %c0_163], %183 {strides = array<i32>} : memref<432x256xf32, #tpu.memory_space<vmem>>, vector<8x256xf32>,
    %c255_i32_164 = arith.constant 255 : i32
    %209 = tpu.dynamic_rotate %183 by %c255_i32_164 dim 1 : vector<8x256xf32>, i32 -> vector<8x256xf32>
    %c5_165 = arith.constant 5 : index
    %c0_166 = arith.constant 0 : index
    %c0_167 = arith.constant 0 : index
    %210 = vector.load %arg4[%c5_165, %c0_166, %c0_167] : memref<9x1x256xf32, #tpu.memory_space<vmem>>, vector<1x1x256xf32>
    %211 = vector.shape_cast %210 : vector<1x1x256xf32> to vector<1x256xf32>
    %212 = vector.broadcast %211 : vector<1x256xf32> to vector<8x256xf32>
    %213 = arith.mulf %209, %212 : vector<8x256xf32>
    %c272 = arith.constant 272 : index
    %c0_168 = arith.constant 0 : index
    %214 = vector.load %arg6[%c272, %c0_168] : memref<432x256xf32, #tpu.memory_space<vmem>>, vector<8x256xf32>
    tpu.vector_store %arg6[%c272, %c0_168], %213 {strides = array<i32>} : memref<432x256xf32, #tpu.memory_space<vmem>>, vector<8x256xf32>,
    %c241_i32_169 = arith.constant 241 : i32
    %215 = tpu.dynamic_rotate %183 by %c241_i32_169 dim 1 : vector<8x256xf32>, i32 -> vector<8x256xf32>
    %c6_170 = arith.constant 6 : index
    %c0_171 = arith.constant 0 : index
    %c0_172 = arith.constant 0 : index
    %216 = vector.load %arg4[%c6_170, %c0_171, %c0_172] : memref<9x1x256xf32, #tpu.memory_space<vmem>>, vector<1x1x256xf32>
    %217 = vector.shape_cast %216 : vector<1x1x256xf32> to vector<1x256xf32>
    %218 = vector.broadcast %217 : vector<1x256xf32> to vector<8x256xf32>
    %219 = arith.mulf %215, %218 : vector<8x256xf32>
    %c320 = arith.constant 320 : index
    %c0_173 = arith.constant 0 : index
    %220 = vector.load %arg6[%c320, %c0_173] : memref<432x256xf32, #tpu.memory_space<vmem>>, vector<8x256xf32>
    tpu.vector_store %arg6[%c320, %c0_173], %219 {strides = array<i32>} : memref<432x256xf32, #tpu.memory_space<vmem>>, vector<8x256xf32>,
    %c240_i32_174 = arith.constant 240 : i32
    %221 = tpu.dynamic_rotate %183 by %c240_i32_174 dim 1 : vector<8x256xf32>, i32 -> vector<8x256xf32>
    %c7_175 = arith.constant 7 : index
    %c0_176 = arith.constant 0 : index
    %c0_177 = arith.constant 0 : index
    %222 = vector.load %arg4[%c7_175, %c0_176, %c0_177] : memref<9x1x256xf32, #tpu.memory_space<vmem>>, vector<1x1x256xf32>
    %223 = vector.shape_cast %222 : vector<1x1x256xf32> to vector<1x256xf32>
    %224 = vector.broadcast %223 : vector<1x256xf32> to vector<8x256xf32>
    %225 = arith.mulf %221, %224 : vector<8x256xf32>
    %c368 = arith.constant 368 : index
    %c0_178 = arith.constant 0 : index
    %226 = vector.load %arg6[%c368, %c0_178] : memref<432x256xf32, #tpu.memory_space<vmem>>, vector<8x256xf32>
    tpu.vector_store %arg6[%c368, %c0_178], %225 {strides = array<i32>} : memref<432x256xf32, #tpu.memory_space<vmem>>, vector<8x256xf32>,
    %c239_i32_179 = arith.constant 239 : i32
    %227 = tpu.dynamic_rotate %183 by %c239_i32_179 dim 1 : vector<8x256xf32>, i32 -> vector<8x256xf32>
    %c8_180 = arith.constant 8 : index
    %c0_181 = arith.constant 0 : index
    %c0_182 = arith.constant 0 : index
    %228 = vector.load %arg4[%c8_180, %c0_181, %c0_182] : memref<9x1x256xf32, #tpu.memory_space<vmem>>, vector<1x1x256xf32>
    %229 = vector.shape_cast %228 : vector<1x1x256xf32> to vector<1x256xf32>
    %230 = vector.broadcast %229 : vector<1x256xf32> to vector<8x256xf32>
    %231 = arith.mulf %227, %230 : vector<8x256xf32>
    %c416 = arith.constant 416 : index
    %c0_183 = arith.constant 0 : index
    %232 = vector.load %arg6[%c416, %c0_183] : memref<432x256xf32, #tpu.memory_space<vmem>>, vector<8x256xf32>
    tpu.vector_store %arg6[%c416, %c0_183], %231 {strides = array<i32>} : memref<432x256xf32, #tpu.memory_space<vmem>>, vector<8x256xf32>,
    %c3_184 = arith.constant 3 : index
    %c0_185 = arith.constant 0 : index
    %c0_186 = arith.constant 0 : index
    %233 = vector.load %arg2[%c3_184, %c0_185, %c0_186] : memref<15x16x432xf32, #tpu.memory_space<vmem>>, vector<1x8x432xf32>
    %234 = vector.shape_cast %233 : vector<1x8x432xf32> to vector<8x432xf32>
    %c0_187 = arith.constant 0 : index
    %c0_188 = arith.constant 0 : index
    %235 = vector.load %arg6[%c0_187, %c0_188] : memref<432x256xf32, #tpu.memory_space<vmem>>, vector<432x256xf32>
    %cst_189 = arith.constant dense<0.000000e+00> : vector<8x256xf32>
    %236 = tpu.matmul %234, %235, %cst_189 {dimension_numbers = #tpu.dot_dimension_numbers<[1], [0], [0], [1], [0, 0, 1, 1], [], []>} : vector<8x432xf32>, vector<432x256xf32>, vector<8x256xf32> -> vector<8x256xf32>
    %c3_190 = arith.constant 3 : index
    %c0_191 = arith.constant 0 : index
    %c0_192 = arith.constant 0 : index
    %237 = vector.load %arg3[%c3_190, %c0_191, %c0_192] : memref<15x16x1xf32, #tpu.memory_space<vmem>>, vector<1x8x1xf32>
    %238 = vector.shape_cast %237 : vector<1x8x1xf32> to vector<8x1xf32>
    %239 = vector.broadcast %238 : vector<8x1xf32> to vector<8x256xf32>
    %240 = arith.addf %236, %239 : vector<8x256xf32>
    %cst_193 = arith.constant 2.000000e-01 : f32
    %241 = vector.broadcast %cst_193 : f32 to vector<8x256xf32>
    %242 = arith.mulf %240, %241 : vector<8x256xf32>
    %243 = arith.maximumf %240, %242 : vector<8x256xf32>
    %c17_i32_194 = arith.constant 17 : i32
    %244 = tpu.dynamic_rotate %243 by %c17_i32_194 dim 1 : vector<8x256xf32>, i32 -> vector<8x256xf32>
    %c0_195 = arith.constant 0 : index
    %c0_196 = arith.constant 0 : index
    %c0_197 = arith.constant 0 : index
    %245 = vector.load %arg4[%c0_195, %c0_196, %c0_197] : memref<9x1x256xf32, #tpu.memory_space<vmem>>, vector<1x1x256xf32>
    %246 = vector.shape_cast %245 : vector<1x1x256xf32> to vector<1x256xf32>
    %247 = vector.broadcast %246 : vector<1x256xf32> to vector<8x256xf32>
    %248 = arith.mulf %244, %247 : vector<8x256xf32>
    %c40 = arith.constant 40 : index
    %c0_198 = arith.constant 0 : index
    %249 = vector.load %arg6[%c40, %c0_198] : memref<432x256xf32, #tpu.memory_space<vmem>>, vector<8x256xf32>
    tpu.vector_store %arg6[%c40, %c0_198], %248 {strides = array<i32>} : memref<432x256xf32, #tpu.memory_space<vmem>>, vector<8x256xf32>,
    %c16_i32_199 = arith.constant 16 : i32
    %250 = tpu.dynamic_rotate %243 by %c16_i32_199 dim 1 : vector<8x256xf32>, i32 -> vector<8x256xf32>
    %c1_200 = arith.constant 1 : index
    %c0_201 = arith.constant 0 : index
    %c0_202 = arith.constant 0 : index
    %251 = vector.load %arg4[%c1_200, %c0_201, %c0_202] : memref<9x1x256xf32, #tpu.memory_space<vmem>>, vector<1x1x256xf32>
    %252 = vector.shape_cast %251 : vector<1x1x256xf32> to vector<1x256xf32>
    %253 = vector.broadcast %252 : vector<1x256xf32> to vector<8x256xf32>
    %254 = arith.mulf %250, %253 : vector<8x256xf32>
    %c88 = arith.constant 88 : index
    %c0_203 = arith.constant 0 : index
    %255 = vector.load %arg6[%c88, %c0_203] : memref<432x256xf32, #tpu.memory_space<vmem>>, vector<8x256xf32>
    tpu.vector_store %arg6[%c88, %c0_203], %254 {strides = array<i32>} : memref<432x256xf32, #tpu.memory_space<vmem>>, vector<8x256xf32>,
    %c15_i32_204 = arith.constant 15 : i32
    %256 = tpu.dynamic_rotate %243 by %c15_i32_204 dim 1 : vector<8x256xf32>, i32 -> vector<8x256xf32>
    %c2_205 = arith.constant 2 : index
    %c0_206 = arith.constant 0 : index
    %c0_207 = arith.constant 0 : index
    %257 = vector.load %arg4[%c2_205, %c0_206, %c0_207] : memref<9x1x256xf32, #tpu.memory_space<vmem>>, vector<1x1x256xf32>
    %258 = vector.shape_cast %257 : vector<1x1x256xf32> to vector<1x256xf32>
    %259 = vector.broadcast %258 : vector<1x256xf32> to vector<8x256xf32>
    %260 = arith.mulf %256, %259 : vector<8x256xf32>
    %c136 = arith.constant 136 : index
    %c0_208 = arith.constant 0 : index
    %261 = vector.load %arg6[%c136, %c0_208] : memref<432x256xf32, #tpu.memory_space<vmem>>, vector<8x256xf32>
    tpu.vector_store %arg6[%c136, %c0_208], %260 {strides = array<i32>} : memref<432x256xf32, #tpu.memory_space<vmem>>, vector<8x256xf32>,
    %c1_i32_209 = arith.constant 1 : i32
    %262 = tpu.dynamic_rotate %243 by %c1_i32_209 dim 1 : vector<8x256xf32>, i32 -> vector<8x256xf32>
    %c3_210 = arith.constant 3 : index
    %c0_211 = arith.constant 0 : index
    %c0_212 = arith.constant 0 : index
    %263 = vector.load %arg4[%c3_210, %c0_211, %c0_212] : memref<9x1x256xf32, #tpu.memory_space<vmem>>, vector<1x1x256xf32>
    %264 = vector.shape_cast %263 : vector<1x1x256xf32> to vector<1x256xf32>
    %265 = vector.broadcast %264 : vector<1x256xf32> to vector<8x256xf32>
    %266 = arith.mulf %262, %265 : vector<8x256xf32>
    %c184 = arith.constant 184 : index
    %c0_213 = arith.constant 0 : index
    %267 = vector.load %arg6[%c184, %c0_213] : memref<432x256xf32, #tpu.memory_space<vmem>>, vector<8x256xf32>
    tpu.vector_store %arg6[%c184, %c0_213], %266 {strides = array<i32>} : memref<432x256xf32, #tpu.memory_space<vmem>>, vector<8x256xf32>,
    %c232 = arith.constant 232 : index
    %c0_214 = arith.constant 0 : index
    %268 = vector.load %arg6[%c232, %c0_214] : memref<432x256xf32, #tpu.memory_space<vmem>>, vector<8x256xf32>
    tpu.vector_store %arg6[%c232, %c0_214], %243 {strides = array<i32>} : memref<432x256xf32, #tpu.memory_space<vmem>>, vector<8x256xf32>,
    %c255_i32_215 = arith.constant 255 : i32
    %269 = tpu.dynamic_rotate %243 by %c255_i32_215 dim 1 : vector<8x256xf32>, i32 -> vector<8x256xf32>
    %c5_216 = arith.constant 5 : index
    %c0_217 = arith.constant 0 : index
    %c0_218 = arith.constant 0 : index
    %270 = vector.load %arg4[%c5_216, %c0_217, %c0_218] : memref<9x1x256xf32, #tpu.memory_space<vmem>>, vector<1x1x256xf32>
    %271 = vector.shape_cast %270 : vector<1x1x256xf32> to vector<1x256xf32>
    %272 = vector.broadcast %271 : vector<1x256xf32> to vector<8x256xf32>
    %273 = arith.mulf %269, %272 : vector<8x256xf32>
    %c280 = arith.constant 280 : index
    %c0_219 = arith.constant 0 : index
    %274 = vector.load %arg6[%c280, %c0_219] : memref<432x256xf32, #tpu.memory_space<vmem>>, vector<8x256xf32>
    tpu.vector_store %arg6[%c280, %c0_219], %273 {strides = array<i32>} : memref<432x256xf32, #tpu.memory_space<vmem>>, vector<8x256xf32>,
    %c241_i32_220 = arith.constant 241 : i32
    %275 = tpu.dynamic_rotate %243 by %c241_i32_220 dim 1 : vector<8x256xf32>, i32 -> vector<8x256xf32>
    %c6_221 = arith.constant 6 : index
    %c0_222 = arith.constant 0 : index
    %c0_223 = arith.constant 0 : index
    %276 = vector.load %arg4[%c6_221, %c0_222, %c0_223] : memref<9x1x256xf32, #tpu.memory_space<vmem>>, vector<1x1x256xf32>
    %277 = vector.shape_cast %276 : vector<1x1x256xf32> to vector<1x256xf32>
    %278 = vector.broadcast %277 : vector<1x256xf32> to vector<8x256xf32>
    %279 = arith.mulf %275, %278 : vector<8x256xf32>
    %c328 = arith.constant 328 : index
    %c0_224 = arith.constant 0 : index
    %280 = vector.load %arg6[%c328, %c0_224] : memref<432x256xf32, #tpu.memory_space<vmem>>, vector<8x256xf32>
    tpu.vector_store %arg6[%c328, %c0_224], %279 {strides = array<i32>} : memref<432x256xf32, #tpu.memory_space<vmem>>, vector<8x256xf32>,
    %c240_i32_225 = arith.constant 240 : i32
    %281 = tpu.dynamic_rotate %243 by %c240_i32_225 dim 1 : vector<8x256xf32>, i32 -> vector<8x256xf32>
    %c7_226 = arith.constant 7 : index
    %c0_227 = arith.constant 0 : index
    %c0_228 = arith.constant 0 : index
    %282 = vector.load %arg4[%c7_226, %c0_227, %c0_228] : memref<9x1x256xf32, #tpu.memory_space<vmem>>, vector<1x1x256xf32>
    %283 = vector.shape_cast %282 : vector<1x1x256xf32> to vector<1x256xf32>
    %284 = vector.broadcast %283 : vector<1x256xf32> to vector<8x256xf32>
    %285 = arith.mulf %281, %284 : vector<8x256xf32>
    %c376 = arith.constant 376 : index
    %c0_229 = arith.constant 0 : index
    %286 = vector.load %arg6[%c376, %c0_229] : memref<432x256xf32, #tpu.memory_space<vmem>>, vector<8x256xf32>
    tpu.vector_store %arg6[%c376, %c0_229], %285 {strides = array<i32>} : memref<432x256xf32, #tpu.memory_space<vmem>>, vector<8x256xf32>,
    %c239_i32_230 = arith.constant 239 : i32
    %287 = tpu.dynamic_rotate %243 by %c239_i32_230 dim 1 : vector<8x256xf32>, i32 -> vector<8x256xf32>
    %c8_231 = arith.constant 8 : index
    %c0_232 = arith.constant 0 : index
    %c0_233 = arith.constant 0 : index
    %288 = vector.load %arg4[%c8_231, %c0_232, %c0_233] : memref<9x1x256xf32, #tpu.memory_space<vmem>>, vector<1x1x256xf32>
    %289 = vector.shape_cast %288 : vector<1x1x256xf32> to vector<1x256xf32>
    %290 = vector.broadcast %289 : vector<1x256xf32> to vector<8x256xf32>
    %291 = arith.mulf %287, %290 : vector<8x256xf32>
    %c424 = arith.constant 424 : index
    %c0_234 = arith.constant 0 : index
    %292 = vector.load %arg6[%c424, %c0_234] : memref<432x256xf32, #tpu.memory_space<vmem>>, vector<8x256xf32>
    tpu.vector_store %arg6[%c424, %c0_234], %291 {strides = array<i32>} : memref<432x256xf32, #tpu.memory_space<vmem>>, vector<8x256xf32>,
    %c4 = arith.constant 4 : index
    %c0_235 = arith.constant 0 : index
    %c0_236 = arith.constant 0 : index
    %293 = vector.load %arg2[%c4, %c0_235, %c0_236] : memref<15x16x432xf32, #tpu.memory_space<vmem>>, vector<1x16x432xf32>
    %294 = vector.shape_cast %293 : vector<1x16x432xf32> to vector<16x432xf32>
    %c0_237 = arith.constant 0 : index
    %c0_238 = arith.constant 0 : index
    %295 = vector.load %arg6[%c0_237, %c0_238] : memref<432x256xf32, #tpu.memory_space<vmem>>, vector<432x256xf32>
    %cst_239 = arith.constant dense<0.000000e+00> : vector<16x256xf32>
    %296 = tpu.matmul %294, %295, %cst_239 {dimension_numbers = #tpu.dot_dimension_numbers<[1], [0], [0], [1], [0, 0, 1, 1], [], []>} : vector<16x432xf32>, vector<432x256xf32>, vector<16x256xf32> -> vector<16x256xf32>
    %c4_240 = arith.constant 4 : index
    %c0_241 = arith.constant 0 : index
    %c0_242 = arith.constant 0 : index
    %297 = vector.load %arg3[%c4_240, %c0_241, %c0_242] : memref<15x16x1xf32, #tpu.memory_space<vmem>>, vector<1x16x1xf32>
    %298 = vector.shape_cast %297 : vector<1x16x1xf32> to vector<16x1xf32>
    %299 = vector.broadcast %298 : vector<16x1xf32> to vector<16x256xf32>
    %300 = arith.addf %296, %299 : vector<16x256xf32>
    %cst_243 = arith.constant 2.000000e-01 : f32
    %301 = vector.broadcast %cst_243 : f32 to vector<16x256xf32>
    %302 = arith.mulf %300, %301 : vector<16x256xf32>
    %303 = arith.addf %302, %3 : vector<16x256xf32>
    %c17_i32_244 = arith.constant 17 : i32
    %304 = tpu.dynamic_rotate %303 by %c17_i32_244 dim 1 : vector<16x256xf32>, i32 -> vector<16x256xf32>
    %c0_245 = arith.constant 0 : index
    %c0_246 = arith.constant 0 : index
    %c0_247 = arith.constant 0 : index
    %305 = vector.load %arg4[%c0_245, %c0_246, %c0_247] : memref<9x1x256xf32, #tpu.memory_space<vmem>>, vector<1x1x256xf32>
    %306 = vector.shape_cast %305 : vector<1x1x256xf32> to vector<1x256xf32>
    %307 = vector.broadcast %306 : vector<1x256xf32> to vector<16x256xf32>
    %308 = arith.mulf %304, %307 : vector<16x256xf32>
    %c0_248 = arith.constant 0 : index
    %c0_249 = arith.constant 0 : index
    %309 = vector.load %arg6[%c0_248, %c0_249] : memref<432x256xf32, #tpu.memory_space<vmem>>, vector<16x256xf32>
    tpu.vector_store %arg6[%c0_248, %c0_249], %308 {strides = array<i32>} : memref<432x256xf32, #tpu.memory_space<vmem>>, vector<16x256xf32>,
    %c16_i32_250 = arith.constant 16 : i32
    %310 = tpu.dynamic_rotate %303 by %c16_i32_250 dim 1 : vector<16x256xf32>, i32 -> vector<16x256xf32>
    %c1_251 = arith.constant 1 : index
    %c0_252 = arith.constant 0 : index
    %c0_253 = arith.constant 0 : index
    %311 = vector.load %arg4[%c1_251, %c0_252, %c0_253] : memref<9x1x256xf32, #tpu.memory_space<vmem>>, vector<1x1x256xf32>
    %312 = vector.shape_cast %311 : vector<1x1x256xf32> to vector<1x256xf32>
    %313 = vector.broadcast %312 : vector<1x256xf32> to vector<16x256xf32>
    %314 = arith.mulf %310, %313 : vector<16x256xf32>
    %c48_254 = arith.constant 48 : index
    %c0_255 = arith.constant 0 : index
    %315 = vector.load %arg6[%c48_254, %c0_255] : memref<432x256xf32, #tpu.memory_space<vmem>>, vector<16x256xf32>
    tpu.vector_store %arg6[%c48_254, %c0_255], %314 {strides = array<i32>} : memref<432x256xf32, #tpu.memory_space<vmem>>, vector<16x256xf32>,
    %c15_i32_256 = arith.constant 15 : i32
    %316 = tpu.dynamic_rotate %303 by %c15_i32_256 dim 1 : vector<16x256xf32>, i32 -> vector<16x256xf32>
    %c2_257 = arith.constant 2 : index
    %c0_258 = arith.constant 0 : index
    %c0_259 = arith.constant 0 : index
    %317 = vector.load %arg4[%c2_257, %c0_258, %c0_259] : memref<9x1x256xf32, #tpu.memory_space<vmem>>, vector<1x1x256xf32>
    %318 = vector.shape_cast %317 : vector<1x1x256xf32> to vector<1x256xf32>
    %319 = vector.broadcast %318 : vector<1x256xf32> to vector<16x256xf32>
    %320 = arith.mulf %316, %319 : vector<16x256xf32>
    %c96_260 = arith.constant 96 : index
    %c0_261 = arith.constant 0 : index
    %321 = vector.load %arg6[%c96_260, %c0_261] : memref<432x256xf32, #tpu.memory_space<vmem>>, vector<16x256xf32>
    tpu.vector_store %arg6[%c96_260, %c0_261], %320 {strides = array<i32>} : memref<432x256xf32, #tpu.memory_space<vmem>>, vector<16x256xf32>,
    %c1_i32_262 = arith.constant 1 : i32
    %322 = tpu.dynamic_rotate %303 by %c1_i32_262 dim 1 : vector<16x256xf32>, i32 -> vector<16x256xf32>
    %c3_263 = arith.constant 3 : index
    %c0_264 = arith.constant 0 : index
    %c0_265 = arith.constant 0 : index
    %323 = vector.load %arg4[%c3_263, %c0_264, %c0_265] : memref<9x1x256xf32, #tpu.memory_space<vmem>>, vector<1x1x256xf32>
    %324 = vector.shape_cast %323 : vector<1x1x256xf32> to vector<1x256xf32>
    %325 = vector.broadcast %324 : vector<1x256xf32> to vector<16x256xf32>
    %326 = arith.mulf %322, %325 : vector<16x256xf32>
    %c144_266 = arith.constant 144 : index
    %c0_267 = arith.constant 0 : index
    %327 = vector.load %arg6[%c144_266, %c0_267] : memref<432x256xf32, #tpu.memory_space<vmem>>, vector<16x256xf32>
    tpu.vector_store %arg6[%c144_266, %c0_267], %326 {strides = array<i32>} : memref<432x256xf32, #tpu.memory_space<vmem>>, vector<16x256xf32>,
    %c192_268 = arith.constant 192 : index
    %c0_269 = arith.constant 0 : index
    %328 = vector.load %arg6[%c192_268, %c0_269] : memref<432x256xf32, #tpu.memory_space<vmem>>, vector<16x256xf32>
    tpu.vector_store %arg6[%c192_268, %c0_269], %303 {strides = array<i32>} : memref<432x256xf32, #tpu.memory_space<vmem>>, vector<16x256xf32>,
    %c255_i32_270 = arith.constant 255 : i32
    %329 = tpu.dynamic_rotate %303 by %c255_i32_270 dim 1 : vector<16x256xf32>, i32 -> vector<16x256xf32>
    %c5_271 = arith.constant 5 : index
    %c0_272 = arith.constant 0 : index
    %c0_273 = arith.constant 0 : index
    %330 = vector.load %arg4[%c5_271, %c0_272, %c0_273] : memref<9x1x256xf32, #tpu.memory_space<vmem>>, vector<1x1x256xf32>
    %331 = vector.shape_cast %330 : vector<1x1x256xf32> to vector<1x256xf32>
    %332 = vector.broadcast %331 : vector<1x256xf32> to vector<16x256xf32>
    %333 = arith.mulf %329, %332 : vector<16x256xf32>
    %c240_274 = arith.constant 240 : index
    %c0_275 = arith.constant 0 : index
    %334 = vector.load %arg6[%c240_274, %c0_275] : memref<432x256xf32, #tpu.memory_space<vmem>>, vector<16x256xf32>
    tpu.vector_store %arg6[%c240_274, %c0_275], %333 {strides = array<i32>} : memref<432x256xf32, #tpu.memory_space<vmem>>, vector<16x256xf32>,
    %c241_i32_276 = arith.constant 241 : i32
    %335 = tpu.dynamic_rotate %303 by %c241_i32_276 dim 1 : vector<16x256xf32>, i32 -> vector<16x256xf32>
    %c6_277 = arith.constant 6 : index
    %c0_278 = arith.constant 0 : index
    %c0_279 = arith.constant 0 : index
    %336 = vector.load %arg4[%c6_277, %c0_278, %c0_279] : memref<9x1x256xf32, #tpu.memory_space<vmem>>, vector<1x1x256xf32>
    %337 = vector.shape_cast %336 : vector<1x1x256xf32> to vector<1x256xf32>
    %338 = vector.broadcast %337 : vector<1x256xf32> to vector<16x256xf32>
    %339 = arith.mulf %335, %338 : vector<16x256xf32>
    %c288_280 = arith.constant 288 : index
    %c0_281 = arith.constant 0 : index
    %340 = vector.load %arg6[%c288_280, %c0_281] : memref<432x256xf32, #tpu.memory_space<vmem>>, vector<16x256xf32>
    tpu.vector_store %arg6[%c288_280, %c0_281], %339 {strides = array<i32>} : memref<432x256xf32, #tpu.memory_space<vmem>>, vector<16x256xf32>,
    %c240_i32_282 = arith.constant 240 : i32
    %341 = tpu.dynamic_rotate %303 by %c240_i32_282 dim 1 : vector<16x256xf32>, i32 -> vector<16x256xf32>
    %c7_283 = arith.constant 7 : index
    %c0_284 = arith.constant 0 : index
    %c0_285 = arith.constant 0 : index
    %342 = vector.load %arg4[%c7_283, %c0_284, %c0_285] : memref<9x1x256xf32, #tpu.memory_space<vmem>>, vector<1x1x256xf32>
    %343 = vector.shape_cast %342 : vector<1x1x256xf32> to vector<1x256xf32>
    %344 = vector.broadcast %343 : vector<1x256xf32> to vector<16x256xf32>
    %345 = arith.mulf %341, %344 : vector<16x256xf32>
    %c336_286 = arith.constant 336 : index
    %c0_287 = arith.constant 0 : index
    %346 = vector.load %arg6[%c336_286, %c0_287] : memref<432x256xf32, #tpu.memory_space<vmem>>, vector<16x256xf32>
    tpu.vector_store %arg6[%c336_286, %c0_287], %345 {strides = array<i32>} : memref<432x256xf32, #tpu.memory_space<vmem>>, vector<16x256xf32>,
    %c239_i32_288 = arith.constant 239 : i32
    %347 = tpu.dynamic_rotate %303 by %c239_i32_288 dim 1 : vector<16x256xf32>, i32 -> vector<16x256xf32>
    %c8_289 = arith.constant 8 : index
    %c0_290 = arith.constant 0 : index
    %c0_291 = arith.constant 0 : index
    %348 = vector.load %arg4[%c8_289, %c0_290, %c0_291] : memref<9x1x256xf32, #tpu.memory_space<vmem>>, vector<1x1x256xf32>
    %349 = vector.shape_cast %348 : vector<1x1x256xf32> to vector<1x256xf32>
    %350 = vector.broadcast %349 : vector<1x256xf32> to vector<16x256xf32>
    %351 = arith.mulf %347, %350 : vector<16x256xf32>
    %c384_292 = arith.constant 384 : index
    %c0_293 = arith.constant 0 : index
    %352 = vector.load %arg6[%c384_292, %c0_293] : memref<432x256xf32, #tpu.memory_space<vmem>>, vector<16x256xf32>
    tpu.vector_store %arg6[%c384_292, %c0_293], %351 {strides = array<i32>} : memref<432x256xf32, #tpu.memory_space<vmem>>, vector<16x256xf32>,
    %c5_294 = arith.constant 5 : index
    %c0_295 = arith.constant 0 : index
    %c0_296 = arith.constant 0 : index
    %353 = vector.load %arg2[%c5_294, %c0_295, %c0_296] : memref<15x16x432xf32, #tpu.memory_space<vmem>>, vector<1x8x432xf32>
    %354 = vector.shape_cast %353 : vector<1x8x432xf32> to vector<8x432xf32>
    %c0_297 = arith.constant 0 : index
    %c0_298 = arith.constant 0 : index
    %355 = vector.load %arg6[%c0_297, %c0_298] : memref<432x256xf32, #tpu.memory_space<vmem>>, vector<432x256xf32>
    %cst_299 = arith.constant dense<0.000000e+00> : vector<8x256xf32>
    %356 = tpu.matmul %354, %355, %cst_299 {dimension_numbers = #tpu.dot_dimension_numbers<[1], [0], [0], [1], [0, 0, 1, 1], [], []>} : vector<8x432xf32>, vector<432x256xf32>, vector<8x256xf32> -> vector<8x256xf32>
    %c5_300 = arith.constant 5 : index
    %c0_301 = arith.constant 0 : index
    %c0_302 = arith.constant 0 : index
    %357 = vector.load %arg3[%c5_300, %c0_301, %c0_302] : memref<15x16x1xf32, #tpu.memory_space<vmem>>, vector<1x8x1xf32>
    %358 = vector.shape_cast %357 : vector<1x8x1xf32> to vector<8x1xf32>
    %359 = vector.broadcast %358 : vector<8x1xf32> to vector<8x256xf32>
    %360 = arith.addf %356, %359 : vector<8x256xf32>
    %cst_303 = arith.constant 2.000000e-01 : f32
    %361 = vector.broadcast %cst_303 : f32 to vector<8x256xf32>
    %362 = arith.mulf %360, %361 : vector<8x256xf32>
    %363 = arith.maximumf %360, %362 : vector<8x256xf32>
    %c17_i32_304 = arith.constant 17 : i32
    %364 = tpu.dynamic_rotate %363 by %c17_i32_304 dim 1 : vector<8x256xf32>, i32 -> vector<8x256xf32>
    %c0_305 = arith.constant 0 : index
    %c0_306 = arith.constant 0 : index
    %c0_307 = arith.constant 0 : index
    %365 = vector.load %arg4[%c0_305, %c0_306, %c0_307] : memref<9x1x256xf32, #tpu.memory_space<vmem>>, vector<1x1x256xf32>
    %366 = vector.shape_cast %365 : vector<1x1x256xf32> to vector<1x256xf32>
    %367 = vector.broadcast %366 : vector<1x256xf32> to vector<8x256xf32>
    %368 = arith.mulf %364, %367 : vector<8x256xf32>
    %c16_308 = arith.constant 16 : index
    %c0_309 = arith.constant 0 : index
    %369 = vector.load %arg6[%c16_308, %c0_309] : memref<432x256xf32, #tpu.memory_space<vmem>>, vector<8x256xf32>
    tpu.vector_store %arg6[%c16_308, %c0_309], %368 {strides = array<i32>} : memref<432x256xf32, #tpu.memory_space<vmem>>, vector<8x256xf32>,
    %c16_i32_310 = arith.constant 16 : i32
    %370 = tpu.dynamic_rotate %363 by %c16_i32_310 dim 1 : vector<8x256xf32>, i32 -> vector<8x256xf32>
    %c1_311 = arith.constant 1 : index
    %c0_312 = arith.constant 0 : index
    %c0_313 = arith.constant 0 : index
    %371 = vector.load %arg4[%c1_311, %c0_312, %c0_313] : memref<9x1x256xf32, #tpu.memory_space<vmem>>, vector<1x1x256xf32>
    %372 = vector.shape_cast %371 : vector<1x1x256xf32> to vector<1x256xf32>
    %373 = vector.broadcast %372 : vector<1x256xf32> to vector<8x256xf32>
    %374 = arith.mulf %370, %373 : vector<8x256xf32>
    %c64_314 = arith.constant 64 : index
    %c0_315 = arith.constant 0 : index
    %375 = vector.load %arg6[%c64_314, %c0_315] : memref<432x256xf32, #tpu.memory_space<vmem>>, vector<8x256xf32>
    tpu.vector_store %arg6[%c64_314, %c0_315], %374 {strides = array<i32>} : memref<432x256xf32, #tpu.memory_space<vmem>>, vector<8x256xf32>,
    %c15_i32_316 = arith.constant 15 : i32
    %376 = tpu.dynamic_rotate %363 by %c15_i32_316 dim 1 : vector<8x256xf32>, i32 -> vector<8x256xf32>
    %c2_317 = arith.constant 2 : index
    %c0_318 = arith.constant 0 : index
    %c0_319 = arith.constant 0 : index
    %377 = vector.load %arg4[%c2_317, %c0_318, %c0_319] : memref<9x1x256xf32, #tpu.memory_space<vmem>>, vector<1x1x256xf32>
    %378 = vector.shape_cast %377 : vector<1x1x256xf32> to vector<1x256xf32>
    %379 = vector.broadcast %378 : vector<1x256xf32> to vector<8x256xf32>
    %380 = arith.mulf %376, %379 : vector<8x256xf32>
    %c112_320 = arith.constant 112 : index
    %c0_321 = arith.constant 0 : index
    %381 = vector.load %arg6[%c112_320, %c0_321] : memref<432x256xf32, #tpu.memory_space<vmem>>, vector<8x256xf32>
    tpu.vector_store %arg6[%c112_320, %c0_321], %380 {strides = array<i32>} : memref<432x256xf32, #tpu.memory_space<vmem>>, vector<8x256xf32>,
    %c1_i32_322 = arith.constant 1 : i32
    %382 = tpu.dynamic_rotate %363 by %c1_i32_322 dim 1 : vector<8x256xf32>, i32 -> vector<8x256xf32>
    %c3_323 = arith.constant 3 : index
    %c0_324 = arith.constant 0 : index
    %c0_325 = arith.constant 0 : index
    %383 = vector.load %arg4[%c3_323, %c0_324, %c0_325] : memref<9x1x256xf32, #tpu.memory_space<vmem>>, vector<1x1x256xf32>
    %384 = vector.shape_cast %383 : vector<1x1x256xf32> to vector<1x256xf32>
    %385 = vector.broadcast %384 : vector<1x256xf32> to vector<8x256xf32>
    %386 = arith.mulf %382, %385 : vector<8x256xf32>
    %c160_326 = arith.constant 160 : index
    %c0_327 = arith.constant 0 : index
    %387 = vector.load %arg6[%c160_326, %c0_327] : memref<432x256xf32, #tpu.memory_space<vmem>>, vector<8x256xf32>
    tpu.vector_store %arg6[%c160_326, %c0_327], %386 {strides = array<i32>} : memref<432x256xf32, #tpu.memory_space<vmem>>, vector<8x256xf32>,
    %c208_328 = arith.constant 208 : index
    %c0_329 = arith.constant 0 : index
    %388 = vector.load %arg6[%c208_328, %c0_329] : memref<432x256xf32, #tpu.memory_space<vmem>>, vector<8x256xf32>
    tpu.vector_store %arg6[%c208_328, %c0_329], %363 {strides = array<i32>} : memref<432x256xf32, #tpu.memory_space<vmem>>, vector<8x256xf32>,
    %c255_i32_330 = arith.constant 255 : i32
    %389 = tpu.dynamic_rotate %363 by %c255_i32_330 dim 1 : vector<8x256xf32>, i32 -> vector<8x256xf32>
    %c5_331 = arith.constant 5 : index
    %c0_332 = arith.constant 0 : index
    %c0_333 = arith.constant 0 : index
    %390 = vector.load %arg4[%c5_331, %c0_332, %c0_333] : memref<9x1x256xf32, #tpu.memory_space<vmem>>, vector<1x1x256xf32>
    %391 = vector.shape_cast %390 : vector<1x1x256xf32> to vector<1x256xf32>
    %392 = vector.broadcast %391 : vector<1x256xf32> to vector<8x256xf32>
    %393 = arith.mulf %389, %392 : vector<8x256xf32>
    %c256_334 = arith.constant 256 : index
    %c0_335 = arith.constant 0 : index
    %394 = vector.load %arg6[%c256_334, %c0_335] : memref<432x256xf32, #tpu.memory_space<vmem>>, vector<8x256xf32>
    tpu.vector_store %arg6[%c256_334, %c0_335], %393 {strides = array<i32>} : memref<432x256xf32, #tpu.memory_space<vmem>>, vector<8x256xf32>,
    %c241_i32_336 = arith.constant 241 : i32
    %395 = tpu.dynamic_rotate %363 by %c241_i32_336 dim 1 : vector<8x256xf32>, i32 -> vector<8x256xf32>
    %c6_337 = arith.constant 6 : index
    %c0_338 = arith.constant 0 : index
    %c0_339 = arith.constant 0 : index
    %396 = vector.load %arg4[%c6_337, %c0_338, %c0_339] : memref<9x1x256xf32, #tpu.memory_space<vmem>>, vector<1x1x256xf32>
    %397 = vector.shape_cast %396 : vector<1x1x256xf32> to vector<1x256xf32>
    %398 = vector.broadcast %397 : vector<1x256xf32> to vector<8x256xf32>
    %399 = arith.mulf %395, %398 : vector<8x256xf32>
    %c304_340 = arith.constant 304 : index
    %c0_341 = arith.constant 0 : index
    %400 = vector.load %arg6[%c304_340, %c0_341] : memref<432x256xf32, #tpu.memory_space<vmem>>, vector<8x256xf32>
    tpu.vector_store %arg6[%c304_340, %c0_341], %399 {strides = array<i32>} : memref<432x256xf32, #tpu.memory_space<vmem>>, vector<8x256xf32>,
    %c240_i32_342 = arith.constant 240 : i32
    %401 = tpu.dynamic_rotate %363 by %c240_i32_342 dim 1 : vector<8x256xf32>, i32 -> vector<8x256xf32>
    %c7_343 = arith.constant 7 : index
    %c0_344 = arith.constant 0 : index
    %c0_345 = arith.constant 0 : index
    %402 = vector.load %arg4[%c7_343, %c0_344, %c0_345] : memref<9x1x256xf32, #tpu.memory_space<vmem>>, vector<1x1x256xf32>
    %403 = vector.shape_cast %402 : vector<1x1x256xf32> to vector<1x256xf32>
    %404 = vector.broadcast %403 : vector<1x256xf32> to vector<8x256xf32>
    %405 = arith.mulf %401, %404 : vector<8x256xf32>
    %c352_346 = arith.constant 352 : index
    %c0_347 = arith.constant 0 : index
    %406 = vector.load %arg6[%c352_346, %c0_347] : memref<432x256xf32, #tpu.memory_space<vmem>>, vector<8x256xf32>
    tpu.vector_store %arg6[%c352_346, %c0_347], %405 {strides = array<i32>} : memref<432x256xf32, #tpu.memory_space<vmem>>, vector<8x256xf32>,
    %c239_i32_348 = arith.constant 239 : i32
    %407 = tpu.dynamic_rotate %363 by %c239_i32_348 dim 1 : vector<8x256xf32>, i32 -> vector<8x256xf32>
    %c8_349 = arith.constant 8 : index
    %c0_350 = arith.constant 0 : index
    %c0_351 = arith.constant 0 : index
    %408 = vector.load %arg4[%c8_349, %c0_350, %c0_351] : memref<9x1x256xf32, #tpu.memory_space<vmem>>, vector<1x1x256xf32>
    %409 = vector.shape_cast %408 : vector<1x1x256xf32> to vector<1x256xf32>
    %410 = vector.broadcast %409 : vector<1x256xf32> to vector<8x256xf32>
    %411 = arith.mulf %407, %410 : vector<8x256xf32>
    %c400_352 = arith.constant 400 : index
    %c0_353 = arith.constant 0 : index
    %412 = vector.load %arg6[%c400_352, %c0_353] : memref<432x256xf32, #tpu.memory_space<vmem>>, vector<8x256xf32>
    tpu.vector_store %arg6[%c400_352, %c0_353], %411 {strides = array<i32>} : memref<432x256xf32, #tpu.memory_space<vmem>>, vector<8x256xf32>,
    %c6_354 = arith.constant 6 : index
    %c0_355 = arith.constant 0 : index
    %c0_356 = arith.constant 0 : index
    %413 = vector.load %arg2[%c6_354, %c0_355, %c0_356] : memref<15x16x432xf32, #tpu.memory_space<vmem>>, vector<1x8x432xf32>
    %414 = vector.shape_cast %413 : vector<1x8x432xf32> to vector<8x432xf32>
    %c0_357 = arith.constant 0 : index
    %c0_358 = arith.constant 0 : index
    %415 = vector.load %arg6[%c0_357, %c0_358] : memref<432x256xf32, #tpu.memory_space<vmem>>, vector<432x256xf32>
    %cst_359 = arith.constant dense<0.000000e+00> : vector<8x256xf32>
    %416 = tpu.matmul %414, %415, %cst_359 {dimension_numbers = #tpu.dot_dimension_numbers<[1], [0], [0], [1], [0, 0, 1, 1], [], []>} : vector<8x432xf32>, vector<432x256xf32>, vector<8x256xf32> -> vector<8x256xf32>
    %c6_360 = arith.constant 6 : index
    %c0_361 = arith.constant 0 : index
    %c0_362 = arith.constant 0 : index
    %417 = vector.load %arg3[%c6_360, %c0_361, %c0_362] : memref<15x16x1xf32, #tpu.memory_space<vmem>>, vector<1x8x1xf32>
    %418 = vector.shape_cast %417 : vector<1x8x1xf32> to vector<8x1xf32>
    %419 = vector.broadcast %418 : vector<8x1xf32> to vector<8x256xf32>
    %420 = arith.addf %416, %419 : vector<8x256xf32>
    %cst_363 = arith.constant 2.000000e-01 : f32
    %421 = vector.broadcast %cst_363 : f32 to vector<8x256xf32>
    %422 = arith.mulf %420, %421 : vector<8x256xf32>
    %423 = arith.maximumf %420, %422 : vector<8x256xf32>
    %c17_i32_364 = arith.constant 17 : i32
    %424 = tpu.dynamic_rotate %423 by %c17_i32_364 dim 1 : vector<8x256xf32>, i32 -> vector<8x256xf32>
    %c0_365 = arith.constant 0 : index
    %c0_366 = arith.constant 0 : index
    %c0_367 = arith.constant 0 : index
    %425 = vector.load %arg4[%c0_365, %c0_366, %c0_367] : memref<9x1x256xf32, #tpu.memory_space<vmem>>, vector<1x1x256xf32>
    %426 = vector.shape_cast %425 : vector<1x1x256xf32> to vector<1x256xf32>
    %427 = vector.broadcast %426 : vector<1x256xf32> to vector<8x256xf32>
    %428 = arith.mulf %424, %427 : vector<8x256xf32>
    %c24_368 = arith.constant 24 : index
    %c0_369 = arith.constant 0 : index
    %429 = vector.load %arg6[%c24_368, %c0_369] : memref<432x256xf32, #tpu.memory_space<vmem>>, vector<8x256xf32>
    tpu.vector_store %arg6[%c24_368, %c0_369], %428 {strides = array<i32>} : memref<432x256xf32, #tpu.memory_space<vmem>>, vector<8x256xf32>,
    %c16_i32_370 = arith.constant 16 : i32
    %430 = tpu.dynamic_rotate %423 by %c16_i32_370 dim 1 : vector<8x256xf32>, i32 -> vector<8x256xf32>
    %c1_371 = arith.constant 1 : index
    %c0_372 = arith.constant 0 : index
    %c0_373 = arith.constant 0 : index
    %431 = vector.load %arg4[%c1_371, %c0_372, %c0_373] : memref<9x1x256xf32, #tpu.memory_space<vmem>>, vector<1x1x256xf32>
    %432 = vector.shape_cast %431 : vector<1x1x256xf32> to vector<1x256xf32>
    %433 = vector.broadcast %432 : vector<1x256xf32> to vector<8x256xf32>
    %434 = arith.mulf %430, %433 : vector<8x256xf32>
    %c72_374 = arith.constant 72 : index
    %c0_375 = arith.constant 0 : index
    %435 = vector.load %arg6[%c72_374, %c0_375] : memref<432x256xf32, #tpu.memory_space<vmem>>, vector<8x256xf32>
    tpu.vector_store %arg6[%c72_374, %c0_375], %434 {strides = array<i32>} : memref<432x256xf32, #tpu.memory_space<vmem>>, vector<8x256xf32>,
    %c15_i32_376 = arith.constant 15 : i32
    %436 = tpu.dynamic_rotate %423 by %c15_i32_376 dim 1 : vector<8x256xf32>, i32 -> vector<8x256xf32>
    %c2_377 = arith.constant 2 : index
    %c0_378 = arith.constant 0 : index
    %c0_379 = arith.constant 0 : index
    %437 = vector.load %arg4[%c2_377, %c0_378, %c0_379] : memref<9x1x256xf32, #tpu.memory_space<vmem>>, vector<1x1x256xf32>
    %438 = vector.shape_cast %437 : vector<1x1x256xf32> to vector<1x256xf32>
    %439 = vector.broadcast %438 : vector<1x256xf32> to vector<8x256xf32>
    %440 = arith.mulf %436, %439 : vector<8x256xf32>
    %c120_380 = arith.constant 120 : index
    %c0_381 = arith.constant 0 : index
    %441 = vector.load %arg6[%c120_380, %c0_381] : memref<432x256xf32, #tpu.memory_space<vmem>>, vector<8x256xf32>
    tpu.vector_store %arg6[%c120_380, %c0_381], %440 {strides = array<i32>} : memref<432x256xf32, #tpu.memory_space<vmem>>, vector<8x256xf32>,
    %c1_i32_382 = arith.constant 1 : i32
    %442 = tpu.dynamic_rotate %423 by %c1_i32_382 dim 1 : vector<8x256xf32>, i32 -> vector<8x256xf32>
    %c3_383 = arith.constant 3 : index
    %c0_384 = arith.constant 0 : index
    %c0_385 = arith.constant 0 : index
    %443 = vector.load %arg4[%c3_383, %c0_384, %c0_385] : memref<9x1x256xf32, #tpu.memory_space<vmem>>, vector<1x1x256xf32>
    %444 = vector.shape_cast %443 : vector<1x1x256xf32> to vector<1x256xf32>
    %445 = vector.broadcast %444 : vector<1x256xf32> to vector<8x256xf32>
    %446 = arith.mulf %442, %445 : vector<8x256xf32>
    %c168_386 = arith.constant 168 : index
    %c0_387 = arith.constant 0 : index
    %447 = vector.load %arg6[%c168_386, %c0_387] : memref<432x256xf32, #tpu.memory_space<vmem>>, vector<8x256xf32>
    tpu.vector_store %arg6[%c168_386, %c0_387], %446 {strides = array<i32>} : memref<432x256xf32, #tpu.memory_space<vmem>>, vector<8x256xf32>,
    %c216_388 = arith.constant 216 : index
    %c0_389 = arith.constant 0 : index
    %448 = vector.load %arg6[%c216_388, %c0_389] : memref<432x256xf32, #tpu.memory_space<vmem>>, vector<8x256xf32>
    tpu.vector_store %arg6[%c216_388, %c0_389], %423 {strides = array<i32>} : memref<432x256xf32, #tpu.memory_space<vmem>>, vector<8x256xf32>,
    %c255_i32_390 = arith.constant 255 : i32
    %449 = tpu.dynamic_rotate %423 by %c255_i32_390 dim 1 : vector<8x256xf32>, i32 -> vector<8x256xf32>
    %c5_391 = arith.constant 5 : index
    %c0_392 = arith.constant 0 : index
    %c0_393 = arith.constant 0 : index
    %450 = vector.load %arg4[%c5_391, %c0_392, %c0_393] : memref<9x1x256xf32, #tpu.memory_space<vmem>>, vector<1x1x256xf32>
    %451 = vector.shape_cast %450 : vector<1x1x256xf32> to vector<1x256xf32>
    %452 = vector.broadcast %451 : vector<1x256xf32> to vector<8x256xf32>
    %453 = arith.mulf %449, %452 : vector<8x256xf32>
    %c264_394 = arith.constant 264 : index
    %c0_395 = arith.constant 0 : index
    %454 = vector.load %arg6[%c264_394, %c0_395] : memref<432x256xf32, #tpu.memory_space<vmem>>, vector<8x256xf32>
    tpu.vector_store %arg6[%c264_394, %c0_395], %453 {strides = array<i32>} : memref<432x256xf32, #tpu.memory_space<vmem>>, vector<8x256xf32>,
    %c241_i32_396 = arith.constant 241 : i32
    %455 = tpu.dynamic_rotate %423 by %c241_i32_396 dim 1 : vector<8x256xf32>, i32 -> vector<8x256xf32>
    %c6_397 = arith.constant 6 : index
    %c0_398 = arith.constant 0 : index
    %c0_399 = arith.constant 0 : index
    %456 = vector.load %arg4[%c6_397, %c0_398, %c0_399] : memref<9x1x256xf32, #tpu.memory_space<vmem>>, vector<1x1x256xf32>
    %457 = vector.shape_cast %456 : vector<1x1x256xf32> to vector<1x256xf32>
    %458 = vector.broadcast %457 : vector<1x256xf32> to vector<8x256xf32>
    %459 = arith.mulf %455, %458 : vector<8x256xf32>
    %c312_400 = arith.constant 312 : index
    %c0_401 = arith.constant 0 : index
    %460 = vector.load %arg6[%c312_400, %c0_401] : memref<432x256xf32, #tpu.memory_space<vmem>>, vector<8x256xf32>
    tpu.vector_store %arg6[%c312_400, %c0_401], %459 {strides = array<i32>} : memref<432x256xf32, #tpu.memory_space<vmem>>, vector<8x256xf32>,
    %c240_i32_402 = arith.constant 240 : i32
    %461 = tpu.dynamic_rotate %423 by %c240_i32_402 dim 1 : vector<8x256xf32>, i32 -> vector<8x256xf32>
    %c7_403 = arith.constant 7 : index
    %c0_404 = arith.constant 0 : index
    %c0_405 = arith.constant 0 : index
    %462 = vector.load %arg4[%c7_403, %c0_404, %c0_405] : memref<9x1x256xf32, #tpu.memory_space<vmem>>, vector<1x1x256xf32>
    %463 = vector.shape_cast %462 : vector<1x1x256xf32> to vector<1x256xf32>
    %464 = vector.broadcast %463 : vector<1x256xf32> to vector<8x256xf32>
    %465 = arith.mulf %461, %464 : vector<8x256xf32>
    %c360_406 = arith.constant 360 : index
    %c0_407 = arith.constant 0 : index
    %466 = vector.load %arg6[%c360_406, %c0_407] : memref<432x256xf32, #tpu.memory_space<vmem>>, vector<8x256xf32>
    tpu.vector_store %arg6[%c360_406, %c0_407], %465 {strides = array<i32>} : memref<432x256xf32, #tpu.memory_space<vmem>>, vector<8x256xf32>,
    %c239_i32_408 = arith.constant 239 : i32
    %467 = tpu.dynamic_rotate %423 by %c239_i32_408 dim 1 : vector<8x256xf32>, i32 -> vector<8x256xf32>
    %c8_409 = arith.constant 8 : index
    %c0_410 = arith.constant 0 : index
    %c0_411 = arith.constant 0 : index
    %468 = vector.load %arg4[%c8_409, %c0_410, %c0_411] : memref<9x1x256xf32, #tpu.memory_space<vmem>>, vector<1x1x256xf32>
    %469 = vector.shape_cast %468 : vector<1x1x256xf32> to vector<1x256xf32>
    %470 = vector.broadcast %469 : vector<1x256xf32> to vector<8x256xf32>
    %471 = arith.mulf %467, %470 : vector<8x256xf32>
    %c408_412 = arith.constant 408 : index
    %c0_413 = arith.constant 0 : index
    %472 = vector.load %arg6[%c408_412, %c0_413] : memref<432x256xf32, #tpu.memory_space<vmem>>, vector<8x256xf32>
    tpu.vector_store %arg6[%c408_412, %c0_413], %471 {strides = array<i32>} : memref<432x256xf32, #tpu.memory_space<vmem>>, vector<8x256xf32>,
    %c7_414 = arith.constant 7 : index
    %c0_415 = arith.constant 0 : index
    %c0_416 = arith.constant 0 : index
    %473 = vector.load %arg2[%c7_414, %c0_415, %c0_416] : memref<15x16x432xf32, #tpu.memory_space<vmem>>, vector<1x8x432xf32>
    %474 = vector.shape_cast %473 : vector<1x8x432xf32> to vector<8x432xf32>
    %c0_417 = arith.constant 0 : index
    %c0_418 = arith.constant 0 : index
    %475 = vector.load %arg6[%c0_417, %c0_418] : memref<432x256xf32, #tpu.memory_space<vmem>>, vector<432x256xf32>
    %cst_419 = arith.constant dense<0.000000e+00> : vector<8x256xf32>
    %476 = tpu.matmul %474, %475, %cst_419 {dimension_numbers = #tpu.dot_dimension_numbers<[1], [0], [0], [1], [0, 0, 1, 1], [], []>} : vector<8x432xf32>, vector<432x256xf32>, vector<8x256xf32> -> vector<8x256xf32>
    %c7_420 = arith.constant 7 : index
    %c0_421 = arith.constant 0 : index
    %c0_422 = arith.constant 0 : index
    %477 = vector.load %arg3[%c7_420, %c0_421, %c0_422] : memref<15x16x1xf32, #tpu.memory_space<vmem>>, vector<1x8x1xf32>
    %478 = vector.shape_cast %477 : vector<1x8x1xf32> to vector<8x1xf32>
    %479 = vector.broadcast %478 : vector<8x1xf32> to vector<8x256xf32>
    %480 = arith.addf %476, %479 : vector<8x256xf32>
    %cst_423 = arith.constant 2.000000e-01 : f32
    %481 = vector.broadcast %cst_423 : f32 to vector<8x256xf32>
    %482 = arith.mulf %480, %481 : vector<8x256xf32>
    %483 = arith.maximumf %480, %482 : vector<8x256xf32>
    %c17_i32_424 = arith.constant 17 : i32
    %484 = tpu.dynamic_rotate %483 by %c17_i32_424 dim 1 : vector<8x256xf32>, i32 -> vector<8x256xf32>
    %c0_425 = arith.constant 0 : index
    %c0_426 = arith.constant 0 : index
    %c0_427 = arith.constant 0 : index
    %485 = vector.load %arg4[%c0_425, %c0_426, %c0_427] : memref<9x1x256xf32, #tpu.memory_space<vmem>>, vector<1x1x256xf32>
    %486 = vector.shape_cast %485 : vector<1x1x256xf32> to vector<1x256xf32>
    %487 = vector.broadcast %486 : vector<1x256xf32> to vector<8x256xf32>
    %488 = arith.mulf %484, %487 : vector<8x256xf32>
    %c32_428 = arith.constant 32 : index
    %c0_429 = arith.constant 0 : index
    %489 = vector.load %arg6[%c32_428, %c0_429] : memref<432x256xf32, #tpu.memory_space<vmem>>, vector<8x256xf32>
    tpu.vector_store %arg6[%c32_428, %c0_429], %488 {strides = array<i32>} : memref<432x256xf32, #tpu.memory_space<vmem>>, vector<8x256xf32>,
    %c16_i32_430 = arith.constant 16 : i32
    %490 = tpu.dynamic_rotate %483 by %c16_i32_430 dim 1 : vector<8x256xf32>, i32 -> vector<8x256xf32>
    %c1_431 = arith.constant 1 : index
    %c0_432 = arith.constant 0 : index
    %c0_433 = arith.constant 0 : index
    %491 = vector.load %arg4[%c1_431, %c0_432, %c0_433] : memref<9x1x256xf32, #tpu.memory_space<vmem>>, vector<1x1x256xf32>
    %492 = vector.shape_cast %491 : vector<1x1x256xf32> to vector<1x256xf32>
    %493 = vector.broadcast %492 : vector<1x256xf32> to vector<8x256xf32>
    %494 = arith.mulf %490, %493 : vector<8x256xf32>
    %c80_434 = arith.constant 80 : index
    %c0_435 = arith.constant 0 : index
    %495 = vector.load %arg6[%c80_434, %c0_435] : memref<432x256xf32, #tpu.memory_space<vmem>>, vector<8x256xf32>
    tpu.vector_store %arg6[%c80_434, %c0_435], %494 {strides = array<i32>} : memref<432x256xf32, #tpu.memory_space<vmem>>, vector<8x256xf32>,
    %c15_i32_436 = arith.constant 15 : i32
    %496 = tpu.dynamic_rotate %483 by %c15_i32_436 dim 1 : vector<8x256xf32>, i32 -> vector<8x256xf32>
    %c2_437 = arith.constant 2 : index
    %c0_438 = arith.constant 0 : index
    %c0_439 = arith.constant 0 : index
    %497 = vector.load %arg4[%c2_437, %c0_438, %c0_439] : memref<9x1x256xf32, #tpu.memory_space<vmem>>, vector<1x1x256xf32>
    %498 = vector.shape_cast %497 : vector<1x1x256xf32> to vector<1x256xf32>
    %499 = vector.broadcast %498 : vector<1x256xf32> to vector<8x256xf32>
    %500 = arith.mulf %496, %499 : vector<8x256xf32>
    %c128_440 = arith.constant 128 : index
    %c0_441 = arith.constant 0 : index
    %501 = vector.load %arg6[%c128_440, %c0_441] : memref<432x256xf32, #tpu.memory_space<vmem>>, vector<8x256xf32>
    tpu.vector_store %arg6[%c128_440, %c0_441], %500 {strides = array<i32>} : memref<432x256xf32, #tpu.memory_space<vmem>>, vector<8x256xf32>,
    %c1_i32_442 = arith.constant 1 : i32
    %502 = tpu.dynamic_rotate %483 by %c1_i32_442 dim 1 : vector<8x256xf32>, i32 -> vector<8x256xf32>
    %c3_443 = arith.constant 3 : index
    %c0_444 = arith.constant 0 : index
    %c0_445 = arith.constant 0 : index
    %503 = vector.load %arg4[%c3_443, %c0_444, %c0_445] : memref<9x1x256xf32, #tpu.memory_space<vmem>>, vector<1x1x256xf32>
    %504 = vector.shape_cast %503 : vector<1x1x256xf32> to vector<1x256xf32>
    %505 = vector.broadcast %504 : vector<1x256xf32> to vector<8x256xf32>
    %506 = arith.mulf %502, %505 : vector<8x256xf32>
    %c176_446 = arith.constant 176 : index
    %c0_447 = arith.constant 0 : index
    %507 = vector.load %arg6[%c176_446, %c0_447] : memref<432x256xf32, #tpu.memory_space<vmem>>, vector<8x256xf32>
    tpu.vector_store %arg6[%c176_446, %c0_447], %506 {strides = array<i32>} : memref<432x256xf32, #tpu.memory_space<vmem>>, vector<8x256xf32>,
    %c224_448 = arith.constant 224 : index
    %c0_449 = arith.constant 0 : index
    %508 = vector.load %arg6[%c224_448, %c0_449] : memref<432x256xf32, #tpu.memory_space<vmem>>, vector<8x256xf32>
    tpu.vector_store %arg6[%c224_448, %c0_449], %483 {strides = array<i32>} : memref<432x256xf32, #tpu.memory_space<vmem>>, vector<8x256xf32>,
    %c255_i32_450 = arith.constant 255 : i32
    %509 = tpu.dynamic_rotate %483 by %c255_i32_450 dim 1 : vector<8x256xf32>, i32 -> vector<8x256xf32>
    %c5_451 = arith.constant 5 : index
    %c0_452 = arith.constant 0 : index
    %c0_453 = arith.constant 0 : index
    %510 = vector.load %arg4[%c5_451, %c0_452, %c0_453] : memref<9x1x256xf32, #tpu.memory_space<vmem>>, vector<1x1x256xf32>
    %511 = vector.shape_cast %510 : vector<1x1x256xf32> to vector<1x256xf32>
    %512 = vector.broadcast %511 : vector<1x256xf32> to vector<8x256xf32>
    %513 = arith.mulf %509, %512 : vector<8x256xf32>
    %c272_454 = arith.constant 272 : index
    %c0_455 = arith.constant 0 : index
    %514 = vector.load %arg6[%c272_454, %c0_455] : memref<432x256xf32, #tpu.memory_space<vmem>>, vector<8x256xf32>
    tpu.vector_store %arg6[%c272_454, %c0_455], %513 {strides = array<i32>} : memref<432x256xf32, #tpu.memory_space<vmem>>, vector<8x256xf32>,
    %c241_i32_456 = arith.constant 241 : i32
    %515 = tpu.dynamic_rotate %483 by %c241_i32_456 dim 1 : vector<8x256xf32>, i32 -> vector<8x256xf32>
    %c6_457 = arith.constant 6 : index
    %c0_458 = arith.constant 0 : index
    %c0_459 = arith.constant 0 : index
    %516 = vector.load %arg4[%c6_457, %c0_458, %c0_459] : memref<9x1x256xf32, #tpu.memory_space<vmem>>, vector<1x1x256xf32>
    %517 = vector.shape_cast %516 : vector<1x1x256xf32> to vector<1x256xf32>
    %518 = vector.broadcast %517 : vector<1x256xf32> to vector<8x256xf32>
    %519 = arith.mulf %515, %518 : vector<8x256xf32>
    %c320_460 = arith.constant 320 : index
    %c0_461 = arith.constant 0 : index
    %520 = vector.load %arg6[%c320_460, %c0_461] : memref<432x256xf32, #tpu.memory_space<vmem>>, vector<8x256xf32>
    tpu.vector_store %arg6[%c320_460, %c0_461], %519 {strides = array<i32>} : memref<432x256xf32, #tpu.memory_space<vmem>>, vector<8x256xf32>,
    %c240_i32_462 = arith.constant 240 : i32
    %521 = tpu.dynamic_rotate %483 by %c240_i32_462 dim 1 : vector<8x256xf32>, i32 -> vector<8x256xf32>
    %c7_463 = arith.constant 7 : index
    %c0_464 = arith.constant 0 : index
    %c0_465 = arith.constant 0 : index
    %522 = vector.load %arg4[%c7_463, %c0_464, %c0_465] : memref<9x1x256xf32, #tpu.memory_space<vmem>>, vector<1x1x256xf32>
    %523 = vector.shape_cast %522 : vector<1x1x256xf32> to vector<1x256xf32>
    %524 = vector.broadcast %523 : vector<1x256xf32> to vector<8x256xf32>
    %525 = arith.mulf %521, %524 : vector<8x256xf32>
    %c368_466 = arith.constant 368 : index
    %c0_467 = arith.constant 0 : index
    %526 = vector.load %arg6[%c368_466, %c0_467] : memref<432x256xf32, #tpu.memory_space<vmem>>, vector<8x256xf32>
    tpu.vector_store %arg6[%c368_466, %c0_467], %525 {strides = array<i32>} : memref<432x256xf32, #tpu.memory_space<vmem>>, vector<8x256xf32>,
    %c239_i32_468 = arith.constant 239 : i32
    %527 = tpu.dynamic_rotate %483 by %c239_i32_468 dim 1 : vector<8x256xf32>, i32 -> vector<8x256xf32>
    %c8_469 = arith.constant 8 : index
    %c0_470 = arith.constant 0 : index
    %c0_471 = arith.constant 0 : index
    %528 = vector.load %arg4[%c8_469, %c0_470, %c0_471] : memref<9x1x256xf32, #tpu.memory_space<vmem>>, vector<1x1x256xf32>
    %529 = vector.shape_cast %528 : vector<1x1x256xf32> to vector<1x256xf32>
    %530 = vector.broadcast %529 : vector<1x256xf32> to vector<8x256xf32>
    %531 = arith.mulf %527, %530 : vector<8x256xf32>
    %c416_472 = arith.constant 416 : index
    %c0_473 = arith.constant 0 : index
    %532 = vector.load %arg6[%c416_472, %c0_473] : memref<432x256xf32, #tpu.memory_space<vmem>>, vector<8x256xf32>
    tpu.vector_store %arg6[%c416_472, %c0_473], %531 {strides = array<i32>} : memref<432x256xf32, #tpu.memory_space<vmem>>, vector<8x256xf32>,
    %c8_474 = arith.constant 8 : index
    %c0_475 = arith.constant 0 : index
    %c0_476 = arith.constant 0 : index
    %533 = vector.load %arg2[%c8_474, %c0_475, %c0_476] : memref<15x16x432xf32, #tpu.memory_space<vmem>>, vector<1x8x432xf32>
    %534 = vector.shape_cast %533 : vector<1x8x432xf32> to vector<8x432xf32>
    %c0_477 = arith.constant 0 : index
    %c0_478 = arith.constant 0 : index
    %535 = vector.load %arg6[%c0_477, %c0_478] : memref<432x256xf32, #tpu.memory_space<vmem>>, vector<432x256xf32>
    %cst_479 = arith.constant dense<0.000000e+00> : vector<8x256xf32>
    %536 = tpu.matmul %534, %535, %cst_479 {dimension_numbers = #tpu.dot_dimension_numbers<[1], [0], [0], [1], [0, 0, 1, 1], [], []>} : vector<8x432xf32>, vector<432x256xf32>, vector<8x256xf32> -> vector<8x256xf32>
    %c8_480 = arith.constant 8 : index
    %c0_481 = arith.constant 0 : index
    %c0_482 = arith.constant 0 : index
    %537 = vector.load %arg3[%c8_480, %c0_481, %c0_482] : memref<15x16x1xf32, #tpu.memory_space<vmem>>, vector<1x8x1xf32>
    %538 = vector.shape_cast %537 : vector<1x8x1xf32> to vector<8x1xf32>
    %539 = vector.broadcast %538 : vector<8x1xf32> to vector<8x256xf32>
    %540 = arith.addf %536, %539 : vector<8x256xf32>
    %cst_483 = arith.constant 2.000000e-01 : f32
    %541 = vector.broadcast %cst_483 : f32 to vector<8x256xf32>
    %542 = arith.mulf %540, %541 : vector<8x256xf32>
    %543 = arith.maximumf %540, %542 : vector<8x256xf32>
    %c17_i32_484 = arith.constant 17 : i32
    %544 = tpu.dynamic_rotate %543 by %c17_i32_484 dim 1 : vector<8x256xf32>, i32 -> vector<8x256xf32>
    %c0_485 = arith.constant 0 : index
    %c0_486 = arith.constant 0 : index
    %c0_487 = arith.constant 0 : index
    %545 = vector.load %arg4[%c0_485, %c0_486, %c0_487] : memref<9x1x256xf32, #tpu.memory_space<vmem>>, vector<1x1x256xf32>
    %546 = vector.shape_cast %545 : vector<1x1x256xf32> to vector<1x256xf32>
    %547 = vector.broadcast %546 : vector<1x256xf32> to vector<8x256xf32>
    %548 = arith.mulf %544, %547 : vector<8x256xf32>
    %c40_488 = arith.constant 40 : index
    %c0_489 = arith.constant 0 : index
    %549 = vector.load %arg6[%c40_488, %c0_489] : memref<432x256xf32, #tpu.memory_space<vmem>>, vector<8x256xf32>
    tpu.vector_store %arg6[%c40_488, %c0_489], %548 {strides = array<i32>} : memref<432x256xf32, #tpu.memory_space<vmem>>, vector<8x256xf32>,
    %c16_i32_490 = arith.constant 16 : i32
    %550 = tpu.dynamic_rotate %543 by %c16_i32_490 dim 1 : vector<8x256xf32>, i32 -> vector<8x256xf32>
    %c1_491 = arith.constant 1 : index
    %c0_492 = arith.constant 0 : index
    %c0_493 = arith.constant 0 : index
    %551 = vector.load %arg4[%c1_491, %c0_492, %c0_493] : memref<9x1x256xf32, #tpu.memory_space<vmem>>, vector<1x1x256xf32>
    %552 = vector.shape_cast %551 : vector<1x1x256xf32> to vector<1x256xf32>
    %553 = vector.broadcast %552 : vector<1x256xf32> to vector<8x256xf32>
    %554 = arith.mulf %550, %553 : vector<8x256xf32>
    %c88_494 = arith.constant 88 : index
    %c0_495 = arith.constant 0 : index
    %555 = vector.load %arg6[%c88_494, %c0_495] : memref<432x256xf32, #tpu.memory_space<vmem>>, vector<8x256xf32>
    tpu.vector_store %arg6[%c88_494, %c0_495], %554 {strides = array<i32>} : memref<432x256xf32, #tpu.memory_space<vmem>>, vector<8x256xf32>,
    %c15_i32_496 = arith.constant 15 : i32
    %556 = tpu.dynamic_rotate %543 by %c15_i32_496 dim 1 : vector<8x256xf32>, i32 -> vector<8x256xf32>
    %c2_497 = arith.constant 2 : index
    %c0_498 = arith.constant 0 : index
    %c0_499 = arith.constant 0 : index
    %557 = vector.load %arg4[%c2_497, %c0_498, %c0_499] : memref<9x1x256xf32, #tpu.memory_space<vmem>>, vector<1x1x256xf32>
    %558 = vector.shape_cast %557 : vector<1x1x256xf32> to vector<1x256xf32>
    %559 = vector.broadcast %558 : vector<1x256xf32> to vector<8x256xf32>
    %560 = arith.mulf %556, %559 : vector<8x256xf32>
    %c136_500 = arith.constant 136 : index
    %c0_501 = arith.constant 0 : index
    %561 = vector.load %arg6[%c136_500, %c0_501] : memref<432x256xf32, #tpu.memory_space<vmem>>, vector<8x256xf32>
    tpu.vector_store %arg6[%c136_500, %c0_501], %560 {strides = array<i32>} : memref<432x256xf32, #tpu.memory_space<vmem>>, vector<8x256xf32>,
    %c1_i32_502 = arith.constant 1 : i32
    %562 = tpu.dynamic_rotate %543 by %c1_i32_502 dim 1 : vector<8x256xf32>, i32 -> vector<8x256xf32>
    %c3_503 = arith.constant 3 : index
    %c0_504 = arith.constant 0 : index
    %c0_505 = arith.constant 0 : index
    %563 = vector.load %arg4[%c3_503, %c0_504, %c0_505] : memref<9x1x256xf32, #tpu.memory_space<vmem>>, vector<1x1x256xf32>
    %564 = vector.shape_cast %563 : vector<1x1x256xf32> to vector<1x256xf32>
    %565 = vector.broadcast %564 : vector<1x256xf32> to vector<8x256xf32>
    %566 = arith.mulf %562, %565 : vector<8x256xf32>
    %c184_506 = arith.constant 184 : index
    %c0_507 = arith.constant 0 : index
    %567 = vector.load %arg6[%c184_506, %c0_507] : memref<432x256xf32, #tpu.memory_space<vmem>>, vector<8x256xf32>
    tpu.vector_store %arg6[%c184_506, %c0_507], %566 {strides = array<i32>} : memref<432x256xf32, #tpu.memory_space<vmem>>, vector<8x256xf32>,
    %c232_508 = arith.constant 232 : index
    %c0_509 = arith.constant 0 : index
    %568 = vector.load %arg6[%c232_508, %c0_509] : memref<432x256xf32, #tpu.memory_space<vmem>>, vector<8x256xf32>
    tpu.vector_store %arg6[%c232_508, %c0_509], %543 {strides = array<i32>} : memref<432x256xf32, #tpu.memory_space<vmem>>, vector<8x256xf32>,
    %c255_i32_510 = arith.constant 255 : i32
    %569 = tpu.dynamic_rotate %543 by %c255_i32_510 dim 1 : vector<8x256xf32>, i32 -> vector<8x256xf32>
    %c5_511 = arith.constant 5 : index
    %c0_512 = arith.constant 0 : index
    %c0_513 = arith.constant 0 : index
    %570 = vector.load %arg4[%c5_511, %c0_512, %c0_513] : memref<9x1x256xf32, #tpu.memory_space<vmem>>, vector<1x1x256xf32>
    %571 = vector.shape_cast %570 : vector<1x1x256xf32> to vector<1x256xf32>
    %572 = vector.broadcast %571 : vector<1x256xf32> to vector<8x256xf32>
    %573 = arith.mulf %569, %572 : vector<8x256xf32>
    %c280_514 = arith.constant 280 : index
    %c0_515 = arith.constant 0 : index
    %574 = vector.load %arg6[%c280_514, %c0_515] : memref<432x256xf32, #tpu.memory_space<vmem>>, vector<8x256xf32>
    tpu.vector_store %arg6[%c280_514, %c0_515], %573 {strides = array<i32>} : memref<432x256xf32, #tpu.memory_space<vmem>>, vector<8x256xf32>,
    %c241_i32_516 = arith.constant 241 : i32
    %575 = tpu.dynamic_rotate %543 by %c241_i32_516 dim 1 : vector<8x256xf32>, i32 -> vector<8x256xf32>
    %c6_517 = arith.constant 6 : index
    %c0_518 = arith.constant 0 : index
    %c0_519 = arith.constant 0 : index
    %576 = vector.load %arg4[%c6_517, %c0_518, %c0_519] : memref<9x1x256xf32, #tpu.memory_space<vmem>>, vector<1x1x256xf32>
    %577 = vector.shape_cast %576 : vector<1x1x256xf32> to vector<1x256xf32>
    %578 = vector.broadcast %577 : vector<1x256xf32> to vector<8x256xf32>
    %579 = arith.mulf %575, %578 : vector<8x256xf32>
    %c328_520 = arith.constant 328 : index
    %c0_521 = arith.constant 0 : index
    %580 = vector.load %arg6[%c328_520, %c0_521] : memref<432x256xf32, #tpu.memory_space<vmem>>, vector<8x256xf32>
    tpu.vector_store %arg6[%c328_520, %c0_521], %579 {strides = array<i32>} : memref<432x256xf32, #tpu.memory_space<vmem>>, vector<8x256xf32>,
    %c240_i32_522 = arith.constant 240 : i32
    %581 = tpu.dynamic_rotate %543 by %c240_i32_522 dim 1 : vector<8x256xf32>, i32 -> vector<8x256xf32>
    %c7_523 = arith.constant 7 : index
    %c0_524 = arith.constant 0 : index
    %c0_525 = arith.constant 0 : index
    %582 = vector.load %arg4[%c7_523, %c0_524, %c0_525] : memref<9x1x256xf32, #tpu.memory_space<vmem>>, vector<1x1x256xf32>
    %583 = vector.shape_cast %582 : vector<1x1x256xf32> to vector<1x256xf32>
    %584 = vector.broadcast %583 : vector<1x256xf32> to vector<8x256xf32>
    %585 = arith.mulf %581, %584 : vector<8x256xf32>
    %c376_526 = arith.constant 376 : index
    %c0_527 = arith.constant 0 : index
    %586 = vector.load %arg6[%c376_526, %c0_527] : memref<432x256xf32, #tpu.memory_space<vmem>>, vector<8x256xf32>
    tpu.vector_store %arg6[%c376_526, %c0_527], %585 {strides = array<i32>} : memref<432x256xf32, #tpu.memory_space<vmem>>, vector<8x256xf32>,
    %c239_i32_528 = arith.constant 239 : i32
    %587 = tpu.dynamic_rotate %543 by %c239_i32_528 dim 1 : vector<8x256xf32>, i32 -> vector<8x256xf32>
    %c8_529 = arith.constant 8 : index
    %c0_530 = arith.constant 0 : index
    %c0_531 = arith.constant 0 : index
    %588 = vector.load %arg4[%c8_529, %c0_530, %c0_531] : memref<9x1x256xf32, #tpu.memory_space<vmem>>, vector<1x1x256xf32>
    %589 = vector.shape_cast %588 : vector<1x1x256xf32> to vector<1x256xf32>
    %590 = vector.broadcast %589 : vector<1x256xf32> to vector<8x256xf32>
    %591 = arith.mulf %587, %590 : vector<8x256xf32>
    %c424_532 = arith.constant 424 : index
    %c0_533 = arith.constant 0 : index
    %592 = vector.load %arg6[%c424_532, %c0_533] : memref<432x256xf32, #tpu.memory_space<vmem>>, vector<8x256xf32>
    tpu.vector_store %arg6[%c424_532, %c0_533], %591 {strides = array<i32>} : memref<432x256xf32, #tpu.memory_space<vmem>>, vector<8x256xf32>,
    %c9 = arith.constant 9 : index
    %c0_534 = arith.constant 0 : index
    %c0_535 = arith.constant 0 : index
    %593 = vector.load %arg2[%c9, %c0_534, %c0_535] : memref<15x16x432xf32, #tpu.memory_space<vmem>>, vector<1x16x432xf32>
    %594 = vector.shape_cast %593 : vector<1x16x432xf32> to vector<16x432xf32>
    %c0_536 = arith.constant 0 : index
    %c0_537 = arith.constant 0 : index
    %595 = vector.load %arg6[%c0_536, %c0_537] : memref<432x256xf32, #tpu.memory_space<vmem>>, vector<432x256xf32>
    %cst_538 = arith.constant dense<0.000000e+00> : vector<16x256xf32>
    %596 = tpu.matmul %594, %595, %cst_538 {dimension_numbers = #tpu.dot_dimension_numbers<[1], [0], [0], [1], [0, 0, 1, 1], [], []>} : vector<16x432xf32>, vector<432x256xf32>, vector<16x256xf32> -> vector<16x256xf32>
    %c9_539 = arith.constant 9 : index
    %c0_540 = arith.constant 0 : index
    %c0_541 = arith.constant 0 : index
    %597 = vector.load %arg3[%c9_539, %c0_540, %c0_541] : memref<15x16x1xf32, #tpu.memory_space<vmem>>, vector<1x16x1xf32>
    %598 = vector.shape_cast %597 : vector<1x16x1xf32> to vector<16x1xf32>
    %599 = vector.broadcast %598 : vector<16x1xf32> to vector<16x256xf32>
    %600 = arith.addf %596, %599 : vector<16x256xf32>
    %cst_542 = arith.constant 2.000000e-01 : f32
    %601 = vector.broadcast %cst_542 : f32 to vector<16x256xf32>
    %602 = arith.mulf %600, %601 : vector<16x256xf32>
    %603 = arith.addf %602, %303 : vector<16x256xf32>
    %c17_i32_543 = arith.constant 17 : i32
    %604 = tpu.dynamic_rotate %603 by %c17_i32_543 dim 1 : vector<16x256xf32>, i32 -> vector<16x256xf32>
    %c0_544 = arith.constant 0 : index
    %c0_545 = arith.constant 0 : index
    %c0_546 = arith.constant 0 : index
    %605 = vector.load %arg4[%c0_544, %c0_545, %c0_546] : memref<9x1x256xf32, #tpu.memory_space<vmem>>, vector<1x1x256xf32>
    %606 = vector.shape_cast %605 : vector<1x1x256xf32> to vector<1x256xf32>
    %607 = vector.broadcast %606 : vector<1x256xf32> to vector<16x256xf32>
    %608 = arith.mulf %604, %607 : vector<16x256xf32>
    %c0_547 = arith.constant 0 : index
    %c0_548 = arith.constant 0 : index
    %609 = vector.load %arg6[%c0_547, %c0_548] : memref<432x256xf32, #tpu.memory_space<vmem>>, vector<16x256xf32>
    tpu.vector_store %arg6[%c0_547, %c0_548], %608 {strides = array<i32>} : memref<432x256xf32, #tpu.memory_space<vmem>>, vector<16x256xf32>,
    %c16_i32_549 = arith.constant 16 : i32
    %610 = tpu.dynamic_rotate %603 by %c16_i32_549 dim 1 : vector<16x256xf32>, i32 -> vector<16x256xf32>
    %c1_550 = arith.constant 1 : index
    %c0_551 = arith.constant 0 : index
    %c0_552 = arith.constant 0 : index
    %611 = vector.load %arg4[%c1_550, %c0_551, %c0_552] : memref<9x1x256xf32, #tpu.memory_space<vmem>>, vector<1x1x256xf32>
    %612 = vector.shape_cast %611 : vector<1x1x256xf32> to vector<1x256xf32>
    %613 = vector.broadcast %612 : vector<1x256xf32> to vector<16x256xf32>
    %614 = arith.mulf %610, %613 : vector<16x256xf32>
    %c48_553 = arith.constant 48 : index
    %c0_554 = arith.constant 0 : index
    %615 = vector.load %arg6[%c48_553, %c0_554] : memref<432x256xf32, #tpu.memory_space<vmem>>, vector<16x256xf32>
    tpu.vector_store %arg6[%c48_553, %c0_554], %614 {strides = array<i32>} : memref<432x256xf32, #tpu.memory_space<vmem>>, vector<16x256xf32>,
    %c15_i32_555 = arith.constant 15 : i32
    %616 = tpu.dynamic_rotate %603 by %c15_i32_555 dim 1 : vector<16x256xf32>, i32 -> vector<16x256xf32>
    %c2_556 = arith.constant 2 : index
    %c0_557 = arith.constant 0 : index
    %c0_558 = arith.constant 0 : index
    %617 = vector.load %arg4[%c2_556, %c0_557, %c0_558] : memref<9x1x256xf32, #tpu.memory_space<vmem>>, vector<1x1x256xf32>
    %618 = vector.shape_cast %617 : vector<1x1x256xf32> to vector<1x256xf32>
    %619 = vector.broadcast %618 : vector<1x256xf32> to vector<16x256xf32>
    %620 = arith.mulf %616, %619 : vector<16x256xf32>
    %c96_559 = arith.constant 96 : index
    %c0_560 = arith.constant 0 : index
    %621 = vector.load %arg6[%c96_559, %c0_560] : memref<432x256xf32, #tpu.memory_space<vmem>>, vector<16x256xf32>
    tpu.vector_store %arg6[%c96_559, %c0_560], %620 {strides = array<i32>} : memref<432x256xf32, #tpu.memory_space<vmem>>, vector<16x256xf32>,
    %c1_i32_561 = arith.constant 1 : i32
    %622 = tpu.dynamic_rotate %603 by %c1_i32_561 dim 1 : vector<16x256xf32>, i32 -> vector<16x256xf32>
    %c3_562 = arith.constant 3 : index
    %c0_563 = arith.constant 0 : index
    %c0_564 = arith.constant 0 : index
    %623 = vector.load %arg4[%c3_562, %c0_563, %c0_564] : memref<9x1x256xf32, #tpu.memory_space<vmem>>, vector<1x1x256xf32>
    %624 = vector.shape_cast %623 : vector<1x1x256xf32> to vector<1x256xf32>
    %625 = vector.broadcast %624 : vector<1x256xf32> to vector<16x256xf32>
    %626 = arith.mulf %622, %625 : vector<16x256xf32>
    %c144_565 = arith.constant 144 : index
    %c0_566 = arith.constant 0 : index
    %627 = vector.load %arg6[%c144_565, %c0_566] : memref<432x256xf32, #tpu.memory_space<vmem>>, vector<16x256xf32>
    tpu.vector_store %arg6[%c144_565, %c0_566], %626 {strides = array<i32>} : memref<432x256xf32, #tpu.memory_space<vmem>>, vector<16x256xf32>,
    %c192_567 = arith.constant 192 : index
    %c0_568 = arith.constant 0 : index
    %628 = vector.load %arg6[%c192_567, %c0_568] : memref<432x256xf32, #tpu.memory_space<vmem>>, vector<16x256xf32>
    tpu.vector_store %arg6[%c192_567, %c0_568], %603 {strides = array<i32>} : memref<432x256xf32, #tpu.memory_space<vmem>>, vector<16x256xf32>,
    %c255_i32_569 = arith.constant 255 : i32
    %629 = tpu.dynamic_rotate %603 by %c255_i32_569 dim 1 : vector<16x256xf32>, i32 -> vector<16x256xf32>
    %c5_570 = arith.constant 5 : index
    %c0_571 = arith.constant 0 : index
    %c0_572 = arith.constant 0 : index
    %630 = vector.load %arg4[%c5_570, %c0_571, %c0_572] : memref<9x1x256xf32, #tpu.memory_space<vmem>>, vector<1x1x256xf32>
    %631 = vector.shape_cast %630 : vector<1x1x256xf32> to vector<1x256xf32>
    %632 = vector.broadcast %631 : vector<1x256xf32> to vector<16x256xf32>
    %633 = arith.mulf %629, %632 : vector<16x256xf32>
    %c240_573 = arith.constant 240 : index
    %c0_574 = arith.constant 0 : index
    %634 = vector.load %arg6[%c240_573, %c0_574] : memref<432x256xf32, #tpu.memory_space<vmem>>, vector<16x256xf32>
    tpu.vector_store %arg6[%c240_573, %c0_574], %633 {strides = array<i32>} : memref<432x256xf32, #tpu.memory_space<vmem>>, vector<16x256xf32>,
    %c241_i32_575 = arith.constant 241 : i32
    %635 = tpu.dynamic_rotate %603 by %c241_i32_575 dim 1 : vector<16x256xf32>, i32 -> vector<16x256xf32>
    %c6_576 = arith.constant 6 : index
    %c0_577 = arith.constant 0 : index
    %c0_578 = arith.constant 0 : index
    %636 = vector.load %arg4[%c6_576, %c0_577, %c0_578] : memref<9x1x256xf32, #tpu.memory_space<vmem>>, vector<1x1x256xf32>
    %637 = vector.shape_cast %636 : vector<1x1x256xf32> to vector<1x256xf32>
    %638 = vector.broadcast %637 : vector<1x256xf32> to vector<16x256xf32>
    %639 = arith.mulf %635, %638 : vector<16x256xf32>
    %c288_579 = arith.constant 288 : index
    %c0_580 = arith.constant 0 : index
    %640 = vector.load %arg6[%c288_579, %c0_580] : memref<432x256xf32, #tpu.memory_space<vmem>>, vector<16x256xf32>
    tpu.vector_store %arg6[%c288_579, %c0_580], %639 {strides = array<i32>} : memref<432x256xf32, #tpu.memory_space<vmem>>, vector<16x256xf32>,
    %c240_i32_581 = arith.constant 240 : i32
    %641 = tpu.dynamic_rotate %603 by %c240_i32_581 dim 1 : vector<16x256xf32>, i32 -> vector<16x256xf32>
    %c7_582 = arith.constant 7 : index
    %c0_583 = arith.constant 0 : index
    %c0_584 = arith.constant 0 : index
    %642 = vector.load %arg4[%c7_582, %c0_583, %c0_584] : memref<9x1x256xf32, #tpu.memory_space<vmem>>, vector<1x1x256xf32>
    %643 = vector.shape_cast %642 : vector<1x1x256xf32> to vector<1x256xf32>
    %644 = vector.broadcast %643 : vector<1x256xf32> to vector<16x256xf32>
    %645 = arith.mulf %641, %644 : vector<16x256xf32>
    %c336_585 = arith.constant 336 : index
    %c0_586 = arith.constant 0 : index
    %646 = vector.load %arg6[%c336_585, %c0_586] : memref<432x256xf32, #tpu.memory_space<vmem>>, vector<16x256xf32>
    tpu.vector_store %arg6[%c336_585, %c0_586], %645 {strides = array<i32>} : memref<432x256xf32, #tpu.memory_space<vmem>>, vector<16x256xf32>,
    %c239_i32_587 = arith.constant 239 : i32
    %647 = tpu.dynamic_rotate %603 by %c239_i32_587 dim 1 : vector<16x256xf32>, i32 -> vector<16x256xf32>
    %c8_588 = arith.constant 8 : index
    %c0_589 = arith.constant 0 : index
    %c0_590 = arith.constant 0 : index
    %648 = vector.load %arg4[%c8_588, %c0_589, %c0_590] : memref<9x1x256xf32, #tpu.memory_space<vmem>>, vector<1x1x256xf32>
    %649 = vector.shape_cast %648 : vector<1x1x256xf32> to vector<1x256xf32>
    %650 = vector.broadcast %649 : vector<1x256xf32> to vector<16x256xf32>
    %651 = arith.mulf %647, %650 : vector<16x256xf32>
    %c384_591 = arith.constant 384 : index
    %c0_592 = arith.constant 0 : index
    %652 = vector.load %arg6[%c384_591, %c0_592] : memref<432x256xf32, #tpu.memory_space<vmem>>, vector<16x256xf32>
    tpu.vector_store %arg6[%c384_591, %c0_592], %651 {strides = array<i32>} : memref<432x256xf32, #tpu.memory_space<vmem>>, vector<16x256xf32>,
    %c10 = arith.constant 10 : index
    %c0_593 = arith.constant 0 : index
    %c0_594 = arith.constant 0 : index
    %653 = vector.load %arg2[%c10, %c0_593, %c0_594] : memref<15x16x432xf32, #tpu.memory_space<vmem>>, vector<1x8x432xf32>
    %654 = vector.shape_cast %653 : vector<1x8x432xf32> to vector<8x432xf32>
    %c0_595 = arith.constant 0 : index
    %c0_596 = arith.constant 0 : index
    %655 = vector.load %arg6[%c0_595, %c0_596] : memref<432x256xf32, #tpu.memory_space<vmem>>, vector<432x256xf32>
    %cst_597 = arith.constant dense<0.000000e+00> : vector<8x256xf32>
    %656 = tpu.matmul %654, %655, %cst_597 {dimension_numbers = #tpu.dot_dimension_numbers<[1], [0], [0], [1], [0, 0, 1, 1], [], []>} : vector<8x432xf32>, vector<432x256xf32>, vector<8x256xf32> -> vector<8x256xf32>
    %c10_598 = arith.constant 10 : index
    %c0_599 = arith.constant 0 : index
    %c0_600 = arith.constant 0 : index
    %657 = vector.load %arg3[%c10_598, %c0_599, %c0_600] : memref<15x16x1xf32, #tpu.memory_space<vmem>>, vector<1x8x1xf32>
    %658 = vector.shape_cast %657 : vector<1x8x1xf32> to vector<8x1xf32>
    %659 = vector.broadcast %658 : vector<8x1xf32> to vector<8x256xf32>
    %660 = arith.addf %656, %659 : vector<8x256xf32>
    %cst_601 = arith.constant 2.000000e-01 : f32
    %661 = vector.broadcast %cst_601 : f32 to vector<8x256xf32>
    %662 = arith.mulf %660, %661 : vector<8x256xf32>
    %663 = arith.maximumf %660, %662 : vector<8x256xf32>
    %c17_i32_602 = arith.constant 17 : i32
    %664 = tpu.dynamic_rotate %663 by %c17_i32_602 dim 1 : vector<8x256xf32>, i32 -> vector<8x256xf32>
    %c0_603 = arith.constant 0 : index
    %c0_604 = arith.constant 0 : index
    %c0_605 = arith.constant 0 : index
    %665 = vector.load %arg4[%c0_603, %c0_604, %c0_605] : memref<9x1x256xf32, #tpu.memory_space<vmem>>, vector<1x1x256xf32>
    %666 = vector.shape_cast %665 : vector<1x1x256xf32> to vector<1x256xf32>
    %667 = vector.broadcast %666 : vector<1x256xf32> to vector<8x256xf32>
    %668 = arith.mulf %664, %667 : vector<8x256xf32>
    %c16_606 = arith.constant 16 : index
    %c0_607 = arith.constant 0 : index
    %669 = vector.load %arg6[%c16_606, %c0_607] : memref<432x256xf32, #tpu.memory_space<vmem>>, vector<8x256xf32>
    tpu.vector_store %arg6[%c16_606, %c0_607], %668 {strides = array<i32>} : memref<432x256xf32, #tpu.memory_space<vmem>>, vector<8x256xf32>,
    %c16_i32_608 = arith.constant 16 : i32
    %670 = tpu.dynamic_rotate %663 by %c16_i32_608 dim 1 : vector<8x256xf32>, i32 -> vector<8x256xf32>
    %c1_609 = arith.constant 1 : index
    %c0_610 = arith.constant 0 : index
    %c0_611 = arith.constant 0 : index
    %671 = vector.load %arg4[%c1_609, %c0_610, %c0_611] : memref<9x1x256xf32, #tpu.memory_space<vmem>>, vector<1x1x256xf32>
    %672 = vector.shape_cast %671 : vector<1x1x256xf32> to vector<1x256xf32>
    %673 = vector.broadcast %672 : vector<1x256xf32> to vector<8x256xf32>
    %674 = arith.mulf %670, %673 : vector<8x256xf32>
    %c64_612 = arith.constant 64 : index
    %c0_613 = arith.constant 0 : index
    %675 = vector.load %arg6[%c64_612, %c0_613] : memref<432x256xf32, #tpu.memory_space<vmem>>, vector<8x256xf32>
    tpu.vector_store %arg6[%c64_612, %c0_613], %674 {strides = array<i32>} : memref<432x256xf32, #tpu.memory_space<vmem>>, vector<8x256xf32>,
    %c15_i32_614 = arith.constant 15 : i32
    %676 = tpu.dynamic_rotate %663 by %c15_i32_614 dim 1 : vector<8x256xf32>, i32 -> vector<8x256xf32>
    %c2_615 = arith.constant 2 : index
    %c0_616 = arith.constant 0 : index
    %c0_617 = arith.constant 0 : index
    %677 = vector.load %arg4[%c2_615, %c0_616, %c0_617] : memref<9x1x256xf32, #tpu.memory_space<vmem>>, vector<1x1x256xf32>
    %678 = vector.shape_cast %677 : vector<1x1x256xf32> to vector<1x256xf32>
    %679 = vector.broadcast %678 : vector<1x256xf32> to vector<8x256xf32>
    %680 = arith.mulf %676, %679 : vector<8x256xf32>
    %c112_618 = arith.constant 112 : index
    %c0_619 = arith.constant 0 : index
    %681 = vector.load %arg6[%c112_618, %c0_619] : memref<432x256xf32, #tpu.memory_space<vmem>>, vector<8x256xf32>
    tpu.vector_store %arg6[%c112_618, %c0_619], %680 {strides = array<i32>} : memref<432x256xf32, #tpu.memory_space<vmem>>, vector<8x256xf32>,
    %c1_i32_620 = arith.constant 1 : i32
    %682 = tpu.dynamic_rotate %663 by %c1_i32_620 dim 1 : vector<8x256xf32>, i32 -> vector<8x256xf32>
    %c3_621 = arith.constant 3 : index
    %c0_622 = arith.constant 0 : index
    %c0_623 = arith.constant 0 : index
    %683 = vector.load %arg4[%c3_621, %c0_622, %c0_623] : memref<9x1x256xf32, #tpu.memory_space<vmem>>, vector<1x1x256xf32>
    %684 = vector.shape_cast %683 : vector<1x1x256xf32> to vector<1x256xf32>
    %685 = vector.broadcast %684 : vector<1x256xf32> to vector<8x256xf32>
    %686 = arith.mulf %682, %685 : vector<8x256xf32>
    %c160_624 = arith.constant 160 : index
    %c0_625 = arith.constant 0 : index
    %687 = vector.load %arg6[%c160_624, %c0_625] : memref<432x256xf32, #tpu.memory_space<vmem>>, vector<8x256xf32>
    tpu.vector_store %arg6[%c160_624, %c0_625], %686 {strides = array<i32>} : memref<432x256xf32, #tpu.memory_space<vmem>>, vector<8x256xf32>,
    %c208_626 = arith.constant 208 : index
    %c0_627 = arith.constant 0 : index
    %688 = vector.load %arg6[%c208_626, %c0_627] : memref<432x256xf32, #tpu.memory_space<vmem>>, vector<8x256xf32>
    tpu.vector_store %arg6[%c208_626, %c0_627], %663 {strides = array<i32>} : memref<432x256xf32, #tpu.memory_space<vmem>>, vector<8x256xf32>,
    %c255_i32_628 = arith.constant 255 : i32
    %689 = tpu.dynamic_rotate %663 by %c255_i32_628 dim 1 : vector<8x256xf32>, i32 -> vector<8x256xf32>
    %c5_629 = arith.constant 5 : index
    %c0_630 = arith.constant 0 : index
    %c0_631 = arith.constant 0 : index
    %690 = vector.load %arg4[%c5_629, %c0_630, %c0_631] : memref<9x1x256xf32, #tpu.memory_space<vmem>>, vector<1x1x256xf32>
    %691 = vector.shape_cast %690 : vector<1x1x256xf32> to vector<1x256xf32>
    %692 = vector.broadcast %691 : vector<1x256xf32> to vector<8x256xf32>
    %693 = arith.mulf %689, %692 : vector<8x256xf32>
    %c256_632 = arith.constant 256 : index
    %c0_633 = arith.constant 0 : index
    %694 = vector.load %arg6[%c256_632, %c0_633] : memref<432x256xf32, #tpu.memory_space<vmem>>, vector<8x256xf32>
    tpu.vector_store %arg6[%c256_632, %c0_633], %693 {strides = array<i32>} : memref<432x256xf32, #tpu.memory_space<vmem>>, vector<8x256xf32>,
    %c241_i32_634 = arith.constant 241 : i32
    %695 = tpu.dynamic_rotate %663 by %c241_i32_634 dim 1 : vector<8x256xf32>, i32 -> vector<8x256xf32>
    %c6_635 = arith.constant 6 : index
    %c0_636 = arith.constant 0 : index
    %c0_637 = arith.constant 0 : index
    %696 = vector.load %arg4[%c6_635, %c0_636, %c0_637] : memref<9x1x256xf32, #tpu.memory_space<vmem>>, vector<1x1x256xf32>
    %697 = vector.shape_cast %696 : vector<1x1x256xf32> to vector<1x256xf32>
    %698 = vector.broadcast %697 : vector<1x256xf32> to vector<8x256xf32>
    %699 = arith.mulf %695, %698 : vector<8x256xf32>
    %c304_638 = arith.constant 304 : index
    %c0_639 = arith.constant 0 : index
    %700 = vector.load %arg6[%c304_638, %c0_639] : memref<432x256xf32, #tpu.memory_space<vmem>>, vector<8x256xf32>
    tpu.vector_store %arg6[%c304_638, %c0_639], %699 {strides = array<i32>} : memref<432x256xf32, #tpu.memory_space<vmem>>, vector<8x256xf32>,
    %c240_i32_640 = arith.constant 240 : i32
    %701 = tpu.dynamic_rotate %663 by %c240_i32_640 dim 1 : vector<8x256xf32>, i32 -> vector<8x256xf32>
    %c7_641 = arith.constant 7 : index
    %c0_642 = arith.constant 0 : index
    %c0_643 = arith.constant 0 : index
    %702 = vector.load %arg4[%c7_641, %c0_642, %c0_643] : memref<9x1x256xf32, #tpu.memory_space<vmem>>, vector<1x1x256xf32>
    %703 = vector.shape_cast %702 : vector<1x1x256xf32> to vector<1x256xf32>
    %704 = vector.broadcast %703 : vector<1x256xf32> to vector<8x256xf32>
    %705 = arith.mulf %701, %704 : vector<8x256xf32>
    %c352_644 = arith.constant 352 : index
    %c0_645 = arith.constant 0 : index
    %706 = vector.load %arg6[%c352_644, %c0_645] : memref<432x256xf32, #tpu.memory_space<vmem>>, vector<8x256xf32>
    tpu.vector_store %arg6[%c352_644, %c0_645], %705 {strides = array<i32>} : memref<432x256xf32, #tpu.memory_space<vmem>>, vector<8x256xf32>,
    %c239_i32_646 = arith.constant 239 : i32
    %707 = tpu.dynamic_rotate %663 by %c239_i32_646 dim 1 : vector<8x256xf32>, i32 -> vector<8x256xf32>
    %c8_647 = arith.constant 8 : index
    %c0_648 = arith.constant 0 : index
    %c0_649 = arith.constant 0 : index
    %708 = vector.load %arg4[%c8_647, %c0_648, %c0_649] : memref<9x1x256xf32, #tpu.memory_space<vmem>>, vector<1x1x256xf32>
    %709 = vector.shape_cast %708 : vector<1x1x256xf32> to vector<1x256xf32>
    %710 = vector.broadcast %709 : vector<1x256xf32> to vector<8x256xf32>
    %711 = arith.mulf %707, %710 : vector<8x256xf32>
    %c400_650 = arith.constant 400 : index
    %c0_651 = arith.constant 0 : index
    %712 = vector.load %arg6[%c400_650, %c0_651] : memref<432x256xf32, #tpu.memory_space<vmem>>, vector<8x256xf32>
    tpu.vector_store %arg6[%c400_650, %c0_651], %711 {strides = array<i32>} : memref<432x256xf32, #tpu.memory_space<vmem>>, vector<8x256xf32>,
    %c11 = arith.constant 11 : index
    %c0_652 = arith.constant 0 : index
    %c0_653 = arith.constant 0 : index
    %713 = vector.load %arg2[%c11, %c0_652, %c0_653] : memref<15x16x432xf32, #tpu.memory_space<vmem>>, vector<1x8x432xf32>
    %714 = vector.shape_cast %713 : vector<1x8x432xf32> to vector<8x432xf32>
    %c0_654 = arith.constant 0 : index
    %c0_655 = arith.constant 0 : index
    %715 = vector.load %arg6[%c0_654, %c0_655] : memref<432x256xf32, #tpu.memory_space<vmem>>, vector<432x256xf32>
    %cst_656 = arith.constant dense<0.000000e+00> : vector<8x256xf32>
    %716 = tpu.matmul %714, %715, %cst_656 {dimension_numbers = #tpu.dot_dimension_numbers<[1], [0], [0], [1], [0, 0, 1, 1], [], []>} : vector<8x432xf32>, vector<432x256xf32>, vector<8x256xf32> -> vector<8x256xf32>
    %c11_657 = arith.constant 11 : index
    %c0_658 = arith.constant 0 : index
    %c0_659 = arith.constant 0 : index
    %717 = vector.load %arg3[%c11_657, %c0_658, %c0_659] : memref<15x16x1xf32, #tpu.memory_space<vmem>>, vector<1x8x1xf32>
    %718 = vector.shape_cast %717 : vector<1x8x1xf32> to vector<8x1xf32>
    %719 = vector.broadcast %718 : vector<8x1xf32> to vector<8x256xf32>
    %720 = arith.addf %716, %719 : vector<8x256xf32>
    %cst_660 = arith.constant 2.000000e-01 : f32
    %721 = vector.broadcast %cst_660 : f32 to vector<8x256xf32>
    %722 = arith.mulf %720, %721 : vector<8x256xf32>
    %723 = arith.maximumf %720, %722 : vector<8x256xf32>
    %c17_i32_661 = arith.constant 17 : i32
    %724 = tpu.dynamic_rotate %723 by %c17_i32_661 dim 1 : vector<8x256xf32>, i32 -> vector<8x256xf32>
    %c0_662 = arith.constant 0 : index
    %c0_663 = arith.constant 0 : index
    %c0_664 = arith.constant 0 : index
    %725 = vector.load %arg4[%c0_662, %c0_663, %c0_664] : memref<9x1x256xf32, #tpu.memory_space<vmem>>, vector<1x1x256xf32>
    %726 = vector.shape_cast %725 : vector<1x1x256xf32> to vector<1x256xf32>
    %727 = vector.broadcast %726 : vector<1x256xf32> to vector<8x256xf32>
    %728 = arith.mulf %724, %727 : vector<8x256xf32>
    %c24_665 = arith.constant 24 : index
    %c0_666 = arith.constant 0 : index
    %729 = vector.load %arg6[%c24_665, %c0_666] : memref<432x256xf32, #tpu.memory_space<vmem>>, vector<8x256xf32>
    tpu.vector_store %arg6[%c24_665, %c0_666], %728 {strides = array<i32>} : memref<432x256xf32, #tpu.memory_space<vmem>>, vector<8x256xf32>,
    %c16_i32_667 = arith.constant 16 : i32
    %730 = tpu.dynamic_rotate %723 by %c16_i32_667 dim 1 : vector<8x256xf32>, i32 -> vector<8x256xf32>
    %c1_668 = arith.constant 1 : index
    %c0_669 = arith.constant 0 : index
    %c0_670 = arith.constant 0 : index
    %731 = vector.load %arg4[%c1_668, %c0_669, %c0_670] : memref<9x1x256xf32, #tpu.memory_space<vmem>>, vector<1x1x256xf32>
    %732 = vector.shape_cast %731 : vector<1x1x256xf32> to vector<1x256xf32>
    %733 = vector.broadcast %732 : vector<1x256xf32> to vector<8x256xf32>
    %734 = arith.mulf %730, %733 : vector<8x256xf32>
    %c72_671 = arith.constant 72 : index
    %c0_672 = arith.constant 0 : index
    %735 = vector.load %arg6[%c72_671, %c0_672] : memref<432x256xf32, #tpu.memory_space<vmem>>, vector<8x256xf32>
    tpu.vector_store %arg6[%c72_671, %c0_672], %734 {strides = array<i32>} : memref<432x256xf32, #tpu.memory_space<vmem>>, vector<8x256xf32>,
    %c15_i32_673 = arith.constant 15 : i32
    %736 = tpu.dynamic_rotate %723 by %c15_i32_673 dim 1 : vector<8x256xf32>, i32 -> vector<8x256xf32>
    %c2_674 = arith.constant 2 : index
    %c0_675 = arith.constant 0 : index
    %c0_676 = arith.constant 0 : index
    %737 = vector.load %arg4[%c2_674, %c0_675, %c0_676] : memref<9x1x256xf32, #tpu.memory_space<vmem>>, vector<1x1x256xf32>
    %738 = vector.shape_cast %737 : vector<1x1x256xf32> to vector<1x256xf32>
    %739 = vector.broadcast %738 : vector<1x256xf32> to vector<8x256xf32>
    %740 = arith.mulf %736, %739 : vector<8x256xf32>
    %c120_677 = arith.constant 120 : index
    %c0_678 = arith.constant 0 : index
    %741 = vector.load %arg6[%c120_677, %c0_678] : memref<432x256xf32, #tpu.memory_space<vmem>>, vector<8x256xf32>
    tpu.vector_store %arg6[%c120_677, %c0_678], %740 {strides = array<i32>} : memref<432x256xf32, #tpu.memory_space<vmem>>, vector<8x256xf32>,
    %c1_i32_679 = arith.constant 1 : i32
    %742 = tpu.dynamic_rotate %723 by %c1_i32_679 dim 1 : vector<8x256xf32>, i32 -> vector<8x256xf32>
    %c3_680 = arith.constant 3 : index
    %c0_681 = arith.constant 0 : index
    %c0_682 = arith.constant 0 : index
    %743 = vector.load %arg4[%c3_680, %c0_681, %c0_682] : memref<9x1x256xf32, #tpu.memory_space<vmem>>, vector<1x1x256xf32>
    %744 = vector.shape_cast %743 : vector<1x1x256xf32> to vector<1x256xf32>
    %745 = vector.broadcast %744 : vector<1x256xf32> to vector<8x256xf32>
    %746 = arith.mulf %742, %745 : vector<8x256xf32>
    %c168_683 = arith.constant 168 : index
    %c0_684 = arith.constant 0 : index
    %747 = vector.load %arg6[%c168_683, %c0_684] : memref<432x256xf32, #tpu.memory_space<vmem>>, vector<8x256xf32>
    tpu.vector_store %arg6[%c168_683, %c0_684], %746 {strides = array<i32>} : memref<432x256xf32, #tpu.memory_space<vmem>>, vector<8x256xf32>,
    %c216_685 = arith.constant 216 : index
    %c0_686 = arith.constant 0 : index
    %748 = vector.load %arg6[%c216_685, %c0_686] : memref<432x256xf32, #tpu.memory_space<vmem>>, vector<8x256xf32>
    tpu.vector_store %arg6[%c216_685, %c0_686], %723 {strides = array<i32>} : memref<432x256xf32, #tpu.memory_space<vmem>>, vector<8x256xf32>,
    %c255_i32_687 = arith.constant 255 : i32
    %749 = tpu.dynamic_rotate %723 by %c255_i32_687 dim 1 : vector<8x256xf32>, i32 -> vector<8x256xf32>
    %c5_688 = arith.constant 5 : index
    %c0_689 = arith.constant 0 : index
    %c0_690 = arith.constant 0 : index
    %750 = vector.load %arg4[%c5_688, %c0_689, %c0_690] : memref<9x1x256xf32, #tpu.memory_space<vmem>>, vector<1x1x256xf32>
    %751 = vector.shape_cast %750 : vector<1x1x256xf32> to vector<1x256xf32>
    %752 = vector.broadcast %751 : vector<1x256xf32> to vector<8x256xf32>
    %753 = arith.mulf %749, %752 : vector<8x256xf32>
    %c264_691 = arith.constant 264 : index
    %c0_692 = arith.constant 0 : index
    %754 = vector.load %arg6[%c264_691, %c0_692] : memref<432x256xf32, #tpu.memory_space<vmem>>, vector<8x256xf32>
    tpu.vector_store %arg6[%c264_691, %c0_692], %753 {strides = array<i32>} : memref<432x256xf32, #tpu.memory_space<vmem>>, vector<8x256xf32>,
    %c241_i32_693 = arith.constant 241 : i32
    %755 = tpu.dynamic_rotate %723 by %c241_i32_693 dim 1 : vector<8x256xf32>, i32 -> vector<8x256xf32>
    %c6_694 = arith.constant 6 : index
    %c0_695 = arith.constant 0 : index
    %c0_696 = arith.constant 0 : index
    %756 = vector.load %arg4[%c6_694, %c0_695, %c0_696] : memref<9x1x256xf32, #tpu.memory_space<vmem>>, vector<1x1x256xf32>
    %757 = vector.shape_cast %756 : vector<1x1x256xf32> to vector<1x256xf32>
    %758 = vector.broadcast %757 : vector<1x256xf32> to vector<8x256xf32>
    %759 = arith.mulf %755, %758 : vector<8x256xf32>
    %c312_697 = arith.constant 312 : index
    %c0_698 = arith.constant 0 : index
    %760 = vector.load %arg6[%c312_697, %c0_698] : memref<432x256xf32, #tpu.memory_space<vmem>>, vector<8x256xf32>
    tpu.vector_store %arg6[%c312_697, %c0_698], %759 {strides = array<i32>} : memref<432x256xf32, #tpu.memory_space<vmem>>, vector<8x256xf32>,
    %c240_i32_699 = arith.constant 240 : i32
    %761 = tpu.dynamic_rotate %723 by %c240_i32_699 dim 1 : vector<8x256xf32>, i32 -> vector<8x256xf32>
    %c7_700 = arith.constant 7 : index
    %c0_701 = arith.constant 0 : index
    %c0_702 = arith.constant 0 : index
    %762 = vector.load %arg4[%c7_700, %c0_701, %c0_702] : memref<9x1x256xf32, #tpu.memory_space<vmem>>, vector<1x1x256xf32>
    %763 = vector.shape_cast %762 : vector<1x1x256xf32> to vector<1x256xf32>
    %764 = vector.broadcast %763 : vector<1x256xf32> to vector<8x256xf32>
    %765 = arith.mulf %761, %764 : vector<8x256xf32>
    %c360_703 = arith.constant 360 : index
    %c0_704 = arith.constant 0 : index
    %766 = vector.load %arg6[%c360_703, %c0_704] : memref<432x256xf32, #tpu.memory_space<vmem>>, vector<8x256xf32>
    tpu.vector_store %arg6[%c360_703, %c0_704], %765 {strides = array<i32>} : memref<432x256xf32, #tpu.memory_space<vmem>>, vector<8x256xf32>,
    %c239_i32_705 = arith.constant 239 : i32
    %767 = tpu.dynamic_rotate %723 by %c239_i32_705 dim 1 : vector<8x256xf32>, i32 -> vector<8x256xf32>
    %c8_706 = arith.constant 8 : index
    %c0_707 = arith.constant 0 : index
    %c0_708 = arith.constant 0 : index
    %768 = vector.load %arg4[%c8_706, %c0_707, %c0_708] : memref<9x1x256xf32, #tpu.memory_space<vmem>>, vector<1x1x256xf32>
    %769 = vector.shape_cast %768 : vector<1x1x256xf32> to vector<1x256xf32>
    %770 = vector.broadcast %769 : vector<1x256xf32> to vector<8x256xf32>
    %771 = arith.mulf %767, %770 : vector<8x256xf32>
    %c408_709 = arith.constant 408 : index
    %c0_710 = arith.constant 0 : index
    %772 = vector.load %arg6[%c408_709, %c0_710] : memref<432x256xf32, #tpu.memory_space<vmem>>, vector<8x256xf32>
    tpu.vector_store %arg6[%c408_709, %c0_710], %771 {strides = array<i32>} : memref<432x256xf32, #tpu.memory_space<vmem>>, vector<8x256xf32>,
    %c12 = arith.constant 12 : index
    %c0_711 = arith.constant 0 : index
    %c0_712 = arith.constant 0 : index
    %773 = vector.load %arg2[%c12, %c0_711, %c0_712] : memref<15x16x432xf32, #tpu.memory_space<vmem>>, vector<1x8x432xf32>
    %774 = vector.shape_cast %773 : vector<1x8x432xf32> to vector<8x432xf32>
    %c0_713 = arith.constant 0 : index
    %c0_714 = arith.constant 0 : index
    %775 = vector.load %arg6[%c0_713, %c0_714] : memref<432x256xf32, #tpu.memory_space<vmem>>, vector<432x256xf32>
    %cst_715 = arith.constant dense<0.000000e+00> : vector<8x256xf32>
    %776 = tpu.matmul %774, %775, %cst_715 {dimension_numbers = #tpu.dot_dimension_numbers<[1], [0], [0], [1], [0, 0, 1, 1], [], []>} : vector<8x432xf32>, vector<432x256xf32>, vector<8x256xf32> -> vector<8x256xf32>
    %c12_716 = arith.constant 12 : index
    %c0_717 = arith.constant 0 : index
    %c0_718 = arith.constant 0 : index
    %777 = vector.load %arg3[%c12_716, %c0_717, %c0_718] : memref<15x16x1xf32, #tpu.memory_space<vmem>>, vector<1x8x1xf32>
    %778 = vector.shape_cast %777 : vector<1x8x1xf32> to vector<8x1xf32>
    %779 = vector.broadcast %778 : vector<8x1xf32> to vector<8x256xf32>
    %780 = arith.addf %776, %779 : vector<8x256xf32>
    %cst_719 = arith.constant 2.000000e-01 : f32
    %781 = vector.broadcast %cst_719 : f32 to vector<8x256xf32>
    %782 = arith.mulf %780, %781 : vector<8x256xf32>
    %783 = arith.maximumf %780, %782 : vector<8x256xf32>
    %c17_i32_720 = arith.constant 17 : i32
    %784 = tpu.dynamic_rotate %783 by %c17_i32_720 dim 1 : vector<8x256xf32>, i32 -> vector<8x256xf32>
    %c0_721 = arith.constant 0 : index
    %c0_722 = arith.constant 0 : index
    %c0_723 = arith.constant 0 : index
    %785 = vector.load %arg4[%c0_721, %c0_722, %c0_723] : memref<9x1x256xf32, #tpu.memory_space<vmem>>, vector<1x1x256xf32>
    %786 = vector.shape_cast %785 : vector<1x1x256xf32> to vector<1x256xf32>
    %787 = vector.broadcast %786 : vector<1x256xf32> to vector<8x256xf32>
    %788 = arith.mulf %784, %787 : vector<8x256xf32>
    %c32_724 = arith.constant 32 : index
    %c0_725 = arith.constant 0 : index
    %789 = vector.load %arg6[%c32_724, %c0_725] : memref<432x256xf32, #tpu.memory_space<vmem>>, vector<8x256xf32>
    tpu.vector_store %arg6[%c32_724, %c0_725], %788 {strides = array<i32>} : memref<432x256xf32, #tpu.memory_space<vmem>>, vector<8x256xf32>,
    %c16_i32_726 = arith.constant 16 : i32
    %790 = tpu.dynamic_rotate %783 by %c16_i32_726 dim 1 : vector<8x256xf32>, i32 -> vector<8x256xf32>
    %c1_727 = arith.constant 1 : index
    %c0_728 = arith.constant 0 : index
    %c0_729 = arith.constant 0 : index
    %791 = vector.load %arg4[%c1_727, %c0_728, %c0_729] : memref<9x1x256xf32, #tpu.memory_space<vmem>>, vector<1x1x256xf32>
    %792 = vector.shape_cast %791 : vector<1x1x256xf32> to vector<1x256xf32>
    %793 = vector.broadcast %792 : vector<1x256xf32> to vector<8x256xf32>
    %794 = arith.mulf %790, %793 : vector<8x256xf32>
    %c80_730 = arith.constant 80 : index
    %c0_731 = arith.constant 0 : index
    %795 = vector.load %arg6[%c80_730, %c0_731] : memref<432x256xf32, #tpu.memory_space<vmem>>, vector<8x256xf32>
    tpu.vector_store %arg6[%c80_730, %c0_731], %794 {strides = array<i32>} : memref<432x256xf32, #tpu.memory_space<vmem>>, vector<8x256xf32>,
    %c15_i32_732 = arith.constant 15 : i32
    %796 = tpu.dynamic_rotate %783 by %c15_i32_732 dim 1 : vector<8x256xf32>, i32 -> vector<8x256xf32>
    %c2_733 = arith.constant 2 : index
    %c0_734 = arith.constant 0 : index
    %c0_735 = arith.constant 0 : index
    %797 = vector.load %arg4[%c2_733, %c0_734, %c0_735] : memref<9x1x256xf32, #tpu.memory_space<vmem>>, vector<1x1x256xf32>
    %798 = vector.shape_cast %797 : vector<1x1x256xf32> to vector<1x256xf32>
    %799 = vector.broadcast %798 : vector<1x256xf32> to vector<8x256xf32>
    %800 = arith.mulf %796, %799 : vector<8x256xf32>
    %c128_736 = arith.constant 128 : index
    %c0_737 = arith.constant 0 : index
    %801 = vector.load %arg6[%c128_736, %c0_737] : memref<432x256xf32, #tpu.memory_space<vmem>>, vector<8x256xf32>
    tpu.vector_store %arg6[%c128_736, %c0_737], %800 {strides = array<i32>} : memref<432x256xf32, #tpu.memory_space<vmem>>, vector<8x256xf32>,
    %c1_i32_738 = arith.constant 1 : i32
    %802 = tpu.dynamic_rotate %783 by %c1_i32_738 dim 1 : vector<8x256xf32>, i32 -> vector<8x256xf32>
    %c3_739 = arith.constant 3 : index
    %c0_740 = arith.constant 0 : index
    %c0_741 = arith.constant 0 : index
    %803 = vector.load %arg4[%c3_739, %c0_740, %c0_741] : memref<9x1x256xf32, #tpu.memory_space<vmem>>, vector<1x1x256xf32>
    %804 = vector.shape_cast %803 : vector<1x1x256xf32> to vector<1x256xf32>
    %805 = vector.broadcast %804 : vector<1x256xf32> to vector<8x256xf32>
    %806 = arith.mulf %802, %805 : vector<8x256xf32>
    %c176_742 = arith.constant 176 : index
    %c0_743 = arith.constant 0 : index
    %807 = vector.load %arg6[%c176_742, %c0_743] : memref<432x256xf32, #tpu.memory_space<vmem>>, vector<8x256xf32>
    tpu.vector_store %arg6[%c176_742, %c0_743], %806 {strides = array<i32>} : memref<432x256xf32, #tpu.memory_space<vmem>>, vector<8x256xf32>,
    %c224_744 = arith.constant 224 : index
    %c0_745 = arith.constant 0 : index
    %808 = vector.load %arg6[%c224_744, %c0_745] : memref<432x256xf32, #tpu.memory_space<vmem>>, vector<8x256xf32>
    tpu.vector_store %arg6[%c224_744, %c0_745], %783 {strides = array<i32>} : memref<432x256xf32, #tpu.memory_space<vmem>>, vector<8x256xf32>,
    %c255_i32_746 = arith.constant 255 : i32
    %809 = tpu.dynamic_rotate %783 by %c255_i32_746 dim 1 : vector<8x256xf32>, i32 -> vector<8x256xf32>
    %c5_747 = arith.constant 5 : index
    %c0_748 = arith.constant 0 : index
    %c0_749 = arith.constant 0 : index
    %810 = vector.load %arg4[%c5_747, %c0_748, %c0_749] : memref<9x1x256xf32, #tpu.memory_space<vmem>>, vector<1x1x256xf32>
    %811 = vector.shape_cast %810 : vector<1x1x256xf32> to vector<1x256xf32>
    %812 = vector.broadcast %811 : vector<1x256xf32> to vector<8x256xf32>
    %813 = arith.mulf %809, %812 : vector<8x256xf32>
    %c272_750 = arith.constant 272 : index
    %c0_751 = arith.constant 0 : index
    %814 = vector.load %arg6[%c272_750, %c0_751] : memref<432x256xf32, #tpu.memory_space<vmem>>, vector<8x256xf32>
    tpu.vector_store %arg6[%c272_750, %c0_751], %813 {strides = array<i32>} : memref<432x256xf32, #tpu.memory_space<vmem>>, vector<8x256xf32>,
    %c241_i32_752 = arith.constant 241 : i32
    %815 = tpu.dynamic_rotate %783 by %c241_i32_752 dim 1 : vector<8x256xf32>, i32 -> vector<8x256xf32>
    %c6_753 = arith.constant 6 : index
    %c0_754 = arith.constant 0 : index
    %c0_755 = arith.constant 0 : index
    %816 = vector.load %arg4[%c6_753, %c0_754, %c0_755] : memref<9x1x256xf32, #tpu.memory_space<vmem>>, vector<1x1x256xf32>
    %817 = vector.shape_cast %816 : vector<1x1x256xf32> to vector<1x256xf32>
    %818 = vector.broadcast %817 : vector<1x256xf32> to vector<8x256xf32>
    %819 = arith.mulf %815, %818 : vector<8x256xf32>
    %c320_756 = arith.constant 320 : index
    %c0_757 = arith.constant 0 : index
    %820 = vector.load %arg6[%c320_756, %c0_757] : memref<432x256xf32, #tpu.memory_space<vmem>>, vector<8x256xf32>
    tpu.vector_store %arg6[%c320_756, %c0_757], %819 {strides = array<i32>} : memref<432x256xf32, #tpu.memory_space<vmem>>, vector<8x256xf32>,
    %c240_i32_758 = arith.constant 240 : i32
    %821 = tpu.dynamic_rotate %783 by %c240_i32_758 dim 1 : vector<8x256xf32>, i32 -> vector<8x256xf32>
    %c7_759 = arith.constant 7 : index
    %c0_760 = arith.constant 0 : index
    %c0_761 = arith.constant 0 : index
    %822 = vector.load %arg4[%c7_759, %c0_760, %c0_761] : memref<9x1x256xf32, #tpu.memory_space<vmem>>, vector<1x1x256xf32>
    %823 = vector.shape_cast %822 : vector<1x1x256xf32> to vector<1x256xf32>
    %824 = vector.broadcast %823 : vector<1x256xf32> to vector<8x256xf32>
    %825 = arith.mulf %821, %824 : vector<8x256xf32>
    %c368_762 = arith.constant 368 : index
    %c0_763 = arith.constant 0 : index
    %826 = vector.load %arg6[%c368_762, %c0_763] : memref<432x256xf32, #tpu.memory_space<vmem>>, vector<8x256xf32>
    tpu.vector_store %arg6[%c368_762, %c0_763], %825 {strides = array<i32>} : memref<432x256xf32, #tpu.memory_space<vmem>>, vector<8x256xf32>,
    %c239_i32_764 = arith.constant 239 : i32
    %827 = tpu.dynamic_rotate %783 by %c239_i32_764 dim 1 : vector<8x256xf32>, i32 -> vector<8x256xf32>
    %c8_765 = arith.constant 8 : index
    %c0_766 = arith.constant 0 : index
    %c0_767 = arith.constant 0 : index
    %828 = vector.load %arg4[%c8_765, %c0_766, %c0_767] : memref<9x1x256xf32, #tpu.memory_space<vmem>>, vector<1x1x256xf32>
    %829 = vector.shape_cast %828 : vector<1x1x256xf32> to vector<1x256xf32>
    %830 = vector.broadcast %829 : vector<1x256xf32> to vector<8x256xf32>
    %831 = arith.mulf %827, %830 : vector<8x256xf32>
    %c416_768 = arith.constant 416 : index
    %c0_769 = arith.constant 0 : index
    %832 = vector.load %arg6[%c416_768, %c0_769] : memref<432x256xf32, #tpu.memory_space<vmem>>, vector<8x256xf32>
    tpu.vector_store %arg6[%c416_768, %c0_769], %831 {strides = array<i32>} : memref<432x256xf32, #tpu.memory_space<vmem>>, vector<8x256xf32>,
    %c13 = arith.constant 13 : index
    %c0_770 = arith.constant 0 : index
    %c0_771 = arith.constant 0 : index
    %833 = vector.load %arg2[%c13, %c0_770, %c0_771] : memref<15x16x432xf32, #tpu.memory_space<vmem>>, vector<1x8x432xf32>
    %834 = vector.shape_cast %833 : vector<1x8x432xf32> to vector<8x432xf32>
    %c0_772 = arith.constant 0 : index
    %c0_773 = arith.constant 0 : index
    %835 = vector.load %arg6[%c0_772, %c0_773] : memref<432x256xf32, #tpu.memory_space<vmem>>, vector<432x256xf32>
    %cst_774 = arith.constant dense<0.000000e+00> : vector<8x256xf32>
    %836 = tpu.matmul %834, %835, %cst_774 {dimension_numbers = #tpu.dot_dimension_numbers<[1], [0], [0], [1], [0, 0, 1, 1], [], []>} : vector<8x432xf32>, vector<432x256xf32>, vector<8x256xf32> -> vector<8x256xf32>
    %c13_775 = arith.constant 13 : index
    %c0_776 = arith.constant 0 : index
    %c0_777 = arith.constant 0 : index
    %837 = vector.load %arg3[%c13_775, %c0_776, %c0_777] : memref<15x16x1xf32, #tpu.memory_space<vmem>>, vector<1x8x1xf32>
    %838 = vector.shape_cast %837 : vector<1x8x1xf32> to vector<8x1xf32>
    %839 = vector.broadcast %838 : vector<8x1xf32> to vector<8x256xf32>
    %840 = arith.addf %836, %839 : vector<8x256xf32>
    %cst_778 = arith.constant 2.000000e-01 : f32
    %841 = vector.broadcast %cst_778 : f32 to vector<8x256xf32>
    %842 = arith.mulf %840, %841 : vector<8x256xf32>
    %843 = arith.maximumf %840, %842 : vector<8x256xf32>
    %c17_i32_779 = arith.constant 17 : i32
    %844 = tpu.dynamic_rotate %843 by %c17_i32_779 dim 1 : vector<8x256xf32>, i32 -> vector<8x256xf32>
    %c0_780 = arith.constant 0 : index
    %c0_781 = arith.constant 0 : index
    %c0_782 = arith.constant 0 : index
    %845 = vector.load %arg4[%c0_780, %c0_781, %c0_782] : memref<9x1x256xf32, #tpu.memory_space<vmem>>, vector<1x1x256xf32>
    %846 = vector.shape_cast %845 : vector<1x1x256xf32> to vector<1x256xf32>
    %847 = vector.broadcast %846 : vector<1x256xf32> to vector<8x256xf32>
    %848 = arith.mulf %844, %847 : vector<8x256xf32>
    %c40_783 = arith.constant 40 : index
    %c0_784 = arith.constant 0 : index
    %849 = vector.load %arg6[%c40_783, %c0_784] : memref<432x256xf32, #tpu.memory_space<vmem>>, vector<8x256xf32>
    tpu.vector_store %arg6[%c40_783, %c0_784], %848 {strides = array<i32>} : memref<432x256xf32, #tpu.memory_space<vmem>>, vector<8x256xf32>,
    %c16_i32_785 = arith.constant 16 : i32
    %850 = tpu.dynamic_rotate %843 by %c16_i32_785 dim 1 : vector<8x256xf32>, i32 -> vector<8x256xf32>
    %c1_786 = arith.constant 1 : index
    %c0_787 = arith.constant 0 : index
    %c0_788 = arith.constant 0 : index
    %851 = vector.load %arg4[%c1_786, %c0_787, %c0_788] : memref<9x1x256xf32, #tpu.memory_space<vmem>>, vector<1x1x256xf32>
    %852 = vector.shape_cast %851 : vector<1x1x256xf32> to vector<1x256xf32>
    %853 = vector.broadcast %852 : vector<1x256xf32> to vector<8x256xf32>
    %854 = arith.mulf %850, %853 : vector<8x256xf32>
    %c88_789 = arith.constant 88 : index
    %c0_790 = arith.constant 0 : index
    %855 = vector.load %arg6[%c88_789, %c0_790] : memref<432x256xf32, #tpu.memory_space<vmem>>, vector<8x256xf32>
    tpu.vector_store %arg6[%c88_789, %c0_790], %854 {strides = array<i32>} : memref<432x256xf32, #tpu.memory_space<vmem>>, vector<8x256xf32>,
    %c15_i32_791 = arith.constant 15 : i32
    %856 = tpu.dynamic_rotate %843 by %c15_i32_791 dim 1 : vector<8x256xf32>, i32 -> vector<8x256xf32>
    %c2_792 = arith.constant 2 : index
    %c0_793 = arith.constant 0 : index
    %c0_794 = arith.constant 0 : index
    %857 = vector.load %arg4[%c2_792, %c0_793, %c0_794] : memref<9x1x256xf32, #tpu.memory_space<vmem>>, vector<1x1x256xf32>
    %858 = vector.shape_cast %857 : vector<1x1x256xf32> to vector<1x256xf32>
    %859 = vector.broadcast %858 : vector<1x256xf32> to vector<8x256xf32>
    %860 = arith.mulf %856, %859 : vector<8x256xf32>
    %c136_795 = arith.constant 136 : index
    %c0_796 = arith.constant 0 : index
    %861 = vector.load %arg6[%c136_795, %c0_796] : memref<432x256xf32, #tpu.memory_space<vmem>>, vector<8x256xf32>
    tpu.vector_store %arg6[%c136_795, %c0_796], %860 {strides = array<i32>} : memref<432x256xf32, #tpu.memory_space<vmem>>, vector<8x256xf32>,
    %c1_i32_797 = arith.constant 1 : i32
    %862 = tpu.dynamic_rotate %843 by %c1_i32_797 dim 1 : vector<8x256xf32>, i32 -> vector<8x256xf32>
    %c3_798 = arith.constant 3 : index
    %c0_799 = arith.constant 0 : index
    %c0_800 = arith.constant 0 : index
    %863 = vector.load %arg4[%c3_798, %c0_799, %c0_800] : memref<9x1x256xf32, #tpu.memory_space<vmem>>, vector<1x1x256xf32>
    %864 = vector.shape_cast %863 : vector<1x1x256xf32> to vector<1x256xf32>
    %865 = vector.broadcast %864 : vector<1x256xf32> to vector<8x256xf32>
    %866 = arith.mulf %862, %865 : vector<8x256xf32>
    %c184_801 = arith.constant 184 : index
    %c0_802 = arith.constant 0 : index
    %867 = vector.load %arg6[%c184_801, %c0_802] : memref<432x256xf32, #tpu.memory_space<vmem>>, vector<8x256xf32>
    tpu.vector_store %arg6[%c184_801, %c0_802], %866 {strides = array<i32>} : memref<432x256xf32, #tpu.memory_space<vmem>>, vector<8x256xf32>,
    %c232_803 = arith.constant 232 : index
    %c0_804 = arith.constant 0 : index
    %868 = vector.load %arg6[%c232_803, %c0_804] : memref<432x256xf32, #tpu.memory_space<vmem>>, vector<8x256xf32>
    tpu.vector_store %arg6[%c232_803, %c0_804], %843 {strides = array<i32>} : memref<432x256xf32, #tpu.memory_space<vmem>>, vector<8x256xf32>,
    %c255_i32_805 = arith.constant 255 : i32
    %869 = tpu.dynamic_rotate %843 by %c255_i32_805 dim 1 : vector<8x256xf32>, i32 -> vector<8x256xf32>
    %c5_806 = arith.constant 5 : index
    %c0_807 = arith.constant 0 : index
    %c0_808 = arith.constant 0 : index
    %870 = vector.load %arg4[%c5_806, %c0_807, %c0_808] : memref<9x1x256xf32, #tpu.memory_space<vmem>>, vector<1x1x256xf32>
    %871 = vector.shape_cast %870 : vector<1x1x256xf32> to vector<1x256xf32>
    %872 = vector.broadcast %871 : vector<1x256xf32> to vector<8x256xf32>
    %873 = arith.mulf %869, %872 : vector<8x256xf32>
    %c280_809 = arith.constant 280 : index
    %c0_810 = arith.constant 0 : index
    %874 = vector.load %arg6[%c280_809, %c0_810] : memref<432x256xf32, #tpu.memory_space<vmem>>, vector<8x256xf32>
    tpu.vector_store %arg6[%c280_809, %c0_810], %873 {strides = array<i32>} : memref<432x256xf32, #tpu.memory_space<vmem>>, vector<8x256xf32>,
    %c241_i32_811 = arith.constant 241 : i32
    %875 = tpu.dynamic_rotate %843 by %c241_i32_811 dim 1 : vector<8x256xf32>, i32 -> vector<8x256xf32>
    %c6_812 = arith.constant 6 : index
    %c0_813 = arith.constant 0 : index
    %c0_814 = arith.constant 0 : index
    %876 = vector.load %arg4[%c6_812, %c0_813, %c0_814] : memref<9x1x256xf32, #tpu.memory_space<vmem>>, vector<1x1x256xf32>
    %877 = vector.shape_cast %876 : vector<1x1x256xf32> to vector<1x256xf32>
    %878 = vector.broadcast %877 : vector<1x256xf32> to vector<8x256xf32>
    %879 = arith.mulf %875, %878 : vector<8x256xf32>
    %c328_815 = arith.constant 328 : index
    %c0_816 = arith.constant 0 : index
    %880 = vector.load %arg6[%c328_815, %c0_816] : memref<432x256xf32, #tpu.memory_space<vmem>>, vector<8x256xf32>
    tpu.vector_store %arg6[%c328_815, %c0_816], %879 {strides = array<i32>} : memref<432x256xf32, #tpu.memory_space<vmem>>, vector<8x256xf32>,
    %c240_i32_817 = arith.constant 240 : i32
    %881 = tpu.dynamic_rotate %843 by %c240_i32_817 dim 1 : vector<8x256xf32>, i32 -> vector<8x256xf32>
    %c7_818 = arith.constant 7 : index
    %c0_819 = arith.constant 0 : index
    %c0_820 = arith.constant 0 : index
    %882 = vector.load %arg4[%c7_818, %c0_819, %c0_820] : memref<9x1x256xf32, #tpu.memory_space<vmem>>, vector<1x1x256xf32>
    %883 = vector.shape_cast %882 : vector<1x1x256xf32> to vector<1x256xf32>
    %884 = vector.broadcast %883 : vector<1x256xf32> to vector<8x256xf32>
    %885 = arith.mulf %881, %884 : vector<8x256xf32>
    %c376_821 = arith.constant 376 : index
    %c0_822 = arith.constant 0 : index
    %886 = vector.load %arg6[%c376_821, %c0_822] : memref<432x256xf32, #tpu.memory_space<vmem>>, vector<8x256xf32>
    tpu.vector_store %arg6[%c376_821, %c0_822], %885 {strides = array<i32>} : memref<432x256xf32, #tpu.memory_space<vmem>>, vector<8x256xf32>,
    %c239_i32_823 = arith.constant 239 : i32
    %887 = tpu.dynamic_rotate %843 by %c239_i32_823 dim 1 : vector<8x256xf32>, i32 -> vector<8x256xf32>
    %c8_824 = arith.constant 8 : index
    %c0_825 = arith.constant 0 : index
    %c0_826 = arith.constant 0 : index
    %888 = vector.load %arg4[%c8_824, %c0_825, %c0_826] : memref<9x1x256xf32, #tpu.memory_space<vmem>>, vector<1x1x256xf32>
    %889 = vector.shape_cast %888 : vector<1x1x256xf32> to vector<1x256xf32>
    %890 = vector.broadcast %889 : vector<1x256xf32> to vector<8x256xf32>
    %891 = arith.mulf %887, %890 : vector<8x256xf32>
    %c424_827 = arith.constant 424 : index
    %c0_828 = arith.constant 0 : index
    %892 = vector.load %arg6[%c424_827, %c0_828] : memref<432x256xf32, #tpu.memory_space<vmem>>, vector<8x256xf32>
    tpu.vector_store %arg6[%c424_827, %c0_828], %891 {strides = array<i32>} : memref<432x256xf32, #tpu.memory_space<vmem>>, vector<8x256xf32>,
    %c14 = arith.constant 14 : index
    %c0_829 = arith.constant 0 : index
    %c0_830 = arith.constant 0 : index
    %893 = vector.load %arg2[%c14, %c0_829, %c0_830] : memref<15x16x432xf32, #tpu.memory_space<vmem>>, vector<1x16x432xf32>
    %894 = vector.shape_cast %893 : vector<1x16x432xf32> to vector<16x432xf32>
    %c0_831 = arith.constant 0 : index
    %c0_832 = arith.constant 0 : index
    %895 = vector.load %arg6[%c0_831, %c0_832] : memref<432x256xf32, #tpu.memory_space<vmem>>, vector<432x256xf32>
    %cst_833 = arith.constant dense<0.000000e+00> : vector<16x256xf32>
    %896 = tpu.matmul %894, %895, %cst_833 {dimension_numbers = #tpu.dot_dimension_numbers<[1], [0], [0], [1], [0, 0, 1, 1], [], []>} : vector<16x432xf32>, vector<432x256xf32>, vector<16x256xf32> -> vector<16x256xf32>
    %c14_834 = arith.constant 14 : index
    %c0_835 = arith.constant 0 : index
    %c0_836 = arith.constant 0 : index
    %897 = vector.load %arg3[%c14_834, %c0_835, %c0_836] : memref<15x16x1xf32, #tpu.memory_space<vmem>>, vector<1x16x1xf32>
    %898 = vector.shape_cast %897 : vector<1x16x1xf32> to vector<16x1xf32>
    %899 = vector.broadcast %898 : vector<16x1xf32> to vector<16x256xf32>
    %900 = arith.addf %896, %899 : vector<16x256xf32>
    %cst_837 = arith.constant 2.000000e-01 : f32
    %901 = vector.broadcast %cst_837 : f32 to vector<16x256xf32>
    %902 = arith.mulf %900, %901 : vector<16x256xf32>
    %903 = arith.addf %902, %603 : vector<16x256xf32>
    %cst_838 = arith.constant 2.000000e-01 : f32
    %904 = vector.broadcast %cst_838 : f32 to vector<16x256xf32>
    %905 = arith.mulf %903, %904 : vector<16x256xf32>
    %c0_839 = arith.constant 0 : index
    %c0_840 = arith.constant 0 : index
    %c0_841 = arith.constant 0 : index
    %906 = vector.load %arg1[%c0_839, %c0_840, %c0_841] : memref<1x16x256xf32, #tpu.memory_space<vmem>>, vector<1x16x256xf32>
    %907 = vector.shape_cast %906 : vector<1x16x256xf32> to vector<16x256xf32>
    %908 = arith.addf %905, %907 : vector<16x256xf32>
    %c0_842 = arith.constant 0 : index
    %c0_843 = arith.constant 0 : index
    %c0_844 = arith.constant 0 : index
    %909 = vector.load %arg5[%c0_842, %c0_843, %c0_844] : memref<1x16x256xf32, #tpu.memory_space<vmem>>, vector<1x16x256xf32>
    %910 = vector.shape_cast %909 : vector<1x16x256xf32> to vector<16x256xf32>
    %911 = vector.shape_cast %908 : vector<16x256xf32> to vector<1x16x256xf32>
    tpu.vector_store %arg5[%c0_842, %c0_843, %c0_844], %911 {strides = array<i32>} : memref<1x16x256xf32, #tpu.memory_space<vmem>>, vector<1x16x256xf32>,
    return
  }
  func.func @transform_0(%arg0: i32) -> (i32, i32, i32) {
    %c0_i32 = arith.constant 0 : i32
    %c0_i32_0 = arith.constant 0 : i32
    %c0_i32_1 = arith.constant 0 : i32
    return %arg0, %c0_i32, %c0_i32_0 : i32, i32, i32
  }
  func.func @transform_1(%arg0: i32) -> (i32, i32, i32) {
    %c0_i32 = arith.constant 0 : i32
    %c0_i32_0 = arith.constant 0 : i32
    %c0_i32_1 = arith.constant 0 : i32
    %c0_i32_2 = arith.constant 0 : i32
    return %c0_i32, %c0_i32_0, %c0_i32_1 : i32, i32, i32
  }
  func.func @transform_2(%arg0: i32) -> (i32, i32, i32) {
    %c0_i32 = arith.constant 0 : i32
    %c0_i32_0 = arith.constant 0 : i32
    %c0_i32_1 = arith.constant 0 : i32
    %c0_i32_2 = arith.constant 0 : i32
    return %c0_i32, %c0_i32_0, %c0_i32_1 : i32, i32, i32
  }
  func.func @transform_3(%arg0: i32) -> (i32, i32, i32) {
    %c0_i32 = arith.constant 0 : i32
    %c0_i32_0 = arith.constant 0 : i32
    %c0_i32_1 = arith.constant 0 : i32
    %c0_i32_2 = arith.constant 0 : i32
    return %c0_i32, %c0_i32_0, %c0_i32_1 : i32, i32, i32
  }
  func.func @transform_4(%arg0: i32) -> (i32, i32, i32) {
    %c0_i32 = arith.constant 0 : i32
    %c0_i32_0 = arith.constant 0 : i32
    %c0_i32_1 = arith.constant 0 : i32
    return %arg0, %c0_i32, %c0_i32_0 : i32, i32, i32
  }
}

</mosaic_0001>

<llo_original>
// kernel: rrdb_forward.1
$region0: #{rrdb_forward.1}
  #allocation0 [shape = 'u32[]', space=smem, size = 0x4, offset = 0x4, fixed_abs, tag = 'smem constant byte address 0x4 - core index']
  #allocation1 [shape = 'u32[144,128]{1,0:T(1,128)}', space=vmem, size = 0x12000, scoped, tag = 'internal scratch']
  #allocation2 [shape = 'f32[432,256]{1,0:T(8,128)}', space=vmem, size = 0x6c000, scoped, tag = 'scratch operand']
  %s0 = inlined_call_operand.vmem [shape: f32[2,16,256], index: 0, kind: input, shape index: {}]
  %s1 = inlined_call_operand.vmem [shape: f32[15,16,432], index: 1, kind: input, shape index: {}]
  %s2 = inlined_call_operand.vmem [shape: f32[15,16,1], index: 2, kind: input, shape index: {}]
  %s3 = inlined_call_operand.vmem [shape: f32[9,1,256], index: 3, kind: input, shape index: {}]
  %s4 = inlined_call_operand.vmem [shape: f32[2,16,256], index: 4, kind: output, shape index: {}]
  %s5 = sld [smem:[#allocation0]]
  $region49: #{rrdb_forward.1} parent=0
    _
  %s7 = ssub.s32 1, %s5
  %s8 = scalar_select 0, %s7, %s5
  loop: start=0, step=1, limit=4
  $region2: #{rrdb_forward.1} parent=0 // loop_pre_header
    _
  $region3: #{rrdb_forward.1} parent=0 // loop_header
    %s10 = sphi 0, %s14
    %p11 = scmp.ge.s32.totalorder %s10, 4
    %s20 = sphi 0, %s22
    %s23 = sphi 0, %s20
    %s24 = sphi 0, %s23
    %s40 = sphi 0, %s24
    %s44 = sphi 0, %s44
    %s46 = sphi 0, %s44
    %s47 = sphi 0, %s46
    %s61 = sphi 0, %s47
    %s65 = sphi 0, %s65
    %s67 = sphi 0, %s65
    %s68 = sphi 0, %s67
    %s82 = sphi 0, %s68
    %s86 = sphi 0, %s86
    %s88 = sphi 0, %s86
    %s89 = sphi 0, %s88
    %s103 = sphi 0, %s89
    %s109 = sphi 0, %s111
    %s112 = sphi 0, %s109
    %s113 = sphi 0, %s112
    %s129 = sphi 0, %s113
  $region4: #{rrdb_forward.1} parent=0 // loop_header_branch
    %13 = sbr.rel (%p11) target = $region8
  $region5: #{rrdb_forward.1} parent=0 // loop_body
    %s15 = ssub.s32 %s10, 1
    %s16 = ssub.s32 %s10, 2
    %s17 = sadd.s32 %s10, 1
    %s18 = ssub.s32 %s10, %s17
    %p19 = scmp.eq.s32.totalorder %s18, 0
    %s21 = sadd.s32 %s20, 1
    %s22 = scalar_select %p19, %s20, %s21
    %p25 = pneg %p19
    %p26 = scmp.eq.s32.totalorder %s10, 1
    %p27 = por %p25, %p26
    %p28 = scmp.ne.s32.totalorder %s20, %s23
    %p29 = scmp.eq.s32.totalorder %s10, 0
    %p30 = por %p28, %p29
    %p31 = scmp.ne.s32.totalorder %s20, %s23
    %p32 = scmp.eq.s32.totalorder %s15, 1
    %p33 = por %p31, %p32
    %p34 = scmp.ne.s32.totalorder %s23, %s24
    %p35 = scmp.eq.s32.totalorder %s15, 0
    %p36 = por %p34, %p35
    %p37 = scmp.ne.s32.totalorder %s23, %s24
    %p38 = scmp.eq.s32.totalorder %s16, 1
    %p39 = por %p37, %p38
    %p41 = scmp.ne.s32.totalorder %s24, %s40
    %p42 = scmp.eq.s32.totalorder %s16, 0
    %p43 = por %p41, %p42
    %s45 = sadd.s32 %s44, 1
    %p48 = scmp.eq.s32.totalorder %s10, 1
    %p49 = scmp.ne.s32.totalorder %s44, %s46
    %p50 = scmp.eq.s32.totalorder %s10, 0
    %p51 = por %p49, %p50
    %p52 = scmp.ne.s32.totalorder %s44, %s46
    %p53 = scmp.eq.s32.totalorder %s15, 1
    %p54 = por %p52, %p53
    %p55 = scmp.ne.s32.totalorder %s46, %s47
    %p56 = scmp.eq.s32.totalorder %s15, 0
    %p57 = por %p55, %p56
    %p58 = scmp.ne.s32.totalorder %s46, %s47
    %p59 = scmp.eq.s32.totalorder %s16, 1
    %p60 = por %p58, %p59
    %p62 = scmp.ne.s32.totalorder %s47, %s61
    %p63 = scmp.eq.s32.totalorder %s16, 0
    %p64 = por %p62, %p63
    %s66 = sadd.s32 %s65, 1
    %p69 = scmp.eq.s32.totalorder %s10, 1
    %p70 = scmp.ne.s32.totalorder %s65, %s67
    %p71 = scmp.eq.s32.totalorder %s10, 0
    %p72 = por %p70, %p71
    %p73 = scmp.ne.s32.totalorder %s65, %s67
    %p74 = scmp.eq.s32.totalorder %s15, 1
    %p75 = por %p73, %p74
    %p76 = scmp.ne.s32.totalorder %s67, %s68
    %p77 = scmp.eq.s32.totalorder %s15, 0
    %p78 = por %p76, %p77
    %p79 = scmp.ne.s32.totalorder %s67, %s68
    %p80 = scmp.eq.s32.totalorder %s16, 1
    %p81 = por %p79, %p80
    %p83 = scmp.ne.s32.totalorder %s68, %s82
    %p84 = scmp.eq.s32.totalorder %s16, 0
    %p85 = por %p83, %p84
    %s87 = sadd.s32 %s86, 1
    %p90 = scmp.eq.s32.totalorder %s10, 1
    %p91 = scmp.ne.s32.totalorder %s86, %s88
    %p92 = scmp.eq.s32.totalorder %s10, 0
    %p93 = por %p91, %p92
    %p94 = scmp.ne.s32.totalorder %s86, %s88
    %p95 = scmp.eq.s32.totalorder %s15, 1
    %p96 = por %p94, %p95
    %p97 = scmp.ne.s32.totalorder %s88, %s89
    %p98 = scmp.eq.s32.totalorder %s15, 0
    %p99 = por %p97, %p98
    %p100 = scmp.ne.s32.totalorder %s88, %s89
    %p101 = scmp.eq.s32.totalorder %s16, 1
    %p102 = por %p100, %p101
    %p104 = scmp.ne.s32.totalorder %s89, %s103
    %p105 = scmp.eq.s32.totalorder %s16, 0
    %p106 = por %p104, %p105
    %s107 = ssub.s32 %s10, %s17
    %p108 = scmp.eq.s32.totalorder %s107, 0
    %s110 = sadd.s32 %s109, 1
    %s111 = scalar_select %p108, %s109, %s110
    %p114 = pneg %p108
    %p115 = scmp.eq.s32.totalorder %s10, 1
    %p116 = por %p114, %p115
    %p117 = scmp.ne.s32.totalorder %s109, %s112
    %p118 = scmp.eq.s32.totalorder %s10, 0
    %p119 = por %p117, %p118
    %p120 = scmp.ne.s32.totalorder %s109, %s112
    %p121 = scmp.eq.s32.totalorder %s15, 1
    %p122 = por %p120, %p121
    %p123 = scmp.ne.s32.totalorder %s112, %s113
    %p124 = scmp.eq.s32.totalorder %s15, 0
    %p125 = por %p123, %p124
    %p126 = scmp.ne.s32.totalorder %s112, %s113
    %p127 = scmp.eq.s32.totalorder %s16, 1
    %p128 = por %p126, %p127
    %p130 = scmp.ne.s32.totalorder %s113, %s129
    %p131 = scmp.eq.s32.totalorder %s16, 0
    %p132 = por %p130, %p131
    %p133 = scmp.le.s32.totalorder 1, %s10
    %p134 = scmp.lt.s32.totalorder %s10, 3
    %p135 = pnand %p133, %p134
    %p136 = pneg %p135
    // Predicated region
    $region9: #{rrdb_forward.1} parent=5 // pred_check
      _
    $region10: #{rrdb_forward.1} parent=5 // pred_check_branch
      %138 = sbr.rel (%p135) target = $region12
    $region11: #{rrdb_forward.1} parent=5 // pred_region
      %s139 = ssub.s32 %s10, 1
      // Predicated region
      $region13: #{rrdb_forward.1} parent=11 // pred_check
        %p140 = pneg %p57
      $region14: #{rrdb_forward.1} parent=11 // pred_check_branch
        %142 = sbr.rel (%p140) target = $region16
      $region15: #{rrdb_forward.1} parent=11 // pred_region
        _
      $region16: #{rrdb_forward.1} parent=11 // pred_fallthru
        _
      // Predicated region
      $region17: #{rrdb_forward.1} parent=11 // pred_check
        %p143 = pneg %p78
      $region18: #{rrdb_forward.1} parent=11 // pred_check_branch
        %145 = sbr.rel (%p143) target = $region20
      $region19: #{rrdb_forward.1} parent=11 // pred_region
        _
      $region20: #{rrdb_forward.1} parent=11 // pred_fallthru
        _
      // Predicated region
      $region21: #{rrdb_forward.1} parent=11 // pred_check
        %p146 = pneg %p99
      $region22: #{rrdb_forward.1} parent=11 // pred_check_branch
        %148 = sbr.rel (%p146) target = $region24
      $region23: #{rrdb_forward.1} parent=11 // pred_region
        _
      $region24: #{rrdb_forward.1} parent=11 // pred_fallthru
        _
    $region12: #{rrdb_forward.1} parent=5 // pred_fallthru
      _
    %p149 = scmp.lt.s32.totalorder %s10, 2
    // Predicated region
    $region25: #{rrdb_forward.1} parent=5 // pred_check
      %p150 = pneg %p149
    $region26: #{rrdb_forward.1} parent=5 // pred_check_branch
      %152 = sbr.rel (%p150) target = $region28
    $region27: #{rrdb_forward.1} parent=5 // pred_region
      // Predicated region
      $region29: #{rrdb_forward.1} parent=27 // pred_check
        %p153 = pneg %p30
      $region30: #{rrdb_forward.1} parent=27 // pred_check_branch
        %155 = sbr.rel (%p153) target = $region32
      $region31: #{rrdb_forward.1} parent=27 // pred_region
        %p156 = scmp.lt.s32.totalorder %s10, 1
        %s157 = scalar_select %p156, %s10, 1
        %s158 = smul.addr %s157, 4
        %s159 = smul.addr %s158, 8
        %s160 = scalar_lea.vmem %s0, %s159
      $region32: #{rrdb_forward.1} parent=27 // pred_fallthru
        _
    $region28: #{rrdb_forward.1} parent=5 // pred_fallthru
      _
    %p161 = scmp.le.s32.totalorder 1, %s10
    %p162 = scmp.lt.s32.totalorder %s10, 3
    %p163 = pnand %p161, %p162
    %p164 = pneg %p163
    // Predicated region
    $region33: #{rrdb_forward.1} parent=5 // pred_check
      _
    $region34: #{rrdb_forward.1} parent=5 // pred_check_branch
      %166 = sbr.rel (%p163) target = $region36
    $region35: #{rrdb_forward.1} parent=5 // pred_region
      %s167 = ssub.s32 %s10, 1
      %p168 = scmp.lt.s32.totalorder %s15, 1
      %s169 = scalar_select %p168, %s15, 1
      %s170 = smul.addr %s169, 4
      %s171 = smul.addr %s170, 8
      %s172 = scalar_lea.vmem %s0, %s171
      %p173 = pneg %p36
      %p174 = pneg %p33
      %p175 = pneg %p57
      %p176 = pneg %p54
      %p177 = pneg %p78
      %p178 = pneg %p75
      %p179 = pneg %p99
      %p180 = pneg %p96
      %p181 = pneg %p125
      %p182 = pneg %p122
      %p183 = scmp.lt.s32.totalorder %s15, 1
      %s184 = scalar_select %p183, %s15, 1
      %s185 = smul.addr %s184, 4
      %s186 = smul.addr %s185, 8
      %s187 = scalar_lea.vmem %s4, %s186
      %p188 = scmp.lt.s32.totalorder %s15, 1
      %s189 = scalar_select %p188, %s15, 1
      %s190 = smul.addr %s189, 4
      %s191 = smul.addr %s190, 8
      %s192 = scalar_lea.vmem %s0, %s191
      %p193 = scmp.lt.s32.totalorder %s15, 1
      %s194 = scalar_select %p193, %s15, 1
      %s195 = smul.addr %s194, 4
      %s196 = smul.addr %s195, 8
      %s197 = scalar_lea.vmem %s4, %s196
      %198 = vst [vmem:[#allocation2] sm:$0xff] 0.0
      %199 = vst [vmem:[#allocation2 + $0x8] sm:$0xff] 0.0
      %200 = vst [vmem:[#allocation2 + $0x10] sm:$0xff] 0.0
      %201 = vst [vmem:[#allocation2 + $0x18] sm:$0xff] 0.0
      %202 = vst [vmem:[#allocation2 + $0x20] sm:$0xff] 0.0
      %203 = vst [vmem:[#allocation2 + $0x28] sm:$0xff] 0.0
      %204 = vst [vmem:[#allocation2 + $0x30] sm:$0xff] 0.0
      %205 = vst [vmem:[#allocation2 + $0x38] sm:$0xff] 0.0
      %206 = vst [vmem:[#allocation2 + $0x40] sm:$0xff] 0.0
      %207 = vst [vmem:[#allocation2 + $0x48] sm:$0xff] 0.0
      %208 = vst [vmem:[#allocation2 + $0x50] sm:$0xff] 0.0
      %209 = vst [vmem:[#allocation2 + $0x58] sm:$0xff] 0.0
      %210 = vst [vmem:[#allocation2 + $0x60] sm:$0xff] 0.0
      %211 = vst [vmem:[#allocation2 + $0x68] sm:$0xff] 0.0
      %212 = vst [vmem:[#allocation2 + $0x70] sm:$0xff] 0.0
      %213 = vst [vmem:[#allocation2 + $0x78] sm:$0xff] 0.0
      %214 = vst [vmem:[#allocation2 + $0x80] sm:$0xff] 0.0
      %215 = vst [vmem:[#allocation2 + $0x88] sm:$0xff] 0.0
      %216 = vst [vmem:[#allocation2 + $0x90] sm:$0xff] 0.0
      %217 = vst [vmem:[#allocation2 + $0x98] sm:$0xff] 0.0
      %218 = vst [vmem:[#allocation2 + $0xa0] sm:$0xff] 0.0
      %219 = vst [vmem:[#allocation2 + $0xa8] sm:$0xff] 0.0
      %220 = vst [vmem:[#allocation2 + $0xb0] sm:$0xff] 0.0
      %221 = vst [vmem:[#allocation2 + $0xb8] sm:$0xff] 0.0
      %222 = vst [vmem:[#allocation2 + $0xc0] sm:$0xff] 0.0
      %223 = vst [vmem:[#allocation2 + $0xc8] sm:$0xff] 0.0
      %224 = vst [vmem:[#allocation2 + $0xd0] sm:$0xff] 0.0
      %225 = vst [vmem:[#allocation2 + $0xd8] sm:$0xff] 0.0
      %226 = vst [vmem:[#allocation2 + $0xe0] sm:$0xff] 0.0
      %227 = vst [vmem:[#allocation2 + $0xe8] sm:$0xff] 0.0
      %228 = vst [vmem:[#allocation2 + $0xf0] sm:$0xff] 0.0
      %229 = vst [vmem:[#allocation2 + $0xf8] sm:$0xff] 0.0
      %230 = vst [vmem:[#allocation2 + $0x100] sm:$0xff] 0.0
      %231 = vst [vmem:[#allocation2 + $0x108] sm:$0xff] 0.0
      %232 = vst [vmem:[#allocation2 + $0x110] sm:$0xff] 0.0
      %233 = vst [vmem:[#allocation2 + $0x118] sm:$0xff] 0.0
      %234 = vst [vmem:[#allocation2 + $0x120] sm:$0xff] 0.0
      %235 = vst [vmem:[#allocation2 + $0x128] sm:$0xff] 0.0
      %236 = vst [vmem:[#allocation2 + $0x130] sm:$0xff] 0.0
      %237 = vst [vmem:[#allocation2 + $0x138] sm:$0xff] 0.0
      %238 = vst [vmem:[#allocation2 + $0x140] sm:$0xff] 0.0
      %239 = vst [vmem:[#allocation2 + $0x148] sm:$0xff] 0.0
      %240 = vst [vmem:[#allocation2 + $0x150] sm:$0xff] 0.0
      %241 = vst [vmem:[#allocation2 + $0x158] sm:$0xff] 0.0
      %242 = vst [vmem:[#allocation2 + $0x160] sm:$0xff] 0.0
      %243 = vst [vmem:[#allocation2 + $0x168] sm:$0xff] 0.0
      %244 = vst [vmem:[#allocation2 + $0x170] sm:$0xff] 0.0
      %245 = vst [vmem:[#allocation2 + $0x178] sm:$0xff] 0.0
      %246 = vst [vmem:[#allocation2 + $0x180] sm:$0xff] 0.0
      %247 = vst [vmem:[#allocation2 + $0x188] sm:$0xff] 0.0
      %248 = vst [vmem:[#allocation2 + $0x190] sm:$0xff] 0.0
      %249 = vst [vmem:[#allocation2 + $0x198] sm:$0xff] 0.0
      %250 = vst [vmem:[#allocation2 + $0x1a0] sm:$0xff] 0.0
      %251 = vst [vmem:[#allocation2 + $0x1a8] sm:$0xff] 0.0
      %252 = vst [vmem:[#allocation2 + $0x1b0] sm:$0xff] 0.0
      %253 = vst [vmem:[#allocation2 + $0x1b8] sm:$0xff] 0.0
      %254 = vst [vmem:[#allocation2 + $0x1c0] sm:$0xff] 0.0
      %255 = vst [vmem:[#allocation2 + $0x1c8] sm:$0xff] 0.0
      %256 = vst [vmem:[#allocation2 + $0x1d0] sm:$0xff] 0.0
      %257 = vst [vmem:[#allocation2 + $0x1d8] sm:$0xff] 0.0
      %258 = vst [vmem:[#allocation2 + $0x1e0] sm:$0xff] 0.0
      %259 = vst [vmem:[#allocation2 + $0x1e8] sm:$0xff] 0.0
      %260 = vst [vmem:[#allocation2 + $0x1f0] sm:$0xff] 0.0
      %261 = vst [vmem:[#allocation2 + $0x1f8] sm:$0xff] 0.0
      %262 = vst [vmem:[#allocation2 + $0x200] sm:$0xff] 0.0
      %263 = vst [vmem:[#allocation2 + $0x208] sm:$0xff] 0.0
      %264 = vst [vmem:[#allocation2 + $0x210] sm:$0xff] 0.0
      %265 = vst [vmem:[#allocation2 + $0x218] sm:$0xff] 0.0
      %266 = vst [vmem:[#allocation2 + $0x220] sm:$0xff] 0.0
      %267 = vst [vmem:[#allocation2 + $0x228] sm:$0xff] 0.0
      %268 = vst [vmem:[#allocation2 + $0x230] sm:$0xff] 0.0
      %269 = vst [vmem:[#allocation2 + $0x238] sm:$0xff] 0.0
      %270 = vst [vmem:[#allocation2 + $0x240] sm:$0xff] 0.0
      %271 = vst [vmem:[#allocation2 + $0x248] sm:$0xff] 0.0
      %272 = vst [vmem:[#allocation2 + $0x250] sm:$0xff] 0.0
      %273 = vst [vmem:[#allocation2 + $0x258] sm:$0xff] 0.0
      %274 = vst [vmem:[#allocation2 + $0x260] sm:$0xff] 0.0
      %275 = vst [vmem:[#allocation2 + $0x268] sm:$0xff] 0.0
      %276 = vst [vmem:[#allocation2 + $0x270] sm:$0xff] 0.0
      %277 = vst [vmem:[#allocation2 + $0x278] sm:$0xff] 0.0
      %278 = vst [vmem:[#allocation2 + $0x280] sm:$0xff] 0.0
      %279 = vst [vmem:[#allocation2 + $0x288] sm:$0xff] 0.0
      %280 = vst [vmem:[#allocation2 + $0x290] sm:$0xff] 0.0
      %281 = vst [vmem:[#allocation2 + $0x298] sm:$0xff] 0.0
      %282 = vst [vmem:[#allocation2 + $0x2a0] sm:$0xff] 0.0
      %283 = vst [vmem:[#allocation2 + $0x2a8] sm:$0xff] 0.0
      %284 = vst [vmem:[#allocation2 + $0x2b0] sm:$0xff] 0.0
      %285 = vst [vmem:[#allocation2 + $0x2b8] sm:$0xff] 0.0
      %286 = vst [vmem:[#allocation2 + $0x2c0] sm:$0xff] 0.0
      %287 = vst [vmem:[#allocation2 + $0x2c8] sm:$0xff] 0.0
      %288 = vst [vmem:[#allocation2 + $0x2d0] sm:$0xff] 0.0
      %289 = vst [vmem:[#allocation2 + $0x2d8] sm:$0xff] 0.0
      %290 = vst [vmem:[#allocation2 + $0x2e0] sm:$0xff] 0.0
      %291 = vst [vmem:[#allocation2 + $0x2e8] sm:$0xff] 0.0
      %292 = vst [vmem:[#allocation2 + $0x2f0] sm:$0xff] 0.0
      %293 = vst [vmem:[#allocation2 + $0x2f8] sm:$0xff] 0.0
      %294 = vst [vmem:[#allocation2 + $0x300] sm:$0xff] 0.0
      %295 = vst [vmem:[#allocation2 + $0x308] sm:$0xff] 0.0
      %296 = vst [vmem:[#allocation2 + $0x310] sm:$0xff] 0.0
      %297 = vst [vmem:[#allocation2 + $0x318] sm:$0xff] 0.0
      %298 = vst [vmem:[#allocation2 + $0x320] sm:$0xff] 0.0
      %299 = vst [vmem:[#allocation2 + $0x328] sm:$0xff] 0.0
      %300 = vst [vmem:[#allocation2 + $0x330] sm:$0xff] 0.0
      %301 = vst [vmem:[#allocation2 + $0x338] sm:$0xff] 0.0
      %302 = vst [vmem:[#allocation2 + $0x340] sm:$0xff] 0.0
      %303 = vst [vmem:[#allocation2 + $0x348] sm:$0xff] 0.0
      %304 = vst [vmem:[#allocation2 + $0x350] sm:$0xff] 0.0
      %305 = vst [vmem:[#allocation2 + $0x358] sm:$0xff] 0.0
      %v306 = vld [vmem:[%s192] sm:$0xff]
      %v307 = vld [vmem:[%s192 + $0x8] sm:$0xff]
      %v308 = vld [vmem:[%s192 + $0x10] sm:$0xff]
      %v309 = vld [vmem:[%s192 + $0x18] sm:$0xff]
      %310 = vrot.lane.b32.xlu0 %v306, 17
      %v311 = vpop.permute.xlu0 %310
      %312 = vrot.lane.b32.xlu0 %v308, 17
      %v313 = vpop.permute.xlu0 %312
      %314 = vrot.lane.b32.xlu0 %v307, 17
      %v315 = vpop.permute.xlu0 %314
      %316 = vrot.lane.b32.xlu0 %v309, 17
      %v317 = vpop.permute.xlu0 %316
      %v318 = vlaneseq
      %v319 = vand.u32 %v318, 127
      %vm320 = vcmp.lt.s32.totalorder %v319, 17
      %v321 = vsel %vm320, %v311, %v315
      %v322 = vsel %vm320, %v313, %v317
      %v323 = vsel %vm320, %v315, %v311
      %v324 = vsel %vm320, %v317, %v313
      %v325 = vld [vmem:[%s3] sm:$0x3]
      %v327 = vlaneseq
      %v328 = vshrl.u32 %v327, 7
      %v329 = vsub.s32 0, %v328
      %v330 = vrot.slane %v325, %v329
      %v331 = vlaneseq
      %v332 = vshrl.u32 %v331, 7
      %v333 = vsub.s32 1, %v332
      %v334 = vrot.slane %v325, %v333
      %v337 = vmul.f32 %v323, %v330
      %v338 = vmul.f32 %v321, %v334
      %v339 = vmul.f32 %v324, %v330
      %v340 = vmul.f32 %v322, %v334
      %341 = vst [vmem:[#allocation2] sm:$0xff] %v337
      %342 = vst [vmem:[#allocation2 + $0x8] sm:$0xff] %v338
      %343 = vst [vmem:[#allocation2 + $0x10] sm:$0xff] %v339
      %344 = vst [vmem:[#allocation2 + $0x18] sm:$0xff] %v340
      %345 = vrot.lane.b32.xlu0 %v306, 16
      %v346 = vpop.permute.xlu0 %345
      %347 = vrot.lane.b32.xlu0 %v308, 16
      %v348 = vpop.permute.xlu0 %347
      %349 = vrot.lane.b32.xlu0 %v307, 16
      %v350 = vpop.permute.xlu0 %349
      %351 = vrot.lane.b32.xlu0 %v309, 16
      %v352 = vpop.permute.xlu0 %351
      %vm353 = vcmp.lt.s32.totalorder %v319, 16
      %v354 = vsel %vm353, %v346, %v350
      %v355 = vsel %vm353, %v348, %v352
      %v356 = vsel %vm353, %v350, %v346
      %v357 = vsel %vm353, %v352, %v348
      %s358 = scalar_lea.vmem %s3, 2
      %v359 = vld [vmem:[%s358] sm:$0x3]
      %v361 = vlaneseq
      %v362 = vshrl.u32 %v361, 7
      %v363 = vsub.s32 0, %v362
      %v364 = vrot.slane %v359, %v363
      %v365 = vlaneseq
      %v366 = vshrl.u32 %v365, 7
      %v367 = vsub.s32 1, %v366
      %v368 = vrot.slane %v359, %v367
      %v371 = vmul.f32 %v356, %v364
      %v372 = vmul.f32 %v354, %v368
      %v373 = vmul.f32 %v357, %v364
      %v374 = vmul.f32 %v355, %v368
      %375 = vst [vmem:[#allocation2 + $0x60] sm:$0xff] %v371
      %376 = vst [vmem:[#allocation2 + $0x68] sm:$0xff] %v372
      %377 = vst [vmem:[#allocation2 + $0x70] sm:$0xff] %v373
      %378 = vst [vmem:[#allocation2 + $0x78] sm:$0xff] %v374
      %379 = vrot.lane.b32.xlu0 %v306, 15
      %v380 = vpop.permute.xlu0 %379
      %381 = vrot.lane.b32.xlu0 %v308, 15
      %v382 = vpop.permute.xlu0 %381
      %383 = vrot.lane.b32.xlu0 %v307, 15
      %v384 = vpop.permute.xlu0 %383
      %385 = vrot.lane.b32.xlu0 %v309, 15
      %v386 = vpop.permute.xlu0 %385
      %vm387 = vcmp.lt.s32.totalorder %v319, 15
      %v388 = vsel %vm387, %v380, %v384
      %v389 = vsel %vm387, %v382, %v386
      %v390 = vsel %vm387, %v384, %v380
      %v391 = vsel %vm387, %v386, %v382
      %s392 = scalar_lea.vmem %s3, 4
      %v393 = vld [vmem:[%s392] sm:$0x3]
      %v395 = vlaneseq
      %v396 = vshrl.u32 %v395, 7
      %v397 = vsub.s32 0, %v396
      %v398 = vrot.slane %v393, %v397
      %v399 = vlaneseq
      %v400 = vshrl.u32 %v399, 7
      %v401 = vsub.s32 1, %v400
      %v402 = vrot.slane %v393, %v401
      %v405 = vmul.f32 %v390, %v398
      %v406 = vmul.f32 %v388, %v402
      %v407 = vmul.f32 %v391, %v398
      %v408 = vmul.f32 %v389, %v402
      %409 = vst [vmem:[#allocation2 + $0xc0] sm:$0xff] %v405
      %410 = vst [vmem:[#allocation2 + $0xc8] sm:$0xff] %v406
      %411 = vst [vmem:[#allocation2 + $0xd0] sm:$0xff] %v407
      %412 = vst [vmem:[#allocation2 + $0xd8] sm:$0xff] %v408
      %413 = vrot.lane.b32.xlu0 %v306, 1
      %v414 = vpop.permute.xlu0 %413
      %415 = vrot.lane.b32.xlu0 %v308, 1
      %v416 = vpop.permute.xlu0 %415
      %417 = vrot.lane.b32.xlu0 %v307, 1
      %v418 = vpop.permute.xlu0 %417
      %419 = vrot.lane.b32.xlu0 %v309, 1
      %v420 = vpop.permute.xlu0 %419
      %vm421 = vcmp.lt.s32.totalorder %v319, 1
      %v422 = vsel %vm421, %v414, %v418
      %v423 = vsel %vm421, %v416, %v420
      %v424 = vsel %vm421, %v418, %v414
      %v425 = vsel %vm421, %v420, %v416
      %s426 = scalar_lea.vmem %s3, 6
      %v427 = vld [vmem:[%s426] sm:$0x3]
      %v429 = vlaneseq
      %v430 = vshrl.u32 %v429, 7
      %v431 = vsub.s32 0, %v430
      %v432 = vrot.slane %v427, %v431
      %v433 = vlaneseq
      %v434 = vshrl.u32 %v433, 7
      %v435 = vsub.s32 1, %v434
      %v436 = vrot.slane %v427, %v435
      %v439 = vmul.f32 %v424, %v432
      %v440 = vmul.f32 %v422, %v436
      %v441 = vmul.f32 %v425, %v432
      %v442 = vmul.f32 %v423, %v436
      %443 = vst [vmem:[#allocation2 + $0x120] sm:$0xff] %v439
      %444 = vst [vmem:[#allocation2 + $0x128] sm:$0xff] %v440
      %445 = vst [vmem:[#allocation2 + $0x130] sm:$0xff] %v441
      %446 = vst [vmem:[#allocation2 + $0x138] sm:$0xff] %v442
      %447 = vst [vmem:[#allocation2 + $0x180] sm:$0xff] %v306
      %448 = vst [vmem:[#allocation2 + $0x188] sm:$0xff] %v307
      %449 = vst [vmem:[#allocation2 + $0x190] sm:$0xff] %v308
      %450 = vst [vmem:[#allocation2 + $0x198] sm:$0xff] %v309
      %451 = vrot.lane.b32.xlu0 %v306, 127
      %v452 = vpop.permute.xlu0 %451
      %453 = vrot.lane.b32.xlu0 %v308, 127
      %v454 = vpop.permute.xlu0 %453
      %455 = vrot.lane.b32.xlu0 %v307, 127
      %v456 = vpop.permute.xlu0 %455
      %457 = vrot.lane.b32.xlu0 %v309, 127
      %v458 = vpop.permute.xlu0 %457
      %vm459 = vcmp.lt.s32.totalorder %v319, 127
      %v460 = vsel %vm459, %v452, %v456
      %v461 = vsel %vm459, %v454, %v458
      %v462 = vsel %vm459, %v456, %v452
      %v463 = vsel %vm459, %v458, %v454
      %s464 = scalar_lea.vmem %s3, 10
      %v465 = vld [vmem:[%s464] sm:$0x3]
      %v467 = vlaneseq
      %v468 = vshrl.u32 %v467, 7
      %v469 = vsub.s32 0, %v468
      %v470 = vrot.slane %v465, %v469
      %v471 = vlaneseq
      %v472 = vshrl.u32 %v471, 7
      %v473 = vsub.s32 1, %v472
      %v474 = vrot.slane %v465, %v473
      %v477 = vmul.f32 %v460, %v470
      %v478 = vmul.f32 %v462, %v474
      %v479 = vmul.f32 %v461, %v470
      %v480 = vmul.f32 %v463, %v474
      %481 = vst [vmem:[#allocation2 + $0x1e0] sm:$0xff] %v477
      %482 = vst [vmem:[#allocation2 + $0x1e8] sm:$0xff] %v478
      %483 = vst [vmem:[#allocation2 + $0x1f0] sm:$0xff] %v479
      %484 = vst [vmem:[#allocation2 + $0x1f8] sm:$0xff] %v480
      %485 = vrot.lane.b32.xlu0 %v306, 113
      %v486 = vpop.permute.xlu0 %485
      %487 = vrot.lane.b32.xlu0 %v308, 113
      %v488 = vpop.permute.xlu0 %487
      %489 = vrot.lane.b32.xlu0 %v307, 113
      %v490 = vpop.permute.xlu0 %489
      %491 = vrot.lane.b32.xlu0 %v309, 113
      %v492 = vpop.permute.xlu0 %491
      %vm493 = vcmp.lt.s32.totalorder %v319, 113
      %v494 = vsel %vm493, %v486, %v490
      %v495 = vsel %vm493, %v488, %v492
      %v496 = vsel %vm493, %v490, %v486
      %v497 = vsel %vm493, %v492, %v488
      %s498 = scalar_lea.vmem %s3, 12
      %v499 = vld [vmem:[%s498] sm:$0x3]
      %v501 = vlaneseq
      %v502 = vshrl.u32 %v501, 7
      %v503 = vsub.s32 0, %v502
      %v504 = vrot.slane %v499, %v503
      %v505 = vlaneseq
      %v506 = vshrl.u32 %v505, 7
      %v507 = vsub.s32 1, %v506
      %v508 = vrot.slane %v499, %v507
      %v511 = vmul.f32 %v494, %v504
      %v512 = vmul.f32 %v496, %v508
      %v513 = vmul.f32 %v495, %v504
      %v514 = vmul.f32 %v497, %v508
      %515 = vst [vmem:[#allocation2 + $0x240] sm:$0xff] %v511
      %516 = vst [vmem:[#allocation2 + $0x248] sm:$0xff] %v512
      %517 = vst [vmem:[#allocation2 + $0x250] sm:$0xff] %v513
      %518 = vst [vmem:[#allocation2 + $0x258] sm:$0xff] %v514
      %519 = vrot.lane.b32.xlu0 %v306, 112
      %v520 = vpop.permute.xlu0 %519
      %521 = vrot.lane.b32.xlu0 %v308, 112
      %v522 = vpop.permute.xlu0 %521
      %523 = vrot.lane.b32.xlu0 %v307, 112
      %v524 = vpop.permute.xlu0 %523
      %525 = vrot.lane.b32.xlu0 %v309, 112
      %v526 = vpop.permute.xlu0 %525
      %vm527 = vcmp.lt.s32.totalorder %v319, 112
      %v528 = vsel %vm527, %v520, %v524
      %v529 = vsel %vm527, %v522, %v526
      %v530 = vsel %vm527, %v524, %v520
      %v531 = vsel %vm527, %v526, %v522
      %s532 = scalar_lea.vmem %s3, 14
      %v533 = vld [vmem:[%s532] sm:$0x3]
      %v535 = vlaneseq
      %v536 = vshrl.u32 %v535, 7
      %v537 = vsub.s32 0, %v536
      %v538 = vrot.slane %v533, %v537
      %v539 = vlaneseq
      %v540 = vshrl.u32 %v539, 7
      %v541 = vsub.s32 1, %v540
      %v542 = vrot.slane %v533, %v541
      %v545 = vmul.f32 %v528, %v538
      %v546 = vmul.f32 %v530, %v542
      %v547 = vmul.f32 %v529, %v538
      %v548 = vmul.f32 %v531, %v542
      %549 = vst [vmem:[#allocation2 + $0x2a0] sm:$0xff] %v545
      %550 = vst [vmem:[#allocation2 + $0x2a8] sm:$0xff] %v546
      %551 = vst [vmem:[#allocation2 + $0x2b0] sm:$0xff] %v547
      %552 = vst [vmem:[#allocation2 + $0x2b8] sm:$0xff] %v548
      %553 = vrot.lane.b32.xlu0 %v306, 111
      %v554 = vpop.permute.xlu0 %553
      %555 = vrot.lane.b32.xlu0 %v308, 111
      %v556 = vpop.permute.xlu0 %555
      %557 = vrot.lane.b32.xlu0 %v307, 111
      %v558 = vpop.permute.xlu0 %557
      %559 = vrot.lane.b32.xlu0 %v309, 111
      %v560 = vpop.permute.xlu0 %559
      %vm561 = vcmp.lt.s32.totalorder %v319, 111
      %v562 = vsel %vm561, %v554, %v558
      %v563 = vsel %vm561, %v556, %v560
      %v564 = vsel %vm561, %v558, %v554
      %v565 = vsel %vm561, %v560, %v556
      %s566 = scalar_lea.vmem %s3, 16
      %v567 = vld [vmem:[%s566] sm:$0x3]
      %v569 = vlaneseq
      %v570 = vshrl.u32 %v569, 7
      %v571 = vsub.s32 0, %v570
      %v572 = vrot.slane %v567, %v571
      %v573 = vlaneseq
      %v574 = vshrl.u32 %v573, 7
      %v575 = vsub.s32 1, %v574
      %v576 = vrot.slane %v567, %v575
      %v579 = vmul.f32 %v562, %v572
      %v580 = vmul.f32 %v564, %v576
      %v581 = vmul.f32 %v563, %v572
      %v582 = vmul.f32 %v565, %v576
      %583 = vst [vmem:[#allocation2 + $0x300] sm:$0xff] %v579
      %584 = vst [vmem:[#allocation2 + $0x308] sm:$0xff] %v580
      %585 = vst [vmem:[#allocation2 + $0x310] sm:$0xff] %v581
      %586 = vst [vmem:[#allocation2 + $0x318] sm:$0xff] %v582
      %v587 = vld [vmem:[%s1] sm:$0xff]
      %v588 = vld [vmem:[%s1 + $0x8] sm:$0xff]
      %v589 = vld [vmem:[%s1 + $0x10] sm:$0xff]
      %v590 = vld [vmem:[%s1 + $0x18] sm:$0xff]
      %v591 = vld [vmem:[#allocation2] sm:$0xff]
      %v592 = vld [vmem:[#allocation2 + $0x8] sm:$0xff]
      %v593 = vld [vmem:[#allocation2 + $0x10] sm:$0xff]
      %v594 = vld [vmem:[#allocation2 + $0x18] sm:$0xff]
      %v595 = vld [vmem:[#allocation2 + $0x20] sm:$0xff]
      %v596 = vld [vmem:[#allocation2 + $0x28] sm:$0xff]
      %v597 = vld [vmem:[#allocation2 + $0x30] sm:$0xff]
      %v598 = vld [vmem:[#allocation2 + $0x38] sm:$0xff]
      %v599 = vld [vmem:[#allocation2 + $0x40] sm:$0xff]
      %v600 = vld [vmem:[#allocation2 + $0x48] sm:$0xff]
      %v601 = vld [vmem:[#allocation2 + $0x50] sm:$0xff]
      %v602 = vld [vmem:[#allocation2 + $0x58] sm:$0xff]
      %v603 = vld [vmem:[#allocation2 + $0x60] sm:$0xff]
      %v604 = vld [vmem:[#allocation2 + $0x68] sm:$0xff]
      %v605 = vld [vmem:[#allocation2 + $0x70] sm:$0xff]
      %v606 = vld [vmem:[#allocation2 + $0x78] sm:$0xff]
      %v607 = vld [vmem:[#allocation2 + $0x80] sm:$0xff]
      %v608 = vld [vmem:[#allocation2 + $0x88] sm:$0xff]
      %v609 = vld [vmem:[#allocation2 + $0x90] sm:$0xff]
      %v610 = vld [vmem:[#allocation2 + $0x98] sm:$0xff]
      %v611 = vld [vmem:[#allocation2 + $0xa0] sm:$0xff]
      %v612 = vld [vmem:[#allocation2 + $0xa8] sm:$0xff]
      %v613 = vld [vmem:[#allocation2 + $0xb0] sm:$0xff]
      %v614 = vld [vmem:[#allocation2 + $0xb8] sm:$0xff]
      %v615 = vld [vmem:[#allocation2 + $0xc0] sm:$0xff]
      %v616 = vld [vmem:[#allocation2 + $0xc8] sm:$0xff]
      %v617 = vld [vmem:[#allocation2 + $0xd0] sm:$0xff]
      %v618 = vld [vmem:[#allocation2 + $0xd8] sm:$0xff]
      %v619 = vld [vmem:[#allocation2 + $0xe0] sm:$0xff]
      %v620 = vld [vmem:[#allocation2 + $0xe8] sm:$0xff]
      %v621 = vld [vmem:[#allocation2 + $0xf0] sm:$0xff]
      %v622 = vld [vmem:[#allocation2 + $0xf8] sm:$0xff]
      %v623 = vld [vmem:[#allocation2 + $0x100] sm:$0xff]
      %v624 = vld [vmem:[#allocation2 + $0x108] sm:$0xff]
      %v625 = vld [vmem:[#allocation2 + $0x110] sm:$0xff]
      %v626 = vld [vmem:[#allocation2 + $0x118] sm:$0xff]
      %v627 = vld [vmem:[#allocation2 + $0x120] sm:$0xff]
      %v628 = vld [vmem:[#allocation2 + $0x128] sm:$0xff]
      %v629 = vld [vmem:[#allocation2 + $0x130] sm:$0xff]
      %v630 = vld [vmem:[#allocation2 + $0x138] sm:$0xff]
      %v631 = vld [vmem:[#allocation2 + $0x140] sm:$0xff]
      %v632 = vld [vmem:[#allocation2 + $0x148] sm:$0xff]
      %v633 = vld [vmem:[#allocation2 + $0x150] sm:$0xff]
      %v634 = vld [vmem:[#allocation2 + $0x158] sm:$0xff]
      %v635 = vld [vmem:[#allocation2 + $0x160] sm:$0xff]
      %v636 = vld [vmem:[#allocation2 + $0x168] sm:$0xff]
      %v637 = vld [vmem:[#allocation2 + $0x170] sm:$0xff]
      %v638 = vld [vmem:[#allocation2 + $0x178] sm:$0xff]
      %v639 = vld [vmem:[#allocation2 + $0x180] sm:$0xff]
      %v640 = vld [vmem:[#allocation2 + $0x188] sm:$0xff]
      %v641 = vld [vmem:[#allocation2 + $0x190] sm:$0xff]
      %v642 = vld [vmem:[#allocation2 + $0x198] sm:$0xff]
      %v643 = vld [vmem:[#allocation2 + $0x1a0] sm:$0xff]
      %v644 = vld [vmem:[#allocation2 + $0x1a8] sm:$0xff]
      %v645 = vld [vmem:[#allocation2 + $0x1b0] sm:$0xff]
      %v646 = vld [vmem:[#allocation2 + $0x1b8] sm:$0xff]
      %v647 = vld [vmem:[#allocation2 + $0x1c0] sm:$0xff]
      %v648 = vld [vmem:[#allocation2 + $0x1c8] sm:$0xff]
      %v649 = vld [vmem:[#allocation2 + $0x1d0] sm:$0xff]
      %v650 = vld [vmem:[#allocation2 + $0x1d8] sm:$0xff]
      %v651 = vld [vmem:[#allocation2 + $0x1e0] sm:$0xff]
      %v652 = vld [vmem:[#allocation2 + $0x1e8] sm:$0xff]
      %v653 = vld [vmem:[#allocation2 + $0x1f0] sm:$0xff]
      %v654 = vld [vmem:[#allocation2 + $0x1f8] sm:$0xff]
      %v655 = vld [vmem:[#allocation2 + $0x200] sm:$0xff]
      %v656 = vld [vmem:[#allocation2 + $0x208] sm:$0xff]
      %v657 = vld [vmem:[#allocation2 + $0x210] sm:$0xff]
      %v658 = vld [vmem:[#allocation2 + $0x218] sm:$0xff]
      %v659 = vld [vmem:[#allocation2 + $0x220] sm:$0xff]
      %v660 = vld [vmem:[#allocation2 + $0x228] sm:$0xff]
      %v661 = vld [vmem:[#allocation2 + $0x230] sm:$0xff]
      %v662 = vld [vmem:[#allocation2 + $0x238] sm:$0xff]
      %v663 = vld [vmem:[#allocation2 + $0x240] sm:$0xff]
      %v664 = vld [vmem:[#allocation2 + $0x248] sm:$0xff]
      %v665 = vld [vmem:[#allocation2 + $0x250] sm:$0xff]
      %v666 = vld [vmem:[#allocation2 + $0x258] sm:$0xff]
      %v667 = vld [vmem:[#allocation2 + $0x260] sm:$0xff]
      %v668 = vld [vmem:[#allocation2 + $0x268] sm:$0xff]
      %v669 = vld [vmem:[#allocation2 + $0x270] sm:$0xff]
      %v670 = vld [vmem:[#allocation2 + $0x278] sm:$0xff]
      %v671 = vld [vmem:[#allocation2 + $0x280] sm:$0xff]
      %v672 = vld [vmem:[#allocation2 + $0x288] sm:$0xff]
      %v673 = vld [vmem:[#allocation2 + $0x290] sm:$0xff]
      %v674 = vld [vmem:[#allocation2 + $0x298] sm:$0xff]
      %v675 = vld [vmem:[#allocation2 + $0x2a0] sm:$0xff]
      %v676 = vld [vmem:[#allocation2 + $0x2a8] sm:$0xff]
      %v677 = vld [vmem:[#allocation2 + $0x2b0] sm:$0xff]
      %v678 = vld [vmem:[#allocation2 + $0x2b8] sm:$0xff]
      %v679 = vld [vmem:[#allocation2 + $0x2c0] sm:$0xff]
      %v680 = vld [vmem:[#allocation2 + $0x2c8] sm:$0xff]
      %v681 = vld [vmem:[#allocation2 + $0x2d0] sm:$0xff]
      %v682 = vld [vmem:[#allocation2 + $0x2d8] sm:$0xff]
      %v683 = vld [vmem:[#allocation2 + $0x2e0] sm:$0xff]
      %v684 = vld [vmem:[#allocation2 + $0x2e8] sm:$0xff]
      %v685 = vld [vmem:[#allocation2 + $0x2f0] sm:$0xff]
      %v686 = vld [vmem:[#allocation2 + $0x2f8] sm:$0xff]
      %v687 = vld [vmem:[#allocation2 + $0x300] sm:$0xff]
      %v688 = vld [vmem:[#allocation2 + $0x308] sm:$0xff]
      %v689 = vld [vmem:[#allocation2 + $0x310] sm:$0xff]
      %v690 = vld [vmem:[#allocation2 + $0x318] sm:$0xff]
      %v691 = vld [vmem:[#allocation2 + $0x320] sm:$0xff]
      %v692 = vld [vmem:[#allocation2 + $0x328] sm:$0xff]
      %v693 = vld [vmem:[#allocation2 + $0x330] sm:$0xff]
      %v694 = vld [vmem:[#allocation2 + $0x338] sm:$0xff]
      %v695 = vld [vmem:[#allocation2 + $0x340] sm:$0xff]
      %v696 = vld [vmem:[#allocation2 + $0x348] sm:$0xff]
      %v697 = vld [vmem:[#allocation2 + $0x350] sm:$0xff]
      %v698 = vld [vmem:[#allocation2 + $0x358] sm:$0xff]
      %v699 = vld [vmem:[%s2] sm:$0xff]
      %701 = vset.pattern.permute.xlu0 0
      %702 = vperm.xlu0 %701, %v699
      %v703 = vpop.permute.xlu0 %702
      %vm705 = vcmask 392192
      %v707 = vsel %vm705, %v590, 0
      %709 = vmatprep.subr.mxu0 %v622
      %710 = vmatpush1.msra.mxu0 %v621
      %711 = vmatprep.subr.mxu0 %v620
      %712 = vmatpush1.msra.mxu0 %v619
      %713 = vmatprep.subr.mxu0 %v618
      %714 = vmatpush1.msra.mxu0 %v617
      %715 = vmatprep.subr.mxu0 %v616
      %716 = vmatpush1.msra.mxu0 %v615
      %717 = vmatprep.subr.mxu0 %v614
      %718 = vmatpush1.msra.mxu0 %v613
      %719 = vmatprep.subr.mxu0 %v612
      %720 = vmatpush1.msra.mxu0 %v611
      %721 = vmatprep.subr.mxu0 %v610
      %722 = vmatpush1.msra.mxu0 %v609
      %723 = vmatprep.subr.mxu0 %v608
      %724 = vmatpush1.msra.mxu0 %v607
      %725 = vmatprep.subr.mxu0 %v606
      %726 = vmatpush1.msra.mxu0 %v605
      %727 = vmatprep.subr.mxu0 %v604
      %728 = vmatpush1.msra.mxu0 %v603
      %729 = vmatprep.subr.mxu0 %v602
      %730 = vmatpush1.msra.mxu0 %v601
      %731 = vmatprep.subr.mxu0 %v600
      %732 = vmatpush1.msra.mxu0 %v599
      %733 = vmatprep.subr.mxu0 %v598
      %734 = vmatpush1.msra.mxu0 %v597
      %735 = vmatprep.subr.mxu0 %v596
      %736 = vmatpush1.msra.mxu0 %v595
      %737 = vmatprep.subr.mxu0 %v594
      %738 = vmatpush1.msra.mxu0 %v593
      %739 = vmatprep.subr.mxu0 %v592
      %740 = vmatpush1.msra.mxu0 %v591
      %741 = vmatprep.subr.mxu0 %v654
      %742 = vmatpush2.msra.mxu0 %v653
      %743 = vmatprep.subr.mxu0 %v652
      %744 = vmatpush2.msra.mxu0 %v651
      %745 = vmatprep.subr.mxu0 %v650
      %746 = vmatpush2.msra.mxu0 %v649
      %747 = vmatprep.subr.mxu0 %v648
      %748 = vmatpush2.msra.mxu0 %v647
      %749 = vmatprep.subr.mxu0 %v646
      %750 = vmatpush2.msra.mxu0 %v645
      %751 = vmatprep.subr.mxu0 %v644
      %752 = vmatpush2.msra.mxu0 %v643
      %753 = vmatprep.subr.mxu0 %v642
      %754 = vmatpush2.msra.mxu0 %v641
      %755 = vmatprep.subr.mxu0 %v640
      %756 = vmatpush2.msra.mxu0 %v639
      %757 = vmatprep.subr.mxu0 %v638
      %758 = vmatpush2.msra.mxu0 %v637
      %759 = vmatprep.subr.mxu0 %v636
      %760 = vmatpush2.msra.mxu0 %v635
      %761 = vmatprep.subr.mxu0 %v634
      %762 = vmatpush2.msra.mxu0 %v633
      %763 = vmatprep.subr.mxu0 %v632
      %764 = vmatpush2.msra.mxu0 %v631
      %765 = vmatprep.subr.mxu0 %v630
      %766 = vmatpush2.msra.mxu0 %v629
      %767 = vmatprep.subr.mxu0 %v628
      %768 = vmatpush2.msra.mxu0 %v627
      %769 = vmatprep.subr.mxu0 %v626
      %770 = vmatpush2.msra.mxu0 %v625
      %771 = vmatprep.subr.mxu0 %v624
      %772 = vmatpush2.msra.mxu0 %v623
      %773 = vmatprep.mubr.f32.mxu0 %v588
      %774 = vmatmul.mubr.f32.gmra.mxu0 %v587
      %v775 = vpop.f32.mrf.mxu0
      %v776 = vadd.f32 %v703, %v775
      %v777 = vpop.f32.mrf.mxu0
      %v778 = vadd.f32 %v703, %v777
      %779 = vdwg.mxu0
      %780 = vmatprep.subr.mxu0 %v686
      %781 = vmatpush1.msra.mxu0 %v685
      %782 = vmatprep.subr.mxu0 %v684
      %783 = vmatpush1.msra.mxu0 %v683
      %784 = vmatprep.subr.mxu0 %v682
      %785 = vmatpush1.msra.mxu0 %v681
      %786 = vmatprep.subr.mxu0 %v680
      %787 = vmatpush1.msra.mxu0 %v679
      %788 = vmatprep.subr.mxu0 %v678
      %789 = vmatpush1.msra.mxu0 %v677
      %790 = vmatprep.subr.mxu0 %v676
      %791 = vmatpush1.msra.mxu0 %v675
      %792 = vmatprep.subr.mxu0 %v674
      %793 = vmatpush1.msra.mxu0 %v673
      %794 = vmatprep.subr.mxu0 %v672
      %795 = vmatpush1.msra.mxu0 %v671
      %796 = vmatprep.subr.mxu0 %v670
      %797 = vmatpush1.msra.mxu0 %v669
      %798 = vmatprep.subr.mxu0 %v668
      %799 = vmatpush1.msra.mxu0 %v667
      %800 = vmatprep.subr.mxu0 %v666
      %801 = vmatpush1.msra.mxu0 %v665
      %802 = vmatprep.subr.mxu0 %v664
      %803 = vmatpush1.msra.mxu0 %v663
      %804 = vmatprep.subr.mxu0 %v662
      %805 = vmatpush1.msra.mxu0 %v661
      %806 = vmatprep.subr.mxu0 %v660
      %807 = vmatpush1.msra.mxu0 %v659
      %808 = vmatprep.subr.mxu0 %v658
      %809 = vmatpush1.msra.mxu0 %v657
      %810 = vmatprep.subr.mxu0 %v656
      %811 = vmatpush1.msra.mxu0 %v655
      %812 = vmatprep.subr.mxu0 0.0
      %813 = vmatpush2.msra.mxu0 0.0
      %814 = vmatprep.subr.mxu0 0.0
      %815 = vmatpush2.msra.mxu0 0.0
      %816 = vmatprep.subr.mxu0 0.0
      %817 = vmatpush2.msra.mxu0 0.0
      %818 = vmatprep.subr.mxu0 0.0
      %819 = vmatpush2.msra.mxu0 0.0
      %820 = vmatprep.subr.mxu0 0.0
      %821 = vmatpush2.msra.mxu0 0.0
      %822 = vmatprep.subr.mxu0 0.0
      %823 = vmatpush2.msra.mxu0 0.0
      %824 = vmatprep.subr.mxu0 0.0
      %825 = vmatpush2.msra.mxu0 0.0
      %826 = vmatprep.subr.mxu0 0.0
      %827 = vmatpush2.msra.mxu0 0.0
      %828 = vmatprep.subr.mxu0 0.0
      %829 = vmatpush2.msra.mxu0 0.0
      %830 = vmatprep.subr.mxu0 0.0
      %831 = vmatpush2.msra.mxu0 0.0
      %832 = vmatprep.subr.mxu0 %v698
      %833 = vmatpush2.msra.mxu0 %v697
      %834 = vmatprep.subr.mxu0 %v696
      %835 = vmatpush2.msra.mxu0 %v695
      %836 = vmatprep.subr.mxu0 %v694
      %837 = vmatpush2.msra.mxu0 %v693
      %838 = vmatprep.subr.mxu0 %v692
      %839 = vmatpush2.msra.mxu0 %v691
      %840 = vmatprep.subr.mxu0 %v690
      %841 = vmatpush2.msra.mxu0 %v689
      %842 = vmatprep.subr.mxu0 %v688
      %843 = vmatpush2.msra.mxu0 %v687
      %844 = vmatprep.mubr.f32.mxu0 %v707
      %845 = vmatmul.mubr.f32.gmra.mxu0 %v589
      %v846 = vpop.f32.mrf.mxu0
      %v847 = vadd.f32 %v776, %v846
      %v848 = vpop.f32.mrf.mxu0
      %v849 = vadd.f32 %v778, %v848
      %850 = vdwg.mxu0
      %v851 = vmul.f32 %v847, 0.2
      %v852 = vmul.f32 %v849, 0.2
      %v853 = vmax.f32 %v847, %v851
      %v854 = vmax.f32 %v849, %v852
      %855 = vrot.lane.b32.xlu0 %v853, 17
      %v856 = vpop.permute.xlu0 %855
      %857 = vrot.lane.b32.xlu0 %v854, 17
      %v858 = vpop.permute.xlu0 %857
      %v859 = vsel %vm320, %v856, %v858
      %v860 = vsel %vm320, %v858, %v856
      %v861 = vld [vmem:[%s3] sm:$0x3]
      %v863 = vlaneseq
      %v864 = vshrl.u32 %v863, 7
      %v865 = vsub.s32 0, %v864
      %v866 = vrot.slane %v861, %v865
      %v867 = vlaneseq
      %v868 = vshrl.u32 %v867, 7
      %v869 = vsub.s32 1, %v868
      %v870 = vrot.slane %v861, %v869
      %v873 = vmul.f32 %v860, %v866
      %v874 = vmul.f32 %v859, %v870
      %875 = vst [vmem:[#allocation2 + $0x20] sm:$0xff] %v873
      %876 = vst [vmem:[#allocation2 + $0x28] sm:$0xff] %v874
      %877 = vrot.lane.b32.xlu0 %v853, 16
      %v878 = vpop.permute.xlu0 %877
      %879 = vrot.lane.b32.xlu0 %v854, 16
      %v880 = vpop.permute.xlu0 %879
      %v881 = vsel %vm353, %v878, %v880
      %v882 = vsel %vm353, %v880, %v878
      %v883 = vld [vmem:[%s358] sm:$0x3]
      %v885 = vlaneseq
      %v886 = vshrl.u32 %v885, 7
      %v887 = vsub.s32 0, %v886
      %v888 = vrot.slane %v883, %v887
      %v889 = vlaneseq
      %v890 = vshrl.u32 %v889, 7
      %v891 = vsub.s32 1, %v890
      %v892 = vrot.slane %v883, %v891
      %v895 = vmul.f32 %v882, %v888
      %v896 = vmul.f32 %v881, %v892
      %897 = vst [vmem:[#allocation2 + $0x80] sm:$0xff] %v895
      %898 = vst [vmem:[#allocation2 + $0x88] sm:$0xff] %v896
      %899 = vrot.lane.b32.xlu0 %v853, 15
      %v900 = vpop.permute.xlu0 %899
      %901 = vrot.lane.b32.xlu0 %v854, 15
      %v902 = vpop.permute.xlu0 %901
      %v903 = vsel %vm387, %v900, %v902
      %v904 = vsel %vm387, %v902, %v900
      %v905 = vld [vmem:[%s392] sm:$0x3]
      %v907 = vlaneseq
      %v908 = vshrl.u32 %v907, 7
      %v909 = vsub.s32 0, %v908
      %v910 = vrot.slane %v905, %v909
      %v911 = vlaneseq
      %v912 = vshrl.u32 %v911, 7
      %v913 = vsub.s32 1, %v912
      %v914 = vrot.slane %v905, %v913
      %v917 = vmul.f32 %v904, %v910
      %v918 = vmul.f32 %v903, %v914
      %919 = vst [vmem:[#allocation2 + $0xe0] sm:$0xff] %v917
      %920 = vst [vmem:[#allocation2 + $0xe8] sm:$0xff] %v918
      %921 = vrot.lane.b32.xlu0 %v853, 1
      %v922 = vpop.permute.xlu0 %921
      %923 = vrot.lane.b32.xlu0 %v854, 1
      %v924 = vpop.permute.xlu0 %923
      %v925 = vsel %vm421, %v922, %v924
      %v926 = vsel %vm421, %v924, %v922
      %v927 = vld [vmem:[%s426] sm:$0x3]
      %v929 = vlaneseq
      %v930 = vshrl.u32 %v929, 7
      %v931 = vsub.s32 0, %v930
      %v932 = vrot.slane %v927, %v931
      %v933 = vlaneseq
      %v934 = vshrl.u32 %v933, 7
      %v935 = vsub.s32 1, %v934
      %v936 = vrot.slane %v927, %v935
      %v939 = vmul.f32 %v926, %v932
      %v940 = vmul.f32 %v925, %v936
      %941 = vst [vmem:[#allocation2 + $0x140] sm:$0xff] %v939
      %942 = vst [vmem:[#allocation2 + $0x148] sm:$0xff] %v940
      %943 = vst [vmem:[#allocation2 + $0x1a0] sm:$0xff] %v853
      %944 = vst [vmem:[#allocation2 + $0x1a8] sm:$0xff] %v854
      %945 = vrot.lane.b32.xlu0 %v853, 127
      %v946 = vpop.permute.xlu0 %945
      %947 = vrot.lane.b32.xlu0 %v854, 127
      %v948 = vpop.permute.xlu0 %947
      %v949 = vsel %vm459, %v946, %v948
      %v950 = vsel %vm459, %v948, %v946
      %v951 = vld [vmem:[%s464] sm:$0x3]
      %v953 = vlaneseq
      %v954 = vshrl.u32 %v953, 7
      %v955 = vsub.s32 0, %v954
      %v956 = vrot.slane %v951, %v955
      %v957 = vlaneseq
      %v958 = vshrl.u32 %v957, 7
      %v959 = vsub.s32 1, %v958
      %v960 = vrot.slane %v951, %v959
      %v963 = vmul.f32 %v949, %v956
      %v964 = vmul.f32 %v950, %v960
      %965 = vst [vmem:[#allocation2 + $0x200] sm:$0xff] %v963
      %966 = vst [vmem:[#allocation2 + $0x208] sm:$0xff] %v964
      %967 = vrot.lane.b32.xlu0 %v853, 113
      %v968 = vpop.permute.xlu0 %967
      %969 = vrot.lane.b32.xlu0 %v854, 113
      %v970 = vpop.permute.xlu0 %969
      %v971 = vsel %vm493, %v968, %v970
      %v972 = vsel %vm493, %v970, %v968
      %v973 = vld [vmem:[%s498] sm:$0x3]
      %v975 = vlaneseq
      %v976 = vshrl.u32 %v975, 7
      %v977 = vsub.s32 0, %v976
      %v978 = vrot.slane %v973, %v977
      %v979 = vlaneseq
      %v980 = vshrl.u32 %v979, 7
      %v981 = vsub.s32 1, %v980
      %v982 = vrot.slane %v973, %v981
      %v985 = vmul.f32 %v971, %v978
      %v986 = vmul.f32 %v972, %v982
      %987 = vst [vmem:[#allocation2 + $0x260] sm:$0xff] %v985
      %988 = vst [vmem:[#allocation2 + $0x268] sm:$0xff] %v986
      %989 = vrot.lane.b32.xlu0 %v853, 112
      %v990 = vpop.permute.xlu0 %989
      %991 = vrot.lane.b32.xlu0 %v854, 112
      %v992 = vpop.permute.xlu0 %991
      %v993 = vsel %vm527, %v990, %v992
      %v994 = vsel %vm527, %v992, %v990
      %v995 = vld [vmem:[%s532] sm:$0x3]
      %v997 = vlaneseq
      %v998 = vshrl.u32 %v997, 7
      %v999 = vsub.s32 0, %v998
      %v1000 = vrot.slane %v995, %v999
      %v1001 = vlaneseq
      %v1002 = vshrl.u32 %v1001, 7
      %v1003 = vsub.s32 1, %v1002
      %v1004 = vrot.slane %v995, %v1003
      %v1007 = vmul.f32 %v993, %v1000
      %v1008 = vmul.f32 %v994, %v1004
      %1009 = vst [vmem:[#allocation2 + $0x2c0] sm:$0xff] %v1007
      %1010 = vst [vmem:[#allocation2 + $0x2c8] sm:$0xff] %v1008
      %1011 = vrot.lane.b32.xlu0 %v853, 111
      %v1012 = vpop.permute.xlu0 %1011
      %1013 = vrot.lane.b32.xlu0 %v854, 111
      %v1014 = vpop.permute.xlu0 %1013
      %v1015 = vsel %vm561, %v1012, %v1014
      %v1016 = vsel %vm561, %v1014, %v1012
      %v1017 = vld [vmem:[%s566] sm:$0x3]
      %v1019 = vlaneseq
      %v1020 = vshrl.u32 %v1019, 7
      %v1021 = vsub.s32 0, %v1020
      %v1022 = vrot.slane %v1017, %v1021
      %v1023 = vlaneseq
      %v1024 = vshrl.u32 %v1023, 7
      %v1025 = vsub.s32 1, %v1024
      %v1026 = vrot.slane %v1017, %v1025
      %v1029 = vmul.f32 %v1015, %v1022
      %v1030 = vmul.f32 %v1016, %v1026
      %1031 = vst [vmem:[#allocation2 + $0x320] sm:$0xff] %v1029
      %1032 = vst [vmem:[#allocation2 + $0x328] sm:$0xff] %v1030
      %s1033 = scalar_lea.vmem %s1, 64
      %v1034 = vld [vmem:[%s1033] sm:$0xff]
      %v1035 = vld [vmem:[%s1033 + $0x8] sm:$0xff]
      %v1036 = vld [vmem:[%s1033 + $0x10] sm:$0xff]
      %v1037 = vld [vmem:[%s1033 + $0x18] sm:$0xff]
      %v1038 = vld [vmem:[#allocation2] sm:$0xff]
      %v1039 = vld [vmem:[#allocation2 + $0x8] sm:$0xff]
      %v1040 = vld [vmem:[#allocation2 + $0x10] sm:$0xff]
      %v1041 = vld [vmem:[#allocation2 + $0x18] sm:$0xff]
      %v1042 = vld [vmem:[#allocation2 + $0x20] sm:$0xff]
      %v1043 = vld [vmem:[#allocation2 + $0x28] sm:$0xff]
      %v1044 = vld [vmem:[#allocation2 + $0x30] sm:$0xff]
      %v1045 = vld [vmem:[#allocation2 + $0x38] sm:$0xff]
      %v1046 = vld [vmem:[#allocation2 + $0x40] sm:$0xff]
      %v1047 = vld [vmem:[#allocation2 + $0x48] sm:$0xff]
      %v1048 = vld [vmem:[#allocation2 + $0x50] sm:$0xff]
      %v1049 = vld [vmem:[#allocation2 + $0x58] sm:$0xff]
      %v1050 = vld [vmem:[#allocation2 + $0x60] sm:$0xff]
      %v1051 = vld [vmem:[#allocation2 + $0x68] sm:$0xff]
      %v1052 = vld [vmem:[#allocation2 + $0x70] sm:$0xff]
      %v1053 = vld [vmem:[#allocation2 + $0x78] sm:$0xff]
      %v1054 = vld [vmem:[#allocation2 + $0x80] sm:$0xff]
      %v1055 = vld [vmem:[#allocation2 + $0x88] sm:$0xff]
      %v1056 = vld [vmem:[#allocation2 + $0x90] sm:$0xff]
      %v1057 = vld [vmem:[#allocation2 + $0x98] sm:$0xff]
      %v1058 = vld [vmem:[#allocation2 + $0xa0] sm:$0xff]
      %v1059 = vld [vmem:[#allocation2 + $0xa8] sm:$0xff]
      %v1060 = vld [vmem:[#allocation2 + $0xb0] sm:$0xff]
      %v1061 = vld [vmem:[#allocation2 + $0xb8] sm:$0xff]
      %v1062 = vld [vmem:[#allocation2 + $0xc0] sm:$0xff]
      %v1063 = vld [vmem:[#allocation2 + $0xc8] sm:$0xff]
      %v1064 = vld [vmem:[#allocation2 + $0xd0] sm:$0xff]
      %v1065 = vld [vmem:[#allocation2 + $0xd8] sm:$0xff]
      %v1066 = vld [vmem:[#allocation2 + $0xe0] sm:$0xff]
      %v1067 = vld [vmem:[#allocation2 + $0xe8] sm:$0xff]
      %v1068 = vld [vmem:[#allocation2 + $0xf0] sm:$0xff]
      %v1069 = vld [vmem:[#allocation2 + $0xf8] sm:$0xff]
      %v1070 = vld [vmem:[#allocation2 + $0x100] sm:$0xff]
      %v1071 = vld [vmem:[#allocation2 + $0x108] sm:$0xff]
      %v1072 = vld [vmem:[#allocation2 + $0x110] sm:$0xff]
      %v1073 = vld [vmem:[#allocation2 + $0x118] sm:$0xff]
      %v1074 = vld [vmem:[#allocation2 + $0x120] sm:$0xff]
      %v1075 = vld [vmem:[#allocation2 + $0x128] sm:$0xff]
      %v1076 = vld [vmem:[#allocation2 + $0x130] sm:$0xff]
      %v1077 = vld [vmem:[#allocation2 + $0x138] sm:$0xff]
      %v1078 = vld [vmem:[#allocation2 + $0x140] sm:$0xff]
      %v1079 = vld [vmem:[#allocation2 + $0x148] sm:$0xff]
      %v1080 = vld [vmem:[#allocation2 + $0x150] sm:$0xff]
      %v1081 = vld [vmem:[#allocation2 + $0x158] sm:$0xff]
      %v1082 = vld [vmem:[#allocation2 + $0x160] sm:$0xff]
      %v1083 = vld [vmem:[#allocation2 + $0x168] sm:$0xff]
      %v1084 = vld [vmem:[#allocation2 + $0x170] sm:$0xff]
      %v1085 = vld [vmem:[#allocation2 + $0x178] sm:$0xff]
      %v1086 = vld [vmem:[#allocation2 + $0x180] sm:$0xff]
      %v1087 = vld [vmem:[#allocation2 + $0x188] sm:$0xff]
      %v1088 = vld [vmem:[#allocation2 + $0x190] sm:$0xff]
      %v1089 = vld [vmem:[#allocation2 + $0x198] sm:$0xff]
      %v1090 = vld [vmem:[#allocation2 + $0x1a0] sm:$0xff]
      %v1091 = vld [vmem:[#allocation2 + $0x1a8] sm:$0xff]
      %v1092 = vld [vmem:[#allocation2 + $0x1b0] sm:$0xff]
      %v1093 = vld [vmem:[#allocation2 + $0x1b8] sm:$0xff]
      %v1094 = vld [vmem:[#allocation2 + $0x1c0] sm:$0xff]
      %v1095 = vld [vmem:[#allocation2 + $0x1c8] sm:$0xff]
      %v1096 = vld [vmem:[#allocation2 + $0x1d0] sm:$0xff]
      %v1097 = vld [vmem:[#allocation2 + $0x1d8] sm:$0xff]
      %v1098 = vld [vmem:[#allocation2 + $0x1e0] sm:$0xff]
      %v1099 = vld [vmem:[#allocation2 + $0x1e8] sm:$0xff]
      %v1100 = vld [vmem:[#allocation2 + $0x1f0] sm:$0xff]
      %v1101 = vld [vmem:[#allocation2 + $0x1f8] sm:$0xff]
      %v1102 = vld [vmem:[#allocation2 + $0x200] sm:$0xff]
      %v1103 = vld [vmem:[#allocation2 + $0x208] sm:$0xff]
      %v1104 = vld [vmem:[#allocation2 + $0x210] sm:$0xff]
      %v1105 = vld [vmem:[#allocation2 + $0x218] sm:$0xff]
      %v1106 = vld [vmem:[#allocation2 + $0x220] sm:$0xff]
      %v1107 = vld [vmem:[#allocation2 + $0x228] sm:$0xff]
      %v1108 = vld [vmem:[#allocation2 + $0x230] sm:$0xff]
      %v1109 = vld [vmem:[#allocation2 + $0x238] sm:$0xff]
      %v1110 = vld [vmem:[#allocation2 + $0x240] sm:$0xff]
      %v1111 = vld [vmem:[#allocation2 + $0x248] sm:$0xff]
      %v1112 = vld [vmem:[#allocation2 + $0x250] sm:$0xff]
      %v1113 = vld [vmem:[#allocation2 + $0x258] sm:$0xff]
      %v1114 = vld [vmem:[#allocation2 + $0x260] sm:$0xff]
      %v1115 = vld [vmem:[#allocation2 + $0x268] sm:$0xff]
      %v1116 = vld [vmem:[#allocation2 + $0x270] sm:$0xff]
      %v1117 = vld [vmem:[#allocation2 + $0x278] sm:$0xff]
      %v1118 = vld [vmem:[#allocation2 + $0x280] sm:$0xff]
      %v1119 = vld [vmem:[#allocation2 + $0x288] sm:$0xff]
      %v1120 = vld [vmem:[#allocation2 + $0x290] sm:$0xff]
      %v1121 = vld [vmem:[#allocation2 + $0x298] sm:$0xff]
      %v1122 = vld [vmem:[#allocation2 + $0x2a0] sm:$0xff]
      %v1123 = vld [vmem:[#allocation2 + $0x2a8] sm:$0xff]
      %v1124 = vld [vmem:[#allocation2 + $0x2b0] sm:$0xff]
      %v1125 = vld [vmem:[#allocation2 + $0x2b8] sm:$0xff]
      %v1126 = vld [vmem:[#allocation2 + $0x2c0] sm:$0xff]
      %v1127 = vld [vmem:[#allocation2 + $0x2c8] sm:$0xff]
      %v1128 = vld [vmem:[#allocation2 + $0x2d0] sm:$0xff]
      %v1129 = vld [vmem:[#allocation2 + $0x2d8] sm:$0xff]
      %v1130 = vld [vmem:[#allocation2 + $0x2e0] sm:$0xff]
      %v1131 = vld [vmem:[#allocation2 + $0x2e8] sm:$0xff]
      %v1132 = vld [vmem:[#allocation2 + $0x2f0] sm:$0xff]
      %v1133 = vld [vmem:[#allocation2 + $0x2f8] sm:$0xff]
      %v1134 = vld [vmem:[#allocation2 + $0x300] sm:$0xff]
      %v1135 = vld [vmem:[#allocation2 + $0x308] sm:$0xff]
      %v1136 = vld [vmem:[#allocation2 + $0x310] sm:$0xff]
      %v1137 = vld [vmem:[#allocation2 + $0x318] sm:$0xff]
      %v1138 = vld [vmem:[#allocation2 + $0x320] sm:$0xff]
      %v1139 = vld [vmem:[#allocation2 + $0x328] sm:$0xff]
      %v1140 = vld [vmem:[#allocation2 + $0x330] sm:$0xff]
      %v1141 = vld [vmem:[#allocation2 + $0x338] sm:$0xff]
      %v1142 = vld [vmem:[#allocation2 + $0x340] sm:$0xff]
      %v1143 = vld [vmem:[#allocation2 + $0x348] sm:$0xff]
      %v1144 = vld [vmem:[#allocation2 + $0x350] sm:$0xff]
      %v1145 = vld [vmem:[#allocation2 + $0x358] sm:$0xff]
      %s1146 = scalar_lea.vmem %s2, 16
      %v1147 = vld [vmem:[%s1146] sm:$0xff]
      %1149 = vset.pattern.permute.xlu0 0
      %1150 = vperm.xlu0 %1149, %v1147
      %v1151 = vpop.permute.xlu0 %1150
      %v1154 = vsel %vm705, %v1037, 0
      %1156 = vmatprep.subr.mxu0 %v1069
      %1157 = vmatpush1.msra.mxu0 %v1068
      %1158 = vmatprep.subr.mxu0 %v1067
      %1159 = vmatpush1.msra.mxu0 %v1066
      %1160 = vmatprep.subr.mxu0 %v1065
      %1161 = vmatpush1.msra.mxu0 %v1064
      %1162 = vmatprep.subr.mxu0 %v1063
      %1163 = vmatpush1.msra.mxu0 %v1062
      %1164 = vmatprep.subr.mxu0 %v1061
      %1165 = vmatpush1.msra.mxu0 %v1060
      %1166 = vmatprep.subr.mxu0 %v1059
      %1167 = vmatpush1.msra.mxu0 %v1058
      %1168 = vmatprep.subr.mxu0 %v1057
      %1169 = vmatpush1.msra.mxu0 %v1056
      %1170 = vmatprep.subr.mxu0 %v1055
      %1171 = vmatpush1.msra.mxu0 %v1054
      %1172 = vmatprep.subr.mxu0 %v1053
      %1173 = vmatpush1.msra.mxu0 %v1052
      %1174 = vmatprep.subr.mxu0 %v1051
      %1175 = vmatpush1.msra.mxu0 %v1050
      %1176 = vmatprep.subr.mxu0 %v1049
      %1177 = vmatpush1.msra.mxu0 %v1048
      %1178 = vmatprep.subr.mxu0 %v1047
      %1179 = vmatpush1.msra.mxu0 %v1046
      %1180 = vmatprep.subr.mxu0 %v1045
      %1181 = vmatpush1.msra.mxu0 %v1044
      %1182 = vmatprep.subr.mxu0 %v1043
      %1183 = vmatpush1.msra.mxu0 %v1042
      %1184 = vmatprep.subr.mxu0 %v1041
      %1185 = vmatpush1.msra.mxu0 %v1040
      %1186 = vmatprep.subr.mxu0 %v1039
      %1187 = vmatpush1.msra.mxu0 %v1038
      %1188 = vmatprep.subr.mxu0 %v1101
      %1189 = vmatpush2.msra.mxu0 %v1100
      %1190 = vmatprep.subr.mxu0 %v1099
      %1191 = vmatpush2.msra.mxu0 %v1098
      %1192 = vmatprep.subr.mxu0 %v1097
      %1193 = vmatpush2.msra.mxu0 %v1096
      %1194 = vmatprep.subr.mxu0 %v1095
      %1195 = vmatpush2.msra.mxu0 %v1094
      %1196 = vmatprep.subr.mxu0 %v1093
      %1197 = vmatpush2.msra.mxu0 %v1092
      %1198 = vmatprep.subr.mxu0 %v1091
      %1199 = vmatpush2.msra.mxu0 %v1090
      %1200 = vmatprep.subr.mxu0 %v1089
      %1201 = vmatpush2.msra.mxu0 %v1088
      %1202 = vmatprep.subr.mxu0 %v1087
      %1203 = vmatpush2.msra.mxu0 %v1086
      %1204 = vmatprep.subr.mxu0 %v1085
      %1205 = vmatpush2.msra.mxu0 %v1084
      %1206 = vmatprep.subr.mxu0 %v1083
      %1207 = vmatpush2.msra.mxu0 %v1082
      %1208 = vmatprep.subr.mxu0 %v1081
      %1209 = vmatpush2.msra.mxu0 %v1080
      %1210 = vmatprep.subr.mxu0 %v1079
      %1211 = vmatpush2.msra.mxu0 %v1078
      %1212 = vmatprep.subr.mxu0 %v1077
      %1213 = vmatpush2.msra.mxu0 %v1076
      %1214 = vmatprep.subr.mxu0 %v1075
      %1215 = vmatpush2.msra.mxu0 %v1074
      %1216 = vmatprep.subr.mxu0 %v1073
      %1217 = vmatpush2.msra.mxu0 %v1072
      %1218 = vmatprep.subr.mxu0 %v1071
      %1219 = vmatpush2.msra.mxu0 %v1070
      %1220 = vmatprep.mubr.f32.mxu0 %v1035
      %1221 = vmatmul.mubr.f32.gmra.mxu0 %v1034
      %v1222 = vpop.f32.mrf.mxu0
      %v1223 = vadd.f32 %v1151, %v1222
      %v1224 = vpop.f32.mrf.mxu0
      %v1225 = vadd.f32 %v1151, %v1224
      %1226 = vdwg.mxu0
      %1227 = vmatprep.subr.mxu0 %v1133
      %1228 = vmatpush1.msra.mxu0 %v1132
      %1229 = vmatprep.subr.mxu0 %v1131
      %1230 = vmatpush1.msra.mxu0 %v1130
      %1231 = vmatprep.subr.mxu0 %v1129
      %1232 = vmatpush1.msra.mxu0 %v1128
      %1233 = vmatprep.subr.mxu0 %v1127
      %1234 = vmatpush1.msra.mxu0 %v1126
      %1235 = vmatprep.subr.mxu0 %v1125
      %1236 = vmatpush1.msra.mxu0 %v1124
      %1237 = vmatprep.subr.mxu0 %v1123
      %1238 = vmatpush1.msra.mxu0 %v1122
      %1239 = vmatprep.subr.mxu0 %v1121
      %1240 = vmatpush1.msra.mxu0 %v1120
      %1241 = vmatprep.subr.mxu0 %v1119
      %1242 = vmatpush1.msra.mxu0 %v1118
      %1243 = vmatprep.subr.mxu0 %v1117
      %1244 = vmatpush1.msra.mxu0 %v1116
      %1245 = vmatprep.subr.mxu0 %v1115
      %1246 = vmatpush1.msra.mxu0 %v1114
      %1247 = vmatprep.subr.mxu0 %v1113
      %1248 = vmatpush1.msra.mxu0 %v1112
      %1249 = vmatprep.subr.mxu0 %v1111
      %1250 = vmatpush1.msra.mxu0 %v1110
      %1251 = vmatprep.subr.mxu0 %v1109
      %1252 = vmatpush1.msra.mxu0 %v1108
      %1253 = vmatprep.subr.mxu0 %v1107
      %1254 = vmatpush1.msra.mxu0 %v1106
      %1255 = vmatprep.subr.mxu0 %v1105
      %1256 = vmatpush1.msra.mxu0 %v1104
      %1257 = vmatprep.subr.mxu0 %v1103
      %1258 = vmatpush1.msra.mxu0 %v1102
      %1259 = vmatprep.subr.mxu0 0.0
      %1260 = vmatpush2.msra.mxu0 0.0
      %1261 = vmatprep.subr.mxu0 0.0
      %1262 = vmatpush2.msra.mxu0 0.0
      %1263 = vmatprep.subr.mxu0 0.0
      %1264 = vmatpush2.msra.mxu0 0.0
      %1265 = vmatprep.subr.mxu0 0.0
      %1266 = vmatpush2.msra.mxu0 0.0
      %1267 = vmatprep.subr.mxu0 0.0
      %1268 = vmatpush2.msra.mxu0 0.0
      %1269 = vmatprep.subr.mxu0 0.0
      %1270 = vmatpush2.msra.mxu0 0.0
      %1271 = vmatprep.subr.mxu0 0.0
      %1272 = vmatpush2.msra.mxu0 0.0
      %1273 = vmatprep.subr.mxu0 0.0
      %1274 = vmatpush2.msra.mxu0 0.0
      %1275 = vmatprep.subr.mxu0 0.0
      %1276 = vmatpush2.msra.mxu0 0.0
      %1277 = vmatprep.subr.mxu0 0.0
      %1278 = vmatpush2.msra.mxu0 0.0
      %1279 = vmatprep.subr.mxu0 %v1145
      %1280 = vmatpush2.msra.mxu0 %v1144
      %1281 = vmatprep.subr.mxu0 %v1143
      %1282 = vmatpush2.msra.mxu0 %v1142
      %1283 = vmatprep.subr.mxu0 %v1141
      %1284 = vmatpush2.msra.mxu0 %v1140
      %1285 = vmatprep.subr.mxu0 %v1139
      %1286 = vmatpush2.msra.mxu0 %v1138
      %1287 = vmatprep.subr.mxu0 %v1137
      %1288 = vmatpush2.msra.mxu0 %v1136
      %1289 = vmatprep.subr.mxu0 %v1135
      %1290 = vmatpush2.msra.mxu0 %v1134
      %1291 = vmatprep.mubr.f32.mxu0 %v1154
      %1292 = vmatmul.mubr.f32.gmra.mxu0 %v1036
      %v1293 = vpop.f32.mrf.mxu0
      %v1294 = vadd.f32 %v1223, %v1293
      %v1295 = vpop.f32.mrf.mxu0
      %v1296 = vadd.f32 %v1225, %v1295
      %1297 = vdwg.mxu0
      %v1298 = vmul.f32 %v1294, 0.2
      %v1299 = vmul.f32 %v1296, 0.2
      %v1300 = vmax.f32 %v1294, %v1298
      %v1301 = vmax.f32 %v1296, %v1299
      %1302 = vrot.lane.b32.xlu0 %v1300, 17
      %v1303 = vpop.permute.xlu0 %1302
      %1304 = vrot.lane.b32.xlu0 %v1301, 17
      %v1305 = vpop.permute.xlu0 %1304
      %v1306 = vsel %vm320, %v1303, %v1305
      %v1307 = vsel %vm320, %v1305, %v1303
      %v1308 = vld [vmem:[%s3] sm:$0x3]
      %v1310 = vlaneseq
      %v1311 = vshrl.u32 %v1310, 7
      %v1312 = vsub.s32 0, %v1311
      %v1313 = vrot.slane %v1308, %v1312
      %v1314 = vlaneseq
      %v1315 = vshrl.u32 %v1314, 7
      %v1316 = vsub.s32 1, %v1315
      %v1317 = vrot.slane %v1308, %v1316
      %v1320 = vmul.f32 %v1307, %v1313
      %v1321 = vmul.f32 %v1306, %v1317
      %1322 = vst [vmem:[#allocation2 + $0x30] sm:$0xff] %v1320
      %1323 = vst [vmem:[#allocation2 + $0x38] sm:$0xff] %v1321
      %1324 = vrot.lane.b32.xlu0 %v1300, 16
      %v1325 = vpop.permute.xlu0 %1324
      %1326 = vrot.lane.b32.xlu0 %v1301, 16
      %v1327 = vpop.permute.xlu0 %1326
      %v1328 = vsel %vm353, %v1325, %v1327
      %v1329 = vsel %vm353, %v1327, %v1325
      %v1330 = vld [vmem:[%s358] sm:$0x3]
      %v1332 = vlaneseq
      %v1333 = vshrl.u32 %v1332, 7
      %v1334 = vsub.s32 0, %v1333
      %v1335 = vrot.slane %v1330, %v1334
      %v1336 = vlaneseq
      %v1337 = vshrl.u32 %v1336, 7
      %v1338 = vsub.s32 1, %v1337
      %v1339 = vrot.slane %v1330, %v1338
      %v1342 = vmul.f32 %v1329, %v1335
      %v1343 = vmul.f32 %v1328, %v1339
      %1344 = vst [vmem:[#allocation2 + $0x90] sm:$0xff] %v1342
      %1345 = vst [vmem:[#allocation2 + $0x98] sm:$0xff] %v1343
      %1346 = vrot.lane.b32.xlu0 %v1300, 15
      %v1347 = vpop.permute.xlu0 %1346
      %1348 = vrot.lane.b32.xlu0 %v1301, 15
      %v1349 = vpop.permute.xlu0 %1348
      %v1350 = vsel %vm387, %v1347, %v1349
      %v1351 = vsel %vm387, %v1349, %v1347
      %v1352 = vld [vmem:[%s392] sm:$0x3]
      %v1354 = vlaneseq
      %v1355 = vshrl.u32 %v1354, 7
      %v1356 = vsub.s32 0, %v1355
      %v1357 = vrot.slane %v1352, %v1356
      %v1358 = vlaneseq
      %v1359 = vshrl.u32 %v1358, 7
      %v1360 = vsub.s32 1, %v1359
      %v1361 = vrot.slane %v1352, %v1360
      %v1364 = vmul.f32 %v1351, %v1357
      %v1365 = vmul.f32 %v1350, %v1361
      %1366 = vst [vmem:[#allocation2 + $0xf0] sm:$0xff] %v1364
      %1367 = vst [vmem:[#allocation2 + $0xf8] sm:$0xff] %v1365
      %1368 = vrot.lane.b32.xlu0 %v1300, 1
      %v1369 = vpop.permute.xlu0 %1368
      %1370 = vrot.lane.b32.xlu0 %v1301, 1
      %v1371 = vpop.permute.xlu0 %1370
      %v1372 = vsel %vm421, %v1369, %v1371
      %v1373 = vsel %vm421, %v1371, %v1369
      %v1374 = vld [vmem:[%s426] sm:$0x3]
      %v1376 = vlaneseq
      %v1377 = vshrl.u32 %v1376, 7
      %v1378 = vsub.s32 0, %v1377
      %v1379 = vrot.slane %v1374, %v1378
      %v1380 = vlaneseq
      %v1381 = vshrl.u32 %v1380, 7
      %v1382 = vsub.s32 1, %v1381
      %v1383 = vrot.slane %v1374, %v1382
      %v1386 = vmul.f32 %v1373, %v1379
      %v1387 = vmul.f32 %v1372, %v1383
      %1388 = vst [vmem:[#allocation2 + $0x150] sm:$0xff] %v1386
      %1389 = vst [vmem:[#allocation2 + $0x158] sm:$0xff] %v1387
      %1390 = vst [vmem:[#allocation2 + $0x1b0] sm:$0xff] %v1300
      %1391 = vst [vmem:[#allocation2 + $0x1b8] sm:$0xff] %v1301
      %1392 = vrot.lane.b32.xlu0 %v1300, 127
      %v1393 = vpop.permute.xlu0 %1392
      %1394 = vrot.lane.b32.xlu0 %v1301, 127
      %v1395 = vpop.permute.xlu0 %1394
      %v1396 = vsel %vm459, %v1393, %v1395
      %v1397 = vsel %vm459, %v1395, %v1393
      %v1398 = vld [vmem:[%s464] sm:$0x3]
      %v1400 = vlaneseq
      %v1401 = vshrl.u32 %v1400, 7
      %v1402 = vsub.s32 0, %v1401
      %v1403 = vrot.slane %v1398, %v1402
      %v1404 = vlaneseq
      %v1405 = vshrl.u32 %v1404, 7
      %v1406 = vsub.s32 1, %v1405
      %v1407 = vrot.slane %v1398, %v1406
      %v1410 = vmul.f32 %v1396, %v1403
      %v1411 = vmul.f32 %v1397, %v1407
      %1412 = vst [vmem:[#allocation2 + $0x210] sm:$0xff] %v1410
      %1413 = vst [vmem:[#allocation2 + $0x218] sm:$0xff] %v1411
      %1414 = vrot.lane.b32.xlu0 %v1300, 113
      %v1415 = vpop.permute.xlu0 %1414
      %1416 = vrot.lane.b32.xlu0 %v1301, 113
      %v1417 = vpop.permute.xlu0 %1416
      %v1418 = vsel %vm493, %v1415, %v1417
      %v1419 = vsel %vm493, %v1417, %v1415
      %v1420 = vld [vmem:[%s498] sm:$0x3]
      %v1422 = vlaneseq
      %v1423 = vshrl.u32 %v1422, 7
      %v1424 = vsub.s32 0, %v1423
      %v1425 = vrot.slane %v1420, %v1424
      %v1426 = vlaneseq
      %v1427 = vshrl.u32 %v1426, 7
      %v1428 = vsub.s32 1, %v1427
      %v1429 = vrot.slane %v1420, %v1428
      %v1432 = vmul.f32 %v1418, %v1425
      %v1433 = vmul.f32 %v1419, %v1429
      %1434 = vst [vmem:[#allocation2 + $0x270] sm:$0xff] %v1432
      %1435 = vst [vmem:[#allocation2 + $0x278] sm:$0xff] %v1433
      %1436 = vrot.lane.b32.xlu0 %v1300, 112
      %v1437 = vpop.permute.xlu0 %1436
      %1438 = vrot.lane.b32.xlu0 %v1301, 112
      %v1439 = vpop.permute.xlu0 %1438
      %v1440 = vsel %vm527, %v1437, %v1439
      %v1441 = vsel %vm527, %v1439, %v1437
      %v1442 = vld [vmem:[%s532] sm:$0x3]
      %v1444 = vlaneseq
      %v1445 = vshrl.u32 %v1444, 7
      %v1446 = vsub.s32 0, %v1445
      %v1447 = vrot.slane %v1442, %v1446
      %v1448 = vlaneseq
      %v1449 = vshrl.u32 %v1448, 7
      %v1450 = vsub.s32 1, %v1449
      %v1451 = vrot.slane %v1442, %v1450
      %v1454 = vmul.f32 %v1440, %v1447
      %v1455 = vmul.f32 %v1441, %v1451
      %1456 = vst [vmem:[#allocation2 + $0x2d0] sm:$0xff] %v1454
      %1457 = vst [vmem:[#allocation2 + $0x2d8] sm:$0xff] %v1455
      %1458 = vrot.lane.b32.xlu0 %v1300, 111
      %v1459 = vpop.permute.xlu0 %1458
      %1460 = vrot.lane.b32.xlu0 %v1301, 111
      %v1461 = vpop.permute.xlu0 %1460
      %v1462 = vsel %vm561, %v1459, %v1461
      %v1463 = vsel %vm561, %v1461, %v1459
      %v1464 = vld [vmem:[%s566] sm:$0x3]
      %v1466 = vlaneseq
      %v1467 = vshrl.u32 %v1466, 7
      %v1468 = vsub.s32 0, %v1467
      %v1469 = vrot.slane %v1464, %v1468
      %v1470 = vlaneseq
      %v1471 = vshrl.u32 %v1470, 7
      %v1472 = vsub.s32 1, %v1471
      %v1473 = vrot.slane %v1464, %v1472
      %v1476 = vmul.f32 %v1462, %v1469
      %v1477 = vmul.f32 %v1463, %v1473
      %1478 = vst [vmem:[#allocation2 + $0x330] sm:$0xff] %v1476
      %1479 = vst [vmem:[#allocation2 + $0x338] sm:$0xff] %v1477
      %s1480 = scalar_lea.vmem %s1, 128
      %v1481 = vld [vmem:[%s1480] sm:$0xff]
      %v1482 = vld [vmem:[%s1480 + $0x8] sm:$0xff]
      %v1483 = vld [vmem:[%s1480 + $0x10] sm:$0xff]
      %v1484 = vld [vmem:[%s1480 + $0x18] sm:$0xff]
      %v1485 = vld [vmem:[#allocation2] sm:$0xff]
      %v1486 = vld [vmem:[#allocation2 + $0x8] sm:$0xff]
      %v1487 = vld [vmem:[#allocation2 + $0x10] sm:$0xff]
      %v1488 = vld [vmem:[#allocation2 + $0x18] sm:$0xff]
      %v1489 = vld [vmem:[#allocation2 + $0x20] sm:$0xff]
      %v1490 = vld [vmem:[#allocation2 + $0x28] sm:$0xff]
      %v1491 = vld [vmem:[#allocation2 + $0x30] sm:$0xff]
      %v1492 = vld [vmem:[#allocation2 + $0x38] sm:$0xff]
      %v1493 = vld [vmem:[#allocation2 + $0x40] sm:$0xff]
      %v1494 = vld [vmem:[#allocation2 + $0x48] sm:$0xff]
      %v1495 = vld [vmem:[#allocation2 + $0x50] sm:$0xff]
      %v1496 = vld [vmem:[#allocation2 + $0x58] sm:$0xff]
      %v1497 = vld [vmem:[#allocation2 + $0x60] sm:$0xff]
      %v1498 = vld [vmem:[#allocation2 + $0x68] sm:$0xff]
      %v1499 = vld [vmem:[#allocation2 + $0x70] sm:$0xff]
      %v1500 = vld [vmem:[#allocation2 + $0x78] sm:$0xff]
      %v1501 = vld [vmem:[#allocation2 + $0x80] sm:$0xff]
      %v1502 = vld [vmem:[#allocation2 + $0x88] sm:$0xff]
      %v1503 = vld [vmem:[#allocation2 + $0x90] sm:$0xff]
      %v1504 = vld [vmem:[#allocation2 + $0x98] sm:$0xff]
      %v1505 = vld [vmem:[#allocation2 + $0xa0] sm:$0xff]
      %v1506 = vld [vmem:[#allocation2 + $0xa8] sm:$0xff]
      %v1507 = vld [vmem:[#allocation2 + $0xb0] sm:$0xff]
      %v1508 = vld [vmem:[#allocation2 + $0xb8] sm:$0xff]
      %v1509 = vld [vmem:[#allocation2 + $0xc0] sm:$0xff]
      %v1510 = vld [vmem:[#allocation2 + $0xc8] sm:$0xff]
      %v1511 = vld [vmem:[#allocation2 + $0xd0] sm:$0xff]
      %v1512 = vld [vmem:[#allocation2 + $0xd8] sm:$0xff]
      %v1513 = vld [vmem:[#allocation2 + $0xe0] sm:$0xff]
      %v1514 = vld [vmem:[#allocation2 + $0xe8] sm:$0xff]
      %v1515 = vld [vmem:[#allocation2 + $0xf0] sm:$0xff]
      %v1516 = vld [vmem:[#allocation2 + $0xf8] sm:$0xff]
      %v1517 = vld [vmem:[#allocation2 + $0x100] sm:$0xff]
      %v1518 = vld [vmem:[#allocation2 + $0x108] sm:$0xff]
      %v1519 = vld [vmem:[#allocation2 + $0x110] sm:$0xff]
      %v1520 = vld [vmem:[#allocation2 + $0x118] sm:$0xff]
      %v1521 = vld [vmem:[#allocation2 + $0x120] sm:$0xff]
      %v1522 = vld [vmem:[#allocation2 + $0x128] sm:$0xff]
      %v1523 = vld [vmem:[#allocation2 + $0x130] sm:$0xff]
      %v1524 = vld [vmem:[#allocation2 + $0x138] sm:$0xff]
      %v1525 = vld [vmem:[#allocation2 + $0x140] sm:$0xff]
      %v1526 = vld [vmem:[#allocation2 + $0x148] sm:$0xff]
      %v1527 = vld [vmem:[#allocation2 + $0x150] sm:$0xff]
      %v1528 = vld [vmem:[#allocation2 + $0x158] sm:$0xff]
      %v1529 = vld [vmem:[#allocation2 + $0x160] sm:$0xff]
      %v1530 = vld [vmem:[#allocation2 + $0x168] sm:$0xff]
      %v1531 = vld [vmem:[#allocation2 + $0x170] sm:$0xff]
      %v1532 = vld [vmem:[#allocation2 + $0x178] sm:$0xff]
      %v1533 = vld [vmem:[#allocation2 + $0x180] sm:$0xff]
      %v1534 = vld [vmem:[#allocation2 + $0x188] sm:$0xff]
      %v1535 = vld [vmem:[#allocation2 + $0x190] sm:$0xff]
      %v1536 = vld [vmem:[#allocation2 + $0x198] sm:$0xff]
      %v1537 = vld [vmem:[#allocation2 + $0x1a0] sm:$0xff]
      %v1538 = vld [vmem:[#allocation2 + $0x1a8] sm:$0xff]
      %v1539 = vld [vmem:[#allocation2 + $0x1b0] sm:$0xff]
      %v1540 = vld [vmem:[#allocation2 + $0x1b8] sm:$0xff]
      %v1541 = vld [vmem:[#allocation2 + $0x1c0] sm:$0xff]
      %v1542 = vld [vmem:[#allocation2 + $0x1c8] sm:$0xff]
      %v1543 = vld [vmem:[#allocation2 + $0x1d0] sm:$0xff]
      %v1544 = vld [vmem:[#allocation2 + $0x1d8] sm:$0xff]
      %v1545 = vld [vmem:[#allocation2 + $0x1e0] sm:$0xff]
      %v1546 = vld [vmem:[#allocation2 + $0x1e8] sm:$0xff]
      %v1547 = vld [vmem:[#allocation2 + $0x1f0] sm:$0xff]
      %v1548 = vld [vmem:[#allocation2 + $0x1f8] sm:$0xff]
      %v1549 = vld [vmem:[#allocation2 + $0x200] sm:$0xff]
      %v1550 = vld [vmem:[#allocation2 + $0x208] sm:$0xff]
      %v1551 = vld [vmem:[#allocation2 + $0x210] sm:$0xff]
      %v1552 = vld [vmem:[#allocation2 + $0x218] sm:$0xff]
      %v1553 = vld [vmem:[#allocation2 + $0x220] sm:$0xff]
      %v1554 = vld [vmem:[#allocation2 + $0x228] sm:$0xff]
      %v1555 = vld [vmem:[#allocation2 + $0x230] sm:$0xff]
      %v1556 = vld [vmem:[#allocation2 + $0x238] sm:$0xff]
      %v1557 = vld [vmem:[#allocation2 + $0x240] sm:$0xff]
      %v1558 = vld [vmem:[#allocation2 + $0x248] sm:$0xff]
      %v1559 = vld [vmem:[#allocation2 + $0x250] sm:$0xff]
      %v1560 = vld [vmem:[#allocation2 + $0x258] sm:$0xff]
      %v1561 = vld [vmem:[#allocation2 + $0x260] sm:$0xff]
      %v1562 = vld [vmem:[#allocation2 + $0x268] sm:$0xff]
      %v1563 = vld [vmem:[#allocation2 + $0x270] sm:$0xff]
      %v1564 = vld [vmem:[#allocation2 + $0x278] sm:$0xff]
      %v1565 = vld [vmem:[#allocation2 + $0x280] sm:$0xff]
      %v1566 = vld [vmem:[#allocation2 + $0x288] sm:$0xff]
      %v1567 = vld [vmem:[#allocation2 + $0x290] sm:$0xff]
      %v1568 = vld [vmem:[#allocation2 + $0x298] sm:$0xff]
      %v1569 = vld [vmem:[#allocation2 + $0x2a0] sm:$0xff]
      %v1570 = vld [vmem:[#allocation2 + $0x2a8] sm:$0xff]
      %v1571 = vld [vmem:[#allocation2 + $0x2b0] sm:$0xff]
      %v1572 = vld [vmem:[#allocation2 + $0x2b8] sm:$0xff]
      %v1573 = vld [vmem:[#allocation2 + $0x2c0] sm:$0xff]
      %v1574 = vld [vmem:[#allocation2 + $0x2c8] sm:$0xff]
      %v1575 = vld [vmem:[#allocation2 + $0x2d0] sm:$0xff]
      %v1576 = vld [vmem:[#allocation2 + $0x2d8] sm:$0xff]
      %v1577 = vld [vmem:[#allocation2 + $0x2e0] sm:$0xff]
      %v1578 = vld [vmem:[#allocation2 + $0x2e8] sm:$0xff]
      %v1579 = vld [vmem:[#allocation2 + $0x2f0] sm:$0xff]
      %v1580 = vld [vmem:[#allocation2 + $0x2f8] sm:$0xff]
      %v1581 = vld [vmem:[#allocation2 + $0x300] sm:$0xff]
      %v1582 = vld [vmem:[#allocation2 + $0x308] sm:$0xff]
      %v1583 = vld [vmem:[#allocation2 + $0x310] sm:$0xff]
      %v1584 = vld [vmem:[#allocation2 + $0x318] sm:$0xff]
      %v1585 = vld [vmem:[#allocation2 + $0x320] sm:$0xff]
      %v1586 = vld [vmem:[#allocation2 + $0x328] sm:$0xff]
      %v1587 = vld [vmem:[#allocation2 + $0x330] sm:$0xff]
      %v1588 = vld [vmem:[#allocation2 + $0x338] sm:$0xff]
      %v1589 = vld [vmem:[#allocation2 + $0x340] sm:$0xff]
      %v1590 = vld [vmem:[#allocation2 + $0x348] sm:$0xff]
      %v1591 = vld [vmem:[#allocation2 + $0x350] sm:$0xff]
      %v1592 = vld [vmem:[#allocation2 + $0x358] sm:$0xff]
      %s1593 = scalar_lea.vmem %s2, 32
      %v1594 = vld [vmem:[%s1593] sm:$0xff]
      %1596 = vset.pattern.permute.xlu0 0
      %1597 = vperm.xlu0 %1596, %v1594
      %v1598 = vpop.permute.xlu0 %1597
      %v1601 = vsel %vm705, %v1484, 0
      %1603 = vmatprep.subr.mxu0 %v1516
      %1604 = vmatpush1.msra.mxu0 %v1515
      %1605 = vmatprep.subr.mxu0 %v1514
      %1606 = vmatpush1.msra.mxu0 %v1513
      %1607 = vmatprep.subr.mxu0 %v1512
      %1608 = vmatpush1.msra.mxu0 %v1511
      %1609 = vmatprep.subr.mxu0 %v1510
      %1610 = vmatpush1.msra.mxu0 %v1509
      %1611 = vmatprep.subr.mxu0 %v1508
      %1612 = vmatpush1.msra.mxu0 %v1507
      %1613 = vmatprep.subr.mxu0 %v1506
      %1614 = vmatpush1.msra.mxu0 %v1505
      %1615 = vmatprep.subr.mxu0 %v1504
      %1616 = vmatpush1.msra.mxu0 %v1503
      %1617 = vmatprep.subr.mxu0 %v1502
      %1618 = vmatpush1.msra.mxu0 %v1501
      %1619 = vmatprep.subr.mxu0 %v1500
      %1620 = vmatpush1.msra.mxu0 %v1499
      %1621 = vmatprep.subr.mxu0 %v1498
      %1622 = vmatpush1.msra.mxu0 %v1497
      %1623 = vmatprep.subr.mxu0 %v1496
      %1624 = vmatpush1.msra.mxu0 %v1495
      %1625 = vmatprep.subr.mxu0 %v1494
      %1626 = vmatpush1.msra.mxu0 %v1493
      %1627 = vmatprep.subr.mxu0 %v1492
      %1628 = vmatpush1.msra.mxu0 %v1491
      %1629 = vmatprep.subr.mxu0 %v1490
      %1630 = vmatpush1.msra.mxu0 %v1489
      %1631 = vmatprep.subr.mxu0 %v1488
      %1632 = vmatpush1.msra.mxu0 %v1487
      %1633 = vmatprep.subr.mxu0 %v1486
      %1634 = vmatpush1.msra.mxu0 %v1485
      %1635 = vmatprep.subr.mxu0 %v1548
      %1636 = vmatpush2.msra.mxu0 %v1547
      %1637 = vmatprep.subr.mxu0 %v1546
      %1638 = vmatpush2.msra.mxu0 %v1545
      %1639 = vmatprep.subr.mxu0 %v1544
      %1640 = vmatpush2.msra.mxu0 %v1543
      %1641 = vmatprep.subr.mxu0 %v1542
      %1642 = vmatpush2.msra.mxu0 %v1541
      %1643 = vmatprep.subr.mxu0 %v1540
      %1644 = vmatpush2.msra.mxu0 %v1539
      %1645 = vmatprep.subr.mxu0 %v1538
      %1646 = vmatpush2.msra.mxu0 %v1537
      %1647 = vmatprep.subr.mxu0 %v1536
      %1648 = vmatpush2.msra.mxu0 %v1535
      %1649 = vmatprep.subr.mxu0 %v1534
      %1650 = vmatpush2.msra.mxu0 %v1533
      %1651 = vmatprep.subr.mxu0 %v1532
      %1652 = vmatpush2.msra.mxu0 %v1531
      %1653 = vmatprep.subr.mxu0 %v1530
      %1654 = vmatpush2.msra.mxu0 %v1529
      %1655 = vmatprep.subr.mxu0 %v1528
      %1656 = vmatpush2.msra.mxu0 %v1527
      %1657 = vmatprep.subr.mxu0 %v1526
      %1658 = vmatpush2.msra.mxu0 %v1525
      %1659 = vmatprep.subr.mxu0 %v1524
      %1660 = vmatpush2.msra.mxu0 %v1523
      %1661 = vmatprep.subr.mxu0 %v1522
      %1662 = vmatpush2.msra.mxu0 %v1521
      %1663 = vmatprep.subr.mxu0 %v1520
      %1664 = vmatpush2.msra.mxu0 %v1519
      %1665 = vmatprep.subr.mxu0 %v1518
      %1666 = vmatpush2.msra.mxu0 %v1517
      %1667 = vmatprep.mubr.f32.mxu0 %v1482
      %1668 = vmatmul.mubr.f32.gmra.mxu0 %v1481
      %v1669 = vpop.f32.mrf.mxu0
      %v1670 = vadd.f32 %v1598, %v1669
      %v1671 = vpop.f32.mrf.mxu0
      %v1672 = vadd.f32 %v1598, %v1671
      %1673 = vdwg.mxu0
      %1674 = vmatprep.subr.mxu0 %v1580
      %1675 = vmatpush1.msra.mxu0 %v1579
      %1676 = vmatprep.subr.mxu0 %v1578
      %1677 = vmatpush1.msra.mxu0 %v1577
      %1678 = vmatprep.subr.mxu0 %v1576
      %1679 = vmatpush1.msra.mxu0 %v1575
      %1680 = vmatprep.subr.mxu0 %v1574
      %1681 = vmatpush1.msra.mxu0 %v1573
      %1682 = vmatprep.subr.mxu0 %v1572
      %1683 = vmatpush1.msra.mxu0 %v1571
      %1684 = vmatprep.subr.mxu0 %v1570
      %1685 = vmatpush1.msra.mxu0 %v1569
      %1686 = vmatprep.subr.mxu0 %v1568
      %1687 = vmatpush1.msra.mxu0 %v1567
      %1688 = vmatprep.subr.mxu0 %v1566
      %1689 = vmatpush1.msra.mxu0 %v1565
      %1690 = vmatprep.subr.mxu0 %v1564
      %1691 = vmatpush1.msra.mxu0 %v1563
      %1692 = vmatprep.subr.mxu0 %v1562
      %1693 = vmatpush1.msra.mxu0 %v1561
      %1694 = vmatprep.subr.mxu0 %v1560
      %1695 = vmatpush1.msra.mxu0 %v1559
      %1696 = vmatprep.subr.mxu0 %v1558
      %1697 = vmatpush1.msra.mxu0 %v1557
      %1698 = vmatprep.subr.mxu0 %v1556
      %1699 = vmatpush1.msra.mxu0 %v1555
      %1700 = vmatprep.subr.mxu0 %v1554
      %1701 = vmatpush1.msra.mxu0 %v1553
      %1702 = vmatprep.subr.mxu0 %v1552
      %1703 = vmatpush1.msra.mxu0 %v1551
      %1704 = vmatprep.subr.mxu0 %v1550
      %1705 = vmatpush1.msra.mxu0 %v1549
      %1706 = vmatprep.subr.mxu0 0.0
      %1707 = vmatpush2.msra.mxu0 0.0
      %1708 = vmatprep.subr.mxu0 0.0
      %1709 = vmatpush2.msra.mxu0 0.0
      %1710 = vmatprep.subr.mxu0 0.0
      %1711 = vmatpush2.msra.mxu0 0.0
      %1712 = vmatprep.subr.mxu0 0.0
      %1713 = vmatpush2.msra.mxu0 0.0
      %1714 = vmatprep.subr.mxu0 0.0
      %1715 = vmatpush2.msra.mxu0 0.0
      %1716 = vmatprep.subr.mxu0 0.0
      %1717 = vmatpush2.msra.mxu0 0.0
      %1718 = vmatprep.subr.mxu0 0.0
      %1719 = vmatpush2.msra.mxu0 0.0
      %1720 = vmatprep.subr.mxu0 0.0
      %1721 = vmatpush2.msra.mxu0 0.0
      %1722 = vmatprep.subr.mxu0 0.0
      %1723 = vmatpush2.msra.mxu0 0.0
      %1724 = vmatprep.subr.mxu0 0.0
      %1725 = vmatpush2.msra.mxu0 0.0
      %1726 = vmatprep.subr.mxu0 %v1592
      %1727 = vmatpush2.msra.mxu0 %v1591
      %1728 = vmatprep.subr.mxu0 %v1590
      %1729 = vmatpush2.msra.mxu0 %v1589
      %1730 = vmatprep.subr.mxu0 %v1588
      %1731 = vmatpush2.msra.mxu0 %v1587
      %1732 = vmatprep.subr.mxu0 %v1586
      %1733 = vmatpush2.msra.mxu0 %v1585
      %1734 = vmatprep.subr.mxu0 %v1584
      %1735 = vmatpush2.msra.mxu0 %v1583
      %1736 = vmatprep.subr.mxu0 %v1582
      %1737 = vmatpush2.msra.mxu0 %v1581
      %1738 = vmatprep.mubr.f32.mxu0 %v1601
      %1739 = vmatmul.mubr.f32.gmra.mxu0 %v1483
      %v1740 = vpop.f32.mrf.mxu0
      %v1741 = vadd.f32 %v1670, %v1740
      %v1742 = vpop.f32.mrf.mxu0
      %v1743 = vadd.f32 %v1672, %v1742
      %1744 = vdwg.mxu0
      %v1745 = vmul.f32 %v1741, 0.2
      %v1746 = vmul.f32 %v1743, 0.2
      %v1747 = vmax.f32 %v1741, %v1745
      %v1748 = vmax.f32 %v1743, %v1746
      %1749 = vrot.lane.b32.xlu0 %v1747, 17
      %v1750 = vpop.permute.xlu0 %1749
      %1751 = vrot.lane.b32.xlu0 %v1748, 17
      %v1752 = vpop.permute.xlu0 %1751
      %v1753 = vsel %vm320, %v1750, %v1752
      %v1754 = vsel %vm320, %v1752, %v1750
      %v1755 = vld [vmem:[%s3] sm:$0x3]
      %v1757 = vlaneseq
      %v1758 = vshrl.u32 %v1757, 7
      %v1759 = vsub.s32 0, %v1758
      %v1760 = vrot.slane %v1755, %v1759
      %v1761 = vlaneseq
      %v1762 = vshrl.u32 %v1761, 7
      %v1763 = vsub.s32 1, %v1762
      %v1764 = vrot.slane %v1755, %v1763
      %v1767 = vmul.f32 %v1754, %v1760
      %v1768 = vmul.f32 %v1753, %v1764
      %1769 = vst [vmem:[#allocation2 + $0x40] sm:$0xff] %v1767
      %1770 = vst [vmem:[#allocation2 + $0x48] sm:$0xff] %v1768
      %1771 = vrot.lane.b32.xlu0 %v1747, 16
      %v1772 = vpop.permute.xlu0 %1771
      %1773 = vrot.lane.b32.xlu0 %v1748, 16
      %v1774 = vpop.permute.xlu0 %1773
      %v1775 = vsel %vm353, %v1772, %v1774
      %v1776 = vsel %vm353, %v1774, %v1772
      %v1777 = vld [vmem:[%s358] sm:$0x3]
      %v1779 = vlaneseq
      %v1780 = vshrl.u32 %v1779, 7
      %v1781 = vsub.s32 0, %v1780
      %v1782 = vrot.slane %v1777, %v1781
      %v1783 = vlaneseq
      %v1784 = vshrl.u32 %v1783, 7
      %v1785 = vsub.s32 1, %v1784
      %v1786 = vrot.slane %v1777, %v1785
      %v1789 = vmul.f32 %v1776, %v1782
      %v1790 = vmul.f32 %v1775, %v1786
      %1791 = vst [vmem:[#allocation2 + $0xa0] sm:$0xff] %v1789
      %1792 = vst [vmem:[#allocation2 + $0xa8] sm:$0xff] %v1790
      %1793 = vrot.lane.b32.xlu0 %v1747, 15
      %v1794 = vpop.permute.xlu0 %1793
      %1795 = vrot.lane.b32.xlu0 %v1748, 15
      %v1796 = vpop.permute.xlu0 %1795
      %v1797 = vsel %vm387, %v1794, %v1796
      %v1798 = vsel %vm387, %v1796, %v1794
      %v1799 = vld [vmem:[%s392] sm:$0x3]
      %v1801 = vlaneseq
      %v1802 = vshrl.u32 %v1801, 7
      %v1803 = vsub.s32 0, %v1802
      %v1804 = vrot.slane %v1799, %v1803
      %v1805 = vlaneseq
      %v1806 = vshrl.u32 %v1805, 7
      %v1807 = vsub.s32 1, %v1806
      %v1808 = vrot.slane %v1799, %v1807
      %v1811 = vmul.f32 %v1798, %v1804
      %v1812 = vmul.f32 %v1797, %v1808
      %1813 = vst [vmem:[#allocation2 + $0x100] sm:$0xff] %v1811
      %1814 = vst [vmem:[#allocation2 + $0x108] sm:$0xff] %v1812
      %1815 = vrot.lane.b32.xlu0 %v1747, 1
      %v1816 = vpop.permute.xlu0 %1815
      %1817 = vrot.lane.b32.xlu0 %v1748, 1
      %v1818 = vpop.permute.xlu0 %1817
      %v1819 = vsel %vm421, %v1816, %v1818
      %v1820 = vsel %vm421, %v1818, %v1816
      %v1821 = vld [vmem:[%s426] sm:$0x3]
      %v1823 = vlaneseq
      %v1824 = vshrl.u32 %v1823, 7
      %v1825 = vsub.s32 0, %v1824
      %v1826 = vrot.slane %v1821, %v1825
      %v1827 = vlaneseq
      %v1828 = vshrl.u32 %v1827, 7
      %v1829 = vsub.s32 1, %v1828
      %v1830 = vrot.slane %v1821, %v1829
      %v1833 = vmul.f32 %v1820, %v1826
      %v1834 = vmul.f32 %v1819, %v1830
      %1835 = vst [vmem:[#allocation2 + $0x160] sm:$0xff] %v1833
      %1836 = vst [vmem:[#allocation2 + $0x168] sm:$0xff] %v1834
      %1837 = vst [vmem:[#allocation2 + $0x1c0] sm:$0xff] %v1747
      %1838 = vst [vmem:[#allocation2 + $0x1c8] sm:$0xff] %v1748
      %1839 = vrot.lane.b32.xlu0 %v1747, 127
      %v1840 = vpop.permute.xlu0 %1839
      %1841 = vrot.lane.b32.xlu0 %v1748, 127
      %v1842 = vpop.permute.xlu0 %1841
      %v1843 = vsel %vm459, %v1840, %v1842
      %v1844 = vsel %vm459, %v1842, %v1840
      %v1845 = vld [vmem:[%s464] sm:$0x3]
      %v1847 = vlaneseq
      %v1848 = vshrl.u32 %v1847, 7
      %v1849 = vsub.s32 0, %v1848
      %v1850 = vrot.slane %v1845, %v1849
      %v1851 = vlaneseq
      %v1852 = vshrl.u32 %v1851, 7
      %v1853 = vsub.s32 1, %v1852
      %v1854 = vrot.slane %v1845, %v1853
      %v1857 = vmul.f32 %v1843, %v1850
      %v1858 = vmul.f32 %v1844, %v1854
      %1859 = vst [vmem:[#allocation2 + $0x220] sm:$0xff] %v1857
      %1860 = vst [vmem:[#allocation2 + $0x228] sm:$0xff] %v1858
      %1861 = vrot.lane.b32.xlu0 %v1747, 113
      %v1862 = vpop.permute.xlu0 %1861
      %1863 = vrot.lane.b32.xlu0 %v1748, 113
      %v1864 = vpop.permute.xlu0 %1863
      %v1865 = vsel %vm493, %v1862, %v1864
      %v1866 = vsel %vm493, %v1864, %v1862
      %v1867 = vld [vmem:[%s498] sm:$0x3]
      %v1869 = vlaneseq
      %v1870 = vshrl.u32 %v1869, 7
      %v1871 = vsub.s32 0, %v1870
      %v1872 = vrot.slane %v1867, %v1871
      %v1873 = vlaneseq
      %v1874 = vshrl.u32 %v1873, 7
      %v1875 = vsub.s32 1, %v1874
      %v1876 = vrot.slane %v1867, %v1875
      %v1879 = vmul.f32 %v1865, %v1872
      %v1880 = vmul.f32 %v1866, %v1876
      %1881 = vst [vmem:[#allocation2 + $0x280] sm:$0xff] %v1879
      %1882 = vst [vmem:[#allocation2 + $0x288] sm:$0xff] %v1880
      %1883 = vrot.lane.b32.xlu0 %v1747, 112
      %v1884 = vpop.permute.xlu0 %1883
      %1885 = vrot.lane.b32.xlu0 %v1748, 112
      %v1886 = vpop.permute.xlu0 %1885
      %v1887 = vsel %vm527, %v1884, %v1886
      %v1888 = vsel %vm527, %v1886, %v1884
      %v1889 = vld [vmem:[%s532] sm:$0x3]
      %v1891 = vlaneseq
      %v1892 = vshrl.u32 %v1891, 7
      %v1893 = vsub.s32 0, %v1892
      %v1894 = vrot.slane %v1889, %v1893
      %v1895 = vlaneseq
      %v1896 = vshrl.u32 %v1895, 7
      %v1897 = vsub.s32 1, %v1896
      %v1898 = vrot.slane %v1889, %v1897
      %v1901 = vmul.f32 %v1887, %v1894
      %v1902 = vmul.f32 %v1888, %v1898
      %1903 = vst [vmem:[#allocation2 + $0x2e0] sm:$0xff] %v1901
      %1904 = vst [vmem:[#allocation2 + $0x2e8] sm:$0xff] %v1902
      %1905 = vrot.lane.b32.xlu0 %v1747, 111
      %v1906 = vpop.permute.xlu0 %1905
      %1907 = vrot.lane.b32.xlu0 %v1748, 111
      %v1908 = vpop.permute.xlu0 %1907
      %v1909 = vsel %vm561, %v1906, %v1908
      %v1910 = vsel %vm561, %v1908, %v1906
      %v1911 = vld [vmem:[%s566] sm:$0x3]
      %v1913 = vlaneseq
      %v1914 = vshrl.u32 %v1913, 7
      %v1915 = vsub.s32 0, %v1914
      %v1916 = vrot.slane %v1911, %v1915
      %v1917 = vlaneseq
      %v1918 = vshrl.u32 %v1917, 7
      %v1919 = vsub.s32 1, %v1918
      %v1920 = vrot.slane %v1911, %v1919
      %v1923 = vmul.f32 %v1909, %v1916
      %v1924 = vmul.f32 %v1910, %v1920
      %1925 = vst [vmem:[#allocation2 + $0x340] sm:$0xff] %v1923
      %1926 = vst [vmem:[#allocation2 + $0x348] sm:$0xff] %v1924
      %s1927 = scalar_lea.vmem %s1, 192
      %v1928 = vld [vmem:[%s1927] sm:$0xff]
      %v1929 = vld [vmem:[%s1927 + $0x8] sm:$0xff]
      %v1930 = vld [vmem:[%s1927 + $0x10] sm:$0xff]
      %v1931 = vld [vmem:[%s1927 + $0x18] sm:$0xff]
      %v1932 = vld [vmem:[#allocation2] sm:$0xff]
      %v1933 = vld [vmem:[#allocation2 + $0x8] sm:$0xff]
      %v1934 = vld [vmem:[#allocation2 + $0x10] sm:$0xff]
      %v1935 = vld [vmem:[#allocation2 + $0x18] sm:$0xff]
      %v1936 = vld [vmem:[#allocation2 + $0x20] sm:$0xff]
      %v1937 = vld [vmem:[#allocation2 + $0x28] sm:$0xff]
      %v1938 = vld [vmem:[#allocation2 + $0x30] sm:$0xff]
      %v1939 = vld [vmem:[#allocation2 + $0x38] sm:$0xff]
      %v1940 = vld [vmem:[#allocation2 + $0x40] sm:$0xff]
      %v1941 = vld [vmem:[#allocation2 + $0x48] sm:$0xff]
      %v1942 = vld [vmem:[#allocation2 + $0x50] sm:$0xff]
      %v1943 = vld [vmem:[#allocation2 + $0x58] sm:$0xff]
      %v1944 = vld [vmem:[#allocation2 + $0x60] sm:$0xff]
      %v1945 = vld [vmem:[#allocation2 + $0x68] sm:$0xff]
      %v1946 = vld [vmem:[#allocation2 + $0x70] sm:$0xff]
      %v1947 = vld [vmem:[#allocation2 + $0x78] sm:$0xff]
      %v1948 = vld [vmem:[#allocation2 + $0x80] sm:$0xff]
      %v1949 = vld [vmem:[#allocation2 + $0x88] sm:$0xff]
      %v1950 = vld [vmem:[#allocation2 + $0x90] sm:$0xff]
      %v1951 = vld [vmem:[#allocation2 + $0x98] sm:$0xff]
      %v1952 = vld [vmem:[#allocation2 + $0xa0] sm:$0xff]
      %v1953 = vld [vmem:[#allocation2 + $0xa8] sm:$0xff]
      %v1954 = vld [vmem:[#allocation2 + $0xb0] sm:$0xff]
      %v1955 = vld [vmem:[#allocation2 + $0xb8] sm:$0xff]
      %v1956 = vld [vmem:[#allocation2 + $0xc0] sm:$0xff]
      %v1957 = vld [vmem:[#allocation2 + $0xc8] sm:$0xff]
      %v1958 = vld [vmem:[#allocation2 + $0xd0] sm:$0xff]
      %v1959 = vld [vmem:[#allocation2 + $0xd8] sm:$0xff]
      %v1960 = vld [vmem:[#allocation2 + $0xe0] sm:$0xff]
      %v1961 = vld [vmem:[#allocation2 + $0xe8] sm:$0xff]
      %v1962 = vld [vmem:[#allocation2 + $0xf0] sm:$0xff]
      %v1963 = vld [vmem:[#allocation2 + $0xf8] sm:$0xff]
      %v1964 = vld [vmem:[#allocation2 + $0x100] sm:$0xff]
      %v1965 = vld [vmem:[#allocation2 + $0x108] sm:$0xff]
      %v1966 = vld [vmem:[#allocation2 + $0x110] sm:$0xff]
      %v1967 = vld [vmem:[#allocation2 + $0x118] sm:$0xff]
      %v1968 = vld [vmem:[#allocation2 + $0x120] sm:$0xff]
      %v1969 = vld [vmem:[#allocation2 + $0x128] sm:$0xff]
      %v1970 = vld [vmem:[#allocation2 + $0x130] sm:$0xff]
      %v1971 = vld [vmem:[#allocation2 + $0x138] sm:$0xff]
      %v1972 = vld [vmem:[#allocation2 + $0x140] sm:$0xff]
      %v1973 = vld [vmem:[#allocation2 + $0x148] sm:$0xff]
      %v1974 = vld [vmem:[#allocation2 + $0x150] sm:$0xff]
      %v1975 = vld [vmem:[#allocation2 + $0x158] sm:$0xff]
      %v1976 = vld [vmem:[#allocation2 + $0x160] sm:$0xff]
      %v1977 = vld [vmem:[#allocation2 + $0x168] sm:$0xff]
      %v1978 = vld [vmem:[#allocation2 + $0x170] sm:$0xff]
      %v1979 = vld [vmem:[#allocation2 + $0x178] sm:$0xff]
      %v1980 = vld [vmem:[#allocation2 + $0x180] sm:$0xff]
      %v1981 = vld [vmem:[#allocation2 + $0x188] sm:$0xff]
      %v1982 = vld [vmem:[#allocation2 + $0x190] sm:$0xff]
      %v1983 = vld [vmem:[#allocation2 + $0x198] sm:$0xff]
      %v1984 = vld [vmem:[#allocation2 + $0x1a0] sm:$0xff]
      %v1985 = vld [vmem:[#allocation2 + $0x1a8] sm:$0xff]
      %v1986 = vld [vmem:[#allocation2 + $0x1b0] sm:$0xff]
      %v1987 = vld [vmem:[#allocation2 + $0x1b8] sm:$0xff]
      %v1988 = vld [vmem:[#allocation2 + $0x1c0] sm:$0xff]
      %v1989 = vld [vmem:[#allocation2 + $0x1c8] sm:$0xff]
      %v1990 = vld [vmem:[#allocation2 + $0x1d0] sm:$0xff]
      %v1991 = vld [vmem:[#allocation2 + $0x1d8] sm:$0xff]
      %v1992 = vld [vmem:[#allocation2 + $0x1e0] sm:$0xff]
      %v1993 = vld [vmem:[#allocation2 + $0x1e8] sm:$0xff]
      %v1994 = vld [vmem:[#allocation2 + $0x1f0] sm:$0xff]
      %v1995 = vld [vmem:[#allocation2 + $0x1f8] sm:$0xff]
      %v1996 = vld [vmem:[#allocation2 + $0x200] sm:$0xff]
      %v1997 = vld [vmem:[#allocation2 + $0x208] sm:$0xff]
      %v1998 = vld [vmem:[#allocation2 + $0x210] sm:$0xff]
      %v1999 = vld [vmem:[#allocation2 + $0x218] sm:$0xff]
      %v2000 = vld [vmem:[#allocation2 + $0x220] sm:$0xff]
      %v2001 = vld [vmem:[#allocation2 + $0x228] sm:$0xff]
      %v2002 = vld [vmem:[#allocation2 + $0x230] sm:$0xff]
      %v2003 = vld [vmem:[#allocation2 + $0x238] sm:$0xff]
      %v2004 = vld [vmem:[#allocation2 + $0x240] sm:$0xff]
      %v2005 = vld [vmem:[#allocation2 + $0x248] sm:$0xff]
      %v2006 = vld [vmem:[#allocation2 + $0x250] sm:$0xff]
      %v2007 = vld [vmem:[#allocation2 + $0x258] sm:$0xff]
      %v2008 = vld [vmem:[#allocation2 + $0x260] sm:$0xff]
      %v2009 = vld [vmem:[#allocation2 + $0x268] sm:$0xff]
      %v2010 = vld [vmem:[#allocation2 + $0x270] sm:$0xff]
      %v2011 = vld [vmem:[#allocation2 + $0x278] sm:$0xff]
      %v2012 = vld [vmem:[#allocation2 + $0x280] sm:$0xff]
      %v2013 = vld [vmem:[#allocation2 + $0x288] sm:$0xff]
      %v2014 = vld [vmem:[#allocation2 + $0x290] sm:$0xff]
      %v2015 = vld [vmem:[#allocation2 + $0x298] sm:$0xff]
      %v2016 = vld [vmem:[#allocation2 + $0x2a0] sm:$0xff]
      %v2017 = vld [vmem:[#allocation2 + $0x2a8] sm:$0xff]
      %v2018 = vld [vmem:[#allocation2 + $0x2b0] sm:$0xff]
      %v2019 = vld [vmem:[#allocation2 + $0x2b8] sm:$0xff]
      %v2020 = vld [vmem:[#allocation2 + $0x2c0] sm:$0xff]
      %v2021 = vld [vmem:[#allocation2 + $0x2c8] sm:$0xff]
      %v2022 = vld [vmem:[#allocation2 + $0x2d0] sm:$0xff]
      %v2023 = vld [vmem:[#allocation2 + $0x2d8] sm:$0xff]
      %v2024 = vld [vmem:[#allocation2 + $0x2e0] sm:$0xff]
      %v2025 = vld [vmem:[#allocation2 + $0x2e8] sm:$0xff]
      %v2026 = vld [vmem:[#allocation2 + $0x2f0] sm:$0xff]
      %v2027 = vld [vmem:[#allocation2 + $0x2f8] sm:$0xff]
      %v2028 = vld [vmem:[#allocation2 + $0x300] sm:$0xff]
      %v2029 = vld [vmem:[#allocation2 + $0x308] sm:$0xff]
      %v2030 = vld [vmem:[#allocation2 + $0x310] sm:$0xff]
      %v2031 = vld [vmem:[#allocation2 + $0x318] sm:$0xff]
      %v2032 = vld [vmem:[#allocation2 + $0x320] sm:$0xff]
      %v2033 = vld [vmem:[#allocation2 + $0x328] sm:$0xff]
      %v2034 = vld [vmem:[#allocation2 + $0x330] sm:$0xff]
      %v2035 = vld [vmem:[#allocation2 + $0x338] sm:$0xff]
      %v2036 = vld [vmem:[#allocation2 + $0x340] sm:$0xff]
      %v2037 = vld [vmem:[#allocation2 + $0x348] sm:$0xff]
      %v2038 = vld [vmem:[#allocation2 + $0x350] sm:$0xff]
      %v2039 = vld [vmem:[#allocation2 + $0x358] sm:$0xff]
      %s2040 = scalar_lea.vmem %s2, 48
      %v2041 = vld [vmem:[%s2040] sm:$0xff]
      %2043 = vset.pattern.permute.xlu0 0
      %2044 = vperm.xlu0 %2043, %v2041
      %v2045 = vpop.permute.xlu0 %2044
      %v2048 = vsel %vm705, %v1931, 0
      %2050 = vmatprep.subr.mxu0 %v1963
      %2051 = vmatpush1.msra.mxu0 %v1962
      %2052 = vmatprep.subr.mxu0 %v1961
      %2053 = vmatpush1.msra.mxu0 %v1960
      %2054 = vmatprep.subr.mxu0 %v1959
      %2055 = vmatpush1.msra.mxu0 %v1958
      %2056 = vmatprep.subr.mxu0 %v1957
      %2057 = vmatpush1.msra.mxu0 %v1956
      %2058 = vmatprep.subr.mxu0 %v1955
      %2059 = vmatpush1.msra.mxu0 %v1954
      %2060 = vmatprep.subr.mxu0 %v1953
      %2061 = vmatpush1.msra.mxu0 %v1952
      %2062 = vmatprep.subr.mxu0 %v1951
      %2063 = vmatpush1.msra.mxu0 %v1950
      %2064 = vmatprep.subr.mxu0 %v1949
      %2065 = vmatpush1.msra.mxu0 %v1948
      %2066 = vmatprep.subr.mxu0 %v1947
      %2067 = vmatpush1.msra.mxu0 %v1946
      %2068 = vmatprep.subr.mxu0 %v1945
      %2069 = vmatpush1.msra.mxu0 %v1944
      %2070 = vmatprep.subr.mxu0 %v1943
      %2071 = vmatpush1.msra.mxu0 %v1942
      %2072 = vmatprep.subr.mxu0 %v1941
      %2073 = vmatpush1.msra.mxu0 %v1940
      %2074 = vmatprep.subr.mxu0 %v1939
      %2075 = vmatpush1.msra.mxu0 %v1938
      %2076 = vmatprep.subr.mxu0 %v1937
      %2077 = vmatpush1.msra.mxu0 %v1936
      %2078 = vmatprep.subr.mxu0 %v1935
      %2079 = vmatpush1.msra.mxu0 %v1934
      %2080 = vmatprep.subr.mxu0 %v1933
      %2081 = vmatpush1.msra.mxu0 %v1932
      %2082 = vmatprep.subr.mxu0 %v1995
      %2083 = vmatpush2.msra.mxu0 %v1994
      %2084 = vmatprep.subr.mxu0 %v1993
      %2085 = vmatpush2.msra.mxu0 %v1992
      %2086 = vmatprep.subr.mxu0 %v1991
      %2087 = vmatpush2.msra.mxu0 %v1990
      %2088 = vmatprep.subr.mxu0 %v1989
      %2089 = vmatpush2.msra.mxu0 %v1988
      %2090 = vmatprep.subr.mxu0 %v1987
      %2091 = vmatpush2.msra.mxu0 %v1986
      %2092 = vmatprep.subr.mxu0 %v1985
      %2093 = vmatpush2.msra.mxu0 %v1984
      %2094 = vmatprep.subr.mxu0 %v1983
      %2095 = vmatpush2.msra.mxu0 %v1982
      %2096 = vmatprep.subr.mxu0 %v1981
      %2097 = vmatpush2.msra.mxu0 %v1980
      %2098 = vmatprep.subr.mxu0 %v1979
      %2099 = vmatpush2.msra.mxu0 %v1978
      %2100 = vmatprep.subr.mxu0 %v1977
      %2101 = vmatpush2.msra.mxu0 %v1976
      %2102 = vmatprep.subr.mxu0 %v1975
      %2103 = vmatpush2.msra.mxu0 %v1974
      %2104 = vmatprep.subr.mxu0 %v1973
      %2105 = vmatpush2.msra.mxu0 %v1972
      %2106 = vmatprep.subr.mxu0 %v1971
      %2107 = vmatpush2.msra.mxu0 %v1970
      %2108 = vmatprep.subr.mxu0 %v1969
      %2109 = vmatpush2.msra.mxu0 %v1968
      %2110 = vmatprep.subr.mxu0 %v1967
      %2111 = vmatpush2.msra.mxu0 %v1966
      %2112 = vmatprep.subr.mxu0 %v1965
      %2113 = vmatpush2.msra.mxu0 %v1964
      %2114 = vmatprep.mubr.f32.mxu0 %v1929
      %2115 = vmatmul.mubr.f32.gmra.mxu0 %v1928
      %v2116 = vpop.f32.mrf.mxu0
      %v2117 = vadd.f32 %v2045, %v2116
      %v2118 = vpop.f32.mrf.mxu0
      %v2119 = vadd.f32 %v2045, %v2118
      %2120 = vdwg.mxu0
      %2121 = vmatprep.subr.mxu0 %v2027
      %2122 = vmatpush1.msra.mxu0 %v2026
      %2123 = vmatprep.subr.mxu0 %v2025
      %2124 = vmatpush1.msra.mxu0 %v2024
      %2125 = vmatprep.subr.mxu0 %v2023
      %2126 = vmatpush1.msra.mxu0 %v2022
      %2127 = vmatprep.subr.mxu0 %v2021
      %2128 = vmatpush1.msra.mxu0 %v2020
      %2129 = vmatprep.subr.mxu0 %v2019
      %2130 = vmatpush1.msra.mxu0 %v2018
      %2131 = vmatprep.subr.mxu0 %v2017
      %2132 = vmatpush1.msra.mxu0 %v2016
      %2133 = vmatprep.subr.mxu0 %v2015
      %2134 = vmatpush1.msra.mxu0 %v2014
      %2135 = vmatprep.subr.mxu0 %v2013
      %2136 = vmatpush1.msra.mxu0 %v2012
      %2137 = vmatprep.subr.mxu0 %v2011
      %2138 = vmatpush1.msra.mxu0 %v2010
      %2139 = vmatprep.subr.mxu0 %v2009
      %2140 = vmatpush1.msra.mxu0 %v2008
      %2141 = vmatprep.subr.mxu0 %v2007
      %2142 = vmatpush1.msra.mxu0 %v2006
      %2143 = vmatprep.subr.mxu0 %v2005
      %2144 = vmatpush1.msra.mxu0 %v2004
      %2145 = vmatprep.subr.mxu0 %v2003
      %2146 = vmatpush1.msra.mxu0 %v2002
      %2147 = vmatprep.subr.mxu0 %v2001
      %2148 = vmatpush1.msra.mxu0 %v2000
      %2149 = vmatprep.subr.mxu0 %v1999
      %2150 = vmatpush1.msra.mxu0 %v1998
      %2151 = vmatprep.subr.mxu0 %v1997
      %2152 = vmatpush1.msra.mxu0 %v1996
      %2153 = vmatprep.subr.mxu0 0.0
      %2154 = vmatpush2.msra.mxu0 0.0
      %2155 = vmatprep.subr.mxu0 0.0
      %2156 = vmatpush2.msra.mxu0 0.0
      %2157 = vmatprep.subr.mxu0 0.0
      %2158 = vmatpush2.msra.mxu0 0.0
      %2159 = vmatprep.subr.mxu0 0.0
      %2160 = vmatpush2.msra.mxu0 0.0
      %2161 = vmatprep.subr.mxu0 0.0
      %2162 = vmatpush2.msra.mxu0 0.0
      %2163 = vmatprep.subr.mxu0 0.0
      %2164 = vmatpush2.msra.mxu0 0.0
      %2165 = vmatprep.subr.mxu0 0.0
      %2166 = vmatpush2.msra.mxu0 0.0
      %2167 = vmatprep.subr.mxu0 0.0
      %2168 = vmatpush2.msra.mxu0 0.0
      %2169 = vmatprep.subr.mxu0 0.0
      %2170 = vmatpush2.msra.mxu0 0.0
      %2171 = vmatprep.subr.mxu0 0.0
      %2172 = vmatpush2.msra.mxu0 0.0
      %2173 = vmatprep.subr.mxu0 %v2039
      %2174 = vmatpush2.msra.mxu0 %v2038
      %2175 = vmatprep.subr.mxu0 %v2037
      %2176 = vmatpush2.msra.mxu0 %v2036
      %2177 = vmatprep.subr.mxu0 %v2035
      %2178 = vmatpush2.msra.mxu0 %v2034
      %2179 = vmatprep.subr.mxu0 %v2033
      %2180 = vmatpush2.msra.mxu0 %v2032
      %2181 = vmatprep.subr.mxu0 %v2031
      %2182 = vmatpush2.msra.mxu0 %v2030
      %2183 = vmatprep.subr.mxu0 %v2029
      %2184 = vmatpush2.msra.mxu0 %v2028
      %2185 = vmatprep.mubr.f32.mxu0 %v2048
      %2186 = vmatmul.mubr.f32.gmra.mxu0 %v1930
      %v2187 = vpop.f32.mrf.mxu0
      %v2188 = vadd.f32 %v2117, %v2187
      %v2189 = vpop.f32.mrf.mxu0
      %v2190 = vadd.f32 %v2119, %v2189
      %2191 = vdwg.mxu0
      %v2192 = vmul.f32 %v2188, 0.2
      %v2193 = vmul.f32 %v2190, 0.2
      %v2194 = vmax.f32 %v2188, %v2192
      %v2195 = vmax.f32 %v2190, %v2193
      %2196 = vrot.lane.b32.xlu0 %v2194, 17
      %v2197 = vpop.permute.xlu0 %2196
      %2198 = vrot.lane.b32.xlu0 %v2195, 17
      %v2199 = vpop.permute.xlu0 %2198
      %v2200 = vsel %vm320, %v2197, %v2199
      %v2201 = vsel %vm320, %v2199, %v2197
      %v2202 = vld [vmem:[%s3] sm:$0x3]
      %v2204 = vlaneseq
      %v2205 = vshrl.u32 %v2204, 7
      %v2206 = vsub.s32 0, %v2205
      %v2207 = vrot.slane %v2202, %v2206
      %v2208 = vlaneseq
      %v2209 = vshrl.u32 %v2208, 7
      %v2210 = vsub.s32 1, %v2209
      %v2211 = vrot.slane %v2202, %v2210
      %v2214 = vmul.f32 %v2201, %v2207
      %v2215 = vmul.f32 %v2200, %v2211
      %2216 = vst [vmem:[#allocation2 + $0x50] sm:$0xff] %v2214
      %2217 = vst [vmem:[#allocation2 + $0x58] sm:$0xff] %v2215
      %2218 = vrot.lane.b32.xlu0 %v2194, 16
      %v2219 = vpop.permute.xlu0 %2218
      %2220 = vrot.lane.b32.xlu0 %v2195, 16
      %v2221 = vpop.permute.xlu0 %2220
      %v2222 = vsel %vm353, %v2219, %v2221
      %v2223 = vsel %vm353, %v2221, %v2219
      %v2224 = vld [vmem:[%s358] sm:$0x3]
      %v2226 = vlaneseq
      %v2227 = vshrl.u32 %v2226, 7
      %v2228 = vsub.s32 0, %v2227
      %v2229 = vrot.slane %v2224, %v2228
      %v2230 = vlaneseq
      %v2231 = vshrl.u32 %v2230, 7
      %v2232 = vsub.s32 1, %v2231
      %v2233 = vrot.slane %v2224, %v2232
      %v2236 = vmul.f32 %v2223, %v2229
      %v2237 = vmul.f32 %v2222, %v2233
      %2238 = vst [vmem:[#allocation2 + $0xb0] sm:$0xff] %v2236
      %2239 = vst [vmem:[#allocation2 + $0xb8] sm:$0xff] %v2237
      %2240 = vrot.lane.b32.xlu0 %v2194, 15
      %v2241 = vpop.permute.xlu0 %2240
      %2242 = vrot.lane.b32.xlu0 %v2195, 15
      %v2243 = vpop.permute.xlu0 %2242
      %v2244 = vsel %vm387, %v2241, %v2243
      %v2245 = vsel %vm387, %v2243, %v2241
      %v2246 = vld [vmem:[%s392] sm:$0x3]
      %v2248 = vlaneseq
      %v2249 = vshrl.u32 %v2248, 7
      %v2250 = vsub.s32 0, %v2249
      %v2251 = vrot.slane %v2246, %v2250
      %v2252 = vlaneseq
      %v2253 = vshrl.u32 %v2252, 7
      %v2254 = vsub.s32 1, %v2253
      %v2255 = vrot.slane %v2246, %v2254
      %v2258 = vmul.f32 %v2245, %v2251
      %v2259 = vmul.f32 %v2244, %v2255
      %2260 = vst [vmem:[#allocation2 + $0x110] sm:$0xff] %v2258
      %2261 = vst [vmem:[#allocation2 + $0x118] sm:$0xff] %v2259
      %2262 = vrot.lane.b32.xlu0 %v2194, 1
      %v2263 = vpop.permute.xlu0 %2262
      %2264 = vrot.lane.b32.xlu0 %v2195, 1
      %v2265 = vpop.permute.xlu0 %2264
      %v2266 = vsel %vm421, %v2263, %v2265
      %v2267 = vsel %vm421, %v2265, %v2263
      %v2268 = vld [vmem:[%s426] sm:$0x3]
      %v2270 = vlaneseq
      %v2271 = vshrl.u32 %v2270, 7
      %v2272 = vsub.s32 0, %v2271
      %v2273 = vrot.slane %v2268, %v2272
      %v2274 = vlaneseq
      %v2275 = vshrl.u32 %v2274, 7
      %v2276 = vsub.s32 1, %v2275
      %v2277 = vrot.slane %v2268, %v2276
      %v2280 = vmul.f32 %v2267, %v2273
      %v2281 = vmul.f32 %v2266, %v2277
      %2282 = vst [vmem:[#allocation2 + $0x170] sm:$0xff] %v2280
      %2283 = vst [vmem:[#allocation2 + $0x178] sm:$0xff] %v2281
      %2284 = vst [vmem:[#allocation2 + $0x1d0] sm:$0xff] %v2194
      %2285 = vst [vmem:[#allocation2 + $0x1d8] sm:$0xff] %v2195
      %2286 = vrot.lane.b32.xlu0 %v2194, 127
      %v2287 = vpop.permute.xlu0 %2286
      %2288 = vrot.lane.b32.xlu0 %v2195, 127
      %v2289 = vpop.permute.xlu0 %2288
      %v2290 = vsel %vm459, %v2287, %v2289
      %v2291 = vsel %vm459, %v2289, %v2287
      %v2292 = vld [vmem:[%s464] sm:$0x3]
      %v2294 = vlaneseq
      %v2295 = vshrl.u32 %v2294, 7
      %v2296 = vsub.s32 0, %v2295
      %v2297 = vrot.slane %v2292, %v2296
      %v2298 = vlaneseq
      %v2299 = vshrl.u32 %v2298, 7
      %v2300 = vsub.s32 1, %v2299
      %v2301 = vrot.slane %v2292, %v2300
      %v2304 = vmul.f32 %v2290, %v2297
      %v2305 = vmul.f32 %v2291, %v2301
      %2306 = vst [vmem:[#allocation2 + $0x230] sm:$0xff] %v2304
      %2307 = vst [vmem:[#allocation2 + $0x238] sm:$0xff] %v2305
      %2308 = vrot.lane.b32.xlu0 %v2194, 113
      %v2309 = vpop.permute.xlu0 %2308
      %2310 = vrot.lane.b32.xlu0 %v2195, 113
      %v2311 = vpop.permute.xlu0 %2310
      %v2312 = vsel %vm493, %v2309, %v2311
      %v2313 = vsel %vm493, %v2311, %v2309
      %v2314 = vld [vmem:[%s498] sm:$0x3]
      %v2316 = vlaneseq
      %v2317 = vshrl.u32 %v2316, 7
      %v2318 = vsub.s32 0, %v2317
      %v2319 = vrot.slane %v2314, %v2318
      %v2320 = vlaneseq
      %v2321 = vshrl.u32 %v2320, 7
      %v2322 = vsub.s32 1, %v2321
      %v2323 = vrot.slane %v2314, %v2322
      %v2326 = vmul.f32 %v2312, %v2319
      %v2327 = vmul.f32 %v2313, %v2323
      %2328 = vst [vmem:[#allocation2 + $0x290] sm:$0xff] %v2326
      %2329 = vst [vmem:[#allocation2 + $0x298] sm:$0xff] %v2327
      %2330 = vrot.lane.b32.xlu0 %v2194, 112
      %v2331 = vpop.permute.xlu0 %2330
      %2332 = vrot.lane.b32.xlu0 %v2195, 112
      %v2333 = vpop.permute.xlu0 %2332
      %v2334 = vsel %vm527, %v2331, %v2333
      %v2335 = vsel %vm527, %v2333, %v2331
      %v2336 = vld [vmem:[%s532] sm:$0x3]
      %v2338 = vlaneseq
      %v2339 = vshrl.u32 %v2338, 7
      %v2340 = vsub.s32 0, %v2339
      %v2341 = vrot.slane %v2336, %v2340
      %v2342 = vlaneseq
      %v2343 = vshrl.u32 %v2342, 7
      %v2344 = vsub.s32 1, %v2343
      %v2345 = vrot.slane %v2336, %v2344
      %v2348 = vmul.f32 %v2334, %v2341
      %v2349 = vmul.f32 %v2335, %v2345
      %2350 = vst [vmem:[#allocation2 + $0x2f0] sm:$0xff] %v2348
      %2351 = vst [vmem:[#allocation2 + $0x2f8] sm:$0xff] %v2349
      %2352 = vrot.lane.b32.xlu0 %v2194, 111
      %v2353 = vpop.permute.xlu0 %2352
      %2354 = vrot.lane.b32.xlu0 %v2195, 111
      %v2355 = vpop.permute.xlu0 %2354
      %v2356 = vsel %vm561, %v2353, %v2355
      %v2357 = vsel %vm561, %v2355, %v2353
      %v2358 = vld [vmem:[%s566] sm:$0x3]
      %v2360 = vlaneseq
      %v2361 = vshrl.u32 %v2360, 7
      %v2362 = vsub.s32 0, %v2361
      %v2363 = vrot.slane %v2358, %v2362
      %v2364 = vlaneseq
      %v2365 = vshrl.u32 %v2364, 7
      %v2366 = vsub.s32 1, %v2365
      %v2367 = vrot.slane %v2358, %v2366
      %v2370 = vmul.f32 %v2356, %v2363
      %v2371 = vmul.f32 %v2357, %v2367
      %2372 = vst [vmem:[#allocation2 + $0x350] sm:$0xff] %v2370
      %2373 = vst [vmem:[#allocation2 + $0x358] sm:$0xff] %v2371
      %s2374 = scalar_lea.vmem %s1, 256
      %v2375 = vld [vmem:[%s2374] sm:$0xff]
      %v2376 = vld [vmem:[%s2374 + $0x8] sm:$0xff]
      %v2377 = vld [vmem:[%s2374 + $0x10] sm:$0xff]
      %v2378 = vld [vmem:[%s2374 + $0x18] sm:$0xff]
      %v2379 = vld [vmem:[%s2374 + $0x20] sm:$0xff]
      %v2380 = vld [vmem:[%s2374 + $0x28] sm:$0xff]
      %v2381 = vld [vmem:[%s2374 + $0x30] sm:$0xff]
      %v2382 = vld [vmem:[%s2374 + $0x38] sm:$0xff]
      %v2383 = vld [vmem:[#allocation2] sm:$0xff]
      %v2384 = vld [vmem:[#allocation2 + $0x8] sm:$0xff]
      %v2385 = vld [vmem:[#allocation2 + $0x10] sm:$0xff]
      %v2386 = vld [vmem:[#allocation2 + $0x18] sm:$0xff]
      %v2387 = vld [vmem:[#allocation2 + $0x20] sm:$0xff]
      %v2388 = vld [vmem:[#allocation2 + $0x28] sm:$0xff]
      %v2389 = vld [vmem:[#allocation2 + $0x30] sm:$0xff]
      %v2390 = vld [vmem:[#allocation2 + $0x38] sm:$0xff]
      %v2391 = vld [vmem:[#allocation2 + $0x40] sm:$0xff]
      %v2392 = vld [vmem:[#allocation2 + $0x48] sm:$0xff]
      %v2393 = vld [vmem:[#allocation2 + $0x50] sm:$0xff]
      %v2394 = vld [vmem:[#allocation2 + $0x58] sm:$0xff]
      %v2395 = vld [vmem:[#allocation2 + $0x60] sm:$0xff]
      %v2396 = vld [vmem:[#allocation2 + $0x68] sm:$0xff]
      %v2397 = vld [vmem:[#allocation2 + $0x70] sm:$0xff]
      %v2398 = vld [vmem:[#allocation2 + $0x78] sm:$0xff]
      %v2399 = vld [vmem:[#allocation2 + $0x80] sm:$0xff]
      %v2400 = vld [vmem:[#allocation2 + $0x88] sm:$0xff]
      %v2401 = vld [vmem:[#allocation2 + $0x90] sm:$0xff]
      %v2402 = vld [vmem:[#allocation2 + $0x98] sm:$0xff]
      %v2403 = vld [vmem:[#allocation2 + $0xa0] sm:$0xff]
      %v2404 = vld [vmem:[#allocation2 + $0xa8] sm:$0xff]
      %v2405 = vld [vmem:[#allocation2 + $0xb0] sm:$0xff]
      %v2406 = vld [vmem:[#allocation2 + $0xb8] sm:$0xff]
      %v2407 = vld [vmem:[#allocation2 + $0xc0] sm:$0xff]
      %v2408 = vld [vmem:[#allocation2 + $0xc8] sm:$0xff]
      %v2409 = vld [vmem:[#allocation2 + $0xd0] sm:$0xff]
      %v2410 = vld [vmem:[#allocation2 + $0xd8] sm:$0xff]
      %v2411 = vld [vmem:[#allocation2 + $0xe0] sm:$0xff]
      %v2412 = vld [vmem:[#allocation2 + $0xe8] sm:$0xff]
      %v2413 = vld [vmem:[#allocation2 + $0xf0] sm:$0xff]
      %v2414 = vld [vmem:[#allocation2 + $0xf8] sm:$0xff]
      %v2415 = vld [vmem:[#allocation2 + $0x100] sm:$0xff]
      %v2416 = vld [vmem:[#allocation2 + $0x108] sm:$0xff]
      %v2417 = vld [vmem:[#allocation2 + $0x110] sm:$0xff]
      %v2418 = vld [vmem:[#allocation2 + $0x118] sm:$0xff]
      %v2419 = vld [vmem:[#allocation2 + $0x120] sm:$0xff]
      %v2420 = vld [vmem:[#allocation2 + $0x128] sm:$0xff]
      %v2421 = vld [vmem:[#allocation2 + $0x130] sm:$0xff]
      %v2422 = vld [vmem:[#allocation2 + $0x138] sm:$0xff]
      %v2423 = vld [vmem:[#allocation2 + $0x140] sm:$0xff]
      %v2424 = vld [vmem:[#allocation2 + $0x148] sm:$0xff]
      %v2425 = vld [vmem:[#allocation2 + $0x150] sm:$0xff]
      %v2426 = vld [vmem:[#allocation2 + $0x158] sm:$0xff]
      %v2427 = vld [vmem:[#allocation2 + $0x160] sm:$0xff]
      %v2428 = vld [vmem:[#allocation2 + $0x168] sm:$0xff]
      %v2429 = vld [vmem:[#allocation2 + $0x170] sm:$0xff]
      %v2430 = vld [vmem:[#allocation2 + $0x178] sm:$0xff]
      %v2431 = vld [vmem:[#allocation2 + $0x180] sm:$0xff]
      %v2432 = vld [vmem:[#allocation2 + $0x188] sm:$0xff]
      %v2433 = vld [vmem:[#allocation2 + $0x190] sm:$0xff]
      %v2434 = vld [vmem:[#allocation2 + $0x198] sm:$0xff]
      %v2435 = vld [vmem:[#allocation2 + $0x1a0] sm:$0xff]
      %v2436 = vld [vmem:[#allocation2 + $0x1a8] sm:$0xff]
      %v2437 = vld [vmem:[#allocation2 + $0x1b0] sm:$0xff]
      %v2438 = vld [vmem:[#allocation2 + $0x1b8] sm:$0xff]
      %v2439 = vld [vmem:[#allocation2 + $0x1c0] sm:$0xff]
      %v2440 = vld [vmem:[#allocation2 + $0x1c8] sm:$0xff]
      %v2441 = vld [vmem:[#allocation2 + $0x1d0] sm:$0xff]
      %v2442 = vld [vmem:[#allocation2 + $0x1d8] sm:$0xff]
      %v2443 = vld [vmem:[#allocation2 + $0x1e0] sm:$0xff]
      %v2444 = vld [vmem:[#allocation2 + $0x1e8] sm:$0xff]
      %v2445 = vld [vmem:[#allocation2 + $0x1f0] sm:$0xff]
      %v2446 = vld [vmem:[#allocation2 + $0x1f8] sm:$0xff]
      %v2447 = vld [vmem:[#allocation2 + $0x200] sm:$0xff]
      %v2448 = vld [vmem:[#allocation2 + $0x208] sm:$0xff]
      %v2449 = vld [vmem:[#allocation2 + $0x210] sm:$0xff]
      %v2450 = vld [vmem:[#allocation2 + $0x218] sm:$0xff]
      %v2451 = vld [vmem:[#allocation2 + $0x220] sm:$0xff]
      %v2452 = vld [vmem:[#allocation2 + $0x228] sm:$0xff]
      %v2453 = vld [vmem:[#allocation2 + $0x230] sm:$0xff]
      %v2454 = vld [vmem:[#allocation2 + $0x238] sm:$0xff]
      %v2455 = vld [vmem:[#allocation2 + $0x240] sm:$0xff]
      %v2456 = vld [vmem:[#allocation2 + $0x248] sm:$0xff]
      %v2457 = vld [vmem:[#allocation2 + $0x250] sm:$0xff]
      %v2458 = vld [vmem:[#allocation2 + $0x258] sm:$0xff]
      %v2459 = vld [vmem:[#allocation2 + $0x260] sm:$0xff]
      %v2460 = vld [vmem:[#allocation2 + $0x268] sm:$0xff]
      %v2461 = vld [vmem:[#allocation2 + $0x270] sm:$0xff]
      %v2462 = vld [vmem:[#allocation2 + $0x278] sm:$0xff]
      %v2463 = vld [vmem:[#allocation2 + $0x280] sm:$0xff]
      %v2464 = vld [vmem:[#allocation2 + $0x288] sm:$0xff]
      %v2465 = vld [vmem:[#allocation2 + $0x290] sm:$0xff]
      %v2466 = vld [vmem:[#allocation2 + $0x298] sm:$0xff]
      %v2467 = vld [vmem:[#allocation2 + $0x2a0] sm:$0xff]
      %v2468 = vld [vmem:[#allocation2 + $0x2a8] sm:$0xff]
      %v2469 = vld [vmem:[#allocation2 + $0x2b0] sm:$0xff]
      %v2470 = vld [vmem:[#allocation2 + $0x2b8] sm:$0xff]
      %v2471 = vld [vmem:[#allocation2 + $0x2c0] sm:$0xff]
      %v2472 = vld [vmem:[#allocation2 + $0x2c8] sm:$0xff]
      %v2473 = vld [vmem:[#allocation2 + $0x2d0] sm:$0xff]
      %v2474 = vld [vmem:[#allocation2 + $0x2d8] sm:$0xff]
      %v2475 = vld [vmem:[#allocation2 + $0x2e0] sm:$0xff]
      %v2476 = vld [vmem:[#allocation2 + $0x2e8] sm:$0xff]
      %v2477 = vld [vmem:[#allocation2 + $0x2f0] sm:$0xff]
      %v2478 = vld [vmem:[#allocation2 + $0x2f8] sm:$0xff]
      %v2479 = vld [vmem:[#allocation2 + $0x300] sm:$0xff]
      %v2480 = vld [vmem:[#allocation2 + $0x308] sm:$0xff]
      %v2481 = vld [vmem:[#allocation2 + $0x310] sm:$0xff]
      %v2482 = vld [vmem:[#allocation2 + $0x318] sm:$0xff]
      %v2483 = vld [vmem:[#allocation2 + $0x320] sm:$0xff]
      %v2484 = vld [vmem:[#allocation2 + $0x328] sm:$0xff]
      %v2485 = vld [vmem:[#allocation2 + $0x330] sm:$0xff]
      %v2486 = vld [vmem:[#allocation2 + $0x338] sm:$0xff]
      %v2487 = vld [vmem:[#allocation2 + $0x340] sm:$0xff]
      %v2488 = vld [vmem:[#allocation2 + $0x348] sm:$0xff]
      %v2489 = vld [vmem:[#allocation2 + $0x350] sm:$0xff]
      %v2490 = vld [vmem:[#allocation2 + $0x358] sm:$0xff]
      %s2491 = scalar_lea.vmem %s2, 64
      %v2492 = vld [vmem:[%s2491] sm:$0xff]
      %v2493 = vld [vmem:[%s2491 + $0x8] sm:$0xff]
      %2495 = vset.pattern.permute.xlu0 0
      %2496 = vperm.xlu0 %2495, %v2492
      %v2497 = vpop.permute.xlu0 %2496
      %2500 = vset.pattern.permute.xlu0 0
      %2501 = vperm.xlu0 %2500, %v2493
      %v2502 = vpop.permute.xlu0 %2501
      %v2505 = vsel %vm705, %v2378, 0
      %v2508 = vsel %vm705, %v2382, 0
      %2510 = vmatprep.subr.mxu0 %v2414
      %2511 = vmatpush1.msra.mxu0 %v2413
      %2512 = vmatprep.subr.mxu0 %v2412
      %2513 = vmatpush1.msra.mxu0 %v2411
      %2514 = vmatprep.subr.mxu0 %v2410
      %2515 = vmatpush1.msra.mxu0 %v2409
      %2516 = vmatprep.subr.mxu0 %v2408
      %2517 = vmatpush1.msra.mxu0 %v2407
      %2518 = vmatprep.subr.mxu0 %v2406
      %2519 = vmatpush1.msra.mxu0 %v2405
      %2520 = vmatprep.subr.mxu0 %v2404
      %2521 = vmatpush1.msra.mxu0 %v2403
      %2522 = vmatprep.subr.mxu0 %v2402
      %2523 = vmatpush1.msra.mxu0 %v2401
      %2524 = vmatprep.subr.mxu0 %v2400
      %2525 = vmatpush1.msra.mxu0 %v2399
      %2526 = vmatprep.subr.mxu0 %v2398
      %2527 = vmatpush1.msra.mxu0 %v2397
      %2528 = vmatprep.subr.mxu0 %v2396
      %2529 = vmatpush1.msra.mxu0 %v2395
      %2530 = vmatprep.subr.mxu0 %v2394
      %2531 = vmatpush1.msra.mxu0 %v2393
      %2532 = vmatprep.subr.mxu0 %v2392
      %2533 = vmatpush1.msra.mxu0 %v2391
      %2534 = vmatprep.subr.mxu0 %v2390
      %2535 = vmatpush1.msra.mxu0 %v2389
      %2536 = vmatprep.subr.mxu0 %v2388
      %2537 = vmatpush1.msra.mxu0 %v2387
      %2538 = vmatprep.subr.mxu0 %v2386
      %2539 = vmatpush1.msra.mxu0 %v2385
      %2540 = vmatprep.subr.mxu0 %v2384
      %2541 = vmatpush1.msra.mxu0 %v2383
      %2542 = vmatprep.subr.mxu0 %v2446
      %2543 = vmatpush2.msra.mxu0 %v2445
      %2544 = vmatprep.subr.mxu0 %v2444
      %2545 = vmatpush2.msra.mxu0 %v2443
      %2546 = vmatprep.subr.mxu0 %v2442
      %2547 = vmatpush2.msra.mxu0 %v2441
      %2548 = vmatprep.subr.mxu0 %v2440
      %2549 = vmatpush2.msra.mxu0 %v2439
      %2550 = vmatprep.subr.mxu0 %v2438
      %2551 = vmatpush2.msra.mxu0 %v2437
      %2552 = vmatprep.subr.mxu0 %v2436
      %2553 = vmatpush2.msra.mxu0 %v2435
      %2554 = vmatprep.subr.mxu0 %v2434
      %2555 = vmatpush2.msra.mxu0 %v2433
      %2556 = vmatprep.subr.mxu0 %v2432
      %2557 = vmatpush2.msra.mxu0 %v2431
      %2558 = vmatprep.subr.mxu0 %v2430
      %2559 = vmatpush2.msra.mxu0 %v2429
      %2560 = vmatprep.subr.mxu0 %v2428
      %2561 = vmatpush2.msra.mxu0 %v2427
      %2562 = vmatprep.subr.mxu0 %v2426
      %2563 = vmatpush2.msra.mxu0 %v2425
      %2564 = vmatprep.subr.mxu0 %v2424
      %2565 = vmatpush2.msra.mxu0 %v2423
      %2566 = vmatprep.subr.mxu0 %v2422
      %2567 = vmatpush2.msra.mxu0 %v2421
      %2568 = vmatprep.subr.mxu0 %v2420
      %2569 = vmatpush2.msra.mxu0 %v2419
      %2570 = vmatprep.subr.mxu0 %v2418
      %2571 = vmatpush2.msra.mxu0 %v2417
      %2572 = vmatprep.subr.mxu0 %v2416
      %2573 = vmatpush2.msra.mxu0 %v2415
      %2574 = vmatprep.mubr.f32.mxu0 %v2376
      %2575 = vmatmul.mubr.f32.gmra.mxu0 %v2375
      %v2576 = vpop.f32.mrf.mxu0
      %v2577 = vadd.f32 %v2497, %v2576
      %v2578 = vpop.f32.mrf.mxu0
      %v2579 = vadd.f32 %v2497, %v2578
      %2580 = vmatprep.mubr.f32.mxu0 %v2380
      %2581 = vmatmul.mubr.f32.gmra.mxu0 %v2379
      %v2582 = vpop.f32.mrf.mxu0
      %v2583 = vadd.f32 %v2502, %v2582
      %v2584 = vpop.f32.mrf.mxu0
      %v2585 = vadd.f32 %v2502, %v2584
      %2586 = vdwg.mxu0
      %2587 = vmatprep.subr.mxu0 %v2478
      %2588 = vmatpush1.msra.mxu0 %v2477
      %2589 = vmatprep.subr.mxu0 %v2476
      %2590 = vmatpush1.msra.mxu0 %v2475
      %2591 = vmatprep.subr.mxu0 %v2474
      %2592 = vmatpush1.msra.mxu0 %v2473
      %2593 = vmatprep.subr.mxu0 %v2472
      %2594 = vmatpush1.msra.mxu0 %v2471
      %2595 = vmatprep.subr.mxu0 %v2470
      %2596 = vmatpush1.msra.mxu0 %v2469
      %2597 = vmatprep.subr.mxu0 %v2468
      %2598 = vmatpush1.msra.mxu0 %v2467
      %2599 = vmatprep.subr.mxu0 %v2466
      %2600 = vmatpush1.msra.mxu0 %v2465
      %2601 = vmatprep.subr.mxu0 %v2464
      %2602 = vmatpush1.msra.mxu0 %v2463
      %2603 = vmatprep.subr.mxu0 %v2462
      %2604 = vmatpush1.msra.mxu0 %v2461
      %2605 = vmatprep.subr.mxu0 %v2460
      %2606 = vmatpush1.msra.mxu0 %v2459
      %2607 = vmatprep.subr.mxu0 %v2458
      %2608 = vmatpush1.msra.mxu0 %v2457
      %2609 = vmatprep.subr.mxu0 %v2456
      %2610 = vmatpush1.msra.mxu0 %v2455
      %2611 = vmatprep.subr.mxu0 %v2454
      %2612 = vmatpush1.msra.mxu0 %v2453
      %2613 = vmatprep.subr.mxu0 %v2452
      %2614 = vmatpush1.msra.mxu0 %v2451
      %2615 = vmatprep.subr.mxu0 %v2450
      %2616 = vmatpush1.msra.mxu0 %v2449
      %2617 = vmatprep.subr.mxu0 %v2448
      %2618 = vmatpush1.msra.mxu0 %v2447
      %2619 = vmatprep.subr.mxu0 0.0
      %2620 = vmatpush2.msra.mxu0 0.0
      %2621 = vmatprep.subr.mxu0 0.0
      %2622 = vmatpush2.msra.mxu0 0.0
      %2623 = vmatprep.subr.mxu0 0.0
      %2624 = vmatpush2.msra.mxu0 0.0
      %2625 = vmatprep.subr.mxu0 0.0
      %2626 = vmatpush2.msra.mxu0 0.0
      %2627 = vmatprep.subr.mxu0 0.0
      %2628 = vmatpush2.msra.mxu0 0.0
      %2629 = vmatprep.subr.mxu0 0.0
      %2630 = vmatpush2.msra.mxu0 0.0
      %2631 = vmatprep.subr.mxu0 0.0
      %2632 = vmatpush2.msra.mxu0 0.0
      %2633 = vmatprep.subr.mxu0 0.0
      %2634 = vmatpush2.msra.mxu0 0.0
      %2635 = vmatprep.subr.mxu0 0.0
      %2636 = vmatpush2.msra.mxu0 0.0
      %2637 = vmatprep.subr.mxu0 0.0
      %2638 = vmatpush2.msra.mxu0 0.0
      %2639 = vmatprep.subr.mxu0 %v2490
      %2640 = vmatpush2.msra.mxu0 %v2489
      %2641 = vmatprep.subr.mxu0 %v2488
      %2642 = vmatpush2.msra.mxu0 %v2487
      %2643 = vmatprep.subr.mxu0 %v2486
      %2644 = vmatpush2.msra.mxu0 %v2485
      %2645 = vmatprep.subr.mxu0 %v2484
      %2646 = vmatpush2.msra.mxu0 %v2483
      %2647 = vmatprep.subr.mxu0 %v2482
      %2648 = vmatpush2.msra.mxu0 %v2481
      %2649 = vmatprep.subr.mxu0 %v2480
      %2650 = vmatpush2.msra.mxu0 %v2479
      %2651 = vmatprep.mubr.f32.mxu0 %v2505
      %2652 = vmatmul.mubr.f32.gmra.mxu0 %v2377
      %v2653 = vpop.f32.mrf.mxu0
      %v2654 = vadd.f32 %v2577, %v2653
      %v2655 = vpop.f32.mrf.mxu0
      %v2656 = vadd.f32 %v2579, %v2655
      %2657 = vmatprep.mubr.f32.mxu0 %v2508
      %2658 = vmatmul.mubr.f32.gmra.mxu0 %v2381
      %v2659 = vpop.f32.mrf.mxu0
      %v2660 = vadd.f32 %v2583, %v2659
      %v2661 = vpop.f32.mrf.mxu0
      %v2662 = vadd.f32 %v2585, %v2661
      %2663 = vdwg.mxu0
      %v2664 = vmul.f32 %v2654, 0.2
      %v2665 = vmul.f32 %v2656, 0.2
      %v2666 = vmul.f32 %v2660, 0.2
      %v2667 = vmul.f32 %v2662, 0.2
      %v2668 = vadd.f32 %v2664, %v306
      %v2669 = vadd.f32 %v2665, %v307
      %v2670 = vadd.f32 %v2666, %v308
      %v2671 = vadd.f32 %v2667, %v309
      %2672 = vrot.lane.b32.xlu0 %v2668, 17
      %v2673 = vpop.permute.xlu0 %2672
      %2674 = vrot.lane.b32.xlu0 %v2670, 17
      %v2675 = vpop.permute.xlu0 %2674
      %2676 = vrot.lane.b32.xlu0 %v2669, 17
      %v2677 = vpop.permute.xlu0 %2676
      %2678 = vrot.lane.b32.xlu0 %v2671, 17
      %v2679 = vpop.permute.xlu0 %2678
      %v2680 = vsel %vm320, %v2673, %v2677
      %v2681 = vsel %vm320, %v2675, %v2679
      %v2682 = vsel %vm320, %v2677, %v2673
      %v2683 = vsel %vm320, %v2679, %v2675
      %v2684 = vld [vmem:[%s3] sm:$0x3]
      %v2686 = vlaneseq
      %v2687 = vshrl.u32 %v2686, 7
      %v2688 = vsub.s32 0, %v2687
      %v2689 = vrot.slane %v2684, %v2688
      %v2690 = vlaneseq
      %v2691 = vshrl.u32 %v2690, 7
      %v2692 = vsub.s32 1, %v2691
      %v2693 = vrot.slane %v2684, %v2692
      %v2696 = vmul.f32 %v2682, %v2689
      %v2697 = vmul.f32 %v2680, %v2693
      %v2698 = vmul.f32 %v2683, %v2689
      %v2699 = vmul.f32 %v2681, %v2693
      %2700 = vst [vmem:[#allocation2] sm:$0xff] %v2696
      %2701 = vst [vmem:[#allocation2 + $0x8] sm:$0xff] %v2697
      %2702 = vst [vmem:[#allocation2 + $0x10] sm:$0xff] %v2698
      %2703 = vst [vmem:[#allocation2 + $0x18] sm:$0xff] %v2699
      %2704 = vrot.lane.b32.xlu0 %v2668, 16
      %v2705 = vpop.permute.xlu0 %2704
      %2706 = vrot.lane.b32.xlu0 %v2670, 16
      %v2707 = vpop.permute.xlu0 %2706
      %2708 = vrot.lane.b32.xlu0 %v2669, 16
      %v2709 = vpop.permute.xlu0 %2708
      %2710 = vrot.lane.b32.xlu0 %v2671, 16
      %v2711 = vpop.permute.xlu0 %2710
      %v2712 = vsel %vm353, %v2705, %v2709
      %v2713 = vsel %vm353, %v2707, %v2711
      %v2714 = vsel %vm353, %v2709, %v2705
      %v2715 = vsel %vm353, %v2711, %v2707
      %v2716 = vld [vmem:[%s358] sm:$0x3]
      %v2718 = vlaneseq
      %v2719 = vshrl.u32 %v2718, 7
      %v2720 = vsub.s32 0, %v2719
      %v2721 = vrot.slane %v2716, %v2720
      %v2722 = vlaneseq
      %v2723 = vshrl.u32 %v2722, 7
      %v2724 = vsub.s32 1, %v2723
      %v2725 = vrot.slane %v2716, %v2724
      %v2728 = vmul.f32 %v2714, %v2721
      %v2729 = vmul.f32 %v2712, %v2725
      %v2730 = vmul.f32 %v2715, %v2721
      %v2731 = vmul.f32 %v2713, %v2725
      %2732 = vst [vmem:[#allocation2 + $0x60] sm:$0xff] %v2728
      %2733 = vst [vmem:[#allocation2 + $0x68] sm:$0xff] %v2729
      %2734 = vst [vmem:[#allocation2 + $0x70] sm:$0xff] %v2730
      %2735 = vst [vmem:[#allocation2 + $0x78] sm:$0xff] %v2731
      %2736 = vrot.lane.b32.xlu0 %v2668, 15
      %v2737 = vpop.permute.xlu0 %2736
      %2738 = vrot.lane.b32.xlu0 %v2670, 15
      %v2739 = vpop.permute.xlu0 %2738
      %2740 = vrot.lane.b32.xlu0 %v2669, 15
      %v2741 = vpop.permute.xlu0 %2740
      %2742 = vrot.lane.b32.xlu0 %v2671, 15
      %v2743 = vpop.permute.xlu0 %2742
      %v2744 = vsel %vm387, %v2737, %v2741
      %v2745 = vsel %vm387, %v2739, %v2743
      %v2746 = vsel %vm387, %v2741, %v2737
      %v2747 = vsel %vm387, %v2743, %v2739
      %v2748 = vld [vmem:[%s392] sm:$0x3]
      %v2750 = vlaneseq
      %v2751 = vshrl.u32 %v2750, 7
      %v2752 = vsub.s32 0, %v2751
      %v2753 = vrot.slane %v2748, %v2752
      %v2754 = vlaneseq
      %v2755 = vshrl.u32 %v2754, 7
      %v2756 = vsub.s32 1, %v2755
      %v2757 = vrot.slane %v2748, %v2756
      %v2760 = vmul.f32 %v2746, %v2753
      %v2761 = vmul.f32 %v2744, %v2757
      %v2762 = vmul.f32 %v2747, %v2753
      %v2763 = vmul.f32 %v2745, %v2757
      %2764 = vst [vmem:[#allocation2 + $0xc0] sm:$0xff] %v2760
      %2765 = vst [vmem:[#allocation2 + $0xc8] sm:$0xff] %v2761
      %2766 = vst [vmem:[#allocation2 + $0xd0] sm:$0xff] %v2762
      %2767 = vst [vmem:[#allocation2 + $0xd8] sm:$0xff] %v2763
      %2768 = vrot.lane.b32.xlu0 %v2668, 1
      %v2769 = vpop.permute.xlu0 %2768
      %2770 = vrot.lane.b32.xlu0 %v2670, 1
      %v2771 = vpop.permute.xlu0 %2770
      %2772 = vrot.lane.b32.xlu0 %v2669, 1
      %v2773 = vpop.permute.xlu0 %2772
      %2774 = vrot.lane.b32.xlu0 %v2671, 1
      %v2775 = vpop.permute.xlu0 %2774
      %v2776 = vsel %vm421, %v2769, %v2773
      %v2777 = vsel %vm421, %v2771, %v2775
      %v2778 = vsel %vm421, %v2773, %v2769
      %v2779 = vsel %vm421, %v2775, %v2771
      %v2780 = vld [vmem:[%s426] sm:$0x3]
      %v2782 = vlaneseq
      %v2783 = vshrl.u32 %v2782, 7
      %v2784 = vsub.s32 0, %v2783
      %v2785 = vrot.slane %v2780, %v2784
      %v2786 = vlaneseq
      %v2787 = vshrl.u32 %v2786, 7
      %v2788 = vsub.s32 1, %v2787
      %v2789 = vrot.slane %v2780, %v2788
      %v2792 = vmul.f32 %v2778, %v2785
      %v2793 = vmul.f32 %v2776, %v2789
      %v2794 = vmul.f32 %v2779, %v2785
      %v2795 = vmul.f32 %v2777, %v2789
      %2796 = vst [vmem:[#allocation2 + $0x120] sm:$0xff] %v2792
      %2797 = vst [vmem:[#allocation2 + $0x128] sm:$0xff] %v2793
      %2798 = vst [vmem:[#allocation2 + $0x130] sm:$0xff] %v2794
      %2799 = vst [vmem:[#allocation2 + $0x138] sm:$0xff] %v2795
      %2800 = vst [vmem:[#allocation2 + $0x180] sm:$0xff] %v2668
      %2801 = vst [vmem:[#allocation2 + $0x188] sm:$0xff] %v2669
      %2802 = vst [vmem:[#allocation2 + $0x190] sm:$0xff] %v2670
      %2803 = vst [vmem:[#allocation2 + $0x198] sm:$0xff] %v2671
      %2804 = vrot.lane.b32.xlu0 %v2668, 127
      %v2805 = vpop.permute.xlu0 %2804
      %2806 = vrot.lane.b32.xlu0 %v2670, 127
      %v2807 = vpop.permute.xlu0 %2806
      %2808 = vrot.lane.b32.xlu0 %v2669, 127
      %v2809 = vpop.permute.xlu0 %2808
      %2810 = vrot.lane.b32.xlu0 %v2671, 127
      %v2811 = vpop.permute.xlu0 %2810
      %v2812 = vsel %vm459, %v2805, %v2809
      %v2813 = vsel %vm459, %v2807, %v2811
      %v2814 = vsel %vm459, %v2809, %v2805
      %v2815 = vsel %vm459, %v2811, %v2807
      %v2816 = vld [vmem:[%s464] sm:$0x3]
      %v2818 = vlaneseq
      %v2819 = vshrl.u32 %v2818, 7
      %v2820 = vsub.s32 0, %v2819
      %v2821 = vrot.slane %v2816, %v2820
      %v2822 = vlaneseq
      %v2823 = vshrl.u32 %v2822, 7
      %v2824 = vsub.s32 1, %v2823
      %v2825 = vrot.slane %v2816, %v2824
      %v2828 = vmul.f32 %v2812, %v2821
      %v2829 = vmul.f32 %v2814, %v2825
      %v2830 = vmul.f32 %v2813, %v2821
      %v2831 = vmul.f32 %v2815, %v2825
      %2832 = vst [vmem:[#allocation2 + $0x1e0] sm:$0xff] %v2828
      %2833 = vst [vmem:[#allocation2 + $0x1e8] sm:$0xff] %v2829
      %2834 = vst [vmem:[#allocation2 + $0x1f0] sm:$0xff] %v2830
      %2835 = vst [vmem:[#allocation2 + $0x1f8] sm:$0xff] %v2831
      %2836 = vrot.lane.b32.xlu0 %v2668, 113
      %v2837 = vpop.permute.xlu0 %2836
      %2838 = vrot.lane.b32.xlu0 %v2670, 113
      %v2839 = vpop.permute.xlu0 %2838
      %2840 = vrot.lane.b32.xlu0 %v2669, 113
      %v2841 = vpop.permute.xlu0 %2840
      %2842 = vrot.lane.b32.xlu0 %v2671, 113
      %v2843 = vpop.permute.xlu0 %2842
      %v2844 = vsel %vm493, %v2837, %v2841
      %v2845 = vsel %vm493, %v2839, %v2843
      %v2846 = vsel %vm493, %v2841, %v2837
      %v2847 = vsel %vm493, %v2843, %v2839
      %v2848 = vld [vmem:[%s498] sm:$0x3]
      %v2850 = vlaneseq
      %v2851 = vshrl.u32 %v2850, 7
      %v2852 = vsub.s32 0, %v2851
      %v2853 = vrot.slane %v2848, %v2852
      %v2854 = vlaneseq
      %v2855 = vshrl.u32 %v2854, 7
      %v2856 = vsub.s32 1, %v2855
      %v2857 = vrot.slane %v2848, %v2856
      %v2860 = vmul.f32 %v2844, %v2853
      %v2861 = vmul.f32 %v2846, %v2857
      %v2862 = vmul.f32 %v2845, %v2853
      %v2863 = vmul.f32 %v2847, %v2857
      %2864 = vst [vmem:[#allocation2 + $0x240] sm:$0xff] %v2860
      %2865 = vst [vmem:[#allocation2 + $0x248] sm:$0xff] %v2861
      %2866 = vst [vmem:[#allocation2 + $0x250] sm:$0xff] %v2862
      %2867 = vst [vmem:[#allocation2 + $0x258] sm:$0xff] %v2863
      %2868 = vrot.lane.b32.xlu0 %v2668, 112
      %v2869 = vpop.permute.xlu0 %2868
      %2870 = vrot.lane.b32.xlu0 %v2670, 112
      %v2871 = vpop.permute.xlu0 %2870
      %2872 = vrot.lane.b32.xlu0 %v2669, 112
      %v2873 = vpop.permute.xlu0 %2872
      %2874 = vrot.lane.b32.xlu0 %v2671, 112
      %v2875 = vpop.permute.xlu0 %2874
      %v2876 = vsel %vm527, %v2869, %v2873
      %v2877 = vsel %vm527, %v2871, %v2875
      %v2878 = vsel %vm527, %v2873, %v2869
      %v2879 = vsel %vm527, %v2875, %v2871
      %v2880 = vld [vmem:[%s532] sm:$0x3]
      %v2882 = vlaneseq
      %v2883 = vshrl.u32 %v2882, 7
      %v2884 = vsub.s32 0, %v2883
      %v2885 = vrot.slane %v2880, %v2884
      %v2886 = vlaneseq
      %v2887 = vshrl.u32 %v2886, 7
      %v2888 = vsub.s32 1, %v2887
      %v2889 = vrot.slane %v2880, %v2888
      %v2892 = vmul.f32 %v2876, %v2885
      %v2893 = vmul.f32 %v2878, %v2889
      %v2894 = vmul.f32 %v2877, %v2885
      %v2895 = vmul.f32 %v2879, %v2889
      %2896 = vst [vmem:[#allocation2 + $0x2a0] sm:$0xff] %v2892
      %2897 = vst [vmem:[#allocation2 + $0x2a8] sm:$0xff] %v2893
      %2898 = vst [vmem:[#allocation2 + $0x2b0] sm:$0xff] %v2894
      %2899 = vst [vmem:[#allocation2 + $0x2b8] sm:$0xff] %v2895
      %2900 = vrot.lane.b32.xlu0 %v2668, 111
      %v2901 = vpop.permute.xlu0 %2900
      %2902 = vrot.lane.b32.xlu0 %v2670, 111
      %v2903 = vpop.permute.xlu0 %2902
      %2904 = vrot.lane.b32.xlu0 %v2669, 111
      %v2905 = vpop.permute.xlu0 %2904
      %2906 = vrot.lane.b32.xlu0 %v2671, 111
      %v2907 = vpop.permute.xlu0 %2906
      %v2908 = vsel %vm561, %v2901, %v2905
      %v2909 = vsel %vm561, %v2903, %v2907
      %v2910 = vsel %vm561, %v2905, %v2901
      %v2911 = vsel %vm561, %v2907, %v2903
      %v2912 = vld [vmem:[%s566] sm:$0x3]
      %v2914 = vlaneseq
      %v2915 = vshrl.u32 %v2914, 7
      %v2916 = vsub.s32 0, %v2915
      %v2917 = vrot.slane %v2912, %v2916
      %v2918 = vlaneseq
      %v2919 = vshrl.u32 %v2918, 7
      %v2920 = vsub.s32 1, %v2919
      %v2921 = vrot.slane %v2912, %v2920
      %v2924 = vmul.f32 %v2908, %v2917
      %v2925 = vmul.f32 %v2910, %v2921
      %v2926 = vmul.f32 %v2909, %v2917
      %v2927 = vmul.f32 %v2911, %v2921
      %2928 = vst [vmem:[#allocation2 + $0x300] sm:$0xff] %v2924
      %2929 = vst [vmem:[#allocation2 + $0x308] sm:$0xff] %v2925
      %2930 = vst [vmem:[#allocation2 + $0x310] sm:$0xff] %v2926
      %2931 = vst [vmem:[#allocation2 + $0x318] sm:$0xff] %v2927
      %s2932 = scalar_lea.vmem %s1, 320
      %v2933 = vld [vmem:[%s2932] sm:$0xff]
      %v2934 = vld [vmem:[%s2932 + $0x8] sm:$0xff]
      %v2935 = vld [vmem:[%s2932 + $0x10] sm:$0xff]
      %v2936 = vld [vmem:[%s2932 + $0x18] sm:$0xff]
      %v2937 = vld [vmem:[#allocation2] sm:$0xff]
      %v2938 = vld [vmem:[#allocation2 + $0x8] sm:$0xff]
      %v2939 = vld [vmem:[#allocation2 + $0x10] sm:$0xff]
      %v2940 = vld [vmem:[#allocation2 + $0x18] sm:$0xff]
      %v2941 = vld [vmem:[#allocation2 + $0x20] sm:$0xff]
      %v2942 = vld [vmem:[#allocation2 + $0x28] sm:$0xff]
      %v2943 = vld [vmem:[#allocation2 + $0x30] sm:$0xff]
      %v2944 = vld [vmem:[#allocation2 + $0x38] sm:$0xff]
      %v2945 = vld [vmem:[#allocation2 + $0x40] sm:$0xff]
      %v2946 = vld [vmem:[#allocation2 + $0x48] sm:$0xff]
      %v2947 = vld [vmem:[#allocation2 + $0x50] sm:$0xff]
      %v2948 = vld [vmem:[#allocation2 + $0x58] sm:$0xff]
      %v2949 = vld [vmem:[#allocation2 + $0x60] sm:$0xff]
      %v2950 = vld [vmem:[#allocation2 + $0x68] sm:$0xff]
      %v2951 = vld [vmem:[#allocation2 + $0x70] sm:$0xff]
      %v2952 = vld [vmem:[#allocation2 + $0x78] sm:$0xff]
      %v2953 = vld [vmem:[#allocation2 + $0x80] sm:$0xff]
      %v2954 = vld [vmem:[#allocation2 + $0x88] sm:$0xff]
      %v2955 = vld [vmem:[#allocation2 + $0x90] sm:$0xff]
      %v2956 = vld [vmem:[#allocation2 + $0x98] sm:$0xff]
      %v2957 = vld [vmem:[#allocation2 + $0xa0] sm:$0xff]
      %v2958 = vld [vmem:[#allocation2 + $0xa8] sm:$0xff]
      %v2959 = vld [vmem:[#allocation2 + $0xb0] sm:$0xff]
      %v2960 = vld [vmem:[#allocation2 + $0xb8] sm:$0xff]
      %v2961 = vld [vmem:[#allocation2 + $0xc0] sm:$0xff]
      %v2962 = vld [vmem:[#allocation2 + $0xc8] sm:$0xff]
      %v2963 = vld [vmem:[#allocation2 + $0xd0] sm:$0xff]
      %v2964 = vld [vmem:[#allocation2 + $0xd8] sm:$0xff]
      %v2965 = vld [vmem:[#allocation2 + $0xe0] sm:$0xff]
      %v2966 = vld [vmem:[#allocation2 + $0xe8] sm:$0xff]
      %v2967 = vld [vmem:[#allocation2 + $0xf0] sm:$0xff]
      %v2968 = vld [vmem:[#allocation2 + $0xf8] sm:$0xff]
      %v2969 = vld [vmem:[#allocation2 + $0x100] sm:$0xff]
      %v2970 = vld [vmem:[#allocation2 + $0x108] sm:$0xff]
      %v2971 = vld [vmem:[#allocation2 + $0x110] sm:$0xff]
      %v2972 = vld [vmem:[#allocation2 + $0x118] sm:$0xff]
      %v2973 = vld [vmem:[#allocation2 + $0x120] sm:$0xff]
      %v2974 = vld [vmem:[#allocation2 + $0x128] sm:$0xff]
      %v2975 = vld [vmem:[#allocation2 + $0x130] sm:$0xff]
      %v2976 = vld [vmem:[#allocation2 + $0x138] sm:$0xff]
      %v2977 = vld [vmem:[#allocation2 + $0x140] sm:$0xff]
      %v2978 = vld [vmem:[#allocation2 + $0x148] sm:$0xff]
      %v2979 = vld [vmem:[#allocation2 + $0x150] sm:$0xff]
      %v2980 = vld [vmem:[#allocation2 + $0x158] sm:$0xff]
      %v2981 = vld [vmem:[#allocation2 + $0x160] sm:$0xff]
      %v2982 = vld [vmem:[#allocation2 + $0x168] sm:$0xff]
      %v2983 = vld [vmem:[#allocation2 + $0x170] sm:$0xff]
      %v2984 = vld [vmem:[#allocation2 + $0x178] sm:$0xff]
      %v2985 = vld [vmem:[#allocation2 + $0x180] sm:$0xff]
      %v2986 = vld [vmem:[#allocation2 + $0x188] sm:$0xff]
      %v2987 = vld [vmem:[#allocation2 + $0x190] sm:$0xff]
      %v2988 = vld [vmem:[#allocation2 + $0x198] sm:$0xff]
      %v2989 = vld [vmem:[#allocation2 + $0x1a0] sm:$0xff]
      %v2990 = vld [vmem:[#allocation2 + $0x1a8] sm:$0xff]
      %v2991 = vld [vmem:[#allocation2 + $0x1b0] sm:$0xff]
      %v2992 = vld [vmem:[#allocation2 + $0x1b8] sm:$0xff]
      %v2993 = vld [vmem:[#allocation2 + $0x1c0] sm:$0xff]
      %v2994 = vld [vmem:[#allocation2 + $0x1c8] sm:$0xff]
      %v2995 = vld [vmem:[#allocation2 + $0x1d0] sm:$0xff]
      %v2996 = vld [vmem:[#allocation2 + $0x1d8] sm:$0xff]
      %v2997 = vld [vmem:[#allocation2 + $0x1e0] sm:$0xff]
      %v2998 = vld [vmem:[#allocation2 + $0x1e8] sm:$0xff]
      %v2999 = vld [vmem:[#allocation2 + $0x1f0] sm:$0xff]
      %v3000 = vld [vmem:[#allocation2 + $0x1f8] sm:$0xff]
      %v3001 = vld [vmem:[#allocation2 + $0x200] sm:$0xff]
      %v3002 = vld [vmem:[#allocation2 + $0x208] sm:$0xff]
      %v3003 = vld [vmem:[#allocation2 + $0x210] sm:$0xff]
      %v3004 = vld [vmem:[#allocation2 + $0x218] sm:$0xff]
      %v3005 = vld [vmem:[#allocation2 + $0x220] sm:$0xff]
      %v3006 = vld [vmem:[#allocation2 + $0x228] sm:$0xff]
      %v3007 = vld [vmem:[#allocation2 + $0x230] sm:$0xff]
      %v3008 = vld [vmem:[#allocation2 + $0x238] sm:$0xff]
      %v3009 = vld [vmem:[#allocation2 + $0x240] sm:$0xff]
      %v3010 = vld [vmem:[#allocation2 + $0x248] sm:$0xff]
      %v3011 = vld [vmem:[#allocation2 + $0x250] sm:$0xff]
      %v3012 = vld [vmem:[#allocation2 + $0x258] sm:$0xff]
      %v3013 = vld [vmem:[#allocation2 + $0x260] sm:$0xff]
      %v3014 = vld [vmem:[#allocation2 + $0x268] sm:$0xff]
      %v3015 = vld [vmem:[#allocation2 + $0x270] sm:$0xff]
      %v3016 = vld [vmem:[#allocation2 + $0x278] sm:$0xff]
      %v3017 = vld [vmem:[#allocation2 + $0x280] sm:$0xff]
      %v3018 = vld [vmem:[#allocation2 + $0x288] sm:$0xff]
      %v3019 = vld [vmem:[#allocation2 + $0x290] sm:$0xff]
      %v3020 = vld [vmem:[#allocation2 + $0x298] sm:$0xff]
      %v3021 = vld [vmem:[#allocation2 + $0x2a0] sm:$0xff]
      %v3022 = vld [vmem:[#allocation2 + $0x2a8] sm:$0xff]
      %v3023 = vld [vmem:[#allocation2 + $0x2b0] sm:$0xff]
      %v3024 = vld [vmem:[#allocation2 + $0x2b8] sm:$0xff]
      %v3025 = vld [vmem:[#allocation2 + $0x2c0] sm:$0xff]
      %v3026 = vld [vmem:[#allocation2 + $0x2c8] sm:$0xff]
      %v3027 = vld [vmem:[#allocation2 + $0x2d0] sm:$0xff]
      %v3028 = vld [vmem:[#allocation2 + $0x2d8] sm:$0xff]
      %v3029 = vld [vmem:[#allocation2 + $0x2e0] sm:$0xff]
      %v3030 = vld [vmem:[#allocation2 + $0x2e8] sm:$0xff]
      %v3031 = vld [vmem:[#allocation2 + $0x2f0] sm:$0xff]
      %v3032 = vld [vmem:[#allocation2 + $0x2f8] sm:$0xff]
      %v3033 = vld [vmem:[#allocation2 + $0x300] sm:$0xff]
      %v3034 = vld [vmem:[#allocation2 + $0x308] sm:$0xff]
      %v3035 = vld [vmem:[#allocation2 + $0x310] sm:$0xff]
      %v3036 = vld [vmem:[#allocation2 + $0x318] sm:$0xff]
      %v3037 = vld [vmem:[#allocation2 + $0x320] sm:$0xff]
      %v3038 = vld [vmem:[#allocation2 + $0x328] sm:$0xff]
      %v3039 = vld [vmem:[#allocation2 + $0x330] sm:$0xff]
      %v3040 = vld [vmem:[#allocation2 + $0x338] sm:$0xff]
      %v3041 = vld [vmem:[#allocation2 + $0x340] sm:$0xff]
      %v3042 = vld [vmem:[#allocation2 + $0x348] sm:$0xff]
      %v3043 = vld [vmem:[#allocation2 + $0x350] sm:$0xff]
      %v3044 = vld [vmem:[#allocation2 + $0x358] sm:$0xff]
      %s3045 = scalar_lea.vmem %s2, 80
      %v3046 = vld [vmem:[%s3045] sm:$0xff]
      %3048 = vset.pattern.permute.xlu0 0
      %3049 = vperm.xlu0 %3048, %v3046
      %v3050 = vpop.permute.xlu0 %3049
      %v3053 = vsel %vm705, %v2936, 0
      %3055 = vmatprep.subr.mxu0 %v2968
      %3056 = vmatpush1.msra.mxu0 %v2967
      %3057 = vmatprep.subr.mxu0 %v2966
      %3058 = vmatpush1.msra.mxu0 %v2965
      %3059 = vmatprep.subr.mxu0 %v2964
      %3060 = vmatpush1.msra.mxu0 %v2963
      %3061 = vmatprep.subr.mxu0 %v2962
      %3062 = vmatpush1.msra.mxu0 %v2961
      %3063 = vmatprep.subr.mxu0 %v2960
      %3064 = vmatpush1.msra.mxu0 %v2959
      %3065 = vmatprep.subr.mxu0 %v2958
      %3066 = vmatpush1.msra.mxu0 %v2957
      %3067 = vmatprep.subr.mxu0 %v2956
      %3068 = vmatpush1.msra.mxu0 %v2955
      %3069 = vmatprep.subr.mxu0 %v2954
      %3070 = vmatpush1.msra.mxu0 %v2953
      %3071 = vmatprep.subr.mxu0 %v2952
      %3072 = vmatpush1.msra.mxu0 %v2951
      %3073 = vmatprep.subr.mxu0 %v2950
      %3074 = vmatpush1.msra.mxu0 %v2949
      %3075 = vmatprep.subr.mxu0 %v2948
      %3076 = vmatpush1.msra.mxu0 %v2947
      %3077 = vmatprep.subr.mxu0 %v2946
      %3078 = vmatpush1.msra.mxu0 %v2945
      %3079 = vmatprep.subr.mxu0 %v2944
      %3080 = vmatpush1.msra.mxu0 %v2943
      %3081 = vmatprep.subr.mxu0 %v2942
      %3082 = vmatpush1.msra.mxu0 %v2941
      %3083 = vmatprep.subr.mxu0 %v2940
      %3084 = vmatpush1.msra.mxu0 %v2939
      %3085 = vmatprep.subr.mxu0 %v2938
      %3086 = vmatpush1.msra.mxu0 %v2937
      %3087 = vmatprep.subr.mxu0 %v3000
      %3088 = vmatpush2.msra.mxu0 %v2999
      %3089 = vmatprep.subr.mxu0 %v2998
      %3090 = vmatpush2.msra.mxu0 %v2997
      %3091 = vmatprep.subr.mxu0 %v2996
      %3092 = vmatpush2.msra.mxu0 %v2995
      %3093 = vmatprep.subr.mxu0 %v2994
      %3094 = vmatpush2.msra.mxu0 %v2993
      %3095 = vmatprep.subr.mxu0 %v2992
      %3096 = vmatpush2.msra.mxu0 %v2991
      %3097 = vmatprep.subr.mxu0 %v2990
      %3098 = vmatpush2.msra.mxu0 %v2989
      %3099 = vmatprep.subr.mxu0 %v2988
      %3100 = vmatpush2.msra.mxu0 %v2987
      %3101 = vmatprep.subr.mxu0 %v2986
      %3102 = vmatpush2.msra.mxu0 %v2985
      %3103 = vmatprep.subr.mxu0 %v2984
      %3104 = vmatpush2.msra.mxu0 %v2983
      %3105 = vmatprep.subr.mxu0 %v2982
      %3106 = vmatpush2.msra.mxu0 %v2981
      %3107 = vmatprep.subr.mxu0 %v2980
      %3108 = vmatpush2.msra.mxu0 %v2979
      %3109 = vmatprep.subr.mxu0 %v2978
      %3110 = vmatpush2.msra.mxu0 %v2977
      %3111 = vmatprep.subr.mxu0 %v2976
      %3112 = vmatpush2.msra.mxu0 %v2975
      %3113 = vmatprep.subr.mxu0 %v2974
      %3114 = vmatpush2.msra.mxu0 %v2973
      %3115 = vmatprep.subr.mxu0 %v2972
      %3116 = vmatpush2.msra.mxu0 %v2971
      %3117 = vmatprep.subr.mxu0 %v2970
      %3118 = vmatpush2.msra.mxu0 %v2969
      %3119 = vmatprep.mubr.f32.mxu0 %v2934
      %3120 = vmatmul.mubr.f32.gmra.mxu0 %v2933
      %v3121 = vpop.f32.mrf.mxu0
      %v3122 = vadd.f32 %v3050, %v3121
      %v3123 = vpop.f32.mrf.mxu0
      %v3124 = vadd.f32 %v3050, %v3123
      %3125 = vdwg.mxu0
      %3126 = vmatprep.subr.mxu0 %v3032
      %3127 = vmatpush1.msra.mxu0 %v3031
      %3128 = vmatprep.subr.mxu0 %v3030
      %3129 = vmatpush1.msra.mxu0 %v3029
      %3130 = vmatprep.subr.mxu0 %v3028
      %3131 = vmatpush1.msra.mxu0 %v3027
      %3132 = vmatprep.subr.mxu0 %v3026
      %3133 = vmatpush1.msra.mxu0 %v3025
      %3134 = vmatprep.subr.mxu0 %v3024
      %3135 = vmatpush1.msra.mxu0 %v3023
      %3136 = vmatprep.subr.mxu0 %v3022
      %3137 = vmatpush1.msra.mxu0 %v3021
      %3138 = vmatprep.subr.mxu0 %v3020
      %3139 = vmatpush1.msra.mxu0 %v3019
      %3140 = vmatprep.subr.mxu0 %v3018
      %3141 = vmatpush1.msra.mxu0 %v3017
      %3142 = vmatprep.subr.mxu0 %v3016
      %3143 = vmatpush1.msra.mxu0 %v3015
      %3144 = vmatprep.subr.mxu0 %v3014
      %3145 = vmatpush1.msra.mxu0 %v3013
      %3146 = vmatprep.subr.mxu0 %v3012
      %3147 = vmatpush1.msra.mxu0 %v3011
      %3148 = vmatprep.subr.mxu0 %v3010
      %3149 = vmatpush1.msra.mxu0 %v3009
      %3150 = vmatprep.subr.mxu0 %v3008
      %3151 = vmatpush1.msra.mxu0 %v3007
      %3152 = vmatprep.subr.mxu0 %v3006
      %3153 = vmatpush1.msra.mxu0 %v3005
      %3154 = vmatprep.subr.mxu0 %v3004
      %3155 = vmatpush1.msra.mxu0 %v3003
      %3156 = vmatprep.subr.mxu0 %v3002
      %3157 = vmatpush1.msra.mxu0 %v3001
      %3158 = vmatprep.subr.mxu0 0.0
      %3159 = vmatpush2.msra.mxu0 0.0
      %3160 = vmatprep.subr.mxu0 0.0
      %3161 = vmatpush2.msra.mxu0 0.0
      %3162 = vmatprep.subr.mxu0 0.0
      %3163 = vmatpush2.msra.mxu0 0.0
      %3164 = vmatprep.subr.mxu0 0.0
      %3165 = vmatpush2.msra.mxu0 0.0
      %3166 = vmatprep.subr.mxu0 0.0
      %3167 = vmatpush2.msra.mxu0 0.0
      %3168 = vmatprep.subr.mxu0 0.0
      %3169 = vmatpush2.msra.mxu0 0.0
      %3170 = vmatprep.subr.mxu0 0.0
      %3171 = vmatpush2.msra.mxu0 0.0
      %3172 = vmatprep.subr.mxu0 0.0
      %3173 = vmatpush2.msra.mxu0 0.0
      %3174 = vmatprep.subr.mxu0 0.0
      %3175 = vmatpush2.msra.mxu0 0.0
      %3176 = vmatprep.subr.mxu0 0.0
      %3177 = vmatpush2.msra.mxu0 0.0
      %3178 = vmatprep.subr.mxu0 %v3044
      %3179 = vmatpush2.msra.mxu0 %v3043
      %3180 = vmatprep.subr.mxu0 %v3042
      %3181 = vmatpush2.msra.mxu0 %v3041
      %3182 = vmatprep.subr.mxu0 %v3040
      %3183 = vmatpush2.msra.mxu0 %v3039
      %3184 = vmatprep.subr.mxu0 %v3038
      %3185 = vmatpush2.msra.mxu0 %v3037
      %3186 = vmatprep.subr.mxu0 %v3036
      %3187 = vmatpush2.msra.mxu0 %v3035
      %3188 = vmatprep.subr.mxu0 %v3034
      %3189 = vmatpush2.msra.mxu0 %v3033
      %3190 = vmatprep.mubr.f32.mxu0 %v3053
      %3191 = vmatmul.mubr.f32.gmra.mxu0 %v2935
      %v3192 = vpop.f32.mrf.mxu0
      %v3193 = vadd.f32 %v3122, %v3192
      %v3194 = vpop.f32.mrf.mxu0
      %v3195 = vadd.f32 %v3124, %v3194
      %3196 = vdwg.mxu0
      %v3197 = vmul.f32 %v3193, 0.2
      %v3198 = vmul.f32 %v3195, 0.2
      %v3199 = vmax.f32 %v3193, %v3197
      %v3200 = vmax.f32 %v3195, %v3198
      %3201 = vrot.lane.b32.xlu0 %v3199, 17
      %v3202 = vpop.permute.xlu0 %3201
      %3203 = vrot.lane.b32.xlu0 %v3200, 17
      %v3204 = vpop.permute.xlu0 %3203
      %v3205 = vsel %vm320, %v3202, %v3204
      %v3206 = vsel %vm320, %v3204, %v3202
      %v3207 = vld [vmem:[%s3] sm:$0x3]
      %v3209 = vlaneseq
      %v3210 = vshrl.u32 %v3209, 7
      %v3211 = vsub.s32 0, %v3210
      %v3212 = vrot.slane %v3207, %v3211
      %v3213 = vlaneseq
      %v3214 = vshrl.u32 %v3213, 7
      %v3215 = vsub.s32 1, %v3214
      %v3216 = vrot.slane %v3207, %v3215
      %v3219 = vmul.f32 %v3206, %v3212
      %v3220 = vmul.f32 %v3205, %v3216
      %3221 = vst [vmem:[#allocation2 + $0x20] sm:$0xff] %v3219
      %3222 = vst [vmem:[#allocation2 + $0x28] sm:$0xff] %v3220
      %3223 = vrot.lane.b32.xlu0 %v3199, 16
      %v3224 = vpop.permute.xlu0 %3223
      %3225 = vrot.lane.b32.xlu0 %v3200, 16
      %v3226 = vpop.permute.xlu0 %3225
      %v3227 = vsel %vm353, %v3224, %v3226
      %v3228 = vsel %vm353, %v3226, %v3224
      %v3229 = vld [vmem:[%s358] sm:$0x3]
      %v3231 = vlaneseq
      %v3232 = vshrl.u32 %v3231, 7
      %v3233 = vsub.s32 0, %v3232
      %v3234 = vrot.slane %v3229, %v3233
      %v3235 = vlaneseq
      %v3236 = vshrl.u32 %v3235, 7
      %v3237 = vsub.s32 1, %v3236
      %v3238 = vrot.slane %v3229, %v3237
      %v3241 = vmul.f32 %v3228, %v3234
      %v3242 = vmul.f32 %v3227, %v3238
      %3243 = vst [vmem:[#allocation2 + $0x80] sm:$0xff] %v3241
      %3244 = vst [vmem:[#allocation2 + $0x88] sm:$0xff] %v3242
      %3245 = vrot.lane.b32.xlu0 %v3199, 15
      %v3246 = vpop.permute.xlu0 %3245
      %3247 = vrot.lane.b32.xlu0 %v3200, 15
      %v3248 = vpop.permute.xlu0 %3247
      %v3249 = vsel %vm387, %v3246, %v3248
      %v3250 = vsel %vm387, %v3248, %v3246
      %v3251 = vld [vmem:[%s392] sm:$0x3]
      %v3253 = vlaneseq
      %v3254 = vshrl.u32 %v3253, 7
      %v3255 = vsub.s32 0, %v3254
      %v3256 = vrot.slane %v3251, %v3255
      %v3257 = vlaneseq
      %v3258 = vshrl.u32 %v3257, 7
      %v3259 = vsub.s32 1, %v3258
      %v3260 = vrot.slane %v3251, %v3259
      %v3263 = vmul.f32 %v3250, %v3256
      %v3264 = vmul.f32 %v3249, %v3260
      %3265 = vst [vmem:[#allocation2 + $0xe0] sm:$0xff] %v3263
      %3266 = vst [vmem:[#allocation2 + $0xe8] sm:$0xff] %v3264
      %3267 = vrot.lane.b32.xlu0 %v3199, 1
      %v3268 = vpop.permute.xlu0 %3267
      %3269 = vrot.lane.b32.xlu0 %v3200, 1
      %v3270 = vpop.permute.xlu0 %3269
      %v3271 = vsel %vm421, %v3268, %v3270
      %v3272 = vsel %vm421, %v3270, %v3268
      %v3273 = vld [vmem:[%s426] sm:$0x3]
      %v3275 = vlaneseq
      %v3276 = vshrl.u32 %v3275, 7
      %v3277 = vsub.s32 0, %v3276
      %v3278 = vrot.slane %v3273, %v3277
      %v3279 = vlaneseq
      %v3280 = vshrl.u32 %v3279, 7
      %v3281 = vsub.s32 1, %v3280
      %v3282 = vrot.slane %v3273, %v3281
      %v3285 = vmul.f32 %v3272, %v3278
      %v3286 = vmul.f32 %v3271, %v3282
      %3287 = vst [vmem:[#allocation2 + $0x140] sm:$0xff] %v3285
      %3288 = vst [vmem:[#allocation2 + $0x148] sm:$0xff] %v3286
      %3289 = vst [vmem:[#allocation2 + $0x1a0] sm:$0xff] %v3199
      %3290 = vst [vmem:[#allocation2 + $0x1a8] sm:$0xff] %v3200
      %3291 = vrot.lane.b32.xlu0 %v3199, 127
      %v3292 = vpop.permute.xlu0 %3291
      %3293 = vrot.lane.b32.xlu0 %v3200, 127
      %v3294 = vpop.permute.xlu0 %3293
      %v3295 = vsel %vm459, %v3292, %v3294
      %v3296 = vsel %vm459, %v3294, %v3292
      %v3297 = vld [vmem:[%s464] sm:$0x3]
      %v3299 = vlaneseq
      %v3300 = vshrl.u32 %v3299, 7
      %v3301 = vsub.s32 0, %v3300
      %v3302 = vrot.slane %v3297, %v3301
      %v3303 = vlaneseq
      %v3304 = vshrl.u32 %v3303, 7
      %v3305 = vsub.s32 1, %v3304
      %v3306 = vrot.slane %v3297, %v3305
      %v3309 = vmul.f32 %v3295, %v3302
      %v3310 = vmul.f32 %v3296, %v3306
      %3311 = vst [vmem:[#allocation2 + $0x200] sm:$0xff] %v3309
      %3312 = vst [vmem:[#allocation2 + $0x208] sm:$0xff] %v3310
      %3313 = vrot.lane.b32.xlu0 %v3199, 113
      %v3314 = vpop.permute.xlu0 %3313
      %3315 = vrot.lane.b32.xlu0 %v3200, 113
      %v3316 = vpop.permute.xlu0 %3315
      %v3317 = vsel %vm493, %v3314, %v3316
      %v3318 = vsel %vm493, %v3316, %v3314
      %v3319 = vld [vmem:[%s498] sm:$0x3]
      %v3321 = vlaneseq
      %v3322 = vshrl.u32 %v3321, 7
      %v3323 = vsub.s32 0, %v3322
      %v3324 = vrot.slane %v3319, %v3323
      %v3325 = vlaneseq
      %v3326 = vshrl.u32 %v3325, 7
      %v3327 = vsub.s32 1, %v3326
      %v3328 = vrot.slane %v3319, %v3327
      %v3331 = vmul.f32 %v3317, %v3324
      %v3332 = vmul.f32 %v3318, %v3328
      %3333 = vst [vmem:[#allocation2 + $0x260] sm:$0xff] %v3331
      %3334 = vst [vmem:[#allocation2 + $0x268] sm:$0xff] %v3332
      %3335 = vrot.lane.b32.xlu0 %v3199, 112
      %v3336 = vpop.permute.xlu0 %3335
      %3337 = vrot.lane.b32.xlu0 %v3200, 112
      %v3338 = vpop.permute.xlu0 %3337
      %v3339 = vsel %vm527, %v3336, %v3338
      %v3340 = vsel %vm527, %v3338, %v3336
      %v3341 = vld [vmem:[%s532] sm:$0x3]
      %v3343 = vlaneseq
      %v3344 = vshrl.u32 %v3343, 7
      %v3345 = vsub.s32 0, %v3344
      %v3346 = vrot.slane %v3341, %v3345
      %v3347 = vlaneseq
      %v3348 = vshrl.u32 %v3347, 7
      %v3349 = vsub.s32 1, %v3348
      %v3350 = vrot.slane %v3341, %v3349
      %v3353 = vmul.f32 %v3339, %v3346
      %v3354 = vmul.f32 %v3340, %v3350
      %3355 = vst [vmem:[#allocation2 + $0x2c0] sm:$0xff] %v3353
      %3356 = vst [vmem:[#allocation2 + $0x2c8] sm:$0xff] %v3354
      %3357 = vrot.lane.b32.xlu0 %v3199, 111
      %v3358 = vpop.permute.xlu0 %3357
      %3359 = vrot.lane.b32.xlu0 %v3200, 111
      %v3360 = vpop.permute.xlu0 %3359
      %v3361 = vsel %vm561, %v3358, %v3360
      %v3362 = vsel %vm561, %v3360, %v3358
      %v3363 = vld [vmem:[%s566] sm:$0x3]
      %v3365 = vlaneseq
      %v3366 = vshrl.u32 %v3365, 7
      %v3367 = vsub.s32 0, %v3366
      %v3368 = vrot.slane %v3363, %v3367
      %v3369 = vlaneseq
      %v3370 = vshrl.u32 %v3369, 7
      %v3371 = vsub.s32 1, %v3370
      %v3372 = vrot.slane %v3363, %v3371
      %v3375 = vmul.f32 %v3361, %v3368
      %v3376 = vmul.f32 %v3362, %v3372
      %3377 = vst [vmem:[#allocation2 + $0x320] sm:$0xff] %v3375
      %3378 = vst [vmem:[#allocation2 + $0x328] sm:$0xff] %v3376
      %s3379 = scalar_lea.vmem %s1, 384
      %v3380 = vld [vmem:[%s3379] sm:$0xff]
      %v3381 = vld [vmem:[%s3379 + $0x8] sm:$0xff]
      %v3382 = vld [vmem:[%s3379 + $0x10] sm:$0xff]
      %v3383 = vld [vmem:[%s3379 + $0x18] sm:$0xff]
      %v3384 = vld [vmem:[#allocation2] sm:$0xff]
      %v3385 = vld [vmem:[#allocation2 + $0x8] sm:$0xff]
      %v3386 = vld [vmem:[#allocation2 + $0x10] sm:$0xff]
      %v3387 = vld [vmem:[#allocation2 + $0x18] sm:$0xff]
      %v3388 = vld [vmem:[#allocation2 + $0x20] sm:$0xff]
      %v3389 = vld [vmem:[#allocation2 + $0x28] sm:$0xff]
      %v3390 = vld [vmem:[#allocation2 + $0x30] sm:$0xff]
      %v3391 = vld [vmem:[#allocation2 + $0x38] sm:$0xff]
      %v3392 = vld [vmem:[#allocation2 + $0x40] sm:$0xff]
      %v3393 = vld [vmem:[#allocation2 + $0x48] sm:$0xff]
      %v3394 = vld [vmem:[#allocation2 + $0x50] sm:$0xff]
      %v3395 = vld [vmem:[#allocation2 + $0x58] sm:$0xff]
      %v3396 = vld [vmem:[#allocation2 + $0x60] sm:$0xff]
      %v3397 = vld [vmem:[#allocation2 + $0x68] sm:$0xff]
      %v3398 = vld [vmem:[#allocation2 + $0x70] sm:$0xff]
      %v3399 = vld [vmem:[#allocation2 + $0x78] sm:$0xff]
      %v3400 = vld [vmem:[#allocation2 + $0x80] sm:$0xff]
      %v3401 = vld [vmem:[#allocation2 + $0x88] sm:$0xff]
      %v3402 = vld [vmem:[#allocation2 + $0x90] sm:$0xff]
      %v3403 = vld [vmem:[#allocation2 + $0x98] sm:$0xff]
      %v3404 = vld [vmem:[#allocation2 + $0xa0] sm:$0xff]
      %v3405 = vld [vmem:[#allocation2 + $0xa8] sm:$0xff]
      %v3406 = vld [vmem:[#allocation2 + $0xb0] sm:$0xff]
      %v3407 = vld [vmem:[#allocation2 + $0xb8] sm:$0xff]
      %v3408 = vld [vmem:[#allocation2 + $0xc0] sm:$0xff]
      %v3409 = vld [vmem:[#allocation2 + $0xc8] sm:$0xff]
      %v3410 = vld [vmem:[#allocation2 + $0xd0] sm:$0xff]
      %v3411 = vld [vmem:[#allocation2 + $0xd8] sm:$0xff]
      %v3412 = vld [vmem:[#allocation2 + $0xe0] sm:$0xff]
      %v3413 = vld [vmem:[#allocation2 + $0xe8] sm:$0xff]
      %v3414 = vld [vmem:[#allocation2 + $0xf0] sm:$0xff]
      %v3415 = vld [vmem:[#allocation2 + $0xf8] sm:$0xff]
      %v3416 = vld [vmem:[#allocation2 + $0x100] sm:$0xff]
      %v3417 = vld [vmem:[#allocation2 + $0x108] sm:$0xff]
      %v3418 = vld [vmem:[#allocation2 + $0x110] sm:$0xff]
      %v3419 = vld [vmem:[#allocation2 + $0x118] sm:$0xff]
      %v3420 = vld [vmem:[#allocation2 + $0x120] sm:$0xff]
      %v3421 = vld [vmem:[#allocation2 + $0x128] sm:$0xff]
      %v3422 = vld [vmem:[#allocation2 + $0x130] sm:$0xff]
      %v3423 = vld [vmem:[#allocation2 + $0x138] sm:$0xff]
      %v3424 = vld [vmem:[#allocation2 + $0x140] sm:$0xff]
      %v3425 = vld [vmem:[#allocation2 + $0x148] sm:$0xff]
      %v3426 = vld [vmem:[#allocation2 + $0x150] sm:$0xff]
      %v3427 = vld [vmem:[#allocation2 + $0x158] sm:$0xff]
      %v3428 = vld [vmem:[#allocation2 + $0x160] sm:$0xff]
      %v3429 = vld [vmem:[#allocation2 + $0x168] sm:$0xff]
      %v3430 = vld [vmem:[#allocation2 + $0x170] sm:$0xff]
      %v3431 = vld [vmem:[#allocation2 + $0x178] sm:$0xff]
      %v3432 = vld [vmem:[#allocation2 + $0x180] sm:$0xff]
      %v3433 = vld [vmem:[#allocation2 + $0x188] sm:$0xff]
      %v3434 = vld [vmem:[#allocation2 + $0x190] sm:$0xff]
      %v3435 = vld [vmem:[#allocation2 + $0x198] sm:$0xff]
      %v3436 = vld [vmem:[#allocation2 + $0x1a0] sm:$0xff]
      %v3437 = vld [vmem:[#allocation2 + $0x1a8] sm:$0xff]
      %v3438 = vld [vmem:[#allocation2 + $0x1b0] sm:$0xff]
      %v3439 = vld [vmem:[#allocation2 + $0x1b8] sm:$0xff]
      %v3440 = vld [vmem:[#allocation2 + $0x1c0] sm:$0xff]
      %v3441 = vld [vmem:[#allocation2 + $0x1c8] sm:$0xff]
      %v3442 = vld [vmem:[#allocation2 + $0x1d0] sm:$0xff]
      %v3443 = vld [vmem:[#allocation2 + $0x1d8] sm:$0xff]
      %v3444 = vld [vmem:[#allocation2 + $0x1e0] sm:$0xff]
      %v3445 = vld [vmem:[#allocation2 + $0x1e8] sm:$0xff]
      %v3446 = vld [vmem:[#allocation2 + $0x1f0] sm:$0xff]
      %v3447 = vld [vmem:[#allocation2 + $0x1f8] sm:$0xff]
      %v3448 = vld [vmem:[#allocation2 + $0x200] sm:$0xff]
      %v3449 = vld [vmem:[#allocation2 + $0x208] sm:$0xff]
      %v3450 = vld [vmem:[#allocation2 + $0x210] sm:$0xff]
      %v3451 = vld [vmem:[#allocation2 + $0x218] sm:$0xff]
      %v3452 = vld [vmem:[#allocation2 + $0x220] sm:$0xff]
      %v3453 = vld [vmem:[#allocation2 + $0x228] sm:$0xff]
      %v3454 = vld [vmem:[#allocation2 + $0x230] sm:$0xff]
      %v3455 = vld [vmem:[#allocation2 + $0x238] sm:$0xff]
      %v3456 = vld [vmem:[#allocation2 + $0x240] sm:$0xff]
      %v3457 = vld [vmem:[#allocation2 + $0x248] sm:$0xff]
      %v3458 = vld [vmem:[#allocation2 + $0x250] sm:$0xff]
      %v3459 = vld [vmem:[#allocation2 + $0x258] sm:$0xff]
      %v3460 = vld [vmem:[#allocation2 + $0x260] sm:$0xff]
      %v3461 = vld [vmem:[#allocation2 + $0x268] sm:$0xff]
      %v3462 = vld [vmem:[#allocation2 + $0x270] sm:$0xff]
      %v3463 = vld [vmem:[#allocation2 + $0x278] sm:$0xff]
      %v3464 = vld [vmem:[#allocation2 + $0x280] sm:$0xff]
      %v3465 = vld [vmem:[#allocation2 + $0x288] sm:$0xff]
      %v3466 = vld [vmem:[#allocation2 + $0x290] sm:$0xff]
      %v3467 = vld [vmem:[#allocation2 + $0x298] sm:$0xff]
      %v3468 = vld [vmem:[#allocation2 + $0x2a0] sm:$0xff]
      %v3469 = vld [vmem:[#allocation2 + $0x2a8] sm:$0xff]
      %v3470 = vld [vmem:[#allocation2 + $0x2b0] sm:$0xff]
      %v3471 = vld [vmem:[#allocation2 + $0x2b8] sm:$0xff]
      %v3472 = vld [vmem:[#allocation2 + $0x2c0] sm:$0xff]
      %v3473 = vld [vmem:[#allocation2 + $0x2c8] sm:$0xff]
      %v3474 = vld [vmem:[#allocation2 + $0x2d0] sm:$0xff]
      %v3475 = vld [vmem:[#allocation2 + $0x2d8] sm:$0xff]
      %v3476 = vld [vmem:[#allocation2 + $0x2e0] sm:$0xff]
      %v3477 = vld [vmem:[#allocation2 + $0x2e8] sm:$0xff]
      %v3478 = vld [vmem:[#allocation2 + $0x2f0] sm:$0xff]
      %v3479 = vld [vmem:[#allocation2 + $0x2f8] sm:$0xff]
      %v3480 = vld [vmem:[#allocation2 + $0x300] sm:$0xff]
      %v3481 = vld [vmem:[#allocation2 + $0x308] sm:$0xff]
      %v3482 = vld [vmem:[#allocation2 + $0x310] sm:$0xff]
      %v3483 = vld [vmem:[#allocation2 + $0x318] sm:$0xff]
      %v3484 = vld [vmem:[#allocation2 + $0x320] sm:$0xff]
      %v3485 = vld [vmem:[#allocation2 + $0x328] sm:$0xff]
      %v3486 = vld [vmem:[#allocation2 + $0x330] sm:$0xff]
      %v3487 = vld [vmem:[#allocation2 + $0x338] sm:$0xff]
      %v3488 = vld [vmem:[#allocation2 + $0x340] sm:$0xff]
      %v3489 = vld [vmem:[#allocation2 + $0x348] sm:$0xff]
      %v3490 = vld [vmem:[#allocation2 + $0x350] sm:$0xff]
      %v3491 = vld [vmem:[#allocation2 + $0x358] sm:$0xff]
      %s3492 = scalar_lea.vmem %s2, 96
      %v3493 = vld [vmem:[%s3492] sm:$0xff]
      %3495 = vset.pattern.permute.xlu0 0
      %3496 = vperm.xlu0 %3495, %v3493
      %v3497 = vpop.permute.xlu0 %3496
      %v3500 = vsel %vm705, %v3383, 0
      %3502 = vmatprep.subr.mxu0 %v3415
      %3503 = vmatpush1.msra.mxu0 %v3414
      %3504 = vmatprep.subr.mxu0 %v3413
      %3505 = vmatpush1.msra.mxu0 %v3412
      %3506 = vmatprep.subr.mxu0 %v3411
      %3507 = vmatpush1.msra.mxu0 %v3410
      %3508 = vmatprep.subr.mxu0 %v3409
      %3509 = vmatpush1.msra.mxu0 %v3408
      %3510 = vmatprep.subr.mxu0 %v3407
      %3511 = vmatpush1.msra.mxu0 %v3406
      %3512 = vmatprep.subr.mxu0 %v3405
      %3513 = vmatpush1.msra.mxu0 %v3404
      %3514 = vmatprep.subr.mxu0 %v3403
      %3515 = vmatpush1.msra.mxu0 %v3402
      %3516 = vmatprep.subr.mxu0 %v3401
      %3517 = vmatpush1.msra.mxu0 %v3400
      %3518 = vmatprep.subr.mxu0 %v3399
      %3519 = vmatpush1.msra.mxu0 %v3398
      %3520 = vmatprep.subr.mxu0 %v3397
      %3521 = vmatpush1.msra.mxu0 %v3396
      %3522 = vmatprep.subr.mxu0 %v3395
      %3523 = vmatpush1.msra.mxu0 %v3394
      %3524 = vmatprep.subr.mxu0 %v3393
      %3525 = vmatpush1.msra.mxu0 %v3392
      %3526 = vmatprep.subr.mxu0 %v3391
      %3527 = vmatpush1.msra.mxu0 %v3390
      %3528 = vmatprep.subr.mxu0 %v3389
      %3529 = vmatpush1.msra.mxu0 %v3388
      %3530 = vmatprep.subr.mxu0 %v3387
      %3531 = vmatpush1.msra.mxu0 %v3386
      %3532 = vmatprep.subr.mxu0 %v3385
      %3533 = vmatpush1.msra.mxu0 %v3384
      %3534 = vmatprep.subr.mxu0 %v3447
      %3535 = vmatpush2.msra.mxu0 %v3446
      %3536 = vmatprep.subr.mxu0 %v3445
      %3537 = vmatpush2.msra.mxu0 %v3444
      %3538 = vmatprep.subr.mxu0 %v3443
      %3539 = vmatpush2.msra.mxu0 %v3442
      %3540 = vmatprep.subr.mxu0 %v3441
      %3541 = vmatpush2.msra.mxu0 %v3440
      %3542 = vmatprep.subr.mxu0 %v3439
      %3543 = vmatpush2.msra.mxu0 %v3438
      %3544 = vmatprep.subr.mxu0 %v3437
      %3545 = vmatpush2.msra.mxu0 %v3436
      %3546 = vmatprep.subr.mxu0 %v3435
      %3547 = vmatpush2.msra.mxu0 %v3434
      %3548 = vmatprep.subr.mxu0 %v3433
      %3549 = vmatpush2.msra.mxu0 %v3432
      %3550 = vmatprep.subr.mxu0 %v3431
      %3551 = vmatpush2.msra.mxu0 %v3430
      %3552 = vmatprep.subr.mxu0 %v3429
      %3553 = vmatpush2.msra.mxu0 %v3428
      %3554 = vmatprep.subr.mxu0 %v3427
      %3555 = vmatpush2.msra.mxu0 %v3426
      %3556 = vmatprep.subr.mxu0 %v3425
      %3557 = vmatpush2.msra.mxu0 %v3424
      %3558 = vmatprep.subr.mxu0 %v3423
      %3559 = vmatpush2.msra.mxu0 %v3422
      %3560 = vmatprep.subr.mxu0 %v3421
      %3561 = vmatpush2.msra.mxu0 %v3420
      %3562 = vmatprep.subr.mxu0 %v3419
      %3563 = vmatpush2.msra.mxu0 %v3418
      %3564 = vmatprep.subr.mxu0 %v3417
      %3565 = vmatpush2.msra.mxu0 %v3416
      %3566 = vmatprep.mubr.f32.mxu0 %v3381
      %3567 = vmatmul.mubr.f32.gmra.mxu0 %v3380
      %v3568 = vpop.f32.mrf.mxu0
      %v3569 = vadd.f32 %v3497, %v3568
      %v3570 = vpop.f32.mrf.mxu0
      %v3571 = vadd.f32 %v3497, %v3570
      %3572 = vdwg.mxu0
      %3573 = vmatprep.subr.mxu0 %v3479
      %3574 = vmatpush1.msra.mxu0 %v3478
      %3575 = vmatprep.subr.mxu0 %v3477
      %3576 = vmatpush1.msra.mxu0 %v3476
      %3577 = vmatprep.subr.mxu0 %v3475
      %3578 = vmatpush1.msra.mxu0 %v3474
      %3579 = vmatprep.subr.mxu0 %v3473
      %3580 = vmatpush1.msra.mxu0 %v3472
      %3581 = vmatprep.subr.mxu0 %v3471
      %3582 = vmatpush1.msra.mxu0 %v3470
      %3583 = vmatprep.subr.mxu0 %v3469
      %3584 = vmatpush1.msra.mxu0 %v3468
      %3585 = vmatprep.subr.mxu0 %v3467
      %3586 = vmatpush1.msra.mxu0 %v3466
      %3587 = vmatprep.subr.mxu0 %v3465
      %3588 = vmatpush1.msra.mxu0 %v3464
      %3589 = vmatprep.subr.mxu0 %v3463
      %3590 = vmatpush1.msra.mxu0 %v3462
      %3591 = vmatprep.subr.mxu0 %v3461
      %3592 = vmatpush1.msra.mxu0 %v3460
      %3593 = vmatprep.subr.mxu0 %v3459
      %3594 = vmatpush1.msra.mxu0 %v3458
      %3595 = vmatprep.subr.mxu0 %v3457
      %3596 = vmatpush1.msra.mxu0 %v3456
      %3597 = vmatprep.subr.mxu0 %v3455
      %3598 = vmatpush1.msra.mxu0 %v3454
      %3599 = vmatprep.subr.mxu0 %v3453
      %3600 = vmatpush1.msra.mxu0 %v3452
      %3601 = vmatprep.subr.mxu0 %v3451
      %3602 = vmatpush1.msra.mxu0 %v3450
      %3603 = vmatprep.subr.mxu0 %v3449
      %3604 = vmatpush1.msra.mxu0 %v3448
      %3605 = vmatprep.subr.mxu0 0.0
      %3606 = vmatpush2.msra.mxu0 0.0
      %3607 = vmatprep.subr.mxu0 0.0
      %3608 = vmatpush2.msra.mxu0 0.0
      %3609 = vmatprep.subr.mxu0 0.0
      %3610 = vmatpush2.msra.mxu0 0.0
      %3611 = vmatprep.subr.mxu0 0.0
      %3612 = vmatpush2.msra.mxu0 0.0
      %3613 = vmatprep.subr.mxu0 0.0
      %3614 = vmatpush2.msra.mxu0 0.0
      %3615 = vmatprep.subr.mxu0 0.0
      %3616 = vmatpush2.msra.mxu0 0.0
      %3617 = vmatprep.subr.mxu0 0.0
      %3618 = vmatpush2.msra.mxu0 0.0
      %3619 = vmatprep.subr.mxu0 0.0
      %3620 = vmatpush2.msra.mxu0 0.0
      %3621 = vmatprep.subr.mxu0 0.0
      %3622 = vmatpush2.msra.mxu0 0.0
      %3623 = vmatprep.subr.mxu0 0.0
      %3624 = vmatpush2.msra.mxu0 0.0
      %3625 = vmatprep.subr.mxu0 %v3491
      %3626 = vmatpush2.msra.mxu0 %v3490
      %3627 = vmatprep.subr.mxu0 %v3489
      %3628 = vmatpush2.msra.mxu0 %v3488
      %3629 = vmatprep.subr.mxu0 %v3487
      %3630 = vmatpush2.msra.mxu0 %v3486
      %3631 = vmatprep.subr.mxu0 %v3485
      %3632 = vmatpush2.msra.mxu0 %v3484
      %3633 = vmatprep.subr.mxu0 %v3483
      %3634 = vmatpush2.msra.mxu0 %v3482
      %3635 = vmatprep.subr.mxu0 %v3481
      %3636 = vmatpush2.msra.mxu0 %v3480
      %3637 = vmatprep.mubr.f32.mxu0 %v3500
      %3638 = vmatmul.mubr.f32.gmra.mxu0 %v3382
      %v3639 = vpop.f32.mrf.mxu0
      %v3640 = vadd.f32 %v3569, %v3639
      %v3641 = vpop.f32.mrf.mxu0
      %v3642 = vadd.f32 %v3571, %v3641
      %3643 = vdwg.mxu0
      %v3644 = vmul.f32 %v3640, 0.2
      %v3645 = vmul.f32 %v3642, 0.2
      %v3646 = vmax.f32 %v3640, %v3644
      %v3647 = vmax.f32 %v3642, %v3645
      %3648 = vrot.lane.b32.xlu0 %v3646, 17
      %v3649 = vpop.permute.xlu0 %3648
      %3650 = vrot.lane.b32.xlu0 %v3647, 17
      %v3651 = vpop.permute.xlu0 %3650
      %v3652 = vsel %vm320, %v3649, %v3651
      %v3653 = vsel %vm320, %v3651, %v3649
      %v3654 = vld [vmem:[%s3] sm:$0x3]
      %v3656 = vlaneseq
      %v3657 = vshrl.u32 %v3656, 7
      %v3658 = vsub.s32 0, %v3657
      %v3659 = vrot.slane %v3654, %v3658
      %v3660 = vlaneseq
      %v3661 = vshrl.u32 %v3660, 7
      %v3662 = vsub.s32 1, %v3661
      %v3663 = vrot.slane %v3654, %v3662
      %v3666 = vmul.f32 %v3653, %v3659
      %v3667 = vmul.f32 %v3652, %v3663
      %3668 = vst [vmem:[#allocation2 + $0x30] sm:$0xff] %v3666
      %3669 = vst [vmem:[#allocation2 + $0x38] sm:$0xff] %v3667
      %3670 = vrot.lane.b32.xlu0 %v3646, 16
      %v3671 = vpop.permute.xlu0 %3670
      %3672 = vrot.lane.b32.xlu0 %v3647, 16
      %v3673 = vpop.permute.xlu0 %3672
      %v3674 = vsel %vm353, %v3671, %v3673
      %v3675 = vsel %vm353, %v3673, %v3671
      %v3676 = vld [vmem:[%s358] sm:$0x3]
      %v3678 = vlaneseq
      %v3679 = vshrl.u32 %v3678, 7
      %v3680 = vsub.s32 0, %v3679
      %v3681 = vrot.slane %v3676, %v3680
      %v3682 = vlaneseq
      %v3683 = vshrl.u32 %v3682, 7
      %v3684 = vsub.s32 1, %v3683
      %v3685 = vrot.slane %v3676, %v3684
      %v3688 = vmul.f32 %v3675, %v3681
      %v3689 = vmul.f32 %v3674, %v3685
      %3690 = vst [vmem:[#allocation2 + $0x90] sm:$0xff] %v3688
      %3691 = vst [vmem:[#allocation2 + $0x98] sm:$0xff] %v3689
      %3692 = vrot.lane.b32.xlu0 %v3646, 15
      %v3693 = vpop.permute.xlu0 %3692
      %3694 = vrot.lane.b32.xlu0 %v3647, 15
      %v3695 = vpop.permute.xlu0 %3694
      %v3696 = vsel %vm387, %v3693, %v3695
      %v3697 = vsel %vm387, %v3695, %v3693
      %v3698 = vld [vmem:[%s392] sm:$0x3]
      %v3700 = vlaneseq
      %v3701 = vshrl.u32 %v3700, 7
      %v3702 = vsub.s32 0, %v3701
      %v3703 = vrot.slane %v3698, %v3702
      %v3704 = vlaneseq
      %v3705 = vshrl.u32 %v3704, 7
      %v3706 = vsub.s32 1, %v3705
      %v3707 = vrot.slane %v3698, %v3706
      %v3710 = vmul.f32 %v3697, %v3703
      %v3711 = vmul.f32 %v3696, %v3707
      %3712 = vst [vmem:[#allocation2 + $0xf0] sm:$0xff] %v3710
      %3713 = vst [vmem:[#allocation2 + $0xf8] sm:$0xff] %v3711
      %3714 = vrot.lane.b32.xlu0 %v3646, 1
      %v3715 = vpop.permute.xlu0 %3714
      %3716 = vrot.lane.b32.xlu0 %v3647, 1
      %v3717 = vpop.permute.xlu0 %3716
      %v3718 = vsel %vm421, %v3715, %v3717
      %v3719 = vsel %vm421, %v3717, %v3715
      %v3720 = vld [vmem:[%s426] sm:$0x3]
      %v3722 = vlaneseq
      %v3723 = vshrl.u32 %v3722, 7
      %v3724 = vsub.s32 0, %v3723
      %v3725 = vrot.slane %v3720, %v3724
      %v3726 = vlaneseq
      %v3727 = vshrl.u32 %v3726, 7
      %v3728 = vsub.s32 1, %v3727
      %v3729 = vrot.slane %v3720, %v3728
      %v3732 = vmul.f32 %v3719, %v3725
      %v3733 = vmul.f32 %v3718, %v3729
      %3734 = vst [vmem:[#allocation2 + $0x150] sm:$0xff] %v3732
      %3735 = vst [vmem:[#allocation2 + $0x158] sm:$0xff] %v3733
      %3736 = vst [vmem:[#allocation2 + $0x1b0] sm:$0xff] %v3646
      %3737 = vst [vmem:[#allocation2 + $0x1b8] sm:$0xff] %v3647
      %3738 = vrot.lane.b32.xlu0 %v3646, 127
      %v3739 = vpop.permute.xlu0 %3738
      %3740 = vrot.lane.b32.xlu0 %v3647, 127
      %v3741 = vpop.permute.xlu0 %3740
      %v3742 = vsel %vm459, %v3739, %v3741
      %v3743 = vsel %vm459, %v3741, %v3739
      %v3744 = vld [vmem:[%s464] sm:$0x3]
      %v3746 = vlaneseq
      %v3747 = vshrl.u32 %v3746, 7
      %v3748 = vsub.s32 0, %v3747
      %v3749 = vrot.slane %v3744, %v3748
      %v3750 = vlaneseq
      %v3751 = vshrl.u32 %v3750, 7
      %v3752 = vsub.s32 1, %v3751
      %v3753 = vrot.slane %v3744, %v3752
      %v3756 = vmul.f32 %v3742, %v3749
      %v3757 = vmul.f32 %v3743, %v3753
      %3758 = vst [vmem:[#allocation2 + $0x210] sm:$0xff] %v3756
      %3759 = vst [vmem:[#allocation2 + $0x218] sm:$0xff] %v3757
      %3760 = vrot.lane.b32.xlu0 %v3646, 113
      %v3761 = vpop.permute.xlu0 %3760
      %3762 = vrot.lane.b32.xlu0 %v3647, 113
      %v3763 = vpop.permute.xlu0 %3762
      %v3764 = vsel %vm493, %v3761, %v3763
      %v3765 = vsel %vm493, %v3763, %v3761
      %v3766 = vld [vmem:[%s498] sm:$0x3]
      %v3768 = vlaneseq
      %v3769 = vshrl.u32 %v3768, 7
      %v3770 = vsub.s32 0, %v3769
      %v3771 = vrot.slane %v3766, %v3770
      %v3772 = vlaneseq
      %v3773 = vshrl.u32 %v3772, 7
      %v3774 = vsub.s32 1, %v3773
      %v3775 = vrot.slane %v3766, %v3774
      %v3778 = vmul.f32 %v3764, %v3771
      %v3779 = vmul.f32 %v3765, %v3775
      %3780 = vst [vmem:[#allocation2 + $0x270] sm:$0xff] %v3778
      %3781 = vst [vmem:[#allocation2 + $0x278] sm:$0xff] %v3779
      %3782 = vrot.lane.b32.xlu0 %v3646, 112
      %v3783 = vpop.permute.xlu0 %3782
      %3784 = vrot.lane.b32.xlu0 %v3647, 112
      %v3785 = vpop.permute.xlu0 %3784
      %v3786 = vsel %vm527, %v3783, %v3785
      %v3787 = vsel %vm527, %v3785, %v3783
      %v3788 = vld [vmem:[%s532] sm:$0x3]
      %v3790 = vlaneseq
      %v3791 = vshrl.u32 %v3790, 7
      %v3792 = vsub.s32 0, %v3791
      %v3793 = vrot.slane %v3788, %v3792
      %v3794 = vlaneseq
      %v3795 = vshrl.u32 %v3794, 7
      %v3796 = vsub.s32 1, %v3795
      %v3797 = vrot.slane %v3788, %v3796
      %v3800 = vmul.f32 %v3786, %v3793
      %v3801 = vmul.f32 %v3787, %v3797
      %3802 = vst [vmem:[#allocation2 + $0x2d0] sm:$0xff] %v3800
      %3803 = vst [vmem:[#allocation2 + $0x2d8] sm:$0xff] %v3801
      %3804 = vrot.lane.b32.xlu0 %v3646, 111
      %v3805 = vpop.permute.xlu0 %3804
      %3806 = vrot.lane.b32.xlu0 %v3647, 111
      %v3807 = vpop.permute.xlu0 %3806
      %v3808 = vsel %vm561, %v3805, %v3807
      %v3809 = vsel %vm561, %v3807, %v3805
      %v3810 = vld [vmem:[%s566] sm:$0x3]
      %v3812 = vlaneseq
      %v3813 = vshrl.u32 %v3812, 7
      %v3814 = vsub.s32 0, %v3813
      %v3815 = vrot.slane %v3810, %v3814
      %v3816 = vlaneseq
      %v3817 = vshrl.u32 %v3816, 7
      %v3818 = vsub.s32 1, %v3817
      %v3819 = vrot.slane %v3810, %v3818
      %v3822 = vmul.f32 %v3808, %v3815
      %v3823 = vmul.f32 %v3809, %v3819
      %3824 = vst [vmem:[#allocation2 + $0x330] sm:$0xff] %v3822
      %3825 = vst [vmem:[#allocation2 + $0x338] sm:$0xff] %v3823
      %s3826 = scalar_lea.vmem %s1, 448
      %v3827 = vld [vmem:[%s3826] sm:$0xff]
      %v3828 = vld [vmem:[%s3826 + $0x8] sm:$0xff]
      %v3829 = vld [vmem:[%s3826 + $0x10] sm:$0xff]
      %v3830 = vld [vmem:[%s3826 + $0x18] sm:$0xff]
      %v3831 = vld [vmem:[#allocation2] sm:$0xff]
      %v3832 = vld [vmem:[#allocation2 + $0x8] sm:$0xff]
      %v3833 = vld [vmem:[#allocation2 + $0x10] sm:$0xff]
      %v3834 = vld [vmem:[#allocation2 + $0x18] sm:$0xff]
      %v3835 = vld [vmem:[#allocation2 + $0x20] sm:$0xff]
      %v3836 = vld [vmem:[#allocation2 + $0x28] sm:$0xff]
      %v3837 = vld [vmem:[#allocation2 + $0x30] sm:$0xff]
      %v3838 = vld [vmem:[#allocation2 + $0x38] sm:$0xff]
      %v3839 = vld [vmem:[#allocation2 + $0x40] sm:$0xff]
      %v3840 = vld [vmem:[#allocation2 + $0x48] sm:$0xff]
      %v3841 = vld [vmem:[#allocation2 + $0x50] sm:$0xff]
      %v3842 = vld [vmem:[#allocation2 + $0x58] sm:$0xff]
      %v3843 = vld [vmem:[#allocation2 + $0x60] sm:$0xff]
      %v3844 = vld [vmem:[#allocation2 + $0x68] sm:$0xff]
      %v3845 = vld [vmem:[#allocation2 + $0x70] sm:$0xff]
      %v3846 = vld [vmem:[#allocation2 + $0x78] sm:$0xff]
      %v3847 = vld [vmem:[#allocation2 + $0x80] sm:$0xff]
      %v3848 = vld [vmem:[#allocation2 + $0x88] sm:$0xff]
      %v3849 = vld [vmem:[#allocation2 + $0x90] sm:$0xff]
      %v3850 = vld [vmem:[#allocation2 + $0x98] sm:$0xff]
      %v3851 = vld [vmem:[#allocation2 + $0xa0] sm:$0xff]
      %v3852 = vld [vmem:[#allocation2 + $0xa8] sm:$0xff]
      %v3853 = vld [vmem:[#allocation2 + $0xb0] sm:$0xff]
      %v3854 = vld [vmem:[#allocation2 + $0xb8] sm:$0xff]
      %v3855 = vld [vmem:[#allocation2 + $0xc0] sm:$0xff]
      %v3856 = vld [vmem:[#allocation2 + $0xc8] sm:$0xff]
      %v3857 = vld [vmem:[#allocation2 + $0xd0] sm:$0xff]
      %v3858 = vld [vmem:[#allocation2 + $0xd8] sm:$0xff]
      %v3859 = vld [vmem:[#allocation2 + $0xe0] sm:$0xff]
      %v3860 = vld [vmem:[#allocation2 + $0xe8] sm:$0xff]
      %v3861 = vld [vmem:[#allocation2 + $0xf0] sm:$0xff]
      %v3862 = vld [vmem:[#allocation2 + $0xf8] sm:$0xff]
      %v3863 = vld [vmem:[#allocation2 + $0x100] sm:$0xff]
      %v3864 = vld [vmem:[#allocation2 + $0x108] sm:$0xff]
      %v3865 = vld [vmem:[#allocation2 + $0x110] sm:$0xff]
      %v3866 = vld [vmem:[#allocation2 + $0x118] sm:$0xff]
      %v3867 = vld [vmem:[#allocation2 + $0x120] sm:$0xff]
      %v3868 = vld [vmem:[#allocation2 + $0x128] sm:$0xff]
      %v3869 = vld [vmem:[#allocation2 + $0x130] sm:$0xff]
      %v3870 = vld [vmem:[#allocation2 + $0x138] sm:$0xff]
      %v3871 = vld [vmem:[#allocation2 + $0x140] sm:$0xff]
      %v3872 = vld [vmem:[#allocation2 + $0x148] sm:$0xff]
      %v3873 = vld [vmem:[#allocation2 + $0x150] sm:$0xff]
      %v3874 = vld [vmem:[#allocation2 + $0x158] sm:$0xff]
      %v3875 = vld [vmem:[#allocation2 + $0x160] sm:$0xff]
      %v3876 = vld [vmem:[#allocation2 + $0x168] sm:$0xff]
      %v3877 = vld [vmem:[#allocation2 + $0x170] sm:$0xff]
      %v3878 = vld [vmem:[#allocation2 + $0x178] sm:$0xff]
      %v3879 = vld [vmem:[#allocation2 + $0x180] sm:$0xff]
      %v3880 = vld [vmem:[#allocation2 + $0x188] sm:$0xff]
      %v3881 = vld [vmem:[#allocation2 + $0x190] sm:$0xff]
      %v3882 = vld [vmem:[#allocation2 + $0x198] sm:$0xff]
      %v3883 = vld [vmem:[#allocation2 + $0x1a0] sm:$0xff]
      %v3884 = vld [vmem:[#allocation2 + $0x1a8] sm:$0xff]
      %v3885 = vld [vmem:[#allocation2 + $0x1b0] sm:$0xff]
      %v3886 = vld [vmem:[#allocation2 + $0x1b8] sm:$0xff]
      %v3887 = vld [vmem:[#allocation2 + $0x1c0] sm:$0xff]
      %v3888 = vld [vmem:[#allocation2 + $0x1c8] sm:$0xff]
      %v3889 = vld [vmem:[#allocation2 + $0x1d0] sm:$0xff]
      %v3890 = vld [vmem:[#allocation2 + $0x1d8] sm:$0xff]
      %v3891 = vld [vmem:[#allocation2 + $0x1e0] sm:$0xff]
      %v3892 = vld [vmem:[#allocation2 + $0x1e8] sm:$0xff]
      %v3893 = vld [vmem:[#allocation2 + $0x1f0] sm:$0xff]
      %v3894 = vld [vmem:[#allocation2 + $0x1f8] sm:$0xff]
      %v3895 = vld [vmem:[#allocation2 + $0x200] sm:$0xff]
      %v3896 = vld [vmem:[#allocation2 + $0x208] sm:$0xff]
      %v3897 = vld [vmem:[#allocation2 + $0x210] sm:$0xff]
      %v3898 = vld [vmem:[#allocation2 + $0x218] sm:$0xff]
      %v3899 = vld [vmem:[#allocation2 + $0x220] sm:$0xff]
      %v3900 = vld [vmem:[#allocation2 + $0x228] sm:$0xff]
      %v3901 = vld [vmem:[#allocation2 + $0x230] sm:$0xff]
      %v3902 = vld [vmem:[#allocation2 + $0x238] sm:$0xff]
      %v3903 = vld [vmem:[#allocation2 + $0x240] sm:$0xff]
      %v3904 = vld [vmem:[#allocation2 + $0x248] sm:$0xff]
      %v3905 = vld [vmem:[#allocation2 + $0x250] sm:$0xff]
      %v3906 = vld [vmem:[#allocation2 + $0x258] sm:$0xff]
      %v3907 = vld [vmem:[#allocation2 + $0x260] sm:$0xff]
      %v3908 = vld [vmem:[#allocation2 + $0x268] sm:$0xff]
      %v3909 = vld [vmem:[#allocation2 + $0x270] sm:$0xff]
      %v3910 = vld [vmem:[#allocation2 + $0x278] sm:$0xff]
      %v3911 = vld [vmem:[#allocation2 + $0x280] sm:$0xff]
      %v3912 = vld [vmem:[#allocation2 + $0x288] sm:$0xff]
      %v3913 = vld [vmem:[#allocation2 + $0x290] sm:$0xff]
      %v3914 = vld [vmem:[#allocation2 + $0x298] sm:$0xff]
      %v3915 = vld [vmem:[#allocation2 + $0x2a0] sm:$0xff]
      %v3916 = vld [vmem:[#allocation2 + $0x2a8] sm:$0xff]
      %v3917 = vld [vmem:[#allocation2 + $0x2b0] sm:$0xff]
      %v3918 = vld [vmem:[#allocation2 + $0x2b8] sm:$0xff]
      %v3919 = vld [vmem:[#allocation2 + $0x2c0] sm:$0xff]
      %v3920 = vld [vmem:[#allocation2 + $0x2c8] sm:$0xff]
      %v3921 = vld [vmem:[#allocation2 + $0x2d0] sm:$0xff]
      %v3922 = vld [vmem:[#allocation2 + $0x2d8] sm:$0xff]
      %v3923 = vld [vmem:[#allocation2 + $0x2e0] sm:$0xff]
      %v3924 = vld [vmem:[#allocation2 + $0x2e8] sm:$0xff]
      %v3925 = vld [vmem:[#allocation2 + $0x2f0] sm:$0xff]
      %v3926 = vld [vmem:[#allocation2 + $0x2f8] sm:$0xff]
      %v3927 = vld [vmem:[#allocation2 + $0x300] sm:$0xff]
      %v3928 = vld [vmem:[#allocation2 + $0x308] sm:$0xff]
      %v3929 = vld [vmem:[#allocation2 + $0x310] sm:$0xff]
      %v3930 = vld [vmem:[#allocation2 + $0x318] sm:$0xff]
      %v3931 = vld [vmem:[#allocation2 + $0x320] sm:$0xff]
      %v3932 = vld [vmem:[#allocation2 + $0x328] sm:$0xff]
      %v3933 = vld [vmem:[#allocation2 + $0x330] sm:$0xff]
      %v3934 = vld [vmem:[#allocation2 + $0x338] sm:$0xff]
      %v3935 = vld [vmem:[#allocation2 + $0x340] sm:$0xff]
      %v3936 = vld [vmem:[#allocation2 + $0x348] sm:$0xff]
      %v3937 = vld [vmem:[#allocation2 + $0x350] sm:$0xff]
      %v3938 = vld [vmem:[#allocation2 + $0x358] sm:$0xff]
      %s3939 = scalar_lea.vmem %s2, 112
      %v3940 = vld [vmem:[%s3939] sm:$0xff]
      %3942 = vset.pattern.permute.xlu0 0
      %3943 = vperm.xlu0 %3942, %v3940
      %v3944 = vpop.permute.xlu0 %3943
      %v3947 = vsel %vm705, %v3830, 0
      %3949 = vmatprep.subr.mxu0 %v3862
      %3950 = vmatpush1.msra.mxu0 %v3861
      %3951 = vmatprep.subr.mxu0 %v3860
      %3952 = vmatpush1.msra.mxu0 %v3859
      %3953 = vmatprep.subr.mxu0 %v3858
      %3954 = vmatpush1.msra.mxu0 %v3857
      %3955 = vmatprep.subr.mxu0 %v3856
      %3956 = vmatpush1.msra.mxu0 %v3855
      %3957 = vmatprep.subr.mxu0 %v3854
      %3958 = vmatpush1.msra.mxu0 %v3853
      %3959 = vmatprep.subr.mxu0 %v3852
      %3960 = vmatpush1.msra.mxu0 %v3851
      %3961 = vmatprep.subr.mxu0 %v3850
      %3962 = vmatpush1.msra.mxu0 %v3849
      %3963 = vmatprep.subr.mxu0 %v3848
      %3964 = vmatpush1.msra.mxu0 %v3847
      %3965 = vmatprep.subr.mxu0 %v3846
      %3966 = vmatpush1.msra.mxu0 %v3845
      %3967 = vmatprep.subr.mxu0 %v3844
      %3968 = vmatpush1.msra.mxu0 %v3843
      %3969 = vmatprep.subr.mxu0 %v3842
      %3970 = vmatpush1.msra.mxu0 %v3841
      %3971 = vmatprep.subr.mxu0 %v3840
      %3972 = vmatpush1.msra.mxu0 %v3839
      %3973 = vmatprep.subr.mxu0 %v3838
      %3974 = vmatpush1.msra.mxu0 %v3837
      %3975 = vmatprep.subr.mxu0 %v3836
      %3976 = vmatpush1.msra.mxu0 %v3835
      %3977 = vmatprep.subr.mxu0 %v3834
      %3978 = vmatpush1.msra.mxu0 %v3833
      %3979 = vmatprep.subr.mxu0 %v3832
      %3980 = vmatpush1.msra.mxu0 %v3831
      %3981 = vmatprep.subr.mxu0 %v3894
      %3982 = vmatpush2.msra.mxu0 %v3893
      %3983 = vmatprep.subr.mxu0 %v3892
      %3984 = vmatpush2.msra.mxu0 %v3891
      %3985 = vmatprep.subr.mxu0 %v3890
      %3986 = vmatpush2.msra.mxu0 %v3889
      %3987 = vmatprep.subr.mxu0 %v3888
      %3988 = vmatpush2.msra.mxu0 %v3887
      %3989 = vmatprep.subr.mxu0 %v3886
      %3990 = vmatpush2.msra.mxu0 %v3885
      %3991 = vmatprep.subr.mxu0 %v3884
      %3992 = vmatpush2.msra.mxu0 %v3883
      %3993 = vmatprep.subr.mxu0 %v3882
      %3994 = vmatpush2.msra.mxu0 %v3881
      %3995 = vmatprep.subr.mxu0 %v3880
      %3996 = vmatpush2.msra.mxu0 %v3879
      %3997 = vmatprep.subr.mxu0 %v3878
      %3998 = vmatpush2.msra.mxu0 %v3877
      %3999 = vmatprep.subr.mxu0 %v3876
      %4000 = vmatpush2.msra.mxu0 %v3875
      %4001 = vmatprep.subr.mxu0 %v3874
      %4002 = vmatpush2.msra.mxu0 %v3873
      %4003 = vmatprep.subr.mxu0 %v3872
      %4004 = vmatpush2.msra.mxu0 %v3871
      %4005 = vmatprep.subr.mxu0 %v3870
      %4006 = vmatpush2.msra.mxu0 %v3869
      %4007 = vmatprep.subr.mxu0 %v3868
      %4008 = vmatpush2.msra.mxu0 %v3867
      %4009 = vmatprep.subr.mxu0 %v3866
      %4010 = vmatpush2.msra.mxu0 %v3865
      %4011 = vmatprep.subr.mxu0 %v3864
      %4012 = vmatpush2.msra.mxu0 %v3863
      %4013 = vmatprep.mubr.f32.mxu0 %v3828
      %4014 = vmatmul.mubr.f32.gmra.mxu0 %v3827
      %v4015 = vpop.f32.mrf.mxu0
      %v4016 = vadd.f32 %v3944, %v4015
      %v4017 = vpop.f32.mrf.mxu0
      %v4018 = vadd.f32 %v3944, %v4017
      %4019 = vdwg.mxu0
      %4020 = vmatprep.subr.mxu0 %v3926
      %4021 = vmatpush1.msra.mxu0 %v3925
      %4022 = vmatprep.subr.mxu0 %v3924
      %4023 = vmatpush1.msra.mxu0 %v3923
      %4024 = vmatprep.subr.mxu0 %v3922
      %4025 = vmatpush1.msra.mxu0 %v3921
      %4026 = vmatprep.subr.mxu0 %v3920
      %4027 = vmatpush1.msra.mxu0 %v3919
      %4028 = vmatprep.subr.mxu0 %v3918
      %4029 = vmatpush1.msra.mxu0 %v3917
      %4030 = vmatprep.subr.mxu0 %v3916
      %4031 = vmatpush1.msra.mxu0 %v3915
      %4032 = vmatprep.subr.mxu0 %v3914
      %4033 = vmatpush1.msra.mxu0 %v3913
      %4034 = vmatprep.subr.mxu0 %v3912
      %4035 = vmatpush1.msra.mxu0 %v3911
      %4036 = vmatprep.subr.mxu0 %v3910
      %4037 = vmatpush1.msra.mxu0 %v3909
      %4038 = vmatprep.subr.mxu0 %v3908
      %4039 = vmatpush1.msra.mxu0 %v3907
      %4040 = vmatprep.subr.mxu0 %v3906
      %4041 = vmatpush1.msra.mxu0 %v3905
      %4042 = vmatprep.subr.mxu0 %v3904
      %4043 = vmatpush1.msra.mxu0 %v3903
      %4044 = vmatprep.subr.mxu0 %v3902
      %4045 = vmatpush1.msra.mxu0 %v3901
      %4046 = vmatprep.subr.mxu0 %v3900
      %4047 = vmatpush1.msra.mxu0 %v3899
      %4048 = vmatprep.subr.mxu0 %v3898
      %4049 = vmatpush1.msra.mxu0 %v3897
      %4050 = vmatprep.subr.mxu0 %v3896
      %4051 = vmatpush1.msra.mxu0 %v3895
      %4052 = vmatprep.subr.mxu0 0.0
      %4053 = vmatpush2.msra.mxu0 0.0
      %4054 = vmatprep.subr.mxu0 0.0
      %4055 = vmatpush2.msra.mxu0 0.0
      %4056 = vmatprep.subr.mxu0 0.0
      %4057 = vmatpush2.msra.mxu0 0.0
      %4058 = vmatprep.subr.mxu0 0.0
      %4059 = vmatpush2.msra.mxu0 0.0
      %4060 = vmatprep.subr.mxu0 0.0
      %4061 = vmatpush2.msra.mxu0 0.0
      %4062 = vmatprep.subr.mxu0 0.0
      %4063 = vmatpush2.msra.mxu0 0.0
      %4064 = vmatprep.subr.mxu0 0.0
      %4065 = vmatpush2.msra.mxu0 0.0
      %4066 = vmatprep.subr.mxu0 0.0
      %4067 = vmatpush2.msra.mxu0 0.0
      %4068 = vmatprep.subr.mxu0 0.0
      %4069 = vmatpush2.msra.mxu0 0.0
      %4070 = vmatprep.subr.mxu0 0.0
      %4071 = vmatpush2.msra.mxu0 0.0
      %4072 = vmatprep.subr.mxu0 %v3938
      %4073 = vmatpush2.msra.mxu0 %v3937
      %4074 = vmatprep.subr.mxu0 %v3936
      %4075 = vmatpush2.msra.mxu0 %v3935
      %4076 = vmatprep.subr.mxu0 %v3934
      %4077 = vmatpush2.msra.mxu0 %v3933
      %4078 = vmatprep.subr.mxu0 %v3932
      %4079 = vmatpush2.msra.mxu0 %v3931
      %4080 = vmatprep.subr.mxu0 %v3930
      %4081 = vmatpush2.msra.mxu0 %v3929
      %4082 = vmatprep.subr.mxu0 %v3928
      %4083 = vmatpush2.msra.mxu0 %v3927
      %4084 = vmatprep.mubr.f32.mxu0 %v3947
      %4085 = vmatmul.mubr.f32.gmra.mxu0 %v3829
      %v4086 = vpop.f32.mrf.mxu0
      %v4087 = vadd.f32 %v4016, %v4086
      %v4088 = vpop.f32.mrf.mxu0
      %v4089 = vadd.f32 %v4018, %v4088
      %4090 = vdwg.mxu0
      %v4091 = vmul.f32 %v4087, 0.2
      %v4092 = vmul.f32 %v4089, 0.2
      %v4093 = vmax.f32 %v4087, %v4091
      %v4094 = vmax.f32 %v4089, %v4092
      %4095 = vrot.lane.b32.xlu0 %v4093, 17
      %v4096 = vpop.permute.xlu0 %4095
      %4097 = vrot.lane.b32.xlu0 %v4094, 17
      %v4098 = vpop.permute.xlu0 %4097
      %v4099 = vsel %vm320, %v4096, %v4098
      %v4100 = vsel %vm320, %v4098, %v4096
      %v4101 = vld [vmem:[%s3] sm:$0x3]
      %v4103 = vlaneseq
      %v4104 = vshrl.u32 %v4103, 7
      %v4105 = vsub.s32 0, %v4104
      %v4106 = vrot.slane %v4101, %v4105
      %v4107 = vlaneseq
      %v4108 = vshrl.u32 %v4107, 7
      %v4109 = vsub.s32 1, %v4108
      %v4110 = vrot.slane %v4101, %v4109
      %v4113 = vmul.f32 %v4100, %v4106
      %v4114 = vmul.f32 %v4099, %v4110
      %4115 = vst [vmem:[#allocation2 + $0x40] sm:$0xff] %v4113
      %4116 = vst [vmem:[#allocation2 + $0x48] sm:$0xff] %v4114
      %4117 = vrot.lane.b32.xlu0 %v4093, 16
      %v4118 = vpop.permute.xlu0 %4117
      %4119 = vrot.lane.b32.xlu0 %v4094, 16
      %v4120 = vpop.permute.xlu0 %4119
      %v4121 = vsel %vm353, %v4118, %v4120
      %v4122 = vsel %vm353, %v4120, %v4118
      %v4123 = vld [vmem:[%s358] sm:$0x3]
      %v4125 = vlaneseq
      %v4126 = vshrl.u32 %v4125, 7
      %v4127 = vsub.s32 0, %v4126
      %v4128 = vrot.slane %v4123, %v4127
      %v4129 = vlaneseq
      %v4130 = vshrl.u32 %v4129, 7
      %v4131 = vsub.s32 1, %v4130
      %v4132 = vrot.slane %v4123, %v4131
      %v4135 = vmul.f32 %v4122, %v4128
      %v4136 = vmul.f32 %v4121, %v4132
      %4137 = vst [vmem:[#allocation2 + $0xa0] sm:$0xff] %v4135
      %4138 = vst [vmem:[#allocation2 + $0xa8] sm:$0xff] %v4136
      %4139 = vrot.lane.b32.xlu0 %v4093, 15
      %v4140 = vpop.permute.xlu0 %4139
      %4141 = vrot.lane.b32.xlu0 %v4094, 15
      %v4142 = vpop.permute.xlu0 %4141
      %v4143 = vsel %vm387, %v4140, %v4142
      %v4144 = vsel %vm387, %v4142, %v4140
      %v4145 = vld [vmem:[%s392] sm:$0x3]
      %v4147 = vlaneseq
      %v4148 = vshrl.u32 %v4147, 7
      %v4149 = vsub.s32 0, %v4148
      %v4150 = vrot.slane %v4145, %v4149
      %v4151 = vlaneseq
      %v4152 = vshrl.u32 %v4151, 7
      %v4153 = vsub.s32 1, %v4152
      %v4154 = vrot.slane %v4145, %v4153
      %v4157 = vmul.f32 %v4144, %v4150
      %v4158 = vmul.f32 %v4143, %v4154
      %4159 = vst [vmem:[#allocation2 + $0x100] sm:$0xff] %v4157
      %4160 = vst [vmem:[#allocation2 + $0x108] sm:$0xff] %v4158
      %4161 = vrot.lane.b32.xlu0 %v4093, 1
      %v4162 = vpop.permute.xlu0 %4161
      %4163 = vrot.lane.b32.xlu0 %v4094, 1
      %v4164 = vpop.permute.xlu0 %4163
      %v4165 = vsel %vm421, %v4162, %v4164
      %v4166 = vsel %vm421, %v4164, %v4162
      %v4167 = vld [vmem:[%s426] sm:$0x3]
      %v4169 = vlaneseq
      %v4170 = vshrl.u32 %v4169, 7
      %v4171 = vsub.s32 0, %v4170
      %v4172 = vrot.slane %v4167, %v4171
      %v4173 = vlaneseq
      %v4174 = vshrl.u32 %v4173, 7
      %v4175 = vsub.s32 1, %v4174
      %v4176 = vrot.slane %v4167, %v4175
      %v4179 = vmul.f32 %v4166, %v4172
      %v4180 = vmul.f32 %v4165, %v4176
      %4181 = vst [vmem:[#allocation2 + $0x160] sm:$0xff] %v4179
      %4182 = vst [vmem:[#allocation2 + $0x168] sm:$0xff] %v4180
      %4183 = vst [vmem:[#allocation2 + $0x1c0] sm:$0xff] %v4093
      %4184 = vst [vmem:[#allocation2 + $0x1c8] sm:$0xff] %v4094
      %4185 = vrot.lane.b32.xlu0 %v4093, 127
      %v4186 = vpop.permute.xlu0 %4185
      %4187 = vrot.lane.b32.xlu0 %v4094, 127
      %v4188 = vpop.permute.xlu0 %4187
      %v4189 = vsel %vm459, %v4186, %v4188
      %v4190 = vsel %vm459, %v4188, %v4186
      %v4191 = vld [vmem:[%s464] sm:$0x3]
      %v4193 = vlaneseq
      %v4194 = vshrl.u32 %v4193, 7
      %v4195 = vsub.s32 0, %v4194
      %v4196 = vrot.slane %v4191, %v4195
      %v4197 = vlaneseq
      %v4198 = vshrl.u32 %v4197, 7
      %v4199 = vsub.s32 1, %v4198
      %v4200 = vrot.slane %v4191, %v4199
      %v4203 = vmul.f32 %v4189, %v4196
      %v4204 = vmul.f32 %v4190, %v4200
      %4205 = vst [vmem:[#allocation2 + $0x220] sm:$0xff] %v4203
      %4206 = vst [vmem:[#allocation2 + $0x228] sm:$0xff] %v4204
      %4207 = vrot.lane.b32.xlu0 %v4093, 113
      %v4208 = vpop.permute.xlu0 %4207
      %4209 = vrot.lane.b32.xlu0 %v4094, 113
      %v4210 = vpop.permute.xlu0 %4209
      %v4211 = vsel %vm493, %v4208, %v4210
      %v4212 = vsel %vm493, %v4210, %v4208
      %v4213 = vld [vmem:[%s498] sm:$0x3]
      %v4215 = vlaneseq
      %v4216 = vshrl.u32 %v4215, 7
      %v4217 = vsub.s32 0, %v4216
      %v4218 = vrot.slane %v4213, %v4217
      %v4219 = vlaneseq
      %v4220 = vshrl.u32 %v4219, 7
      %v4221 = vsub.s32 1, %v4220
      %v4222 = vrot.slane %v4213, %v4221
      %v4225 = vmul.f32 %v4211, %v4218
      %v4226 = vmul.f32 %v4212, %v4222
      %4227 = vst [vmem:[#allocation2 + $0x280] sm:$0xff] %v4225
      %4228 = vst [vmem:[#allocation2 + $0x288] sm:$0xff] %v4226
      %4229 = vrot.lane.b32.xlu0 %v4093, 112
      %v4230 = vpop.permute.xlu0 %4229
      %4231 = vrot.lane.b32.xlu0 %v4094, 112
      %v4232 = vpop.permute.xlu0 %4231
      %v4233 = vsel %vm527, %v4230, %v4232
      %v4234 = vsel %vm527, %v4232, %v4230
      %v4235 = vld [vmem:[%s532] sm:$0x3]
      %v4237 = vlaneseq
      %v4238 = vshrl.u32 %v4237, 7
      %v4239 = vsub.s32 0, %v4238
      %v4240 = vrot.slane %v4235, %v4239
      %v4241 = vlaneseq
      %v4242 = vshrl.u32 %v4241, 7
      %v4243 = vsub.s32 1, %v4242
      %v4244 = vrot.slane %v4235, %v4243
      %v4247 = vmul.f32 %v4233, %v4240
      %v4248 = vmul.f32 %v4234, %v4244
      %4249 = vst [vmem:[#allocation2 + $0x2e0] sm:$0xff] %v4247
      %4250 = vst [vmem:[#allocation2 + $0x2e8] sm:$0xff] %v4248
      %4251 = vrot.lane.b32.xlu0 %v4093, 111
      %v4252 = vpop.permute.xlu0 %4251
      %4253 = vrot.lane.b32.xlu0 %v4094, 111
      %v4254 = vpop.permute.xlu0 %4253
      %v4255 = vsel %vm561, %v4252, %v4254
      %v4256 = vsel %vm561, %v4254, %v4252
      %v4257 = vld [vmem:[%s566] sm:$0x3]
      %v4259 = vlaneseq
      %v4260 = vshrl.u32 %v4259, 7
      %v4261 = vsub.s32 0, %v4260
      %v4262 = vrot.slane %v4257, %v4261
      %v4263 = vlaneseq
      %v4264 = vshrl.u32 %v4263, 7
      %v4265 = vsub.s32 1, %v4264
      %v4266 = vrot.slane %v4257, %v4265
      %v4269 = vmul.f32 %v4255, %v4262
      %v4270 = vmul.f32 %v4256, %v4266
      %4271 = vst [vmem:[#allocation2 + $0x340] sm:$0xff] %v4269
      %4272 = vst [vmem:[#allocation2 + $0x348] sm:$0xff] %v4270
      %s4273 = scalar_lea.vmem %s1, 512
      %v4274 = vld [vmem:[%s4273] sm:$0xff]
      %v4275 = vld [vmem:[%s4273 + $0x8] sm:$0xff]
      %v4276 = vld [vmem:[%s4273 + $0x10] sm:$0xff]
      %v4277 = vld [vmem:[%s4273 + $0x18] sm:$0xff]
      %v4278 = vld [vmem:[#allocation2] sm:$0xff]
      %v4279 = vld [vmem:[#allocation2 + $0x8] sm:$0xff]
      %v4280 = vld [vmem:[#allocation2 + $0x10] sm:$0xff]
      %v4281 = vld [vmem:[#allocation2 + $0x18] sm:$0xff]
      %v4282 = vld [vmem:[#allocation2 + $0x20] sm:$0xff]
      %v4283 = vld [vmem:[#allocation2 + $0x28] sm:$0xff]
      %v4284 = vld [vmem:[#allocation2 + $0x30] sm:$0xff]
      %v4285 = vld [vmem:[#allocation2 + $0x38] sm:$0xff]
      %v4286 = vld [vmem:[#allocation2 + $0x40] sm:$0xff]
      %v4287 = vld [vmem:[#allocation2 + $0x48] sm:$0xff]
      %v4288 = vld [vmem:[#allocation2 + $0x50] sm:$0xff]
      %v4289 = vld [vmem:[#allocation2 + $0x58] sm:$0xff]
      %v4290 = vld [vmem:[#allocation2 + $0x60] sm:$0xff]
      %v4291 = vld [vmem:[#allocation2 + $0x68] sm:$0xff]
      %v4292 = vld [vmem:[#allocation2 + $0x70] sm:$0xff]
      %v4293 = vld [vmem:[#allocation2 + $0x78] sm:$0xff]
      %v4294 = vld [vmem:[#allocation2 + $0x80] sm:$0xff]
      %v4295 = vld [vmem:[#allocation2 + $0x88] sm:$0xff]
      %v4296 = vld [vmem:[#allocation2 + $0x90] sm:$0xff]
      %v4297 = vld [vmem:[#allocation2 + $0x98] sm:$0xff]
      %v4298 = vld [vmem:[#allocation2 + $0xa0] sm:$0xff]
      %v4299 = vld [vmem:[#allocation2 + $0xa8] sm:$0xff]
      %v4300 = vld [vmem:[#allocation2 + $0xb0] sm:$0xff]
      %v4301 = vld [vmem:[#allocation2 + $0xb8] sm:$0xff]
      %v4302 = vld [vmem:[#allocation2 + $0xc0] sm:$0xff]
      %v4303 = vld [vmem:[#allocation2 + $0xc8] sm:$0xff]
      %v4304 = vld [vmem:[#allocation2 + $0xd0] sm:$0xff]
      %v4305 = vld [vmem:[#allocation2 + $0xd8] sm:$0xff]
      %v4306 = vld [vmem:[#allocation2 + $0xe0] sm:$0xff]
      %v4307 = vld [vmem:[#allocation2 + $0xe8] sm:$0xff]
      %v4308 = vld [vmem:[#allocation2 + $0xf0] sm:$0xff]
      %v4309 = vld [vmem:[#allocation2 + $0xf8] sm:$0xff]
      %v4310 = vld [vmem:[#allocation2 + $0x100] sm:$0xff]
      %v4311 = vld [vmem:[#allocation2 + $0x108] sm:$0xff]
      %v4312 = vld [vmem:[#allocation2 + $0x110] sm:$0xff]
      %v4313 = vld [vmem:[#allocation2 + $0x118] sm:$0xff]
      %v4314 = vld [vmem:[#allocation2 + $0x120] sm:$0xff]
      %v4315 = vld [vmem:[#allocation2 + $0x128] sm:$0xff]
      %v4316 = vld [vmem:[#allocation2 + $0x130] sm:$0xff]
      %v4317 = vld [vmem:[#allocation2 + $0x138] sm:$0xff]
      %v4318 = vld [vmem:[#allocation2 + $0x140] sm:$0xff]
      %v4319 = vld [vmem:[#allocation2 + $0x148] sm:$0xff]
      %v4320 = vld [vmem:[#allocation2 + $0x150] sm:$0xff]
      %v4321 = vld [vmem:[#allocation2 + $0x158] sm:$0xff]
      %v4322 = vld [vmem:[#allocation2 + $0x160] sm:$0xff]
      %v4323 = vld [vmem:[#allocation2 + $0x168] sm:$0xff]
      %v4324 = vld [vmem:[#allocation2 + $0x170] sm:$0xff]
      %v4325 = vld [vmem:[#allocation2 + $0x178] sm:$0xff]
      %v4326 = vld [vmem:[#allocation2 + $0x180] sm:$0xff]
      %v4327 = vld [vmem:[#allocation2 + $0x188] sm:$0xff]
      %v4328 = vld [vmem:[#allocation2 + $0x190] sm:$0xff]
      %v4329 = vld [vmem:[#allocation2 + $0x198] sm:$0xff]
      %v4330 = vld [vmem:[#allocation2 + $0x1a0] sm:$0xff]
      %v4331 = vld [vmem:[#allocation2 + $0x1a8] sm:$0xff]
      %v4332 = vld [vmem:[#allocation2 + $0x1b0] sm:$0xff]
      %v4333 = vld [vmem:[#allocation2 + $0x1b8] sm:$0xff]
      %v4334 = vld [vmem:[#allocation2 + $0x1c0] sm:$0xff]
      %v4335 = vld [vmem:[#allocation2 + $0x1c8] sm:$0xff]
      %v4336 = vld [vmem:[#allocation2 + $0x1d0] sm:$0xff]
      %v4337 = vld [vmem:[#allocation2 + $0x1d8] sm:$0xff]
      %v4338 = vld [vmem:[#allocation2 + $0x1e0] sm:$0xff]
      %v4339 = vld [vmem:[#allocation2 + $0x1e8] sm:$0xff]
      %v4340 = vld [vmem:[#allocation2 + $0x1f0] sm:$0xff]
      %v4341 = vld [vmem:[#allocation2 + $0x1f8] sm:$0xff]
      %v4342 = vld [vmem:[#allocation2 + $0x200] sm:$0xff]
      %v4343 = vld [vmem:[#allocation2 + $0x208] sm:$0xff]
      %v4344 = vld [vmem:[#allocation2 + $0x210] sm:$0xff]
      %v4345 = vld [vmem:[#allocation2 + $0x218] sm:$0xff]
      %v4346 = vld [vmem:[#allocation2 + $0x220] sm:$0xff]
      %v4347 = vld [vmem:[#allocation2 + $0x228] sm:$0xff]
      %v4348 = vld [vmem:[#allocation2 + $0x230] sm:$0xff]
      %v4349 = vld [vmem:[#allocation2 + $0x238] sm:$0xff]
      %v4350 = vld [vmem:[#allocation2 + $0x240] sm:$0xff]
      %v4351 = vld [vmem:[#allocation2 + $0x248] sm:$0xff]
      %v4352 = vld [vmem:[#allocation2 + $0x250] sm:$0xff]
      %v4353 = vld [vmem:[#allocation2 + $0x258] sm:$0xff]
      %v4354 = vld [vmem:[#allocation2 + $0x260] sm:$0xff]
      %v4355 = vld [vmem:[#allocation2 + $0x268] sm:$0xff]
      %v4356 = vld [vmem:[#allocation2 + $0x270] sm:$0xff]
      %v4357 = vld [vmem:[#allocation2 + $0x278] sm:$0xff]
      %v4358 = vld [vmem:[#allocation2 + $0x280] sm:$0xff]
      %v4359 = vld [vmem:[#allocation2 + $0x288] sm:$0xff]
      %v4360 = vld [vmem:[#allocation2 + $0x290] sm:$0xff]
      %v4361 = vld [vmem:[#allocation2 + $0x298] sm:$0xff]
      %v4362 = vld [vmem:[#allocation2 + $0x2a0] sm:$0xff]
      %v4363 = vld [vmem:[#allocation2 + $0x2a8] sm:$0xff]
      %v4364 = vld [vmem:[#allocation2 + $0x2b0] sm:$0xff]
      %v4365 = vld [vmem:[#allocation2 + $0x2b8] sm:$0xff]
      %v4366 = vld [vmem:[#allocation2 + $0x2c0] sm:$0xff]
      %v4367 = vld [vmem:[#allocation2 + $0x2c8] sm:$0xff]
      %v4368 = vld [vmem:[#allocation2 + $0x2d0] sm:$0xff]
      %v4369 = vld [vmem:[#allocation2 + $0x2d8] sm:$0xff]
      %v4370 = vld [vmem:[#allocation2 + $0x2e0] sm:$0xff]
      %v4371 = vld [vmem:[#allocation2 + $0x2e8] sm:$0xff]
      %v4372 = vld [vmem:[#allocation2 + $0x2f0] sm:$0xff]
      %v4373 = vld [vmem:[#allocation2 + $0x2f8] sm:$0xff]
      %v4374 = vld [vmem:[#allocation2 + $0x300] sm:$0xff]
      %v4375 = vld [vmem:[#allocation2 + $0x308] sm:$0xff]
      %v4376 = vld [vmem:[#allocation2 + $0x310] sm:$0xff]
      %v4377 = vld [vmem:[#allocation2 + $0x318] sm:$0xff]
      %v4378 = vld [vmem:[#allocation2 + $0x320] sm:$0xff]
      %v4379 = vld [vmem:[#allocation2 + $0x328] sm:$0xff]
      %v4380 = vld [vmem:[#allocation2 + $0x330] sm:$0xff]
      %v4381 = vld [vmem:[#allocation2 + $0x338] sm:$0xff]
      %v4382 = vld [vmem:[#allocation2 + $0x340] sm:$0xff]
      %v4383 = vld [vmem:[#allocation2 + $0x348] sm:$0xff]
      %v4384 = vld [vmem:[#allocation2 + $0x350] sm:$0xff]
      %v4385 = vld [vmem:[#allocation2 + $0x358] sm:$0xff]
      %s4386 = scalar_lea.vmem %s2, 128
      %v4387 = vld [vmem:[%s4386] sm:$0xff]
      %4389 = vset.pattern.permute.xlu0 0
      %4390 = vperm.xlu0 %4389, %v4387
      %v4391 = vpop.permute.xlu0 %4390
      %v4394 = vsel %vm705, %v4277, 0
      %4396 = vmatprep.subr.mxu0 %v4309
      %4397 = vmatpush1.msra.mxu0 %v4308
      %4398 = vmatprep.subr.mxu0 %v4307
      %4399 = vmatpush1.msra.mxu0 %v4306
      %4400 = vmatprep.subr.mxu0 %v4305
      %4401 = vmatpush1.msra.mxu0 %v4304
      %4402 = vmatprep.subr.mxu0 %v4303
      %4403 = vmatpush1.msra.mxu0 %v4302
      %4404 = vmatprep.subr.mxu0 %v4301
      %4405 = vmatpush1.msra.mxu0 %v4300
      %4406 = vmatprep.subr.mxu0 %v4299
      %4407 = vmatpush1.msra.mxu0 %v4298
      %4408 = vmatprep.subr.mxu0 %v4297
      %4409 = vmatpush1.msra.mxu0 %v4296
      %4410 = vmatprep.subr.mxu0 %v4295
      %4411 = vmatpush1.msra.mxu0 %v4294
      %4412 = vmatprep.subr.mxu0 %v4293
      %4413 = vmatpush1.msra.mxu0 %v4292
      %4414 = vmatprep.subr.mxu0 %v4291
      %4415 = vmatpush1.msra.mxu0 %v4290
      %4416 = vmatprep.subr.mxu0 %v4289
      %4417 = vmatpush1.msra.mxu0 %v4288
      %4418 = vmatprep.subr.mxu0 %v4287
      %4419 = vmatpush1.msra.mxu0 %v4286
      %4420 = vmatprep.subr.mxu0 %v4285
      %4421 = vmatpush1.msra.mxu0 %v4284
      %4422 = vmatprep.subr.mxu0 %v4283
      %4423 = vmatpush1.msra.mxu0 %v4282
      %4424 = vmatprep.subr.mxu0 %v4281
      %4425 = vmatpush1.msra.mxu0 %v4280
      %4426 = vmatprep.subr.mxu0 %v4279
      %4427 = vmatpush1.msra.mxu0 %v4278
      %4428 = vmatprep.subr.mxu0 %v4341
      %4429 = vmatpush2.msra.mxu0 %v4340
      %4430 = vmatprep.subr.mxu0 %v4339
      %4431 = vmatpush2.msra.mxu0 %v4338
      %4432 = vmatprep.subr.mxu0 %v4337
      %4433 = vmatpush2.msra.mxu0 %v4336
      %4434 = vmatprep.subr.mxu0 %v4335
      %4435 = vmatpush2.msra.mxu0 %v4334
      %4436 = vmatprep.subr.mxu0 %v4333
      %4437 = vmatpush2.msra.mxu0 %v4332
      %4438 = vmatprep.subr.mxu0 %v4331
      %4439 = vmatpush2.msra.mxu0 %v4330
      %4440 = vmatprep.subr.mxu0 %v4329
      %4441 = vmatpush2.msra.mxu0 %v4328
      %4442 = vmatprep.subr.mxu0 %v4327
      %4443 = vmatpush2.msra.mxu0 %v4326
      %4444 = vmatprep.subr.mxu0 %v4325
      %4445 = vmatpush2.msra.mxu0 %v4324
      %4446 = vmatprep.subr.mxu0 %v4323
      %4447 = vmatpush2.msra.mxu0 %v4322
      %4448 = vmatprep.subr.mxu0 %v4321
      %4449 = vmatpush2.msra.mxu0 %v4320
      %4450 = vmatprep.subr.mxu0 %v4319
      %4451 = vmatpush2.msra.mxu0 %v4318
      %4452 = vmatprep.subr.mxu0 %v4317
      %4453 = vmatpush2.msra.mxu0 %v4316
      %4454 = vmatprep.subr.mxu0 %v4315
      %4455 = vmatpush2.msra.mxu0 %v4314
      %4456 = vmatprep.subr.mxu0 %v4313
      %4457 = vmatpush2.msra.mxu0 %v4312
      %4458 = vmatprep.subr.mxu0 %v4311
      %4459 = vmatpush2.msra.mxu0 %v4310
      %4460 = vmatprep.mubr.f32.mxu0 %v4275
      %4461 = vmatmul.mubr.f32.gmra.mxu0 %v4274
      %v4462 = vpop.f32.mrf.mxu0
      %v4463 = vadd.f32 %v4391, %v4462
      %v4464 = vpop.f32.mrf.mxu0
      %v4465 = vadd.f32 %v4391, %v4464
      %4466 = vdwg.mxu0
      %4467 = vmatprep.subr.mxu0 %v4373
      %4468 = vmatpush1.msra.mxu0 %v4372
      %4469 = vmatprep.subr.mxu0 %v4371
      %4470 = vmatpush1.msra.mxu0 %v4370
      %4471 = vmatprep.subr.mxu0 %v4369
      %4472 = vmatpush1.msra.mxu0 %v4368
      %4473 = vmatprep.subr.mxu0 %v4367
      %4474 = vmatpush1.msra.mxu0 %v4366
      %4475 = vmatprep.subr.mxu0 %v4365
      %4476 = vmatpush1.msra.mxu0 %v4364
      %4477 = vmatprep.subr.mxu0 %v4363
      %4478 = vmatpush1.msra.mxu0 %v4362
      %4479 = vmatprep.subr.mxu0 %v4361
      %4480 = vmatpush1.msra.mxu0 %v4360
      %4481 = vmatprep.subr.mxu0 %v4359
      %4482 = vmatpush1.msra.mxu0 %v4358
      %4483 = vmatprep.subr.mxu0 %v4357
      %4484 = vmatpush1.msra.mxu0 %v4356
      %4485 = vmatprep.subr.mxu0 %v4355
      %4486 = vmatpush1.msra.mxu0 %v4354
      %4487 = vmatprep.subr.mxu0 %v4353
      %4488 = vmatpush1.msra.mxu0 %v4352
      %4489 = vmatprep.subr.mxu0 %v4351
      %4490 = vmatpush1.msra.mxu0 %v4350
      %4491 = vmatprep.subr.mxu0 %v4349
      %4492 = vmatpush1.msra.mxu0 %v4348
      %4493 = vmatprep.subr.mxu0 %v4347
      %4494 = vmatpush1.msra.mxu0 %v4346
      %4495 = vmatprep.subr.mxu0 %v4345
      %4496 = vmatpush1.msra.mxu0 %v4344
      %4497 = vmatprep.subr.mxu0 %v4343
      %4498 = vmatpush1.msra.mxu0 %v4342
      %4499 = vmatprep.subr.mxu0 0.0
      %4500 = vmatpush2.msra.mxu0 0.0
      %4501 = vmatprep.subr.mxu0 0.0
      %4502 = vmatpush2.msra.mxu0 0.0
      %4503 = vmatprep.subr.mxu0 0.0
      %4504 = vmatpush2.msra.mxu0 0.0
      %4505 = vmatprep.subr.mxu0 0.0
      %4506 = vmatpush2.msra.mxu0 0.0
      %4507 = vmatprep.subr.mxu0 0.0
      %4508 = vmatpush2.msra.mxu0 0.0
      %4509 = vmatprep.subr.mxu0 0.0
      %4510 = vmatpush2.msra.mxu0 0.0
      %4511 = vmatprep.subr.mxu0 0.0
      %4512 = vmatpush2.msra.mxu0 0.0
      %4513 = vmatprep.subr.mxu0 0.0
      %4514 = vmatpush2.msra.mxu0 0.0
      %4515 = vmatprep.subr.mxu0 0.0
      %4516 = vmatpush2.msra.mxu0 0.0
      %4517 = vmatprep.subr.mxu0 0.0
      %4518 = vmatpush2.msra.mxu0 0.0
      %4519 = vmatprep.subr.mxu0 %v4385
      %4520 = vmatpush2.msra.mxu0 %v4384
      %4521 = vmatprep.subr.mxu0 %v4383
      %4522 = vmatpush2.msra.mxu0 %v4382
      %4523 = vmatprep.subr.mxu0 %v4381
      %4524 = vmatpush2.msra.mxu0 %v4380
      %4525 = vmatprep.subr.mxu0 %v4379
      %4526 = vmatpush2.msra.mxu0 %v4378
      %4527 = vmatprep.subr.mxu0 %v4377
      %4528 = vmatpush2.msra.mxu0 %v4376
      %4529 = vmatprep.subr.mxu0 %v4375
      %4530 = vmatpush2.msra.mxu0 %v4374
      %4531 = vmatprep.mubr.f32.mxu0 %v4394
      %4532 = vmatmul.mubr.f32.gmra.mxu0 %v4276
      %v4533 = vpop.f32.mrf.mxu0
      %v4534 = vadd.f32 %v4463, %v4533
      %v4535 = vpop.f32.mrf.mxu0
      %v4536 = vadd.f32 %v4465, %v4535
      %4537 = vdwg.mxu0
      %v4538 = vmul.f32 %v4534, 0.2
      %v4539 = vmul.f32 %v4536, 0.2
      %v4540 = vmax.f32 %v4534, %v4538
      %v4541 = vmax.f32 %v4536, %v4539
      %4542 = vrot.lane.b32.xlu0 %v4540, 17
      %v4543 = vpop.permute.xlu0 %4542
      %4544 = vrot.lane.b32.xlu0 %v4541, 17
      %v4545 = vpop.permute.xlu0 %4544
      %v4546 = vsel %vm320, %v4543, %v4545
      %v4547 = vsel %vm320, %v4545, %v4543
      %v4548 = vld [vmem:[%s3] sm:$0x3]
      %v4550 = vlaneseq
      %v4551 = vshrl.u32 %v4550, 7
      %v4552 = vsub.s32 0, %v4551
      %v4553 = vrot.slane %v4548, %v4552
      %v4554 = vlaneseq
      %v4555 = vshrl.u32 %v4554, 7
      %v4556 = vsub.s32 1, %v4555
      %v4557 = vrot.slane %v4548, %v4556
      %v4560 = vmul.f32 %v4547, %v4553
      %v4561 = vmul.f32 %v4546, %v4557
      %4562 = vst [vmem:[#allocation2 + $0x50] sm:$0xff] %v4560
      %4563 = vst [vmem:[#allocation2 + $0x58] sm:$0xff] %v4561
      %4564 = vrot.lane.b32.xlu0 %v4540, 16
      %v4565 = vpop.permute.xlu0 %4564
      %4566 = vrot.lane.b32.xlu0 %v4541, 16
      %v4567 = vpop.permute.xlu0 %4566
      %v4568 = vsel %vm353, %v4565, %v4567
      %v4569 = vsel %vm353, %v4567, %v4565
      %v4570 = vld [vmem:[%s358] sm:$0x3]
      %v4572 = vlaneseq
      %v4573 = vshrl.u32 %v4572, 7
      %v4574 = vsub.s32 0, %v4573
      %v4575 = vrot.slane %v4570, %v4574
      %v4576 = vlaneseq
      %v4577 = vshrl.u32 %v4576, 7
      %v4578 = vsub.s32 1, %v4577
      %v4579 = vrot.slane %v4570, %v4578
      %v4582 = vmul.f32 %v4569, %v4575
      %v4583 = vmul.f32 %v4568, %v4579
      %4584 = vst [vmem:[#allocation2 + $0xb0] sm:$0xff] %v4582
      %4585 = vst [vmem:[#allocation2 + $0xb8] sm:$0xff] %v4583
      %4586 = vrot.lane.b32.xlu0 %v4540, 15
      %v4587 = vpop.permute.xlu0 %4586
      %4588 = vrot.lane.b32.xlu0 %v4541, 15
      %v4589 = vpop.permute.xlu0 %4588
      %v4590 = vsel %vm387, %v4587, %v4589
      %v4591 = vsel %vm387, %v4589, %v4587
      %v4592 = vld [vmem:[%s392] sm:$0x3]
      %v4594 = vlaneseq
      %v4595 = vshrl.u32 %v4594, 7
      %v4596 = vsub.s32 0, %v4595
      %v4597 = vrot.slane %v4592, %v4596
      %v4598 = vlaneseq
      %v4599 = vshrl.u32 %v4598, 7
      %v4600 = vsub.s32 1, %v4599
      %v4601 = vrot.slane %v4592, %v4600
      %v4604 = vmul.f32 %v4591, %v4597
      %v4605 = vmul.f32 %v4590, %v4601
      %4606 = vst [vmem:[#allocation2 + $0x110] sm:$0xff] %v4604
      %4607 = vst [vmem:[#allocation2 + $0x118] sm:$0xff] %v4605
      %4608 = vrot.lane.b32.xlu0 %v4540, 1
      %v4609 = vpop.permute.xlu0 %4608
      %4610 = vrot.lane.b32.xlu0 %v4541, 1
      %v4611 = vpop.permute.xlu0 %4610
      %v4612 = vsel %vm421, %v4609, %v4611
      %v4613 = vsel %vm421, %v4611, %v4609
      %v4614 = vld [vmem:[%s426] sm:$0x3]
      %v4616 = vlaneseq
      %v4617 = vshrl.u32 %v4616, 7
      %v4618 = vsub.s32 0, %v4617
      %v4619 = vrot.slane %v4614, %v4618
      %v4620 = vlaneseq
      %v4621 = vshrl.u32 %v4620, 7
      %v4622 = vsub.s32 1, %v4621
      %v4623 = vrot.slane %v4614, %v4622
      %v4626 = vmul.f32 %v4613, %v4619
      %v4627 = vmul.f32 %v4612, %v4623
      %4628 = vst [vmem:[#allocation2 + $0x170] sm:$0xff] %v4626
      %4629 = vst [vmem:[#allocation2 + $0x178] sm:$0xff] %v4627
      %4630 = vst [vmem:[#allocation2 + $0x1d0] sm:$0xff] %v4540
      %4631 = vst [vmem:[#allocation2 + $0x1d8] sm:$0xff] %v4541
      %4632 = vrot.lane.b32.xlu0 %v4540, 127
      %v4633 = vpop.permute.xlu0 %4632
      %4634 = vrot.lane.b32.xlu0 %v4541, 127
      %v4635 = vpop.permute.xlu0 %4634
      %v4636 = vsel %vm459, %v4633, %v4635
      %v4637 = vsel %vm459, %v4635, %v4633
      %v4638 = vld [vmem:[%s464] sm:$0x3]
      %v4640 = vlaneseq
      %v4641 = vshrl.u32 %v4640, 7
      %v4642 = vsub.s32 0, %v4641
      %v4643 = vrot.slane %v4638, %v4642
      %v4644 = vlaneseq
      %v4645 = vshrl.u32 %v4644, 7
      %v4646 = vsub.s32 1, %v4645
      %v4647 = vrot.slane %v4638, %v4646
      %v4650 = vmul.f32 %v4636, %v4643
      %v4651 = vmul.f32 %v4637, %v4647
      %4652 = vst [vmem:[#allocation2 + $0x230] sm:$0xff] %v4650
      %4653 = vst [vmem:[#allocation2 + $0x238] sm:$0xff] %v4651
      %4654 = vrot.lane.b32.xlu0 %v4540, 113
      %v4655 = vpop.permute.xlu0 %4654
      %4656 = vrot.lane.b32.xlu0 %v4541, 113
      %v4657 = vpop.permute.xlu0 %4656
      %v4658 = vsel %vm493, %v4655, %v4657
      %v4659 = vsel %vm493, %v4657, %v4655
      %v4660 = vld [vmem:[%s498] sm:$0x3]
      %v4662 = vlaneseq
      %v4663 = vshrl.u32 %v4662, 7
      %v4664 = vsub.s32 0, %v4663
      %v4665 = vrot.slane %v4660, %v4664
      %v4666 = vlaneseq
      %v4667 = vshrl.u32 %v4666, 7
      %v4668 = vsub.s32 1, %v4667
      %v4669 = vrot.slane %v4660, %v4668
      %v4672 = vmul.f32 %v4658, %v4665
      %v4673 = vmul.f32 %v4659, %v4669
      %4674 = vst [vmem:[#allocation2 + $0x290] sm:$0xff] %v4672
      %4675 = vst [vmem:[#allocation2 + $0x298] sm:$0xff] %v4673
      %4676 = vrot.lane.b32.xlu0 %v4540, 112
      %v4677 = vpop.permute.xlu0 %4676
      %4678 = vrot.lane.b32.xlu0 %v4541, 112
      %v4679 = vpop.permute.xlu0 %4678
      %v4680 = vsel %vm527, %v4677, %v4679
      %v4681 = vsel %vm527, %v4679, %v4677
      %v4682 = vld [vmem:[%s532] sm:$0x3]
      %v4684 = vlaneseq
      %v4685 = vshrl.u32 %v4684, 7
      %v4686 = vsub.s32 0, %v4685
      %v4687 = vrot.slane %v4682, %v4686
      %v4688 = vlaneseq
      %v4689 = vshrl.u32 %v4688, 7
      %v4690 = vsub.s32 1, %v4689
      %v4691 = vrot.slane %v4682, %v4690
      %v4694 = vmul.f32 %v4680, %v4687
      %v4695 = vmul.f32 %v4681, %v4691
      %4696 = vst [vmem:[#allocation2 + $0x2f0] sm:$0xff] %v4694
      %4697 = vst [vmem:[#allocation2 + $0x2f8] sm:$0xff] %v4695
      %4698 = vrot.lane.b32.xlu0 %v4540, 111
      %v4699 = vpop.permute.xlu0 %4698
      %4700 = vrot.lane.b32.xlu0 %v4541, 111
      %v4701 = vpop.permute.xlu0 %4700
      %v4702 = vsel %vm561, %v4699, %v4701
      %v4703 = vsel %vm561, %v4701, %v4699
      %v4704 = vld [vmem:[%s566] sm:$0x3]
      %v4706 = vlaneseq
      %v4707 = vshrl.u32 %v4706, 7
      %v4708 = vsub.s32 0, %v4707
      %v4709 = vrot.slane %v4704, %v4708
      %v4710 = vlaneseq
      %v4711 = vshrl.u32 %v4710, 7
      %v4712 = vsub.s32 1, %v4711
      %v4713 = vrot.slane %v4704, %v4712
      %v4716 = vmul.f32 %v4702, %v4709
      %v4717 = vmul.f32 %v4703, %v4713
      %4718 = vst [vmem:[#allocation2 + $0x350] sm:$0xff] %v4716
      %4719 = vst [vmem:[#allocation2 + $0x358] sm:$0xff] %v4717
      %s4720 = scalar_lea.vmem %s1, 576
      %v4721 = vld [vmem:[%s4720] sm:$0xff]
      %v4722 = vld [vmem:[%s4720 + $0x8] sm:$0xff]
      %v4723 = vld [vmem:[%s4720 + $0x10] sm:$0xff]
      %v4724 = vld [vmem:[%s4720 + $0x18] sm:$0xff]
      %v4725 = vld [vmem:[%s4720 + $0x20] sm:$0xff]
      %v4726 = vld [vmem:[%s4720 + $0x28] sm:$0xff]
      %v4727 = vld [vmem:[%s4720 + $0x30] sm:$0xff]
      %v4728 = vld [vmem:[%s4720 + $0x38] sm:$0xff]
      %v4729 = vld [vmem:[#allocation2] sm:$0xff]
      %v4730 = vld [vmem:[#allocation2 + $0x8] sm:$0xff]
      %v4731 = vld [vmem:[#allocation2 + $0x10] sm:$0xff]
      %v4732 = vld [vmem:[#allocation2 + $0x18] sm:$0xff]
      %v4733 = vld [vmem:[#allocation2 + $0x20] sm:$0xff]
      %v4734 = vld [vmem:[#allocation2 + $0x28] sm:$0xff]
      %v4735 = vld [vmem:[#allocation2 + $0x30] sm:$0xff]
      %v4736 = vld [vmem:[#allocation2 + $0x38] sm:$0xff]
      %v4737 = vld [vmem:[#allocation2 + $0x40] sm:$0xff]
      %v4738 = vld [vmem:[#allocation2 + $0x48] sm:$0xff]
      %v4739 = vld [vmem:[#allocation2 + $0x50] sm:$0xff]
      %v4740 = vld [vmem:[#allocation2 + $0x58] sm:$0xff]
      %v4741 = vld [vmem:[#allocation2 + $0x60] sm:$0xff]
      %v4742 = vld [vmem:[#allocation2 + $0x68] sm:$0xff]
      %v4743 = vld [vmem:[#allocation2 + $0x70] sm:$0xff]
      %v4744 = vld [vmem:[#allocation2 + $0x78] sm:$0xff]
      %v4745 = vld [vmem:[#allocation2 + $0x80] sm:$0xff]
      %v4746 = vld [vmem:[#allocation2 + $0x88] sm:$0xff]
      %v4747 = vld [vmem:[#allocation2 + $0x90] sm:$0xff]
      %v4748 = vld [vmem:[#allocation2 + $0x98] sm:$0xff]
      %v4749 = vld [vmem:[#allocation2 + $0xa0] sm:$0xff]
      %v4750 = vld [vmem:[#allocation2 + $0xa8] sm:$0xff]
      %v4751 = vld [vmem:[#allocation2 + $0xb0] sm:$0xff]
      %v4752 = vld [vmem:[#allocation2 + $0xb8] sm:$0xff]
      %v4753 = vld [vmem:[#allocation2 + $0xc0] sm:$0xff]
      %v4754 = vld [vmem:[#allocation2 + $0xc8] sm:$0xff]
      %v4755 = vld [vmem:[#allocation2 + $0xd0] sm:$0xff]
      %v4756 = vld [vmem:[#allocation2 + $0xd8] sm:$0xff]
      %v4757 = vld [vmem:[#allocation2 + $0xe0] sm:$0xff]
      %v4758 = vld [vmem:[#allocation2 + $0xe8] sm:$0xff]
      %v4759 = vld [vmem:[#allocation2 + $0xf0] sm:$0xff]
      %v4760 = vld [vmem:[#allocation2 + $0xf8] sm:$0xff]
      %v4761 = vld [vmem:[#allocation2 + $0x100] sm:$0xff]
      %v4762 = vld [vmem:[#allocation2 + $0x108] sm:$0xff]
      %v4763 = vld [vmem:[#allocation2 + $0x110] sm:$0xff]
      %v4764 = vld [vmem:[#allocation2 + $0x118] sm:$0xff]
      %v4765 = vld [vmem:[#allocation2 + $0x120] sm:$0xff]
      %v4766 = vld [vmem:[#allocation2 + $0x128] sm:$0xff]
      %v4767 = vld [vmem:[#allocation2 + $0x130] sm:$0xff]
      %v4768 = vld [vmem:[#allocation2 + $0x138] sm:$0xff]
      %v4769 = vld [vmem:[#allocation2 + $0x140] sm:$0xff]
      %v4770 = vld [vmem:[#allocation2 + $0x148] sm:$0xff]
      %v4771 = vld [vmem:[#allocation2 + $0x150] sm:$0xff]
      %v4772 = vld [vmem:[#allocation2 + $0x158] sm:$0xff]
      %v4773 = vld [vmem:[#allocation2 + $0x160] sm:$0xff]
      %v4774 = vld [vmem:[#allocation2 + $0x168] sm:$0xff]
      %v4775 = vld [vmem:[#allocation2 + $0x170] sm:$0xff]
      %v4776 = vld [vmem:[#allocation2 + $0x178] sm:$0xff]
      %v4777 = vld [vmem:[#allocation2 + $0x180] sm:$0xff]
      %v4778 = vld [vmem:[#allocation2 + $0x188] sm:$0xff]
      %v4779 = vld [vmem:[#allocation2 + $0x190] sm:$0xff]
      %v4780 = vld [vmem:[#allocation2 + $0x198] sm:$0xff]
      %v4781 = vld [vmem:[#allocation2 + $0x1a0] sm:$0xff]
      %v4782 = vld [vmem:[#allocation2 + $0x1a8] sm:$0xff]
      %v4783 = vld [vmem:[#allocation2 + $0x1b0] sm:$0xff]
      %v4784 = vld [vmem:[#allocation2 + $0x1b8] sm:$0xff]
      %v4785 = vld [vmem:[#allocation2 + $0x1c0] sm:$0xff]
      %v4786 = vld [vmem:[#allocation2 + $0x1c8] sm:$0xff]
      %v4787 = vld [vmem:[#allocation2 + $0x1d0] sm:$0xff]
      %v4788 = vld [vmem:[#allocation2 + $0x1d8] sm:$0xff]
      %v4789 = vld [vmem:[#allocation2 + $0x1e0] sm:$0xff]
      %v4790 = vld [vmem:[#allocation2 + $0x1e8] sm:$0xff]
      %v4791 = vld [vmem:[#allocation2 + $0x1f0] sm:$0xff]
      %v4792 = vld [vmem:[#allocation2 + $0x1f8] sm:$0xff]
      %v4793 = vld [vmem:[#allocation2 + $0x200] sm:$0xff]
      %v4794 = vld [vmem:[#allocation2 + $0x208] sm:$0xff]
      %v4795 = vld [vmem:[#allocation2 + $0x210] sm:$0xff]
      %v4796 = vld [vmem:[#allocation2 + $0x218] sm:$0xff]
      %v4797 = vld [vmem:[#allocation2 + $0x220] sm:$0xff]
      %v4798 = vld [vmem:[#allocation2 + $0x228] sm:$0xff]
      %v4799 = vld [vmem:[#allocation2 + $0x230] sm:$0xff]
      %v4800 = vld [vmem:[#allocation2 + $0x238] sm:$0xff]
      %v4801 = vld [vmem:[#allocation2 + $0x240] sm:$0xff]
      %v4802 = vld [vmem:[#allocation2 + $0x248] sm:$0xff]
      %v4803 = vld [vmem:[#allocation2 + $0x250] sm:$0xff]
      %v4804 = vld [vmem:[#allocation2 + $0x258] sm:$0xff]
      %v4805 = vld [vmem:[#allocation2 + $0x260] sm:$0xff]
      %v4806 = vld [vmem:[#allocation2 + $0x268] sm:$0xff]
      %v4807 = vld [vmem:[#allocation2 + $0x270] sm:$0xff]
      %v4808 = vld [vmem:[#allocation2 + $0x278] sm:$0xff]
      %v4809 = vld [vmem:[#allocation2 + $0x280] sm:$0xff]
      %v4810 = vld [vmem:[#allocation2 + $0x288] sm:$0xff]
      %v4811 = vld [vmem:[#allocation2 + $0x290] sm:$0xff]
      %v4812 = vld [vmem:[#allocation2 + $0x298] sm:$0xff]
      %v4813 = vld [vmem:[#allocation2 + $0x2a0] sm:$0xff]
      %v4814 = vld [vmem:[#allocation2 + $0x2a8] sm:$0xff]
      %v4815 = vld [vmem:[#allocation2 + $0x2b0] sm:$0xff]
      %v4816 = vld [vmem:[#allocation2 + $0x2b8] sm:$0xff]
      %v4817 = vld [vmem:[#allocation2 + $0x2c0] sm:$0xff]
      %v4818 = vld [vmem:[#allocation2 + $0x2c8] sm:$0xff]
      %v4819 = vld [vmem:[#allocation2 + $0x2d0] sm:$0xff]
      %v4820 = vld [vmem:[#allocation2 + $0x2d8] sm:$0xff]
      %v4821 = vld [vmem:[#allocation2 + $0x2e0] sm:$0xff]
      %v4822 = vld [vmem:[#allocation2 + $0x2e8] sm:$0xff]
      %v4823 = vld [vmem:[#allocation2 + $0x2f0] sm:$0xff]
      %v4824 = vld [vmem:[#allocation2 + $0x2f8] sm:$0xff]
      %v4825 = vld [vmem:[#allocation2 + $0x300] sm:$0xff]
      %v4826 = vld [vmem:[#allocation2 + $0x308] sm:$0xff]
      %v4827 = vld [vmem:[#allocation2 + $0x310] sm:$0xff]
      %v4828 = vld [vmem:[#allocation2 + $0x318] sm:$0xff]
      %v4829 = vld [vmem:[#allocation2 + $0x320] sm:$0xff]
      %v4830 = vld [vmem:[#allocation2 + $0x328] sm:$0xff]
      %v4831 = vld [vmem:[#allocation2 + $0x330] sm:$0xff]
      %v4832 = vld [vmem:[#allocation2 + $0x338] sm:$0xff]
      %v4833 = vld [vmem:[#allocation2 + $0x340] sm:$0xff]
      %v4834 = vld [vmem:[#allocation2 + $0x348] sm:$0xff]
      %v4835 = vld [vmem:[#allocation2 + $0x350] sm:$0xff]
      %v4836 = vld [vmem:[#allocation2 + $0x358] sm:$0xff]
      %s4837 = scalar_lea.vmem %s2, 144
      %v4838 = vld [vmem:[%s4837] sm:$0xff]
      %v4839 = vld [vmem:[%s4837 + $0x8] sm:$0xff]
      %4841 = vset.pattern.permute.xlu0 0
      %4842 = vperm.xlu0 %4841, %v4838
      %v4843 = vpop.permute.xlu0 %4842
      %4846 = vset.pattern.permute.xlu0 0
      %4847 = vperm.xlu0 %4846, %v4839
      %v4848 = vpop.permute.xlu0 %4847
      %v4851 = vsel %vm705, %v4724, 0
      %v4854 = vsel %vm705, %v4728, 0
      %4856 = vmatprep.subr.mxu0 %v4760
      %4857 = vmatpush1.msra.mxu0 %v4759
      %4858 = vmatprep.subr.mxu0 %v4758
      %4859 = vmatpush1.msra.mxu0 %v4757
      %4860 = vmatprep.subr.mxu0 %v4756
      %4861 = vmatpush1.msra.mxu0 %v4755
      %4862 = vmatprep.subr.mxu0 %v4754
      %4863 = vmatpush1.msra.mxu0 %v4753
      %4864 = vmatprep.subr.mxu0 %v4752
      %4865 = vmatpush1.msra.mxu0 %v4751
      %4866 = vmatprep.subr.mxu0 %v4750
      %4867 = vmatpush1.msra.mxu0 %v4749
      %4868 = vmatprep.subr.mxu0 %v4748
      %4869 = vmatpush1.msra.mxu0 %v4747
      %4870 = vmatprep.subr.mxu0 %v4746
      %4871 = vmatpush1.msra.mxu0 %v4745
      %4872 = vmatprep.subr.mxu0 %v4744
      %4873 = vmatpush1.msra.mxu0 %v4743
      %4874 = vmatprep.subr.mxu0 %v4742
      %4875 = vmatpush1.msra.mxu0 %v4741
      %4876 = vmatprep.subr.mxu0 %v4740
      %4877 = vmatpush1.msra.mxu0 %v4739
      %4878 = vmatprep.subr.mxu0 %v4738
      %4879 = vmatpush1.msra.mxu0 %v4737
      %4880 = vmatprep.subr.mxu0 %v4736
      %4881 = vmatpush1.msra.mxu0 %v4735
      %4882 = vmatprep.subr.mxu0 %v4734
      %4883 = vmatpush1.msra.mxu0 %v4733
      %4884 = vmatprep.subr.mxu0 %v4732
      %4885 = vmatpush1.msra.mxu0 %v4731
      %4886 = vmatprep.subr.mxu0 %v4730
      %4887 = vmatpush1.msra.mxu0 %v4729
      %4888 = vmatprep.subr.mxu0 %v4792
      %4889 = vmatpush2.msra.mxu0 %v4791
      %4890 = vmatprep.subr.mxu0 %v4790
      %4891 = vmatpush2.msra.mxu0 %v4789
      %4892 = vmatprep.subr.mxu0 %v4788
      %4893 = vmatpush2.msra.mxu0 %v4787
      %4894 = vmatprep.subr.mxu0 %v4786
      %4895 = vmatpush2.msra.mxu0 %v4785
      %4896 = vmatprep.subr.mxu0 %v4784
      %4897 = vmatpush2.msra.mxu0 %v4783
      %4898 = vmatprep.subr.mxu0 %v4782
      %4899 = vmatpush2.msra.mxu0 %v4781
      %4900 = vmatprep.subr.mxu0 %v4780
      %4901 = vmatpush2.msra.mxu0 %v4779
      %4902 = vmatprep.subr.mxu0 %v4778
      %4903 = vmatpush2.msra.mxu0 %v4777
      %4904 = vmatprep.subr.mxu0 %v4776
      %4905 = vmatpush2.msra.mxu0 %v4775
      %4906 = vmatprep.subr.mxu0 %v4774
      %4907 = vmatpush2.msra.mxu0 %v4773
      %4908 = vmatprep.subr.mxu0 %v4772
      %4909 = vmatpush2.msra.mxu0 %v4771
      %4910 = vmatprep.subr.mxu0 %v4770
      %4911 = vmatpush2.msra.mxu0 %v4769
      %4912 = vmatprep.subr.mxu0 %v4768
      %4913 = vmatpush2.msra.mxu0 %v4767
      %4914 = vmatprep.subr.mxu0 %v4766
      %4915 = vmatpush2.msra.mxu0 %v4765
      %4916 = vmatprep.subr.mxu0 %v4764
      %4917 = vmatpush2.msra.mxu0 %v4763
      %4918 = vmatprep.subr.mxu0 %v4762
      %4919 = vmatpush2.msra.mxu0 %v4761
      %4920 = vmatprep.mubr.f32.mxu0 %v4722
      %4921 = vmatmul.mubr.f32.gmra.mxu0 %v4721
      %v4922 = vpop.f32.mrf.mxu0
      %v4923 = vadd.f32 %v4843, %v4922
      %v4924 = vpop.f32.mrf.mxu0
      %v4925 = vadd.f32 %v4843, %v4924
      %4926 = vmatprep.mubr.f32.mxu0 %v4726
      %4927 = vmatmul.mubr.f32.gmra.mxu0 %v4725
      %v4928 = vpop.f32.mrf.mxu0
      %v4929 = vadd.f32 %v4848, %v4928
      %v4930 = vpop.f32.mrf.mxu0
      %v4931 = vadd.f32 %v4848, %v4930
      %4932 = vdwg.mxu0
      %4933 = vmatprep.subr.mxu0 %v4824
      %4934 = vmatpush1.msra.mxu0 %v4823
      %4935 = vmatprep.subr.mxu0 %v4822
      %4936 = vmatpush1.msra.mxu0 %v4821
      %4937 = vmatprep.subr.mxu0 %v4820
      %4938 = vmatpush1.msra.mxu0 %v4819
      %4939 = vmatprep.subr.mxu0 %v4818
      %4940 = vmatpush1.msra.mxu0 %v4817
      %4941 = vmatprep.subr.mxu0 %v4816
      %4942 = vmatpush1.msra.mxu0 %v4815
      %4943 = vmatprep.subr.mxu0 %v4814
      %4944 = vmatpush1.msra.mxu0 %v4813
      %4945 = vmatprep.subr.mxu0 %v4812
      %4946 = vmatpush1.msra.mxu0 %v4811
      %4947 = vmatprep.subr.mxu0 %v4810
      %4948 = vmatpush1.msra.mxu0 %v4809
      %4949 = vmatprep.subr.mxu0 %v4808
      %4950 = vmatpush1.msra.mxu0 %v4807
      %4951 = vmatprep.subr.mxu0 %v4806
      %4952 = vmatpush1.msra.mxu0 %v4805
      %4953 = vmatprep.subr.mxu0 %v4804
      %4954 = vmatpush1.msra.mxu0 %v4803
      %4955 = vmatprep.subr.mxu0 %v4802
      %4956 = vmatpush1.msra.mxu0 %v4801
      %4957 = vmatprep.subr.mxu0 %v4800
      %4958 = vmatpush1.msra.mxu0 %v4799
      %4959 = vmatprep.subr.mxu0 %v4798
      %4960 = vmatpush1.msra.mxu0 %v4797
      %4961 = vmatprep.subr.mxu0 %v4796
      %4962 = vmatpush1.msra.mxu0 %v4795
      %4963 = vmatprep.subr.mxu0 %v4794
      %4964 = vmatpush1.msra.mxu0 %v4793
      %4965 = vmatprep.subr.mxu0 0.0
      %4966 = vmatpush2.msra.mxu0 0.0
      %4967 = vmatprep.subr.mxu0 0.0
      %4968 = vmatpush2.msra.mxu0 0.0
      %4969 = vmatprep.subr.mxu0 0.0
      %4970 = vmatpush2.msra.mxu0 0.0
      %4971 = vmatprep.subr.mxu0 0.0
      %4972 = vmatpush2.msra.mxu0 0.0
      %4973 = vmatprep.subr.mxu0 0.0
      %4974 = vmatpush2.msra.mxu0 0.0
      %4975 = vmatprep.subr.mxu0 0.0
      %4976 = vmatpush2.msra.mxu0 0.0
      %4977 = vmatprep.subr.mxu0 0.0
      %4978 = vmatpush2.msra.mxu0 0.0
      %4979 = vmatprep.subr.mxu0 0.0
      %4980 = vmatpush2.msra.mxu0 0.0
      %4981 = vmatprep.subr.mxu0 0.0
      %4982 = vmatpush2.msra.mxu0 0.0
      %4983 = vmatprep.subr.mxu0 0.0
      %4984 = vmatpush2.msra.mxu0 0.0
      %4985 = vmatprep.subr.mxu0 %v4836
      %4986 = vmatpush2.msra.mxu0 %v4835
      %4987 = vmatprep.subr.mxu0 %v4834
      %4988 = vmatpush2.msra.mxu0 %v4833
      %4989 = vmatprep.subr.mxu0 %v4832
      %4990 = vmatpush2.msra.mxu0 %v4831
      %4991 = vmatprep.subr.mxu0 %v4830
      %4992 = vmatpush2.msra.mxu0 %v4829
      %4993 = vmatprep.subr.mxu0 %v4828
      %4994 = vmatpush2.msra.mxu0 %v4827
      %4995 = vmatprep.subr.mxu0 %v4826
      %4996 = vmatpush2.msra.mxu0 %v4825
      %4997 = vmatprep.mubr.f32.mxu0 %v4851
      %4998 = vmatmul.mubr.f32.gmra.mxu0 %v4723
      %v4999 = vpop.f32.mrf.mxu0
      %v5000 = vadd.f32 %v4923, %v4999
      %v5001 = vpop.f32.mrf.mxu0
      %v5002 = vadd.f32 %v4925, %v5001
      %5003 = vmatprep.mubr.f32.mxu0 %v4854
      %5004 = vmatmul.mubr.f32.gmra.mxu0 %v4727
      %v5005 = vpop.f32.mrf.mxu0
      %v5006 = vadd.f32 %v4929, %v5005
      %v5007 = vpop.f32.mrf.mxu0
      %v5008 = vadd.f32 %v4931, %v5007
      %5009 = vdwg.mxu0
      %v5010 = vmul.f32 %v5000, 0.2
      %v5011 = vmul.f32 %v5002, 0.2
      %v5012 = vmul.f32 %v5006, 0.2
      %v5013 = vmul.f32 %v5008, 0.2
      %v5014 = vadd.f32 %v5010, %v2668
      %v5015 = vadd.f32 %v5011, %v2669
      %v5016 = vadd.f32 %v5012, %v2670
      %v5017 = vadd.f32 %v5013, %v2671
      %5018 = vrot.lane.b32.xlu0 %v5014, 17
      %v5019 = vpop.permute.xlu0 %5018
      %5020 = vrot.lane.b32.xlu0 %v5016, 17
      %v5021 = vpop.permute.xlu0 %5020
      %5022 = vrot.lane.b32.xlu0 %v5015, 17
      %v5023 = vpop.permute.xlu0 %5022
      %5024 = vrot.lane.b32.xlu0 %v5017, 17
      %v5025 = vpop.permute.xlu0 %5024
      %v5026 = vsel %vm320, %v5019, %v5023
      %v5027 = vsel %vm320, %v5021, %v5025
      %v5028 = vsel %vm320, %v5023, %v5019
      %v5029 = vsel %vm320, %v5025, %v5021
      %v5030 = vld [vmem:[%s3] sm:$0x3]
      %v5032 = vlaneseq
      %v5033 = vshrl.u32 %v5032, 7
      %v5034 = vsub.s32 0, %v5033
      %v5035 = vrot.slane %v5030, %v5034
      %v5036 = vlaneseq
      %v5037 = vshrl.u32 %v5036, 7
      %v5038 = vsub.s32 1, %v5037
      %v5039 = vrot.slane %v5030, %v5038
      %v5042 = vmul.f32 %v5028, %v5035
      %v5043 = vmul.f32 %v5026, %v5039
      %v5044 = vmul.f32 %v5029, %v5035
      %v5045 = vmul.f32 %v5027, %v5039
      %5046 = vst [vmem:[#allocation2] sm:$0xff] %v5042
      %5047 = vst [vmem:[#allocation2 + $0x8] sm:$0xff] %v5043
      %5048 = vst [vmem:[#allocation2 + $0x10] sm:$0xff] %v5044
      %5049 = vst [vmem:[#allocation2 + $0x18] sm:$0xff] %v5045
      %5050 = vrot.lane.b32.xlu0 %v5014, 16
      %v5051 = vpop.permute.xlu0 %5050
      %5052 = vrot.lane.b32.xlu0 %v5016, 16
      %v5053 = vpop.permute.xlu0 %5052
      %5054 = vrot.lane.b32.xlu0 %v5015, 16
      %v5055 = vpop.permute.xlu0 %5054
      %5056 = vrot.lane.b32.xlu0 %v5017, 16
      %v5057 = vpop.permute.xlu0 %5056
      %v5058 = vsel %vm353, %v5051, %v5055
      %v5059 = vsel %vm353, %v5053, %v5057
      %v5060 = vsel %vm353, %v5055, %v5051
      %v5061 = vsel %vm353, %v5057, %v5053
      %v5062 = vld [vmem:[%s358] sm:$0x3]
      %v5064 = vlaneseq
      %v5065 = vshrl.u32 %v5064, 7
      %v5066 = vsub.s32 0, %v5065
      %v5067 = vrot.slane %v5062, %v5066
      %v5068 = vlaneseq
      %v5069 = vshrl.u32 %v5068, 7
      %v5070 = vsub.s32 1, %v5069
      %v5071 = vrot.slane %v5062, %v5070
      %v5074 = vmul.f32 %v5060, %v5067
      %v5075 = vmul.f32 %v5058, %v5071
      %v5076 = vmul.f32 %v5061, %v5067
      %v5077 = vmul.f32 %v5059, %v5071
      %5078 = vst [vmem:[#allocation2 + $0x60] sm:$0xff] %v5074
      %5079 = vst [vmem:[#allocation2 + $0x68] sm:$0xff] %v5075
      %5080 = vst [vmem:[#allocation2 + $0x70] sm:$0xff] %v5076
      %5081 = vst [vmem:[#allocation2 + $0x78] sm:$0xff] %v5077
      %5082 = vrot.lane.b32.xlu0 %v5014, 15
      %v5083 = vpop.permute.xlu0 %5082
      %5084 = vrot.lane.b32.xlu0 %v5016, 15
      %v5085 = vpop.permute.xlu0 %5084
      %5086 = vrot.lane.b32.xlu0 %v5015, 15
      %v5087 = vpop.permute.xlu0 %5086
      %5088 = vrot.lane.b32.xlu0 %v5017, 15
      %v5089 = vpop.permute.xlu0 %5088
      %v5090 = vsel %vm387, %v5083, %v5087
      %v5091 = vsel %vm387, %v5085, %v5089
      %v5092 = vsel %vm387, %v5087, %v5083
      %v5093 = vsel %vm387, %v5089, %v5085
      %v5094 = vld [vmem:[%s392] sm:$0x3]
      %v5096 = vlaneseq
      %v5097 = vshrl.u32 %v5096, 7
      %v5098 = vsub.s32 0, %v5097
      %v5099 = vrot.slane %v5094, %v5098
      %v5100 = vlaneseq
      %v5101 = vshrl.u32 %v5100, 7
      %v5102 = vsub.s32 1, %v5101
      %v5103 = vrot.slane %v5094, %v5102
      %v5106 = vmul.f32 %v5092, %v5099
      %v5107 = vmul.f32 %v5090, %v5103
      %v5108 = vmul.f32 %v5093, %v5099
      %v5109 = vmul.f32 %v5091, %v5103
      %5110 = vst [vmem:[#allocation2 + $0xc0] sm:$0xff] %v5106
      %5111 = vst [vmem:[#allocation2 + $0xc8] sm:$0xff] %v5107
      %5112 = vst [vmem:[#allocation2 + $0xd0] sm:$0xff] %v5108
      %5113 = vst [vmem:[#allocation2 + $0xd8] sm:$0xff] %v5109
      %5114 = vrot.lane.b32.xlu0 %v5014, 1
      %v5115 = vpop.permute.xlu0 %5114
      %5116 = vrot.lane.b32.xlu0 %v5016, 1
      %v5117 = vpop.permute.xlu0 %5116
      %5118 = vrot.lane.b32.xlu0 %v5015, 1
      %v5119 = vpop.permute.xlu0 %5118
      %5120 = vrot.lane.b32.xlu0 %v5017, 1
      %v5121 = vpop.permute.xlu0 %5120
      %v5122 = vsel %vm421, %v5115, %v5119
      %v5123 = vsel %vm421, %v5117, %v5121
      %v5124 = vsel %vm421, %v5119, %v5115
      %v5125 = vsel %vm421, %v5121, %v5117
      %v5126 = vld [vmem:[%s426] sm:$0x3]
      %v5128 = vlaneseq
      %v5129 = vshrl.u32 %v5128, 7
      %v5130 = vsub.s32 0, %v5129
      %v5131 = vrot.slane %v5126, %v5130
      %v5132 = vlaneseq
      %v5133 = vshrl.u32 %v5132, 7
      %v5134 = vsub.s32 1, %v5133
      %v5135 = vrot.slane %v5126, %v5134
      %v5138 = vmul.f32 %v5124, %v5131
      %v5139 = vmul.f32 %v5122, %v5135
      %v5140 = vmul.f32 %v5125, %v5131
      %v5141 = vmul.f32 %v5123, %v5135
      %5142 = vst [vmem:[#allocation2 + $0x120] sm:$0xff] %v5138
      %5143 = vst [vmem:[#allocation2 + $0x128] sm:$0xff] %v5139
      %5144 = vst [vmem:[#allocation2 + $0x130] sm:$0xff] %v5140
      %5145 = vst [vmem:[#allocation2 + $0x138] sm:$0xff] %v5141
      %5146 = vst [vmem:[#allocation2 + $0x180] sm:$0xff] %v5014
      %5147 = vst [vmem:[#allocation2 + $0x188] sm:$0xff] %v5015
      %5148 = vst [vmem:[#allocation2 + $0x190] sm:$0xff] %v5016
      %5149 = vst [vmem:[#allocation2 + $0x198] sm:$0xff] %v5017
      %5150 = vrot.lane.b32.xlu0 %v5014, 127
      %v5151 = vpop.permute.xlu0 %5150
      %5152 = vrot.lane.b32.xlu0 %v5016, 127
      %v5153 = vpop.permute.xlu0 %5152
      %5154 = vrot.lane.b32.xlu0 %v5015, 127
      %v5155 = vpop.permute.xlu0 %5154
      %5156 = vrot.lane.b32.xlu0 %v5017, 127
      %v5157 = vpop.permute.xlu0 %5156
      %v5158 = vsel %vm459, %v5151, %v5155
      %v5159 = vsel %vm459, %v5153, %v5157
      %v5160 = vsel %vm459, %v5155, %v5151
      %v5161 = vsel %vm459, %v5157, %v5153
      %v5162 = vld [vmem:[%s464] sm:$0x3]
      %v5164 = vlaneseq
      %v5165 = vshrl.u32 %v5164, 7
      %v5166 = vsub.s32 0, %v5165
      %v5167 = vrot.slane %v5162, %v5166
      %v5168 = vlaneseq
      %v5169 = vshrl.u32 %v5168, 7
      %v5170 = vsub.s32 1, %v5169
      %v5171 = vrot.slane %v5162, %v5170
      %v5174 = vmul.f32 %v5158, %v5167
      %v5175 = vmul.f32 %v5160, %v5171
      %v5176 = vmul.f32 %v5159, %v5167
      %v5177 = vmul.f32 %v5161, %v5171
      %5178 = vst [vmem:[#allocation2 + $0x1e0] sm:$0xff] %v5174
      %5179 = vst [vmem:[#allocation2 + $0x1e8] sm:$0xff] %v5175
      %5180 = vst [vmem:[#allocation2 + $0x1f0] sm:$0xff] %v5176
      %5181 = vst [vmem:[#allocation2 + $0x1f8] sm:$0xff] %v5177
      %5182 = vrot.lane.b32.xlu0 %v5014, 113
      %v5183 = vpop.permute.xlu0 %5182
      %5184 = vrot.lane.b32.xlu0 %v5016, 113
      %v5185 = vpop.permute.xlu0 %5184
      %5186 = vrot.lane.b32.xlu0 %v5015, 113
      %v5187 = vpop.permute.xlu0 %5186
      %5188 = vrot.lane.b32.xlu0 %v5017, 113
      %v5189 = vpop.permute.xlu0 %5188
      %v5190 = vsel %vm493, %v5183, %v5187
      %v5191 = vsel %vm493, %v5185, %v5189
      %v5192 = vsel %vm493, %v5187, %v5183
      %v5193 = vsel %vm493, %v5189, %v5185
      %v5194 = vld [vmem:[%s498] sm:$0x3]
      %v5196 = vlaneseq
      %v5197 = vshrl.u32 %v5196, 7
      %v5198 = vsub.s32 0, %v5197
      %v5199 = vrot.slane %v5194, %v5198
      %v5200 = vlaneseq
      %v5201 = vshrl.u32 %v5200, 7
      %v5202 = vsub.s32 1, %v5201
      %v5203 = vrot.slane %v5194, %v5202
      %v5206 = vmul.f32 %v5190, %v5199
      %v5207 = vmul.f32 %v5192, %v5203
      %v5208 = vmul.f32 %v5191, %v5199
      %v5209 = vmul.f32 %v5193, %v5203
      %5210 = vst [vmem:[#allocation2 + $0x240] sm:$0xff] %v5206
      %5211 = vst [vmem:[#allocation2 + $0x248] sm:$0xff] %v5207
      %5212 = vst [vmem:[#allocation2 + $0x250] sm:$0xff] %v5208
      %5213 = vst [vmem:[#allocation2 + $0x258] sm:$0xff] %v5209
      %5214 = vrot.lane.b32.xlu0 %v5014, 112
      %v5215 = vpop.permute.xlu0 %5214
      %5216 = vrot.lane.b32.xlu0 %v5016, 112
      %v5217 = vpop.permute.xlu0 %5216
      %5218 = vrot.lane.b32.xlu0 %v5015, 112
      %v5219 = vpop.permute.xlu0 %5218
      %5220 = vrot.lane.b32.xlu0 %v5017, 112
      %v5221 = vpop.permute.xlu0 %5220
      %v5222 = vsel %vm527, %v5215, %v5219
      %v5223 = vsel %vm527, %v5217, %v5221
      %v5224 = vsel %vm527, %v5219, %v5215
      %v5225 = vsel %vm527, %v5221, %v5217
      %v5226 = vld [vmem:[%s532] sm:$0x3]
      %v5228 = vlaneseq
      %v5229 = vshrl.u32 %v5228, 7
      %v5230 = vsub.s32 0, %v5229
      %v5231 = vrot.slane %v5226, %v5230
      %v5232 = vlaneseq
      %v5233 = vshrl.u32 %v5232, 7
      %v5234 = vsub.s32 1, %v5233
      %v5235 = vrot.slane %v5226, %v5234
      %v5238 = vmul.f32 %v5222, %v5231
      %v5239 = vmul.f32 %v5224, %v5235
      %v5240 = vmul.f32 %v5223, %v5231
      %v5241 = vmul.f32 %v5225, %v5235
      %5242 = vst [vmem:[#allocation2 + $0x2a0] sm:$0xff] %v5238
      %5243 = vst [vmem:[#allocation2 + $0x2a8] sm:$0xff] %v5239
      %5244 = vst [vmem:[#allocation2 + $0x2b0] sm:$0xff] %v5240
      %5245 = vst [vmem:[#allocation2 + $0x2b8] sm:$0xff] %v5241
      %5246 = vrot.lane.b32.xlu0 %v5014, 111
      %v5247 = vpop.permute.xlu0 %5246
      %5248 = vrot.lane.b32.xlu0 %v5016, 111
      %v5249 = vpop.permute.xlu0 %5248
      %5250 = vrot.lane.b32.xlu0 %v5015, 111
      %v5251 = vpop.permute.xlu0 %5250
      %5252 = vrot.lane.b32.xlu0 %v5017, 111
      %v5253 = vpop.permute.xlu0 %5252
      %v5254 = vsel %vm561, %v5247, %v5251
      %v5255 = vsel %vm561, %v5249, %v5253
      %v5256 = vsel %vm561, %v5251, %v5247
      %v5257 = vsel %vm561, %v5253, %v5249
      %v5258 = vld [vmem:[%s566] sm:$0x3]
      %v5260 = vlaneseq
      %v5261 = vshrl.u32 %v5260, 7
      %v5262 = vsub.s32 0, %v5261
      %v5263 = vrot.slane %v5258, %v5262
      %v5264 = vlaneseq
      %v5265 = vshrl.u32 %v5264, 7
      %v5266 = vsub.s32 1, %v5265
      %v5267 = vrot.slane %v5258, %v5266
      %v5270 = vmul.f32 %v5254, %v5263
      %v5271 = vmul.f32 %v5256, %v5267
      %v5272 = vmul.f32 %v5255, %v5263
      %v5273 = vmul.f32 %v5257, %v5267
      %5274 = vst [vmem:[#allocation2 + $0x300] sm:$0xff] %v5270
      %5275 = vst [vmem:[#allocation2 + $0x308] sm:$0xff] %v5271
      %5276 = vst [vmem:[#allocation2 + $0x310] sm:$0xff] %v5272
      %5277 = vst [vmem:[#allocation2 + $0x318] sm:$0xff] %v5273
      %s5278 = scalar_lea.vmem %s1, 640
      %v5279 = vld [vmem:[%s5278] sm:$0xff]
      %v5280 = vld [vmem:[%s5278 + $0x8] sm:$0xff]
      %v5281 = vld [vmem:[%s5278 + $0x10] sm:$0xff]
      %v5282 = vld [vmem:[%s5278 + $0x18] sm:$0xff]
      %v5283 = vld [vmem:[#allocation2] sm:$0xff]
      %v5284 = vld [vmem:[#allocation2 + $0x8] sm:$0xff]
      %v5285 = vld [vmem:[#allocation2 + $0x10] sm:$0xff]
      %v5286 = vld [vmem:[#allocation2 + $0x18] sm:$0xff]
      %v5287 = vld [vmem:[#allocation2 + $0x20] sm:$0xff]
      %v5288 = vld [vmem:[#allocation2 + $0x28] sm:$0xff]
      %v5289 = vld [vmem:[#allocation2 + $0x30] sm:$0xff]
      %v5290 = vld [vmem:[#allocation2 + $0x38] sm:$0xff]
      %v5291 = vld [vmem:[#allocation2 + $0x40] sm:$0xff]
      %v5292 = vld [vmem:[#allocation2 + $0x48] sm:$0xff]
      %v5293 = vld [vmem:[#allocation2 + $0x50] sm:$0xff]
      %v5294 = vld [vmem:[#allocation2 + $0x58] sm:$0xff]
      %v5295 = vld [vmem:[#allocation2 + $0x60] sm:$0xff]
      %v5296 = vld [vmem:[#allocation2 + $0x68] sm:$0xff]
      %v5297 = vld [vmem:[#allocation2 + $0x70] sm:$0xff]
      %v5298 = vld [vmem:[#allocation2 + $0x78] sm:$0xff]
      %v5299 = vld [vmem:[#allocation2 + $0x80] sm:$0xff]
      %v5300 = vld [vmem:[#allocation2 + $0x88] sm:$0xff]
      %v5301 = vld [vmem:[#allocation2 + $0x90] sm:$0xff]
      %v5302 = vld [vmem:[#allocation2 + $0x98] sm:$0xff]
      %v5303 = vld [vmem:[#allocation2 + $0xa0] sm:$0xff]
      %v5304 = vld [vmem:[#allocation2 + $0xa8] sm:$0xff]
      %v5305 = vld [vmem:[#allocation2 + $0xb0] sm:$0xff]
      %v5306 = vld [vmem:[#allocation2 + $0xb8] sm:$0xff]
      %v5307 = vld [vmem:[#allocation2 + $0xc0] sm:$0xff]
      %v5308 = vld [vmem:[#allocation2 + $0xc8] sm:$0xff]
      %v5309 = vld [vmem:[#allocation2 + $0xd0] sm:$0xff]
      %v5310 = vld [vmem:[#allocation2 + $0xd8] sm:$0xff]
      %v5311 = vld [vmem:[#allocation2 + $0xe0] sm:$0xff]
      %v5312 = vld [vmem:[#allocation2 + $0xe8] sm:$0xff]
      %v5313 = vld [vmem:[#allocation2 + $0xf0] sm:$0xff]
      %v5314 = vld [vmem:[#allocation2 + $0xf8] sm:$0xff]
      %v5315 = vld [vmem:[#allocation2 + $0x100] sm:$0xff]
      %v5316 = vld [vmem:[#allocation2 + $0x108] sm:$0xff]
      %v5317 = vld [vmem:[#allocation2 + $0x110] sm:$0xff]
      %v5318 = vld [vmem:[#allocation2 + $0x118] sm:$0xff]
      %v5319 = vld [vmem:[#allocation2 + $0x120] sm:$0xff]
      %v5320 = vld [vmem:[#allocation2 + $0x128] sm:$0xff]
      %v5321 = vld [vmem:[#allocation2 + $0x130] sm:$0xff]
      %v5322 = vld [vmem:[#allocation2 + $0x138] sm:$0xff]
      %v5323 = vld [vmem:[#allocation2 + $0x140] sm:$0xff]
      %v5324 = vld [vmem:[#allocation2 + $0x148] sm:$0xff]
      %v5325 = vld [vmem:[#allocation2 + $0x150] sm:$0xff]
      %v5326 = vld [vmem:[#allocation2 + $0x158] sm:$0xff]
      %v5327 = vld [vmem:[#allocation2 + $0x160] sm:$0xff]
      %v5328 = vld [vmem:[#allocation2 + $0x168] sm:$0xff]
      %v5329 = vld [vmem:[#allocation2 + $0x170] sm:$0xff]
      %v5330 = vld [vmem:[#allocation2 + $0x178] sm:$0xff]
      %v5331 = vld [vmem:[#allocation2 + $0x180] sm:$0xff]
      %v5332 = vld [vmem:[#allocation2 + $0x188] sm:$0xff]
      %v5333 = vld [vmem:[#allocation2 + $0x190] sm:$0xff]
      %v5334 = vld [vmem:[#allocation2 + $0x198] sm:$0xff]
      %v5335 = vld [vmem:[#allocation2 + $0x1a0] sm:$0xff]
      %v5336 = vld [vmem:[#allocation2 + $0x1a8] sm:$0xff]
      %v5337 = vld [vmem:[#allocation2 + $0x1b0] sm:$0xff]
      %v5338 = vld [vmem:[#allocation2 + $0x1b8] sm:$0xff]
      %v5339 = vld [vmem:[#allocation2 + $0x1c0] sm:$0xff]
      %v5340 = vld [vmem:[#allocation2 + $0x1c8] sm:$0xff]
      %v5341 = vld [vmem:[#allocation2 + $0x1d0] sm:$0xff]
      %v5342 = vld [vmem:[#allocation2 + $0x1d8] sm:$0xff]
      %v5343 = vld [vmem:[#allocation2 + $0x1e0] sm:$0xff]
      %v5344 = vld [vmem:[#allocation2 + $0x1e8] sm:$0xff]
      %v5345 = vld [vmem:[#allocation2 + $0x1f0] sm:$0xff]
      %v5346 = vld [vmem:[#allocation2 + $0x1f8] sm:$0xff]
      %v5347 = vld [vmem:[#allocation2 + $0x200] sm:$0xff]
      %v5348 = vld [vmem:[#allocation2 + $0x208] sm:$0xff]
      %v5349 = vld [vmem:[#allocation2 + $0x210] sm:$0xff]
      %v5350 = vld [vmem:[#allocation2 + $0x218] sm:$0xff]
      %v5351 = vld [vmem:[#allocation2 + $0x220] sm:$0xff]
      %v5352 = vld [vmem:[#allocation2 + $0x228] sm:$0xff]
      %v5353 = vld [vmem:[#allocation2 + $0x230] sm:$0xff]
      %v5354 = vld [vmem:[#allocation2 + $0x238] sm:$0xff]
      %v5355 = vld [vmem:[#allocation2 + $0x240] sm:$0xff]
      %v5356 = vld [vmem:[#allocation2 + $0x248] sm:$0xff]
      %v5357 = vld [vmem:[#allocation2 + $0x250] sm:$0xff]
      %v5358 = vld [vmem:[#allocation2 + $0x258] sm:$0xff]
      %v5359 = vld [vmem:[#allocation2 + $0x260] sm:$0xff]
      %v5360 = vld [vmem:[#allocation2 + $0x268] sm:$0xff]
      %v5361 = vld [vmem:[#allocation2 + $0x270] sm:$0xff]
      %v5362 = vld [vmem:[#allocation2 + $0x278] sm:$0xff]
      %v5363 = vld [vmem:[#allocation2 + $0x280] sm:$0xff]
      %v5364 = vld [vmem:[#allocation2 + $0x288] sm:$0xff]
      %v5365 = vld [vmem:[#allocation2 + $0x290] sm:$0xff]
      %v5366 = vld [vmem:[#allocation2 + $0x298] sm:$0xff]
      %v5367 = vld [vmem:[#allocation2 + $0x2a0] sm:$0xff]
      %v5368 = vld [vmem:[#allocation2 + $0x2a8] sm:$0xff]
      %v5369 = vld [vmem:[#allocation2 + $0x2b0] sm:$0xff]
      %v5370 = vld [vmem:[#allocation2 + $0x2b8] sm:$0xff]
      %v5371 = vld [vmem:[#allocation2 + $0x2c0] sm:$0xff]
      %v5372 = vld [vmem:[#allocation2 + $0x2c8] sm:$0xff]
      %v5373 = vld [vmem:[#allocation2 + $0x2d0] sm:$0xff]
      %v5374 = vld [vmem:[#allocation2 + $0x2d8] sm:$0xff]
      %v5375 = vld [vmem:[#allocation2 + $0x2e0] sm:$0xff]
      %v5376 = vld [vmem:[#allocation2 + $0x2e8] sm:$0xff]
      %v5377 = vld [vmem:[#allocation2 + $0x2f0] sm:$0xff]
      %v5378 = vld [vmem:[#allocation2 + $0x2f8] sm:$0xff]
      %v5379 = vld [vmem:[#allocation2 + $0x300] sm:$0xff]
      %v5380 = vld [vmem:[#allocation2 + $0x308] sm:$0xff]
      %v5381 = vld [vmem:[#allocation2 + $0x310] sm:$0xff]
      %v5382 = vld [vmem:[#allocation2 + $0x318] sm:$0xff]
      %v5383 = vld [vmem:[#allocation2 + $0x320] sm:$0xff]
      %v5384 = vld [vmem:[#allocation2 + $0x328] sm:$0xff]
      %v5385 = vld [vmem:[#allocation2 + $0x330] sm:$0xff]
      %v5386 = vld [vmem:[#allocation2 + $0x338] sm:$0xff]
      %v5387 = vld [vmem:[#allocation2 + $0x340] sm:$0xff]
      %v5388 = vld [vmem:[#allocation2 + $0x348] sm:$0xff]
      %v5389 = vld [vmem:[#allocation2 + $0x350] sm:$0xff]
      %v5390 = vld [vmem:[#allocation2 + $0x358] sm:$0xff]
      %s5391 = scalar_lea.vmem %s2, 160
      %v5392 = vld [vmem:[%s5391] sm:$0xff]
      %5394 = vset.pattern.permute.xlu0 0
      %5395 = vperm.xlu0 %5394, %v5392
      %v5396 = vpop.permute.xlu0 %5395
      %v5399 = vsel %vm705, %v5282, 0
      %5401 = vmatprep.subr.mxu0 %v5314
      %5402 = vmatpush1.msra.mxu0 %v5313
      %5403 = vmatprep.subr.mxu0 %v5312
      %5404 = vmatpush1.msra.mxu0 %v5311
      %5405 = vmatprep.subr.mxu0 %v5310
      %5406 = vmatpush1.msra.mxu0 %v5309
      %5407 = vmatprep.subr.mxu0 %v5308
      %5408 = vmatpush1.msra.mxu0 %v5307
      %5409 = vmatprep.subr.mxu0 %v5306
      %5410 = vmatpush1.msra.mxu0 %v5305
      %5411 = vmatprep.subr.mxu0 %v5304
      %5412 = vmatpush1.msra.mxu0 %v5303
      %5413 = vmatprep.subr.mxu0 %v5302
      %5414 = vmatpush1.msra.mxu0 %v5301
      %5415 = vmatprep.subr.mxu0 %v5300
      %5416 = vmatpush1.msra.mxu0 %v5299
      %5417 = vmatprep.subr.mxu0 %v5298
      %5418 = vmatpush1.msra.mxu0 %v5297
      %5419 = vmatprep.subr.mxu0 %v5296
      %5420 = vmatpush1.msra.mxu0 %v5295
      %5421 = vmatprep.subr.mxu0 %v5294
      %5422 = vmatpush1.msra.mxu0 %v5293
      %5423 = vmatprep.subr.mxu0 %v5292
      %5424 = vmatpush1.msra.mxu0 %v5291
      %5425 = vmatprep.subr.mxu0 %v5290
      %5426 = vmatpush1.msra.mxu0 %v5289
      %5427 = vmatprep.subr.mxu0 %v5288
      %5428 = vmatpush1.msra.mxu0 %v5287
      %5429 = vmatprep.subr.mxu0 %v5286
      %5430 = vmatpush1.msra.mxu0 %v5285
      %5431 = vmatprep.subr.mxu0 %v5284
      %5432 = vmatpush1.msra.mxu0 %v5283
      %5433 = vmatprep.subr.mxu0 %v5346
      %5434 = vmatpush2.msra.mxu0 %v5345
      %5435 = vmatprep.subr.mxu0 %v5344
      %5436 = vmatpush2.msra.mxu0 %v5343
      %5437 = vmatprep.subr.mxu0 %v5342
      %5438 = vmatpush2.msra.mxu0 %v5341
      %5439 = vmatprep.subr.mxu0 %v5340
      %5440 = vmatpush2.msra.mxu0 %v5339
      %5441 = vmatprep.subr.mxu0 %v5338
      %5442 = vmatpush2.msra.mxu0 %v5337
      %5443 = vmatprep.subr.mxu0 %v5336
      %5444 = vmatpush2.msra.mxu0 %v5335
      %5445 = vmatprep.subr.mxu0 %v5334
      %5446 = vmatpush2.msra.mxu0 %v5333
      %5447 = vmatprep.subr.mxu0 %v5332
      %5448 = vmatpush2.msra.mxu0 %v5331
      %5449 = vmatprep.subr.mxu0 %v5330
      %5450 = vmatpush2.msra.mxu0 %v5329
      %5451 = vmatprep.subr.mxu0 %v5328
      %5452 = vmatpush2.msra.mxu0 %v5327
      %5453 = vmatprep.subr.mxu0 %v5326
      %5454 = vmatpush2.msra.mxu0 %v5325
      %5455 = vmatprep.subr.mxu0 %v5324
      %5456 = vmatpush2.msra.mxu0 %v5323
      %5457 = vmatprep.subr.mxu0 %v5322
      %5458 = vmatpush2.msra.mxu0 %v5321
      %5459 = vmatprep.subr.mxu0 %v5320
      %5460 = vmatpush2.msra.mxu0 %v5319
      %5461 = vmatprep.subr.mxu0 %v5318
      %5462 = vmatpush2.msra.mxu0 %v5317
      %5463 = vmatprep.subr.mxu0 %v5316
      %5464 = vmatpush2.msra.mxu0 %v5315
      %5465 = vmatprep.mubr.f32.mxu0 %v5280
      %5466 = vmatmul.mubr.f32.gmra.mxu0 %v5279
      %v5467 = vpop.f32.mrf.mxu0
      %v5468 = vadd.f32 %v5396, %v5467
      %v5469 = vpop.f32.mrf.mxu0
      %v5470 = vadd.f32 %v5396, %v5469
      %5471 = vdwg.mxu0
      %5472 = vmatprep.subr.mxu0 %v5378
      %5473 = vmatpush1.msra.mxu0 %v5377
      %5474 = vmatprep.subr.mxu0 %v5376
      %5475 = vmatpush1.msra.mxu0 %v5375
      %5476 = vmatprep.subr.mxu0 %v5374
      %5477 = vmatpush1.msra.mxu0 %v5373
      %5478 = vmatprep.subr.mxu0 %v5372
      %5479 = vmatpush1.msra.mxu0 %v5371
      %5480 = vmatprep.subr.mxu0 %v5370
      %5481 = vmatpush1.msra.mxu0 %v5369
      %5482 = vmatprep.subr.mxu0 %v5368
      %5483 = vmatpush1.msra.mxu0 %v5367
      %5484 = vmatprep.subr.mxu0 %v5366
      %5485 = vmatpush1.msra.mxu0 %v5365
      %5486 = vmatprep.subr.mxu0 %v5364
      %5487 = vmatpush1.msra.mxu0 %v5363
      %5488 = vmatprep.subr.mxu0 %v5362
      %5489 = vmatpush1.msra.mxu0 %v5361
      %5490 = vmatprep.subr.mxu0 %v5360
      %5491 = vmatpush1.msra.mxu0 %v5359
      %5492 = vmatprep.subr.mxu0 %v5358
      %5493 = vmatpush1.msra.mxu0 %v5357
      %5494 = vmatprep.subr.mxu0 %v5356
      %5495 = vmatpush1.msra.mxu0 %v5355
      %5496 = vmatprep.subr.mxu0 %v5354
      %5497 = vmatpush1.msra.mxu0 %v5353
      %5498 = vmatprep.subr.mxu0 %v5352
      %5499 = vmatpush1.msra.mxu0 %v5351
      %5500 = vmatprep.subr.mxu0 %v5350
      %5501 = vmatpush1.msra.mxu0 %v5349
      %5502 = vmatprep.subr.mxu0 %v5348
      %5503 = vmatpush1.msra.mxu0 %v5347
      %5504 = vmatprep.subr.mxu0 0.0
      %5505 = vmatpush2.msra.mxu0 0.0
      %5506 = vmatprep.subr.mxu0 0.0
      %5507 = vmatpush2.msra.mxu0 0.0
      %5508 = vmatprep.subr.mxu0 0.0
      %5509 = vmatpush2.msra.mxu0 0.0
      %5510 = vmatprep.subr.mxu0 0.0
      %5511 = vmatpush2.msra.mxu0 0.0
      %5512 = vmatprep.subr.mxu0 0.0
      %5513 = vmatpush2.msra.mxu0 0.0
      %5514 = vmatprep.subr.mxu0 0.0
      %5515 = vmatpush2.msra.mxu0 0.0
      %5516 = vmatprep.subr.mxu0 0.0
      %5517 = vmatpush2.msra.mxu0 0.0
      %5518 = vmatprep.subr.mxu0 0.0
      %5519 = vmatpush2.msra.mxu0 0.0
      %5520 = vmatprep.subr.mxu0 0.0
      %5521 = vmatpush2.msra.mxu0 0.0
      %5522 = vmatprep.subr.mxu0 0.0
      %5523 = vmatpush2.msra.mxu0 0.0
      %5524 = vmatprep.subr.mxu0 %v5390
      %5525 = vmatpush2.msra.mxu0 %v5389
      %5526 = vmatprep.subr.mxu0 %v5388
      %5527 = vmatpush2.msra.mxu0 %v5387
      %5528 = vmatprep.subr.mxu0 %v5386
      %5529 = vmatpush2.msra.mxu0 %v5385
      %5530 = vmatprep.subr.mxu0 %v5384
      %5531 = vmatpush2.msra.mxu0 %v5383
      %5532 = vmatprep.subr.mxu0 %v5382
      %5533 = vmatpush2.msra.mxu0 %v5381
      %5534 = vmatprep.subr.mxu0 %v5380
      %5535 = vmatpush2.msra.mxu0 %v5379
      %5536 = vmatprep.mubr.f32.mxu0 %v5399
      %5537 = vmatmul.mubr.f32.gmra.mxu0 %v5281
      %v5538 = vpop.f32.mrf.mxu0
      %v5539 = vadd.f32 %v5468, %v5538
      %v5540 = vpop.f32.mrf.mxu0
      %v5541 = vadd.f32 %v5470, %v5540
      %5542 = vdwg.mxu0
      %v5543 = vmul.f32 %v5539, 0.2
      %v5544 = vmul.f32 %v5541, 0.2
      %v5545 = vmax.f32 %v5539, %v5543
      %v5546 = vmax.f32 %v5541, %v5544
      %5547 = vrot.lane.b32.xlu0 %v5545, 17
      %v5548 = vpop.permute.xlu0 %5547
      %5549 = vrot.lane.b32.xlu0 %v5546, 17
      %v5550 = vpop.permute.xlu0 %5549
      %v5551 = vsel %vm320, %v5548, %v5550
      %v5552 = vsel %vm320, %v5550, %v5548
      %v5553 = vld [vmem:[%s3] sm:$0x3]
      %v5555 = vlaneseq
      %v5556 = vshrl.u32 %v5555, 7
      %v5557 = vsub.s32 0, %v5556
      %v5558 = vrot.slane %v5553, %v5557
      %v5559 = vlaneseq
      %v5560 = vshrl.u32 %v5559, 7
      %v5561 = vsub.s32 1, %v5560
      %v5562 = vrot.slane %v5553, %v5561
      %v5565 = vmul.f32 %v5552, %v5558
      %v5566 = vmul.f32 %v5551, %v5562
      %5567 = vst [vmem:[#allocation2 + $0x20] sm:$0xff] %v5565
      %5568 = vst [vmem:[#allocation2 + $0x28] sm:$0xff] %v5566
      %5569 = vrot.lane.b32.xlu0 %v5545, 16
      %v5570 = vpop.permute.xlu0 %5569
      %5571 = vrot.lane.b32.xlu0 %v5546, 16
      %v5572 = vpop.permute.xlu0 %5571
      %v5573 = vsel %vm353, %v5570, %v5572
      %v5574 = vsel %vm353, %v5572, %v5570
      %v5575 = vld [vmem:[%s358] sm:$0x3]
      %v5577 = vlaneseq
      %v5578 = vshrl.u32 %v5577, 7
      %v5579 = vsub.s32 0, %v5578
      %v5580 = vrot.slane %v5575, %v5579
      %v5581 = vlaneseq
      %v5582 = vshrl.u32 %v5581, 7
      %v5583 = vsub.s32 1, %v5582
      %v5584 = vrot.slane %v5575, %v5583
      %v5587 = vmul.f32 %v5574, %v5580
      %v5588 = vmul.f32 %v5573, %v5584
      %5589 = vst [vmem:[#allocation2 + $0x80] sm:$0xff] %v5587
      %5590 = vst [vmem:[#allocation2 + $0x88] sm:$0xff] %v5588
      %5591 = vrot.lane.b32.xlu0 %v5545, 15
      %v5592 = vpop.permute.xlu0 %5591
      %5593 = vrot.lane.b32.xlu0 %v5546, 15
      %v5594 = vpop.permute.xlu0 %5593
      %v5595 = vsel %vm387, %v5592, %v5594
      %v5596 = vsel %vm387, %v5594, %v5592
      %v5597 = vld [vmem:[%s392] sm:$0x3]
      %v5599 = vlaneseq
      %v5600 = vshrl.u32 %v5599, 7
      %v5601 = vsub.s32 0, %v5600
      %v5602 = vrot.slane %v5597, %v5601
      %v5603 = vlaneseq
      %v5604 = vshrl.u32 %v5603, 7
      %v5605 = vsub.s32 1, %v5604
      %v5606 = vrot.slane %v5597, %v5605
      %v5609 = vmul.f32 %v5596, %v5602
      %v5610 = vmul.f32 %v5595, %v5606
      %5611 = vst [vmem:[#allocation2 + $0xe0] sm:$0xff] %v5609
      %5612 = vst [vmem:[#allocation2 + $0xe8] sm:$0xff] %v5610
      %5613 = vrot.lane.b32.xlu0 %v5545, 1
      %v5614 = vpop.permute.xlu0 %5613
      %5615 = vrot.lane.b32.xlu0 %v5546, 1
      %v5616 = vpop.permute.xlu0 %5615
      %v5617 = vsel %vm421, %v5614, %v5616
      %v5618 = vsel %vm421, %v5616, %v5614
      %v5619 = vld [vmem:[%s426] sm:$0x3]
      %v5621 = vlaneseq
      %v5622 = vshrl.u32 %v5621, 7
      %v5623 = vsub.s32 0, %v5622
      %v5624 = vrot.slane %v5619, %v5623
      %v5625 = vlaneseq
      %v5626 = vshrl.u32 %v5625, 7
      %v5627 = vsub.s32 1, %v5626
      %v5628 = vrot.slane %v5619, %v5627
      %v5631 = vmul.f32 %v5618, %v5624
      %v5632 = vmul.f32 %v5617, %v5628
      %5633 = vst [vmem:[#allocation2 + $0x140] sm:$0xff] %v5631
      %5634 = vst [vmem:[#allocation2 + $0x148] sm:$0xff] %v5632
      %5635 = vst [vmem:[#allocation2 + $0x1a0] sm:$0xff] %v5545
      %5636 = vst [vmem:[#allocation2 + $0x1a8] sm:$0xff] %v5546
      %5637 = vrot.lane.b32.xlu0 %v5545, 127
      %v5638 = vpop.permute.xlu0 %5637
      %5639 = vrot.lane.b32.xlu0 %v5546, 127
      %v5640 = vpop.permute.xlu0 %5639
      %v5641 = vsel %vm459, %v5638, %v5640
      %v5642 = vsel %vm459, %v5640, %v5638
      %v5643 = vld [vmem:[%s464] sm:$0x3]
      %v5645 = vlaneseq
      %v5646 = vshrl.u32 %v5645, 7
      %v5647 = vsub.s32 0, %v5646
      %v5648 = vrot.slane %v5643, %v5647
      %v5649 = vlaneseq
      %v5650 = vshrl.u32 %v5649, 7
      %v5651 = vsub.s32 1, %v5650
      %v5652 = vrot.slane %v5643, %v5651
      %v5655 = vmul.f32 %v5641, %v5648
      %v5656 = vmul.f32 %v5642, %v5652
      %5657 = vst [vmem:[#allocation2 + $0x200] sm:$0xff] %v5655
      %5658 = vst [vmem:[#allocation2 + $0x208] sm:$0xff] %v5656
      %5659 = vrot.lane.b32.xlu0 %v5545, 113
      %v5660 = vpop.permute.xlu0 %5659
      %5661 = vrot.lane.b32.xlu0 %v5546, 113
      %v5662 = vpop.permute.xlu0 %5661
      %v5663 = vsel %vm493, %v5660, %v5662
      %v5664 = vsel %vm493, %v5662, %v5660
      %v5665 = vld [vmem:[%s498] sm:$0x3]
      %v5667 = vlaneseq
      %v5668 = vshrl.u32 %v5667, 7
      %v5669 = vsub.s32 0, %v5668
      %v5670 = vrot.slane %v5665, %v5669
      %v5671 = vlaneseq
      %v5672 = vshrl.u32 %v5671, 7
      %v5673 = vsub.s32 1, %v5672
      %v5674 = vrot.slane %v5665, %v5673
      %v5677 = vmul.f32 %v5663, %v5670
      %v5678 = vmul.f32 %v5664, %v5674
      %5679 = vst [vmem:[#allocation2 + $0x260] sm:$0xff] %v5677
      %5680 = vst [vmem:[#allocation2 + $0x268] sm:$0xff] %v5678
      %5681 = vrot.lane.b32.xlu0 %v5545, 112
      %v5682 = vpop.permute.xlu0 %5681
      %5683 = vrot.lane.b32.xlu0 %v5546, 112
      %v5684 = vpop.permute.xlu0 %5683
      %v5685 = vsel %vm527, %v5682, %v5684
      %v5686 = vsel %vm527, %v5684, %v5682
      %v5687 = vld [vmem:[%s532] sm:$0x3]
      %v5689 = vlaneseq
      %v5690 = vshrl.u32 %v5689, 7
      %v5691 = vsub.s32 0, %v5690
      %v5692 = vrot.slane %v5687, %v5691
      %v5693 = vlaneseq
      %v5694 = vshrl.u32 %v5693, 7
      %v5695 = vsub.s32 1, %v5694
      %v5696 = vrot.slane %v5687, %v5695
      %v5699 = vmul.f32 %v5685, %v5692
      %v5700 = vmul.f32 %v5686, %v5696
      %5701 = vst [vmem:[#allocation2 + $0x2c0] sm:$0xff] %v5699
      %5702 = vst [vmem:[#allocation2 + $0x2c8] sm:$0xff] %v5700
      %5703 = vrot.lane.b32.xlu0 %v5545, 111
      %v5704 = vpop.permute.xlu0 %5703
      %5705 = vrot.lane.b32.xlu0 %v5546, 111
      %v5706 = vpop.permute.xlu0 %5705
      %v5707 = vsel %vm561, %v5704, %v5706
      %v5708 = vsel %vm561, %v5706, %v5704
      %v5709 = vld [vmem:[%s566] sm:$0x3]
      %v5711 = vlaneseq
      %v5712 = vshrl.u32 %v5711, 7
      %v5713 = vsub.s32 0, %v5712
      %v5714 = vrot.slane %v5709, %v5713
      %v5715 = vlaneseq
      %v5716 = vshrl.u32 %v5715, 7
      %v5717 = vsub.s32 1, %v5716
      %v5718 = vrot.slane %v5709, %v5717
      %v5721 = vmul.f32 %v5707, %v5714
      %v5722 = vmul.f32 %v5708, %v5718
      %5723 = vst [vmem:[#allocation2 + $0x320] sm:$0xff] %v5721
      %5724 = vst [vmem:[#allocation2 + $0x328] sm:$0xff] %v5722
      %s5725 = scalar_lea.vmem %s1, 704
      %v5726 = vld [vmem:[%s5725] sm:$0xff]
      %v5727 = vld [vmem:[%s5725 + $0x8] sm:$0xff]
      %v5728 = vld [vmem:[%s5725 + $0x10] sm:$0xff]
      %v5729 = vld [vmem:[%s5725 + $0x18] sm:$0xff]
      %v5730 = vld [vmem:[#allocation2] sm:$0xff]
      %v5731 = vld [vmem:[#allocation2 + $0x8] sm:$0xff]
      %v5732 = vld [vmem:[#allocation2 + $0x10] sm:$0xff]
      %v5733 = vld [vmem:[#allocation2 + $0x18] sm:$0xff]
      %v5734 = vld [vmem:[#allocation2 + $0x20] sm:$0xff]
      %v5735 = vld [vmem:[#allocation2 + $0x28] sm:$0xff]
      %v5736 = vld [vmem:[#allocation2 + $0x30] sm:$0xff]
      %v5737 = vld [vmem:[#allocation2 + $0x38] sm:$0xff]
      %v5738 = vld [vmem:[#allocation2 + $0x40] sm:$0xff]
      %v5739 = vld [vmem:[#allocation2 + $0x48] sm:$0xff]
      %v5740 = vld [vmem:[#allocation2 + $0x50] sm:$0xff]
      %v5741 = vld [vmem:[#allocation2 + $0x58] sm:$0xff]
      %v5742 = vld [vmem:[#allocation2 + $0x60] sm:$0xff]
      %v5743 = vld [vmem:[#allocation2 + $0x68] sm:$0xff]
      %v5744 = vld [vmem:[#allocation2 + $0x70] sm:$0xff]
      %v5745 = vld [vmem:[#allocation2 + $0x78] sm:$0xff]
      %v5746 = vld [vmem:[#allocation2 + $0x80] sm:$0xff]
      %v5747 = vld [vmem:[#allocation2 + $0x88] sm:$0xff]
      %v5748 = vld [vmem:[#allocation2 + $0x90] sm:$0xff]
      %v5749 = vld [vmem:[#allocation2 + $0x98] sm:$0xff]
      %v5750 = vld [vmem:[#allocation2 + $0xa0] sm:$0xff]
      %v5751 = vld [vmem:[#allocation2 + $0xa8] sm:$0xff]
      %v5752 = vld [vmem:[#allocation2 + $0xb0] sm:$0xff]
      %v5753 = vld [vmem:[#allocation2 + $0xb8] sm:$0xff]
      %v5754 = vld [vmem:[#allocation2 + $0xc0] sm:$0xff]
      %v5755 = vld [vmem:[#allocation2 + $0xc8] sm:$0xff]
      %v5756 = vld [vmem:[#allocation2 + $0xd0] sm:$0xff]
      %v5757 = vld [vmem:[#allocation2 + $0xd8] sm:$0xff]
      %v5758 = vld [vmem:[#allocation2 + $0xe0] sm:$0xff]
      %v5759 = vld [vmem:[#allocation2 + $0xe8] sm:$0xff]
      %v5760 = vld [vmem:[#allocation2 + $0xf0] sm:$0xff]
      %v5761 = vld [vmem:[#allocation2 + $0xf8] sm:$0xff]
      %v5762 = vld [vmem:[#allocation2 + $0x100] sm:$0xff]
      %v5763 = vld [vmem:[#allocation2 + $0x108] sm:$0xff]
      %v5764 = vld [vmem:[#allocation2 + $0x110] sm:$0xff]
      %v5765 = vld [vmem:[#allocation2 + $0x118] sm:$0xff]
      %v5766 = vld [vmem:[#allocation2 + $0x120] sm:$0xff]
      %v5767 = vld [vmem:[#allocation2 + $0x128] sm:$0xff]
      %v5768 = vld [vmem:[#allocation2 + $0x130] sm:$0xff]
      %v5769 = vld [vmem:[#allocation2 + $0x138] sm:$0xff]
      %v5770 = vld [vmem:[#allocation2 + $0x140] sm:$0xff]
      %v5771 = vld [vmem:[#allocation2 + $0x148] sm:$0xff]
      %v5772 = vld [vmem:[#allocation2 + $0x150] sm:$0xff]
      %v5773 = vld [vmem:[#allocation2 + $0x158] sm:$0xff]
      %v5774 = vld [vmem:[#allocation2 + $0x160] sm:$0xff]
      %v5775 = vld [vmem:[#allocation2 + $0x168] sm:$0xff]
      %v5776 = vld [vmem:[#allocation2 + $0x170] sm:$0xff]
      %v5777 = vld [vmem:[#allocation2 + $0x178] sm:$0xff]
      %v5778 = vld [vmem:[#allocation2 + $0x180] sm:$0xff]
      %v5779 = vld [vmem:[#allocation2 + $0x188] sm:$0xff]
      %v5780 = vld [vmem:[#allocation2 + $0x190] sm:$0xff]
      %v5781 = vld [vmem:[#allocation2 + $0x198] sm:$0xff]
      %v5782 = vld [vmem:[#allocation2 + $0x1a0] sm:$0xff]
      %v5783 = vld [vmem:[#allocation2 + $0x1a8] sm:$0xff]
      %v5784 = vld [vmem:[#allocation2 + $0x1b0] sm:$0xff]
      %v5785 = vld [vmem:[#allocation2 + $0x1b8] sm:$0xff]
      %v5786 = vld [vmem:[#allocation2 + $0x1c0] sm:$0xff]
      %v5787 = vld [vmem:[#allocation2 + $0x1c8] sm:$0xff]
      %v5788 = vld [vmem:[#allocation2 + $0x1d0] sm:$0xff]
      %v5789 = vld [vmem:[#allocation2 + $0x1d8] sm:$0xff]
      %v5790 = vld [vmem:[#allocation2 + $0x1e0] sm:$0xff]
      %v5791 = vld [vmem:[#allocation2 + $0x1e8] sm:$0xff]
      %v5792 = vld [vmem:[#allocation2 + $0x1f0] sm:$0xff]
      %v5793 = vld [vmem:[#allocation2 + $0x1f8] sm:$0xff]
      %v5794 = vld [vmem:[#allocation2 + $0x200] sm:$0xff]
      %v5795 = vld [vmem:[#allocation2 + $0x208] sm:$0xff]
      %v5796 = vld [vmem:[#allocation2 + $0x210] sm:$0xff]
      %v5797 = vld [vmem:[#allocation2 + $0x218] sm:$0xff]
      %v5798 = vld [vmem:[#allocation2 + $0x220] sm:$0xff]
      %v5799 = vld [vmem:[#allocation2 + $0x228] sm:$0xff]
      %v5800 = vld [vmem:[#allocation2 + $0x230] sm:$0xff]
      %v5801 = vld [vmem:[#allocation2 + $0x238] sm:$0xff]
      %v5802 = vld [vmem:[#allocation2 + $0x240] sm:$0xff]
      %v5803 = vld [vmem:[#allocation2 + $0x248] sm:$0xff]
      %v5804 = vld [vmem:[#allocation2 + $0x250] sm:$0xff]
      %v5805 = vld [vmem:[#allocation2 + $0x258] sm:$0xff]
      %v5806 = vld [vmem:[#allocation2 + $0x260] sm:$0xff]
      %v5807 = vld [vmem:[#allocation2 + $0x268] sm:$0xff]
      %v5808 = vld [vmem:[#allocation2 + $0x270] sm:$0xff]
      %v5809 = vld [vmem:[#allocation2 + $0x278] sm:$0xff]
      %v5810 = vld [vmem:[#allocation2 + $0x280] sm:$0xff]
      %v5811 = vld [vmem:[#allocation2 + $0x288] sm:$0xff]
      %v5812 = vld [vmem:[#allocation2 + $0x290] sm:$0xff]
      %v5813 = vld [vmem:[#allocation2 + $0x298] sm:$0xff]
      %v5814 = vld [vmem:[#allocation2 + $0x2a0] sm:$0xff]
      %v5815 = vld [vmem:[#allocation2 + $0x2a8] sm:$0xff]
      %v5816 = vld [vmem:[#allocation2 + $0x2b0] sm:$0xff]
      %v5817 = vld [vmem:[#allocation2 + $0x2b8] sm:$0xff]
      %v5818 = vld [vmem:[#allocation2 + $0x2c0] sm:$0xff]
      %v5819 = vld [vmem:[#allocation2 + $0x2c8] sm:$0xff]
      %v5820 = vld [vmem:[#allocation2 + $0x2d0] sm:$0xff]
      %v5821 = vld [vmem:[#allocation2 + $0x2d8] sm:$0xff]
      %v5822 = vld [vmem:[#allocation2 + $0x2e0] sm:$0xff]
      %v5823 = vld [vmem:[#allocation2 + $0x2e8] sm:$0xff]
      %v5824 = vld [vmem:[#allocation2 + $0x2f0] sm:$0xff]
      %v5825 = vld [vmem:[#allocation2 + $0x2f8] sm:$0xff]
      %v5826 = vld [vmem:[#allocation2 + $0x300] sm:$0xff]
      %v5827 = vld [vmem:[#allocation2 + $0x308] sm:$0xff]
      %v5828 = vld [vmem:[#allocation2 + $0x310] sm:$0xff]
      %v5829 = vld [vmem:[#allocation2 + $0x318] sm:$0xff]
      %v5830 = vld [vmem:[#allocation2 + $0x320] sm:$0xff]
      %v5831 = vld [vmem:[#allocation2 + $0x328] sm:$0xff]
      %v5832 = vld [vmem:[#allocation2 + $0x330] sm:$0xff]
      %v5833 = vld [vmem:[#allocation2 + $0x338] sm:$0xff]
      %v5834 = vld [vmem:[#allocation2 + $0x340] sm:$0xff]
      %v5835 = vld [vmem:[#allocation2 + $0x348] sm:$0xff]
      %v5836 = vld [vmem:[#allocation2 + $0x350] sm:$0xff]
      %v5837 = vld [vmem:[#allocation2 + $0x358] sm:$0xff]
      %s5838 = scalar_lea.vmem %s2, 176
      %v5839 = vld [vmem:[%s5838] sm:$0xff]
      %5841 = vset.pattern.permute.xlu0 0
      %5842 = vperm.xlu0 %5841, %v5839
      %v5843 = vpop.permute.xlu0 %5842
      %v5846 = vsel %vm705, %v5729, 0
      %5848 = vmatprep.subr.mxu0 %v5761
      %5849 = vmatpush1.msra.mxu0 %v5760
      %5850 = vmatprep.subr.mxu0 %v5759
      %5851 = vmatpush1.msra.mxu0 %v5758
      %5852 = vmatprep.subr.mxu0 %v5757
      %5853 = vmatpush1.msra.mxu0 %v5756
      %5854 = vmatprep.subr.mxu0 %v5755
      %5855 = vmatpush1.msra.mxu0 %v5754
      %5856 = vmatprep.subr.mxu0 %v5753
      %5857 = vmatpush1.msra.mxu0 %v5752
      %5858 = vmatprep.subr.mxu0 %v5751
      %5859 = vmatpush1.msra.mxu0 %v5750
      %5860 = vmatprep.subr.mxu0 %v5749
      %5861 = vmatpush1.msra.mxu0 %v5748
      %5862 = vmatprep.subr.mxu0 %v5747
      %5863 = vmatpush1.msra.mxu0 %v5746
      %5864 = vmatprep.subr.mxu0 %v5745
      %5865 = vmatpush1.msra.mxu0 %v5744
      %5866 = vmatprep.subr.mxu0 %v5743
      %5867 = vmatpush1.msra.mxu0 %v5742
      %5868 = vmatprep.subr.mxu0 %v5741
      %5869 = vmatpush1.msra.mxu0 %v5740
      %5870 = vmatprep.subr.mxu0 %v5739
      %5871 = vmatpush1.msra.mxu0 %v5738
      %5872 = vmatprep.subr.mxu0 %v5737
      %5873 = vmatpush1.msra.mxu0 %v5736
      %5874 = vmatprep.subr.mxu0 %v5735
      %5875 = vmatpush1.msra.mxu0 %v5734
      %5876 = vmatprep.subr.mxu0 %v5733
      %5877 = vmatpush1.msra.mxu0 %v5732
      %5878 = vmatprep.subr.mxu0 %v5731
      %5879 = vmatpush1.msra.mxu0 %v5730
      %5880 = vmatprep.subr.mxu0 %v5793
      %5881 = vmatpush2.msra.mxu0 %v5792
      %5882 = vmatprep.subr.mxu0 %v5791
      %5883 = vmatpush2.msra.mxu0 %v5790
      %5884 = vmatprep.subr.mxu0 %v5789
      %5885 = vmatpush2.msra.mxu0 %v5788
      %5886 = vmatprep.subr.mxu0 %v5787
      %5887 = vmatpush2.msra.mxu0 %v5786
      %5888 = vmatprep.subr.mxu0 %v5785
      %5889 = vmatpush2.msra.mxu0 %v5784
      %5890 = vmatprep.subr.mxu0 %v5783
      %5891 = vmatpush2.msra.mxu0 %v5782
      %5892 = vmatprep.subr.mxu0 %v5781
      %5893 = vmatpush2.msra.mxu0 %v5780
      %5894 = vmatprep.subr.mxu0 %v5779
      %5895 = vmatpush2.msra.mxu0 %v5778
      %5896 = vmatprep.subr.mxu0 %v5777
      %5897 = vmatpush2.msra.mxu0 %v5776
      %5898 = vmatprep.subr.mxu0 %v5775
      %5899 = vmatpush2.msra.mxu0 %v5774
      %5900 = vmatprep.subr.mxu0 %v5773
      %5901 = vmatpush2.msra.mxu0 %v5772
      %5902 = vmatprep.subr.mxu0 %v5771
      %5903 = vmatpush2.msra.mxu0 %v5770
      %5904 = vmatprep.subr.mxu0 %v5769
      %5905 = vmatpush2.msra.mxu0 %v5768
      %5906 = vmatprep.subr.mxu0 %v5767
      %5907 = vmatpush2.msra.mxu0 %v5766
      %5908 = vmatprep.subr.mxu0 %v5765
      %5909 = vmatpush2.msra.mxu0 %v5764
      %5910 = vmatprep.subr.mxu0 %v5763
      %5911 = vmatpush2.msra.mxu0 %v5762
      %5912 = vmatprep.mubr.f32.mxu0 %v5727
      %5913 = vmatmul.mubr.f32.gmra.mxu0 %v5726
      %v5914 = vpop.f32.mrf.mxu0
      %v5915 = vadd.f32 %v5843, %v5914
      %v5916 = vpop.f32.mrf.mxu0
      %v5917 = vadd.f32 %v5843, %v5916
      %5918 = vdwg.mxu0
      %5919 = vmatprep.subr.mxu0 %v5825
      %5920 = vmatpush1.msra.mxu0 %v5824
      %5921 = vmatprep.subr.mxu0 %v5823
      %5922 = vmatpush1.msra.mxu0 %v5822
      %5923 = vmatprep.subr.mxu0 %v5821
      %5924 = vmatpush1.msra.mxu0 %v5820
      %5925 = vmatprep.subr.mxu0 %v5819
      %5926 = vmatpush1.msra.mxu0 %v5818
      %5927 = vmatprep.subr.mxu0 %v5817
      %5928 = vmatpush1.msra.mxu0 %v5816
      %5929 = vmatprep.subr.mxu0 %v5815
      %5930 = vmatpush1.msra.mxu0 %v5814
      %5931 = vmatprep.subr.mxu0 %v5813
      %5932 = vmatpush1.msra.mxu0 %v5812
      %5933 = vmatprep.subr.mxu0 %v5811
      %5934 = vmatpush1.msra.mxu0 %v5810
      %5935 = vmatprep.subr.mxu0 %v5809
      %5936 = vmatpush1.msra.mxu0 %v5808
      %5937 = vmatprep.subr.mxu0 %v5807
      %5938 = vmatpush1.msra.mxu0 %v5806
      %5939 = vmatprep.subr.mxu0 %v5805
      %5940 = vmatpush1.msra.mxu0 %v5804
      %5941 = vmatprep.subr.mxu0 %v5803
      %5942 = vmatpush1.msra.mxu0 %v5802
      %5943 = vmatprep.subr.mxu0 %v5801
      %5944 = vmatpush1.msra.mxu0 %v5800
      %5945 = vmatprep.subr.mxu0 %v5799
      %5946 = vmatpush1.msra.mxu0 %v5798
      %5947 = vmatprep.subr.mxu0 %v5797
      %5948 = vmatpush1.msra.mxu0 %v5796
      %5949 = vmatprep.subr.mxu0 %v5795
      %5950 = vmatpush1.msra.mxu0 %v5794
      %5951 = vmatprep.subr.mxu0 0.0
      %5952 = vmatpush2.msra.mxu0 0.0
      %5953 = vmatprep.subr.mxu0 0.0
      %5954 = vmatpush2.msra.mxu0 0.0
      %5955 = vmatprep.subr.mxu0 0.0
      %5956 = vmatpush2.msra.mxu0 0.0
      %5957 = vmatprep.subr.mxu0 0.0
      %5958 = vmatpush2.msra.mxu0 0.0
      %5959 = vmatprep.subr.mxu0 0.0
      %5960 = vmatpush2.msra.mxu0 0.0
      %5961 = vmatprep.subr.mxu0 0.0
      %5962 = vmatpush2.msra.mxu0 0.0
      %5963 = vmatprep.subr.mxu0 0.0
      %5964 = vmatpush2.msra.mxu0 0.0
      %5965 = vmatprep.subr.mxu0 0.0
      %5966 = vmatpush2.msra.mxu0 0.0
      %5967 = vmatprep.subr.mxu0 0.0
      %5968 = vmatpush2.msra.mxu0 0.0
      %5969 = vmatprep.subr.mxu0 0.0
      %5970 = vmatpush2.msra.mxu0 0.0
      %5971 = vmatprep.subr.mxu0 %v5837
      %5972 = vmatpush2.msra.mxu0 %v5836
      %5973 = vmatprep.subr.mxu0 %v5835
      %5974 = vmatpush2.msra.mxu0 %v5834
      %5975 = vmatprep.subr.mxu0 %v5833
      %5976 = vmatpush2.msra.mxu0 %v5832
      %5977 = vmatprep.subr.mxu0 %v5831
      %5978 = vmatpush2.msra.mxu0 %v5830
      %5979 = vmatprep.subr.mxu0 %v5829
      %5980 = vmatpush2.msra.mxu0 %v5828
      %5981 = vmatprep.subr.mxu0 %v5827
      %5982 = vmatpush2.msra.mxu0 %v5826
      %5983 = vmatprep.mubr.f32.mxu0 %v5846
      %5984 = vmatmul.mubr.f32.gmra.mxu0 %v5728
      %v5985 = vpop.f32.mrf.mxu0
      %v5986 = vadd.f32 %v5915, %v5985
      %v5987 = vpop.f32.mrf.mxu0
      %v5988 = vadd.f32 %v5917, %v5987
      %5989 = vdwg.mxu0
      %v5990 = vmul.f32 %v5986, 0.2
      %v5991 = vmul.f32 %v5988, 0.2
      %v5992 = vmax.f32 %v5986, %v5990
      %v5993 = vmax.f32 %v5988, %v5991
      %5994 = vrot.lane.b32.xlu0 %v5992, 17
      %v5995 = vpop.permute.xlu0 %5994
      %5996 = vrot.lane.b32.xlu0 %v5993, 17
      %v5997 = vpop.permute.xlu0 %5996
      %v5998 = vsel %vm320, %v5995, %v5997
      %v5999 = vsel %vm320, %v5997, %v5995
      %v6000 = vld [vmem:[%s3] sm:$0x3]
      %v6002 = vlaneseq
      %v6003 = vshrl.u32 %v6002, 7
      %v6004 = vsub.s32 0, %v6003
      %v6005 = vrot.slane %v6000, %v6004
      %v6006 = vlaneseq
      %v6007 = vshrl.u32 %v6006, 7
      %v6008 = vsub.s32 1, %v6007
      %v6009 = vrot.slane %v6000, %v6008
      %v6012 = vmul.f32 %v5999, %v6005
      %v6013 = vmul.f32 %v5998, %v6009
      %6014 = vst [vmem:[#allocation2 + $0x30] sm:$0xff] %v6012
      %6015 = vst [vmem:[#allocation2 + $0x38] sm:$0xff] %v6013
      %6016 = vrot.lane.b32.xlu0 %v5992, 16
      %v6017 = vpop.permute.xlu0 %6016
      %6018 = vrot.lane.b32.xlu0 %v5993, 16
      %v6019 = vpop.permute.xlu0 %6018
      %v6020 = vsel %vm353, %v6017, %v6019
      %v6021 = vsel %vm353, %v6019, %v6017
      %v6022 = vld [vmem:[%s358] sm:$0x3]
      %v6024 = vlaneseq
      %v6025 = vshrl.u32 %v6024, 7
      %v6026 = vsub.s32 0, %v6025
      %v6027 = vrot.slane %v6022, %v6026
      %v6028 = vlaneseq
      %v6029 = vshrl.u32 %v6028, 7
      %v6030 = vsub.s32 1, %v6029
      %v6031 = vrot.slane %v6022, %v6030
      %v6034 = vmul.f32 %v6021, %v6027
      %v6035 = vmul.f32 %v6020, %v6031
      %6036 = vst [vmem:[#allocation2 + $0x90] sm:$0xff] %v6034
      %6037 = vst [vmem:[#allocation2 + $0x98] sm:$0xff] %v6035
      %6038 = vrot.lane.b32.xlu0 %v5992, 15
      %v6039 = vpop.permute.xlu0 %6038
      %6040 = vrot.lane.b32.xlu0 %v5993, 15
      %v6041 = vpop.permute.xlu0 %6040
      %v6042 = vsel %vm387, %v6039, %v6041
      %v6043 = vsel %vm387, %v6041, %v6039
      %v6044 = vld [vmem:[%s392] sm:$0x3]
      %v6046 = vlaneseq
      %v6047 = vshrl.u32 %v6046, 7
      %v6048 = vsub.s32 0, %v6047
      %v6049 = vrot.slane %v6044, %v6048
      %v6050 = vlaneseq
      %v6051 = vshrl.u32 %v6050, 7
      %v6052 = vsub.s32 1, %v6051
      %v6053 = vrot.slane %v6044, %v6052
      %v6056 = vmul.f32 %v6043, %v6049
      %v6057 = vmul.f32 %v6042, %v6053
      %6058 = vst [vmem:[#allocation2 + $0xf0] sm:$0xff] %v6056
      %6059 = vst [vmem:[#allocation2 + $0xf8] sm:$0xff] %v6057
      %6060 = vrot.lane.b32.xlu0 %v5992, 1
      %v6061 = vpop.permute.xlu0 %6060
      %6062 = vrot.lane.b32.xlu0 %v5993, 1
      %v6063 = vpop.permute.xlu0 %6062
      %v6064 = vsel %vm421, %v6061, %v6063
      %v6065 = vsel %vm421, %v6063, %v6061
      %v6066 = vld [vmem:[%s426] sm:$0x3]
      %v6068 = vlaneseq
      %v6069 = vshrl.u32 %v6068, 7
      %v6070 = vsub.s32 0, %v6069
      %v6071 = vrot.slane %v6066, %v6070
      %v6072 = vlaneseq
      %v6073 = vshrl.u32 %v6072, 7
      %v6074 = vsub.s32 1, %v6073
      %v6075 = vrot.slane %v6066, %v6074
      %v6078 = vmul.f32 %v6065, %v6071
      %v6079 = vmul.f32 %v6064, %v6075
      %6080 = vst [vmem:[#allocation2 + $0x150] sm:$0xff] %v6078
      %6081 = vst [vmem:[#allocation2 + $0x158] sm:$0xff] %v6079
      %6082 = vst [vmem:[#allocation2 + $0x1b0] sm:$0xff] %v5992
      %6083 = vst [vmem:[#allocation2 + $0x1b8] sm:$0xff] %v5993
      %6084 = vrot.lane.b32.xlu0 %v5992, 127
      %v6085 = vpop.permute.xlu0 %6084
      %6086 = vrot.lane.b32.xlu0 %v5993, 127
      %v6087 = vpop.permute.xlu0 %6086
      %v6088 = vsel %vm459, %v6085, %v6087
      %v6089 = vsel %vm459, %v6087, %v6085
      %v6090 = vld [vmem:[%s464] sm:$0x3]
      %v6092 = vlaneseq
      %v6093 = vshrl.u32 %v6092, 7
      %v6094 = vsub.s32 0, %v6093
      %v6095 = vrot.slane %v6090, %v6094
      %v6096 = vlaneseq
      %v6097 = vshrl.u32 %v6096, 7
      %v6098 = vsub.s32 1, %v6097
      %v6099 = vrot.slane %v6090, %v6098
      %v6102 = vmul.f32 %v6088, %v6095
      %v6103 = vmul.f32 %v6089, %v6099
      %6104 = vst [vmem:[#allocation2 + $0x210] sm:$0xff] %v6102
      %6105 = vst [vmem:[#allocation2 + $0x218] sm:$0xff] %v6103
      %6106 = vrot.lane.b32.xlu0 %v5992, 113
      %v6107 = vpop.permute.xlu0 %6106
      %6108 = vrot.lane.b32.xlu0 %v5993, 113
      %v6109 = vpop.permute.xlu0 %6108
      %v6110 = vsel %vm493, %v6107, %v6109
      %v6111 = vsel %vm493, %v6109, %v6107
      %v6112 = vld [vmem:[%s498] sm:$0x3]
      %v6114 = vlaneseq
      %v6115 = vshrl.u32 %v6114, 7
      %v6116 = vsub.s32 0, %v6115
      %v6117 = vrot.slane %v6112, %v6116
      %v6118 = vlaneseq
      %v6119 = vshrl.u32 %v6118, 7
      %v6120 = vsub.s32 1, %v6119
      %v6121 = vrot.slane %v6112, %v6120
      %v6124 = vmul.f32 %v6110, %v6117
      %v6125 = vmul.f32 %v6111, %v6121
      %6126 = vst [vmem:[#allocation2 + $0x270] sm:$0xff] %v6124
      %6127 = vst [vmem:[#allocation2 + $0x278] sm:$0xff] %v6125
      %6128 = vrot.lane.b32.xlu0 %v5992, 112
      %v6129 = vpop.permute.xlu0 %6128
      %6130 = vrot.lane.b32.xlu0 %v5993, 112
      %v6131 = vpop.permute.xlu0 %6130
      %v6132 = vsel %vm527, %v6129, %v6131
      %v6133 = vsel %vm527, %v6131, %v6129
      %v6134 = vld [vmem:[%s532] sm:$0x3]
      %v6136 = vlaneseq
      %v6137 = vshrl.u32 %v6136, 7
      %v6138 = vsub.s32 0, %v6137
      %v6139 = vrot.slane %v6134, %v6138
      %v6140 = vlaneseq
      %v6141 = vshrl.u32 %v6140, 7
      %v6142 = vsub.s32 1, %v6141
      %v6143 = vrot.slane %v6134, %v6142
      %v6146 = vmul.f32 %v6132, %v6139
      %v6147 = vmul.f32 %v6133, %v6143
      %6148 = vst [vmem:[#allocation2 + $0x2d0] sm:$0xff] %v6146
      %6149 = vst [vmem:[#allocation2 + $0x2d8] sm:$0xff] %v6147
      %6150 = vrot.lane.b32.xlu0 %v5992, 111
      %v6151 = vpop.permute.xlu0 %6150
      %6152 = vrot.lane.b32.xlu0 %v5993, 111
      %v6153 = vpop.permute.xlu0 %6152
      %v6154 = vsel %vm561, %v6151, %v6153
      %v6155 = vsel %vm561, %v6153, %v6151
      %v6156 = vld [vmem:[%s566] sm:$0x3]
      %v6158 = vlaneseq
      %v6159 = vshrl.u32 %v6158, 7
      %v6160 = vsub.s32 0, %v6159
      %v6161 = vrot.slane %v6156, %v6160
      %v6162 = vlaneseq
      %v6163 = vshrl.u32 %v6162, 7
      %v6164 = vsub.s32 1, %v6163
      %v6165 = vrot.slane %v6156, %v6164
      %v6168 = vmul.f32 %v6154, %v6161
      %v6169 = vmul.f32 %v6155, %v6165
      %6170 = vst [vmem:[#allocation2 + $0x330] sm:$0xff] %v6168
      %6171 = vst [vmem:[#allocation2 + $0x338] sm:$0xff] %v6169
      %s6172 = scalar_lea.vmem %s1, 768
      %v6173 = vld [vmem:[%s6172] sm:$0xff]
      %v6174 = vld [vmem:[%s6172 + $0x8] sm:$0xff]
      %v6175 = vld [vmem:[%s6172 + $0x10] sm:$0xff]
      %v6176 = vld [vmem:[%s6172 + $0x18] sm:$0xff]
      %v6177 = vld [vmem:[#allocation2] sm:$0xff]
      %v6178 = vld [vmem:[#allocation2 + $0x8] sm:$0xff]
      %v6179 = vld [vmem:[#allocation2 + $0x10] sm:$0xff]
      %v6180 = vld [vmem:[#allocation2 + $0x18] sm:$0xff]
      %v6181 = vld [vmem:[#allocation2 + $0x20] sm:$0xff]
      %v6182 = vld [vmem:[#allocation2 + $0x28] sm:$0xff]
      %v6183 = vld [vmem:[#allocation2 + $0x30] sm:$0xff]
      %v6184 = vld [vmem:[#allocation2 + $0x38] sm:$0xff]
      %v6185 = vld [vmem:[#allocation2 + $0x40] sm:$0xff]
      %v6186 = vld [vmem:[#allocation2 + $0x48] sm:$0xff]
      %v6187 = vld [vmem:[#allocation2 + $0x50] sm:$0xff]
      %v6188 = vld [vmem:[#allocation2 + $0x58] sm:$0xff]
      %v6189 = vld [vmem:[#allocation2 + $0x60] sm:$0xff]
      %v6190 = vld [vmem:[#allocation2 + $0x68] sm:$0xff]
      %v6191 = vld [vmem:[#allocation2 + $0x70] sm:$0xff]
      %v6192 = vld [vmem:[#allocation2 + $0x78] sm:$0xff]
      %v6193 = vld [vmem:[#allocation2 + $0x80] sm:$0xff]
      %v6194 = vld [vmem:[#allocation2 + $0x88] sm:$0xff]
      %v6195 = vld [vmem:[#allocation2 + $0x90] sm:$0xff]
      %v6196 = vld [vmem:[#allocation2 + $0x98] sm:$0xff]
      %v6197 = vld [vmem:[#allocation2 + $0xa0] sm:$0xff]
      %v6198 = vld [vmem:[#allocation2 + $0xa8] sm:$0xff]
      %v6199 = vld [vmem:[#allocation2 + $0xb0] sm:$0xff]
      %v6200 = vld [vmem:[#allocation2 + $0xb8] sm:$0xff]
      %v6201 = vld [vmem:[#allocation2 + $0xc0] sm:$0xff]
      %v6202 = vld [vmem:[#allocation2 + $0xc8] sm:$0xff]
      %v6203 = vld [vmem:[#allocation2 + $0xd0] sm:$0xff]
      %v6204 = vld [vmem:[#allocation2 + $0xd8] sm:$0xff]
      %v6205 = vld [vmem:[#allocation2 + $0xe0] sm:$0xff]
      %v6206 = vld [vmem:[#allocation2 + $0xe8] sm:$0xff]
      %v6207 = vld [vmem:[#allocation2 + $0xf0] sm:$0xff]
      %v6208 = vld [vmem:[#allocation2 + $0xf8] sm:$0xff]
      %v6209 = vld [vmem:[#allocation2 + $0x100] sm:$0xff]
      %v6210 = vld [vmem:[#allocation2 + $0x108] sm:$0xff]
      %v6211 = vld [vmem:[#allocation2 + $0x110] sm:$0xff]
      %v6212 = vld [vmem:[#allocation2 + $0x118] sm:$0xff]
      %v6213 = vld [vmem:[#allocation2 + $0x120] sm:$0xff]
      %v6214 = vld [vmem:[#allocation2 + $0x128] sm:$0xff]
      %v6215 = vld [vmem:[#allocation2 + $0x130] sm:$0xff]
      %v6216 = vld [vmem:[#allocation2 + $0x138] sm:$0xff]
      %v6217 = vld [vmem:[#allocation2 + $0x140] sm:$0xff]
      %v6218 = vld [vmem:[#allocation2 + $0x148] sm:$0xff]
      %v6219 = vld [vmem:[#allocation2 + $0x150] sm:$0xff]
      %v6220 = vld [vmem:[#allocation2 + $0x158] sm:$0xff]
      %v6221 = vld [vmem:[#allocation2 + $0x160] sm:$0xff]
      %v6222 = vld [vmem:[#allocation2 + $0x168] sm:$0xff]
      %v6223 = vld [vmem:[#allocation2 + $0x170] sm:$0xff]
      %v6224 = vld [vmem:[#allocation2 + $0x178] sm:$0xff]
      %v6225 = vld [vmem:[#allocation2 + $0x180] sm:$0xff]
      %v6226 = vld [vmem:[#allocation2 + $0x188] sm:$0xff]
      %v6227 = vld [vmem:[#allocation2 + $0x190] sm:$0xff]
      %v6228 = vld [vmem:[#allocation2 + $0x198] sm:$0xff]
      %v6229 = vld [vmem:[#allocation2 + $0x1a0] sm:$0xff]
      %v6230 = vld [vmem:[#allocation2 + $0x1a8] sm:$0xff]
      %v6231 = vld [vmem:[#allocation2 + $0x1b0] sm:$0xff]
      %v6232 = vld [vmem:[#allocation2 + $0x1b8] sm:$0xff]
      %v6233 = vld [vmem:[#allocation2 + $0x1c0] sm:$0xff]
      %v6234 = vld [vmem:[#allocation2 + $0x1c8] sm:$0xff]
      %v6235 = vld [vmem:[#allocation2 + $0x1d0] sm:$0xff]
      %v6236 = vld [vmem:[#allocation2 + $0x1d8] sm:$0xff]
      %v6237 = vld [vmem:[#allocation2 + $0x1e0] sm:$0xff]
      %v6238 = vld [vmem:[#allocation2 + $0x1e8] sm:$0xff]
      %v6239 = vld [vmem:[#allocation2 + $0x1f0] sm:$0xff]
      %v6240 = vld [vmem:[#allocation2 + $0x1f8] sm:$0xff]
      %v6241 = vld [vmem:[#allocation2 + $0x200] sm:$0xff]
      %v6242 = vld [vmem:[#allocation2 + $0x208] sm:$0xff]
      %v6243 = vld [vmem:[#allocation2 + $0x210] sm:$0xff]
      %v6244 = vld [vmem:[#allocation2 + $0x218] sm:$0xff]
      %v6245 = vld [vmem:[#allocation2 + $0x220] sm:$0xff]
      %v6246 = vld [vmem:[#allocation2 + $0x228] sm:$0xff]
      %v6247 = vld [vmem:[#allocation2 + $0x230] sm:$0xff]
      %v6248 = vld [vmem:[#allocation2 + $0x238] sm:$0xff]
      %v6249 = vld [vmem:[#allocation2 + $0x240] sm:$0xff]
      %v6250 = vld [vmem:[#allocation2 + $0x248] sm:$0xff]
      %v6251 = vld [vmem:[#allocation2 + $0x250] sm:$0xff]
      %v6252 = vld [vmem:[#allocation2 + $0x258] sm:$0xff]
      %v6253 = vld [vmem:[#allocation2 + $0x260] sm:$0xff]
      %v6254 = vld [vmem:[#allocation2 + $0x268] sm:$0xff]
      %v6255 = vld [vmem:[#allocation2 + $0x270] sm:$0xff]
      %v6256 = vld [vmem:[#allocation2 + $0x278] sm:$0xff]
      %v6257 = vld [vmem:[#allocation2 + $0x280] sm:$0xff]
      %v6258 = vld [vmem:[#allocation2 + $0x288] sm:$0xff]
      %v6259 = vld [vmem:[#allocation2 + $0x290] sm:$0xff]
      %v6260 = vld [vmem:[#allocation2 + $0x298] sm:$0xff]
      %v6261 = vld [vmem:[#allocation2 + $0x2a0] sm:$0xff]
      %v6262 = vld [vmem:[#allocation2 + $0x2a8] sm:$0xff]
      %v6263 = vld [vmem:[#allocation2 + $0x2b0] sm:$0xff]
      %v6264 = vld [vmem:[#allocation2 + $0x2b8] sm:$0xff]
      %v6265 = vld [vmem:[#allocation2 + $0x2c0] sm:$0xff]
      %v6266 = vld [vmem:[#allocation2 + $0x2c8] sm:$0xff]
      %v6267 = vld [vmem:[#allocation2 + $0x2d0] sm:$0xff]
      %v6268 = vld [vmem:[#allocation2 + $0x2d8] sm:$0xff]
      %v6269 = vld [vmem:[#allocation2 + $0x2e0] sm:$0xff]
      %v6270 = vld [vmem:[#allocation2 + $0x2e8] sm:$0xff]
      %v6271 = vld [vmem:[#allocation2 + $0x2f0] sm:$0xff]
      %v6272 = vld [vmem:[#allocation2 + $0x2f8] sm:$0xff]
      %v6273 = vld [vmem:[#allocation2 + $0x300] sm:$0xff]
      %v6274 = vld [vmem:[#allocation2 + $0x308] sm:$0xff]
      %v6275 = vld [vmem:[#allocation2 + $0x310] sm:$0xff]
      %v6276 = vld [vmem:[#allocation2 + $0x318] sm:$0xff]
      %v6277 = vld [vmem:[#allocation2 + $0x320] sm:$0xff]
      %v6278 = vld [vmem:[#allocation2 + $0x328] sm:$0xff]
      %v6279 = vld [vmem:[#allocation2 + $0x330] sm:$0xff]
      %v6280 = vld [vmem:[#allocation2 + $0x338] sm:$0xff]
      %v6281 = vld [vmem:[#allocation2 + $0x340] sm:$0xff]
      %v6282 = vld [vmem:[#allocation2 + $0x348] sm:$0xff]
      %v6283 = vld [vmem:[#allocation2 + $0x350] sm:$0xff]
      %v6284 = vld [vmem:[#allocation2 + $0x358] sm:$0xff]
      %s6285 = scalar_lea.vmem %s2, 192
      %v6286 = vld [vmem:[%s6285] sm:$0xff]
      %6288 = vset.pattern.permute.xlu0 0
      %6289 = vperm.xlu0 %6288, %v6286
      %v6290 = vpop.permute.xlu0 %6289
      %v6293 = vsel %vm705, %v6176, 0
      %6295 = vmatprep.subr.mxu0 %v6208
      %6296 = vmatpush1.msra.mxu0 %v6207
      %6297 = vmatprep.subr.mxu0 %v6206
      %6298 = vmatpush1.msra.mxu0 %v6205
      %6299 = vmatprep.subr.mxu0 %v6204
      %6300 = vmatpush1.msra.mxu0 %v6203
      %6301 = vmatprep.subr.mxu0 %v6202
      %6302 = vmatpush1.msra.mxu0 %v6201
      %6303 = vmatprep.subr.mxu0 %v6200
      %6304 = vmatpush1.msra.mxu0 %v6199
      %6305 = vmatprep.subr.mxu0 %v6198
      %6306 = vmatpush1.msra.mxu0 %v6197
      %6307 = vmatprep.subr.mxu0 %v6196
      %6308 = vmatpush1.msra.mxu0 %v6195
      %6309 = vmatprep.subr.mxu0 %v6194
      %6310 = vmatpush1.msra.mxu0 %v6193
      %6311 = vmatprep.subr.mxu0 %v6192
      %6312 = vmatpush1.msra.mxu0 %v6191
      %6313 = vmatprep.subr.mxu0 %v6190
      %6314 = vmatpush1.msra.mxu0 %v6189
      %6315 = vmatprep.subr.mxu0 %v6188
      %6316 = vmatpush1.msra.mxu0 %v6187
      %6317 = vmatprep.subr.mxu0 %v6186
      %6318 = vmatpush1.msra.mxu0 %v6185
      %6319 = vmatprep.subr.mxu0 %v6184
      %6320 = vmatpush1.msra.mxu0 %v6183
      %6321 = vmatprep.subr.mxu0 %v6182
      %6322 = vmatpush1.msra.mxu0 %v6181
      %6323 = vmatprep.subr.mxu0 %v6180
      %6324 = vmatpush1.msra.mxu0 %v6179
      %6325 = vmatprep.subr.mxu0 %v6178
      %6326 = vmatpush1.msra.mxu0 %v6177
      %6327 = vmatprep.subr.mxu0 %v6240
      %6328 = vmatpush2.msra.mxu0 %v6239
      %6329 = vmatprep.subr.mxu0 %v6238
      %6330 = vmatpush2.msra.mxu0 %v6237
      %6331 = vmatprep.subr.mxu0 %v6236
      %6332 = vmatpush2.msra.mxu0 %v6235
      %6333 = vmatprep.subr.mxu0 %v6234
      %6334 = vmatpush2.msra.mxu0 %v6233
      %6335 = vmatprep.subr.mxu0 %v6232
      %6336 = vmatpush2.msra.mxu0 %v6231
      %6337 = vmatprep.subr.mxu0 %v6230
      %6338 = vmatpush2.msra.mxu0 %v6229
      %6339 = vmatprep.subr.mxu0 %v6228
      %6340 = vmatpush2.msra.mxu0 %v6227
      %6341 = vmatprep.subr.mxu0 %v6226
      %6342 = vmatpush2.msra.mxu0 %v6225
      %6343 = vmatprep.subr.mxu0 %v6224
      %6344 = vmatpush2.msra.mxu0 %v6223
      %6345 = vmatprep.subr.mxu0 %v6222
      %6346 = vmatpush2.msra.mxu0 %v6221
      %6347 = vmatprep.subr.mxu0 %v6220
      %6348 = vmatpush2.msra.mxu0 %v6219
      %6349 = vmatprep.subr.mxu0 %v6218
      %6350 = vmatpush2.msra.mxu0 %v6217
      %6351 = vmatprep.subr.mxu0 %v6216
      %6352 = vmatpush2.msra.mxu0 %v6215
      %6353 = vmatprep.subr.mxu0 %v6214
      %6354 = vmatpush2.msra.mxu0 %v6213
      %6355 = vmatprep.subr.mxu0 %v6212
      %6356 = vmatpush2.msra.mxu0 %v6211
      %6357 = vmatprep.subr.mxu0 %v6210
      %6358 = vmatpush2.msra.mxu0 %v6209
      %6359 = vmatprep.mubr.f32.mxu0 %v6174
      %6360 = vmatmul.mubr.f32.gmra.mxu0 %v6173
      %v6361 = vpop.f32.mrf.mxu0
      %v6362 = vadd.f32 %v6290, %v6361
      %v6363 = vpop.f32.mrf.mxu0
      %v6364 = vadd.f32 %v6290, %v6363
      %6365 = vdwg.mxu0
      %6366 = vmatprep.subr.mxu0 %v6272
      %6367 = vmatpush1.msra.mxu0 %v6271
      %6368 = vmatprep.subr.mxu0 %v6270
      %6369 = vmatpush1.msra.mxu0 %v6269
      %6370 = vmatprep.subr.mxu0 %v6268
      %6371 = vmatpush1.msra.mxu0 %v6267
      %6372 = vmatprep.subr.mxu0 %v6266
      %6373 = vmatpush1.msra.mxu0 %v6265
      %6374 = vmatprep.subr.mxu0 %v6264
      %6375 = vmatpush1.msra.mxu0 %v6263
      %6376 = vmatprep.subr.mxu0 %v6262
      %6377 = vmatpush1.msra.mxu0 %v6261
      %6378 = vmatprep.subr.mxu0 %v6260
      %6379 = vmatpush1.msra.mxu0 %v6259
      %6380 = vmatprep.subr.mxu0 %v6258
      %6381 = vmatpush1.msra.mxu0 %v6257
      %6382 = vmatprep.subr.mxu0 %v6256
      %6383 = vmatpush1.msra.mxu0 %v6255
      %6384 = vmatprep.subr.mxu0 %v6254
      %6385 = vmatpush1.msra.mxu0 %v6253
      %6386 = vmatprep.subr.mxu0 %v6252
      %6387 = vmatpush1.msra.mxu0 %v6251
      %6388 = vmatprep.subr.mxu0 %v6250
      %6389 = vmatpush1.msra.mxu0 %v6249
      %6390 = vmatprep.subr.mxu0 %v6248
      %6391 = vmatpush1.msra.mxu0 %v6247
      %6392 = vmatprep.subr.mxu0 %v6246
      %6393 = vmatpush1.msra.mxu0 %v6245
      %6394 = vmatprep.subr.mxu0 %v6244
      %6395 = vmatpush1.msra.mxu0 %v6243
      %6396 = vmatprep.subr.mxu0 %v6242
      %6397 = vmatpush1.msra.mxu0 %v6241
      %6398 = vmatprep.subr.mxu0 0.0
      %6399 = vmatpush2.msra.mxu0 0.0
      %6400 = vmatprep.subr.mxu0 0.0
      %6401 = vmatpush2.msra.mxu0 0.0
      %6402 = vmatprep.subr.mxu0 0.0
      %6403 = vmatpush2.msra.mxu0 0.0
      %6404 = vmatprep.subr.mxu0 0.0
      %6405 = vmatpush2.msra.mxu0 0.0
      %6406 = vmatprep.subr.mxu0 0.0
      %6407 = vmatpush2.msra.mxu0 0.0
      %6408 = vmatprep.subr.mxu0 0.0
      %6409 = vmatpush2.msra.mxu0 0.0
      %6410 = vmatprep.subr.mxu0 0.0
      %6411 = vmatpush2.msra.mxu0 0.0
      %6412 = vmatprep.subr.mxu0 0.0
      %6413 = vmatpush2.msra.mxu0 0.0
      %6414 = vmatprep.subr.mxu0 0.0
      %6415 = vmatpush2.msra.mxu0 0.0
      %6416 = vmatprep.subr.mxu0 0.0
      %6417 = vmatpush2.msra.mxu0 0.0
      %6418 = vmatprep.subr.mxu0 %v6284
      %6419 = vmatpush2.msra.mxu0 %v6283
      %6420 = vmatprep.subr.mxu0 %v6282
      %6421 = vmatpush2.msra.mxu0 %v6281
      %6422 = vmatprep.subr.mxu0 %v6280
      %6423 = vmatpush2.msra.mxu0 %v6279
      %6424 = vmatprep.subr.mxu0 %v6278
      %6425 = vmatpush2.msra.mxu0 %v6277
      %6426 = vmatprep.subr.mxu0 %v6276
      %6427 = vmatpush2.msra.mxu0 %v6275
      %6428 = vmatprep.subr.mxu0 %v6274
      %6429 = vmatpush2.msra.mxu0 %v6273
      %6430 = vmatprep.mubr.f32.mxu0 %v6293
      %6431 = vmatmul.mubr.f32.gmra.mxu0 %v6175
      %v6432 = vpop.f32.mrf.mxu0
      %v6433 = vadd.f32 %v6362, %v6432
      %v6434 = vpop.f32.mrf.mxu0
      %v6435 = vadd.f32 %v6364, %v6434
      %6436 = vdwg.mxu0
      %v6437 = vmul.f32 %v6433, 0.2
      %v6438 = vmul.f32 %v6435, 0.2
      %v6439 = vmax.f32 %v6433, %v6437
      %v6440 = vmax.f32 %v6435, %v6438
      %6441 = vrot.lane.b32.xlu0 %v6439, 17
      %v6442 = vpop.permute.xlu0 %6441
      %6443 = vrot.lane.b32.xlu0 %v6440, 17
      %v6444 = vpop.permute.xlu0 %6443
      %v6445 = vsel %vm320, %v6442, %v6444
      %v6446 = vsel %vm320, %v6444, %v6442
      %v6447 = vld [vmem:[%s3] sm:$0x3]
      %v6449 = vlaneseq
      %v6450 = vshrl.u32 %v6449, 7
      %v6451 = vsub.s32 0, %v6450
      %v6452 = vrot.slane %v6447, %v6451
      %v6453 = vlaneseq
      %v6454 = vshrl.u32 %v6453, 7
      %v6455 = vsub.s32 1, %v6454
      %v6456 = vrot.slane %v6447, %v6455
      %v6459 = vmul.f32 %v6446, %v6452
      %v6460 = vmul.f32 %v6445, %v6456
      %6461 = vst [vmem:[#allocation2 + $0x40] sm:$0xff] %v6459
      %6462 = vst [vmem:[#allocation2 + $0x48] sm:$0xff] %v6460
      %6463 = vrot.lane.b32.xlu0 %v6439, 16
      %v6464 = vpop.permute.xlu0 %6463
      %6465 = vrot.lane.b32.xlu0 %v6440, 16
      %v6466 = vpop.permute.xlu0 %6465
      %v6467 = vsel %vm353, %v6464, %v6466
      %v6468 = vsel %vm353, %v6466, %v6464
      %v6469 = vld [vmem:[%s358] sm:$0x3]
      %v6471 = vlaneseq
      %v6472 = vshrl.u32 %v6471, 7
      %v6473 = vsub.s32 0, %v6472
      %v6474 = vrot.slane %v6469, %v6473
      %v6475 = vlaneseq
      %v6476 = vshrl.u32 %v6475, 7
      %v6477 = vsub.s32 1, %v6476
      %v6478 = vrot.slane %v6469, %v6477
      %v6481 = vmul.f32 %v6468, %v6474
      %v6482 = vmul.f32 %v6467, %v6478
      %6483 = vst [vmem:[#allocation2 + $0xa0] sm:$0xff] %v6481
      %6484 = vst [vmem:[#allocation2 + $0xa8] sm:$0xff] %v6482
      %6485 = vrot.lane.b32.xlu0 %v6439, 15
      %v6486 = vpop.permute.xlu0 %6485
      %6487 = vrot.lane.b32.xlu0 %v6440, 15
      %v6488 = vpop.permute.xlu0 %6487
      %v6489 = vsel %vm387, %v6486, %v6488
      %v6490 = vsel %vm387, %v6488, %v6486
      %v6491 = vld [vmem:[%s392] sm:$0x3]
      %v6493 = vlaneseq
      %v6494 = vshrl.u32 %v6493, 7
      %v6495 = vsub.s32 0, %v6494
      %v6496 = vrot.slane %v6491, %v6495
      %v6497 = vlaneseq
      %v6498 = vshrl.u32 %v6497, 7
      %v6499 = vsub.s32 1, %v6498
      %v6500 = vrot.slane %v6491, %v6499
      %v6503 = vmul.f32 %v6490, %v6496
      %v6504 = vmul.f32 %v6489, %v6500
      %6505 = vst [vmem:[#allocation2 + $0x100] sm:$0xff] %v6503
      %6506 = vst [vmem:[#allocation2 + $0x108] sm:$0xff] %v6504
      %6507 = vrot.lane.b32.xlu0 %v6439, 1
      %v6508 = vpop.permute.xlu0 %6507
      %6509 = vrot.lane.b32.xlu0 %v6440, 1
      %v6510 = vpop.permute.xlu0 %6509
      %v6511 = vsel %vm421, %v6508, %v6510
      %v6512 = vsel %vm421, %v6510, %v6508
      %v6513 = vld [vmem:[%s426] sm:$0x3]
      %v6515 = vlaneseq
      %v6516 = vshrl.u32 %v6515, 7
      %v6517 = vsub.s32 0, %v6516
      %v6518 = vrot.slane %v6513, %v6517
      %v6519 = vlaneseq
      %v6520 = vshrl.u32 %v6519, 7
      %v6521 = vsub.s32 1, %v6520
      %v6522 = vrot.slane %v6513, %v6521
      %v6525 = vmul.f32 %v6512, %v6518
      %v6526 = vmul.f32 %v6511, %v6522
      %6527 = vst [vmem:[#allocation2 + $0x160] sm:$0xff] %v6525
      %6528 = vst [vmem:[#allocation2 + $0x168] sm:$0xff] %v6526
      %6529 = vst [vmem:[#allocation2 + $0x1c0] sm:$0xff] %v6439
      %6530 = vst [vmem:[#allocation2 + $0x1c8] sm:$0xff] %v6440
      %6531 = vrot.lane.b32.xlu0 %v6439, 127
      %v6532 = vpop.permute.xlu0 %6531
      %6533 = vrot.lane.b32.xlu0 %v6440, 127
      %v6534 = vpop.permute.xlu0 %6533
      %v6535 = vsel %vm459, %v6532, %v6534
      %v6536 = vsel %vm459, %v6534, %v6532
      %v6537 = vld [vmem:[%s464] sm:$0x3]
      %v6539 = vlaneseq
      %v6540 = vshrl.u32 %v6539, 7
      %v6541 = vsub.s32 0, %v6540
      %v6542 = vrot.slane %v6537, %v6541
      %v6543 = vlaneseq
      %v6544 = vshrl.u32 %v6543, 7
      %v6545 = vsub.s32 1, %v6544
      %v6546 = vrot.slane %v6537, %v6545
      %v6549 = vmul.f32 %v6535, %v6542
      %v6550 = vmul.f32 %v6536, %v6546
      %6551 = vst [vmem:[#allocation2 + $0x220] sm:$0xff] %v6549
      %6552 = vst [vmem:[#allocation2 + $0x228] sm:$0xff] %v6550
      %6553 = vrot.lane.b32.xlu0 %v6439, 113
      %v6554 = vpop.permute.xlu0 %6553
      %6555 = vrot.lane.b32.xlu0 %v6440, 113
      %v6556 = vpop.permute.xlu0 %6555
      %v6557 = vsel %vm493, %v6554, %v6556
      %v6558 = vsel %vm493, %v6556, %v6554
      %v6559 = vld [vmem:[%s498] sm:$0x3]
      %v6561 = vlaneseq
      %v6562 = vshrl.u32 %v6561, 7
      %v6563 = vsub.s32 0, %v6562
      %v6564 = vrot.slane %v6559, %v6563
      %v6565 = vlaneseq
      %v6566 = vshrl.u32 %v6565, 7
      %v6567 = vsub.s32 1, %v6566
      %v6568 = vrot.slane %v6559, %v6567
      %v6571 = vmul.f32 %v6557, %v6564
      %v6572 = vmul.f32 %v6558, %v6568
      %6573 = vst [vmem:[#allocation2 + $0x280] sm:$0xff] %v6571
      %6574 = vst [vmem:[#allocation2 + $0x288] sm:$0xff] %v6572
      %6575 = vrot.lane.b32.xlu0 %v6439, 112
      %v6576 = vpop.permute.xlu0 %6575
      %6577 = vrot.lane.b32.xlu0 %v6440, 112
      %v6578 = vpop.permute.xlu0 %6577
      %v6579 = vsel %vm527, %v6576, %v6578
      %v6580 = vsel %vm527, %v6578, %v6576
      %v6581 = vld [vmem:[%s532] sm:$0x3]
      %v6583 = vlaneseq
      %v6584 = vshrl.u32 %v6583, 7
      %v6585 = vsub.s32 0, %v6584
      %v6586 = vrot.slane %v6581, %v6585
      %v6587 = vlaneseq
      %v6588 = vshrl.u32 %v6587, 7
      %v6589 = vsub.s32 1, %v6588
      %v6590 = vrot.slane %v6581, %v6589
      %v6593 = vmul.f32 %v6579, %v6586
      %v6594 = vmul.f32 %v6580, %v6590
      %6595 = vst [vmem:[#allocation2 + $0x2e0] sm:$0xff] %v6593
      %6596 = vst [vmem:[#allocation2 + $0x2e8] sm:$0xff] %v6594
      %6597 = vrot.lane.b32.xlu0 %v6439, 111
      %v6598 = vpop.permute.xlu0 %6597
      %6599 = vrot.lane.b32.xlu0 %v6440, 111
      %v6600 = vpop.permute.xlu0 %6599
      %v6601 = vsel %vm561, %v6598, %v6600
      %v6602 = vsel %vm561, %v6600, %v6598
      %v6603 = vld [vmem:[%s566] sm:$0x3]
      %v6605 = vlaneseq
      %v6606 = vshrl.u32 %v6605, 7
      %v6607 = vsub.s32 0, %v6606
      %v6608 = vrot.slane %v6603, %v6607
      %v6609 = vlaneseq
      %v6610 = vshrl.u32 %v6609, 7
      %v6611 = vsub.s32 1, %v6610
      %v6612 = vrot.slane %v6603, %v6611
      %v6615 = vmul.f32 %v6601, %v6608
      %v6616 = vmul.f32 %v6602, %v6612
      %6617 = vst [vmem:[#allocation2 + $0x340] sm:$0xff] %v6615
      %6618 = vst [vmem:[#allocation2 + $0x348] sm:$0xff] %v6616
      %s6619 = scalar_lea.vmem %s1, 832
      %v6620 = vld [vmem:[%s6619] sm:$0xff]
      %v6621 = vld [vmem:[%s6619 + $0x8] sm:$0xff]
      %v6622 = vld [vmem:[%s6619 + $0x10] sm:$0xff]
      %v6623 = vld [vmem:[%s6619 + $0x18] sm:$0xff]
      %v6624 = vld [vmem:[#allocation2] sm:$0xff]
      %v6625 = vld [vmem:[#allocation2 + $0x8] sm:$0xff]
      %v6626 = vld [vmem:[#allocation2 + $0x10] sm:$0xff]
      %v6627 = vld [vmem:[#allocation2 + $0x18] sm:$0xff]
      %v6628 = vld [vmem:[#allocation2 + $0x20] sm:$0xff]
      %v6629 = vld [vmem:[#allocation2 + $0x28] sm:$0xff]
      %v6630 = vld [vmem:[#allocation2 + $0x30] sm:$0xff]
      %v6631 = vld [vmem:[#allocation2 + $0x38] sm:$0xff]
      %v6632 = vld [vmem:[#allocation2 + $0x40] sm:$0xff]
      %v6633 = vld [vmem:[#allocation2 + $0x48] sm:$0xff]
      %v6634 = vld [vmem:[#allocation2 + $0x50] sm:$0xff]
      %v6635 = vld [vmem:[#allocation2 + $0x58] sm:$0xff]
      %v6636 = vld [vmem:[#allocation2 + $0x60] sm:$0xff]
      %v6637 = vld [vmem:[#allocation2 + $0x68] sm:$0xff]
      %v6638 = vld [vmem:[#allocation2 + $0x70] sm:$0xff]
      %v6639 = vld [vmem:[#allocation2 + $0x78] sm:$0xff]
      %v6640 = vld [vmem:[#allocation2 + $0x80] sm:$0xff]
      %v6641 = vld [vmem:[#allocation2 + $0x88] sm:$0xff]
      %v6642 = vld [vmem:[#allocation2 + $0x90] sm:$0xff]
      %v6643 = vld [vmem:[#allocation2 + $0x98] sm:$0xff]
      %v6644 = vld [vmem:[#allocation2 + $0xa0] sm:$0xff]
      %v6645 = vld [vmem:[#allocation2 + $0xa8] sm:$0xff]
      %v6646 = vld [vmem:[#allocation2 + $0xb0] sm:$0xff]
      %v6647 = vld [vmem:[#allocation2 + $0xb8] sm:$0xff]
      %v6648 = vld [vmem:[#allocation2 + $0xc0] sm:$0xff]
      %v6649 = vld [vmem:[#allocation2 + $0xc8] sm:$0xff]
      %v6650 = vld [vmem:[#allocation2 + $0xd0] sm:$0xff]
      %v6651 = vld [vmem:[#allocation2 + $0xd8] sm:$0xff]
      %v6652 = vld [vmem:[#allocation2 + $0xe0] sm:$0xff]
      %v6653 = vld [vmem:[#allocation2 + $0xe8] sm:$0xff]
      %v6654 = vld [vmem:[#allocation2 + $0xf0] sm:$0xff]
      %v6655 = vld [vmem:[#allocation2 + $0xf8] sm:$0xff]
      %v6656 = vld [vmem:[#allocation2 + $0x100] sm:$0xff]
      %v6657 = vld [vmem:[#allocation2 + $0x108] sm:$0xff]
      %v6658 = vld [vmem:[#allocation2 + $0x110] sm:$0xff]
      %v6659 = vld [vmem:[#allocation2 + $0x118] sm:$0xff]
      %v6660 = vld [vmem:[#allocation2 + $0x120] sm:$0xff]
      %v6661 = vld [vmem:[#allocation2 + $0x128] sm:$0xff]
      %v6662 = vld [vmem:[#allocation2 + $0x130] sm:$0xff]
      %v6663 = vld [vmem:[#allocation2 + $0x138] sm:$0xff]
      %v6664 = vld [vmem:[#allocation2 + $0x140] sm:$0xff]
      %v6665 = vld [vmem:[#allocation2 + $0x148] sm:$0xff]
      %v6666 = vld [vmem:[#allocation2 + $0x150] sm:$0xff]
      %v6667 = vld [vmem:[#allocation2 + $0x158] sm:$0xff]
      %v6668 = vld [vmem:[#allocation2 + $0x160] sm:$0xff]
      %v6669 = vld [vmem:[#allocation2 + $0x168] sm:$0xff]
      %v6670 = vld [vmem:[#allocation2 + $0x170] sm:$0xff]
      %v6671 = vld [vmem:[#allocation2 + $0x178] sm:$0xff]
      %v6672 = vld [vmem:[#allocation2 + $0x180] sm:$0xff]
      %v6673 = vld [vmem:[#allocation2 + $0x188] sm:$0xff]
      %v6674 = vld [vmem:[#allocation2 + $0x190] sm:$0xff]
      %v6675 = vld [vmem:[#allocation2 + $0x198] sm:$0xff]
      %v6676 = vld [vmem:[#allocation2 + $0x1a0] sm:$0xff]
      %v6677 = vld [vmem:[#allocation2 + $0x1a8] sm:$0xff]
      %v6678 = vld [vmem:[#allocation2 + $0x1b0] sm:$0xff]
      %v6679 = vld [vmem:[#allocation2 + $0x1b8] sm:$0xff]
      %v6680 = vld [vmem:[#allocation2 + $0x1c0] sm:$0xff]
      %v6681 = vld [vmem:[#allocation2 + $0x1c8] sm:$0xff]
      %v6682 = vld [vmem:[#allocation2 + $0x1d0] sm:$0xff]
      %v6683 = vld [vmem:[#allocation2 + $0x1d8] sm:$0xff]
      %v6684 = vld [vmem:[#allocation2 + $0x1e0] sm:$0xff]
      %v6685 = vld [vmem:[#allocation2 + $0x1e8] sm:$0xff]
      %v6686 = vld [vmem:[#allocation2 + $0x1f0] sm:$0xff]
      %v6687 = vld [vmem:[#allocation2 + $0x1f8] sm:$0xff]
      %v6688 = vld [vmem:[#allocation2 + $0x200] sm:$0xff]
      %v6689 = vld [vmem:[#allocation2 + $0x208] sm:$0xff]
      %v6690 = vld [vmem:[#allocation2 + $0x210] sm:$0xff]
      %v6691 = vld [vmem:[#allocation2 + $0x218] sm:$0xff]
      %v6692 = vld [vmem:[#allocation2 + $0x220] sm:$0xff]
      %v6693 = vld [vmem:[#allocation2 + $0x228] sm:$0xff]
      %v6694 = vld [vmem:[#allocation2 + $0x230] sm:$0xff]
      %v6695 = vld [vmem:[#allocation2 + $0x238] sm:$0xff]
      %v6696 = vld [vmem:[#allocation2 + $0x240] sm:$0xff]
      %v6697 = vld [vmem:[#allocation2 + $0x248] sm:$0xff]
      %v6698 = vld [vmem:[#allocation2 + $0x250] sm:$0xff]
      %v6699 = vld [vmem:[#allocation2 + $0x258] sm:$0xff]
      %v6700 = vld [vmem:[#allocation2 + $0x260] sm:$0xff]
      %v6701 = vld [vmem:[#allocation2 + $0x268] sm:$0xff]
      %v6702 = vld [vmem:[#allocation2 + $0x270] sm:$0xff]
      %v6703 = vld [vmem:[#allocation2 + $0x278] sm:$0xff]
      %v6704 = vld [vmem:[#allocation2 + $0x280] sm:$0xff]
      %v6705 = vld [vmem:[#allocation2 + $0x288] sm:$0xff]
      %v6706 = vld [vmem:[#allocation2 + $0x290] sm:$0xff]
      %v6707 = vld [vmem:[#allocation2 + $0x298] sm:$0xff]
      %v6708 = vld [vmem:[#allocation2 + $0x2a0] sm:$0xff]
      %v6709 = vld [vmem:[#allocation2 + $0x2a8] sm:$0xff]
      %v6710 = vld [vmem:[#allocation2 + $0x2b0] sm:$0xff]
      %v6711 = vld [vmem:[#allocation2 + $0x2b8] sm:$0xff]
      %v6712 = vld [vmem:[#allocation2 + $0x2c0] sm:$0xff]
      %v6713 = vld [vmem:[#allocation2 + $0x2c8] sm:$0xff]
      %v6714 = vld [vmem:[#allocation2 + $0x2d0] sm:$0xff]
      %v6715 = vld [vmem:[#allocation2 + $0x2d8] sm:$0xff]
      %v6716 = vld [vmem:[#allocation2 + $0x2e0] sm:$0xff]
      %v6717 = vld [vmem:[#allocation2 + $0x2e8] sm:$0xff]
      %v6718 = vld [vmem:[#allocation2 + $0x2f0] sm:$0xff]
      %v6719 = vld [vmem:[#allocation2 + $0x2f8] sm:$0xff]
      %v6720 = vld [vmem:[#allocation2 + $0x300] sm:$0xff]
      %v6721 = vld [vmem:[#allocation2 + $0x308] sm:$0xff]
      %v6722 = vld [vmem:[#allocation2 + $0x310] sm:$0xff]
      %v6723 = vld [vmem:[#allocation2 + $0x318] sm:$0xff]
      %v6724 = vld [vmem:[#allocation2 + $0x320] sm:$0xff]
      %v6725 = vld [vmem:[#allocation2 + $0x328] sm:$0xff]
      %v6726 = vld [vmem:[#allocation2 + $0x330] sm:$0xff]
      %v6727 = vld [vmem:[#allocation2 + $0x338] sm:$0xff]
      %v6728 = vld [vmem:[#allocation2 + $0x340] sm:$0xff]
      %v6729 = vld [vmem:[#allocation2 + $0x348] sm:$0xff]
      %v6730 = vld [vmem:[#allocation2 + $0x350] sm:$0xff]
      %v6731 = vld [vmem:[#allocation2 + $0x358] sm:$0xff]
      %s6732 = scalar_lea.vmem %s2, 208
      %v6733 = vld [vmem:[%s6732] sm:$0xff]
      %6735 = vset.pattern.permute.xlu0 0
      %6736 = vperm.xlu0 %6735, %v6733
      %v6737 = vpop.permute.xlu0 %6736
      %v6740 = vsel %vm705, %v6623, 0
      %6742 = vmatprep.subr.mxu0 %v6655
      %6743 = vmatpush1.msra.mxu0 %v6654
      %6744 = vmatprep.subr.mxu0 %v6653
      %6745 = vmatpush1.msra.mxu0 %v6652
      %6746 = vmatprep.subr.mxu0 %v6651
      %6747 = vmatpush1.msra.mxu0 %v6650
      %6748 = vmatprep.subr.mxu0 %v6649
      %6749 = vmatpush1.msra.mxu0 %v6648
      %6750 = vmatprep.subr.mxu0 %v6647
      %6751 = vmatpush1.msra.mxu0 %v6646
      %6752 = vmatprep.subr.mxu0 %v6645
      %6753 = vmatpush1.msra.mxu0 %v6644
      %6754 = vmatprep.subr.mxu0 %v6643
      %6755 = vmatpush1.msra.mxu0 %v6642
      %6756 = vmatprep.subr.mxu0 %v6641
      %6757 = vmatpush1.msra.mxu0 %v6640
      %6758 = vmatprep.subr.mxu0 %v6639
      %6759 = vmatpush1.msra.mxu0 %v6638
      %6760 = vmatprep.subr.mxu0 %v6637
      %6761 = vmatpush1.msra.mxu0 %v6636
      %6762 = vmatprep.subr.mxu0 %v6635
      %6763 = vmatpush1.msra.mxu0 %v6634
      %6764 = vmatprep.subr.mxu0 %v6633
      %6765 = vmatpush1.msra.mxu0 %v6632
      %6766 = vmatprep.subr.mxu0 %v6631
      %6767 = vmatpush1.msra.mxu0 %v6630
      %6768 = vmatprep.subr.mxu0 %v6629
      %6769 = vmatpush1.msra.mxu0 %v6628
      %6770 = vmatprep.subr.mxu0 %v6627
      %6771 = vmatpush1.msra.mxu0 %v6626
      %6772 = vmatprep.subr.mxu0 %v6625
      %6773 = vmatpush1.msra.mxu0 %v6624
      %6774 = vmatprep.subr.mxu0 %v6687
      %6775 = vmatpush2.msra.mxu0 %v6686
      %6776 = vmatprep.subr.mxu0 %v6685
      %6777 = vmatpush2.msra.mxu0 %v6684
      %6778 = vmatprep.subr.mxu0 %v6683
      %6779 = vmatpush2.msra.mxu0 %v6682
      %6780 = vmatprep.subr.mxu0 %v6681
      %6781 = vmatpush2.msra.mxu0 %v6680
      %6782 = vmatprep.subr.mxu0 %v6679
      %6783 = vmatpush2.msra.mxu0 %v6678
      %6784 = vmatprep.subr.mxu0 %v6677
      %6785 = vmatpush2.msra.mxu0 %v6676
      %6786 = vmatprep.subr.mxu0 %v6675
      %6787 = vmatpush2.msra.mxu0 %v6674
      %6788 = vmatprep.subr.mxu0 %v6673
      %6789 = vmatpush2.msra.mxu0 %v6672
      %6790 = vmatprep.subr.mxu0 %v6671
      %6791 = vmatpush2.msra.mxu0 %v6670
      %6792 = vmatprep.subr.mxu0 %v6669
      %6793 = vmatpush2.msra.mxu0 %v6668
      %6794 = vmatprep.subr.mxu0 %v6667
      %6795 = vmatpush2.msra.mxu0 %v6666
      %6796 = vmatprep.subr.mxu0 %v6665
      %6797 = vmatpush2.msra.mxu0 %v6664
      %6798 = vmatprep.subr.mxu0 %v6663
      %6799 = vmatpush2.msra.mxu0 %v6662
      %6800 = vmatprep.subr.mxu0 %v6661
      %6801 = vmatpush2.msra.mxu0 %v6660
      %6802 = vmatprep.subr.mxu0 %v6659
      %6803 = vmatpush2.msra.mxu0 %v6658
      %6804 = vmatprep.subr.mxu0 %v6657
      %6805 = vmatpush2.msra.mxu0 %v6656
      %6806 = vmatprep.mubr.f32.mxu0 %v6621
      %6807 = vmatmul.mubr.f32.gmra.mxu0 %v6620
      %v6808 = vpop.f32.mrf.mxu0
      %v6809 = vadd.f32 %v6737, %v6808
      %v6810 = vpop.f32.mrf.mxu0
      %v6811 = vadd.f32 %v6737, %v6810
      %6812 = vdwg.mxu0
      %6813 = vmatprep.subr.mxu0 %v6719
      %6814 = vmatpush1.msra.mxu0 %v6718
      %6815 = vmatprep.subr.mxu0 %v6717
      %6816 = vmatpush1.msra.mxu0 %v6716
      %6817 = vmatprep.subr.mxu0 %v6715
      %6818 = vmatpush1.msra.mxu0 %v6714
      %6819 = vmatprep.subr.mxu0 %v6713
      %6820 = vmatpush1.msra.mxu0 %v6712
      %6821 = vmatprep.subr.mxu0 %v6711
      %6822 = vmatpush1.msra.mxu0 %v6710
      %6823 = vmatprep.subr.mxu0 %v6709
      %6824 = vmatpush1.msra.mxu0 %v6708
      %6825 = vmatprep.subr.mxu0 %v6707
      %6826 = vmatpush1.msra.mxu0 %v6706
      %6827 = vmatprep.subr.mxu0 %v6705
      %6828 = vmatpush1.msra.mxu0 %v6704
      %6829 = vmatprep.subr.mxu0 %v6703
      %6830 = vmatpush1.msra.mxu0 %v6702
      %6831 = vmatprep.subr.mxu0 %v6701
      %6832 = vmatpush1.msra.mxu0 %v6700
      %6833 = vmatprep.subr.mxu0 %v6699
      %6834 = vmatpush1.msra.mxu0 %v6698
      %6835 = vmatprep.subr.mxu0 %v6697
      %6836 = vmatpush1.msra.mxu0 %v6696
      %6837 = vmatprep.subr.mxu0 %v6695
      %6838 = vmatpush1.msra.mxu0 %v6694
      %6839 = vmatprep.subr.mxu0 %v6693
      %6840 = vmatpush1.msra.mxu0 %v6692
      %6841 = vmatprep.subr.mxu0 %v6691
      %6842 = vmatpush1.msra.mxu0 %v6690
      %6843 = vmatprep.subr.mxu0 %v6689
      %6844 = vmatpush1.msra.mxu0 %v6688
      %6845 = vmatprep.subr.mxu0 0.0
      %6846 = vmatpush2.msra.mxu0 0.0
      %6847 = vmatprep.subr.mxu0 0.0
      %6848 = vmatpush2.msra.mxu0 0.0
      %6849 = vmatprep.subr.mxu0 0.0
      %6850 = vmatpush2.msra.mxu0 0.0
      %6851 = vmatprep.subr.mxu0 0.0
      %6852 = vmatpush2.msra.mxu0 0.0
      %6853 = vmatprep.subr.mxu0 0.0
      %6854 = vmatpush2.msra.mxu0 0.0
      %6855 = vmatprep.subr.mxu0 0.0
      %6856 = vmatpush2.msra.mxu0 0.0
      %6857 = vmatprep.subr.mxu0 0.0
      %6858 = vmatpush2.msra.mxu0 0.0
      %6859 = vmatprep.subr.mxu0 0.0
      %6860 = vmatpush2.msra.mxu0 0.0
      %6861 = vmatprep.subr.mxu0 0.0
      %6862 = vmatpush2.msra.mxu0 0.0
      %6863 = vmatprep.subr.mxu0 0.0
      %6864 = vmatpush2.msra.mxu0 0.0
      %6865 = vmatprep.subr.mxu0 %v6731
      %6866 = vmatpush2.msra.mxu0 %v6730
      %6867 = vmatprep.subr.mxu0 %v6729
      %6868 = vmatpush2.msra.mxu0 %v6728
      %6869 = vmatprep.subr.mxu0 %v6727
      %6870 = vmatpush2.msra.mxu0 %v6726
      %6871 = vmatprep.subr.mxu0 %v6725
      %6872 = vmatpush2.msra.mxu0 %v6724
      %6873 = vmatprep.subr.mxu0 %v6723
      %6874 = vmatpush2.msra.mxu0 %v6722
      %6875 = vmatprep.subr.mxu0 %v6721
      %6876 = vmatpush2.msra.mxu0 %v6720
      %6877 = vmatprep.mubr.f32.mxu0 %v6740
      %6878 = vmatmul.mubr.f32.gmra.mxu0 %v6622
      %v6879 = vpop.f32.mrf.mxu0
      %v6880 = vadd.f32 %v6809, %v6879
      %v6881 = vpop.f32.mrf.mxu0
      %v6882 = vadd.f32 %v6811, %v6881
      %6883 = vdwg.mxu0
      %v6884 = vmul.f32 %v6880, 0.2
      %v6885 = vmul.f32 %v6882, 0.2
      %v6886 = vmax.f32 %v6880, %v6884
      %v6887 = vmax.f32 %v6882, %v6885
      %6888 = vrot.lane.b32.xlu0 %v6886, 17
      %v6889 = vpop.permute.xlu0 %6888
      %6890 = vrot.lane.b32.xlu0 %v6887, 17
      %v6891 = vpop.permute.xlu0 %6890
      %v6892 = vsel %vm320, %v6889, %v6891
      %v6893 = vsel %vm320, %v6891, %v6889
      %v6894 = vld [vmem:[%s3] sm:$0x3]
      %v6896 = vlaneseq
      %v6897 = vshrl.u32 %v6896, 7
      %v6898 = vsub.s32 0, %v6897
      %v6899 = vrot.slane %v6894, %v6898
      %v6900 = vlaneseq
      %v6901 = vshrl.u32 %v6900, 7
      %v6902 = vsub.s32 1, %v6901
      %v6903 = vrot.slane %v6894, %v6902
      %v6906 = vmul.f32 %v6893, %v6899
      %v6907 = vmul.f32 %v6892, %v6903
      %6908 = vst [vmem:[#allocation2 + $0x50] sm:$0xff] %v6906
      %6909 = vst [vmem:[#allocation2 + $0x58] sm:$0xff] %v6907
      %6910 = vrot.lane.b32.xlu0 %v6886, 16
      %v6911 = vpop.permute.xlu0 %6910
      %6912 = vrot.lane.b32.xlu0 %v6887, 16
      %v6913 = vpop.permute.xlu0 %6912
      %v6914 = vsel %vm353, %v6911, %v6913
      %v6915 = vsel %vm353, %v6913, %v6911
      %v6916 = vld [vmem:[%s358] sm:$0x3]
      %v6918 = vlaneseq
      %v6919 = vshrl.u32 %v6918, 7
      %v6920 = vsub.s32 0, %v6919
      %v6921 = vrot.slane %v6916, %v6920
      %v6922 = vlaneseq
      %v6923 = vshrl.u32 %v6922, 7
      %v6924 = vsub.s32 1, %v6923
      %v6925 = vrot.slane %v6916, %v6924
      %v6928 = vmul.f32 %v6915, %v6921
      %v6929 = vmul.f32 %v6914, %v6925
      %6930 = vst [vmem:[#allocation2 + $0xb0] sm:$0xff] %v6928
      %6931 = vst [vmem:[#allocation2 + $0xb8] sm:$0xff] %v6929
      %6932 = vrot.lane.b32.xlu0 %v6886, 15
      %v6933 = vpop.permute.xlu0 %6932
      %6934 = vrot.lane.b32.xlu0 %v6887, 15
      %v6935 = vpop.permute.xlu0 %6934
      %v6936 = vsel %vm387, %v6933, %v6935
      %v6937 = vsel %vm387, %v6935, %v6933
      %v6938 = vld [vmem:[%s392] sm:$0x3]
      %v6940 = vlaneseq
      %v6941 = vshrl.u32 %v6940, 7
      %v6942 = vsub.s32 0, %v6941
      %v6943 = vrot.slane %v6938, %v6942
      %v6944 = vlaneseq
      %v6945 = vshrl.u32 %v6944, 7
      %v6946 = vsub.s32 1, %v6945
      %v6947 = vrot.slane %v6938, %v6946
      %v6950 = vmul.f32 %v6937, %v6943
      %v6951 = vmul.f32 %v6936, %v6947
      %6952 = vst [vmem:[#allocation2 + $0x110] sm:$0xff] %v6950
      %6953 = vst [vmem:[#allocation2 + $0x118] sm:$0xff] %v6951
      %6954 = vrot.lane.b32.xlu0 %v6886, 1
      %v6955 = vpop.permute.xlu0 %6954
      %6956 = vrot.lane.b32.xlu0 %v6887, 1
      %v6957 = vpop.permute.xlu0 %6956
      %v6958 = vsel %vm421, %v6955, %v6957
      %v6959 = vsel %vm421, %v6957, %v6955
      %v6960 = vld [vmem:[%s426] sm:$0x3]
      %v6962 = vlaneseq
      %v6963 = vshrl.u32 %v6962, 7
      %v6964 = vsub.s32 0, %v6963
      %v6965 = vrot.slane %v6960, %v6964
      %v6966 = vlaneseq
      %v6967 = vshrl.u32 %v6966, 7
      %v6968 = vsub.s32 1, %v6967
      %v6969 = vrot.slane %v6960, %v6968
      %v6972 = vmul.f32 %v6959, %v6965
      %v6973 = vmul.f32 %v6958, %v6969
      %6974 = vst [vmem:[#allocation2 + $0x170] sm:$0xff] %v6972
      %6975 = vst [vmem:[#allocation2 + $0x178] sm:$0xff] %v6973
      %6976 = vst [vmem:[#allocation2 + $0x1d0] sm:$0xff] %v6886
      %6977 = vst [vmem:[#allocation2 + $0x1d8] sm:$0xff] %v6887
      %6978 = vrot.lane.b32.xlu0 %v6886, 127
      %v6979 = vpop.permute.xlu0 %6978
      %6980 = vrot.lane.b32.xlu0 %v6887, 127
      %v6981 = vpop.permute.xlu0 %6980
      %v6982 = vsel %vm459, %v6979, %v6981
      %v6983 = vsel %vm459, %v6981, %v6979
      %v6984 = vld [vmem:[%s464] sm:$0x3]
      %v6986 = vlaneseq
      %v6987 = vshrl.u32 %v6986, 7
      %v6988 = vsub.s32 0, %v6987
      %v6989 = vrot.slane %v6984, %v6988
      %v6990 = vlaneseq
      %v6991 = vshrl.u32 %v6990, 7
      %v6992 = vsub.s32 1, %v6991
      %v6993 = vrot.slane %v6984, %v6992
      %v6996 = vmul.f32 %v6982, %v6989
      %v6997 = vmul.f32 %v6983, %v6993
      %6998 = vst [vmem:[#allocation2 + $0x230] sm:$0xff] %v6996
      %6999 = vst [vmem:[#allocation2 + $0x238] sm:$0xff] %v6997
      %7000 = vrot.lane.b32.xlu0 %v6886, 113
      %v7001 = vpop.permute.xlu0 %7000
      %7002 = vrot.lane.b32.xlu0 %v6887, 113
      %v7003 = vpop.permute.xlu0 %7002
      %v7004 = vsel %vm493, %v7001, %v7003
      %v7005 = vsel %vm493, %v7003, %v7001
      %v7006 = vld [vmem:[%s498] sm:$0x3]
      %v7008 = vlaneseq
      %v7009 = vshrl.u32 %v7008, 7
      %v7010 = vsub.s32 0, %v7009
      %v7011 = vrot.slane %v7006, %v7010
      %v7012 = vlaneseq
      %v7013 = vshrl.u32 %v7012, 7
      %v7014 = vsub.s32 1, %v7013
      %v7015 = vrot.slane %v7006, %v7014
      %v7018 = vmul.f32 %v7004, %v7011
      %v7019 = vmul.f32 %v7005, %v7015
      %7020 = vst [vmem:[#allocation2 + $0x290] sm:$0xff] %v7018
      %7021 = vst [vmem:[#allocation2 + $0x298] sm:$0xff] %v7019
      %7022 = vrot.lane.b32.xlu0 %v6886, 112
      %v7023 = vpop.permute.xlu0 %7022
      %7024 = vrot.lane.b32.xlu0 %v6887, 112
      %v7025 = vpop.permute.xlu0 %7024
      %v7026 = vsel %vm527, %v7023, %v7025
      %v7027 = vsel %vm527, %v7025, %v7023
      %v7028 = vld [vmem:[%s532] sm:$0x3]
      %v7030 = vlaneseq
      %v7031 = vshrl.u32 %v7030, 7
      %v7032 = vsub.s32 0, %v7031
      %v7033 = vrot.slane %v7028, %v7032
      %v7034 = vlaneseq
      %v7035 = vshrl.u32 %v7034, 7
      %v7036 = vsub.s32 1, %v7035
      %v7037 = vrot.slane %v7028, %v7036
      %v7040 = vmul.f32 %v7026, %v7033
      %v7041 = vmul.f32 %v7027, %v7037
      %7042 = vst [vmem:[#allocation2 + $0x2f0] sm:$0xff] %v7040
      %7043 = vst [vmem:[#allocation2 + $0x2f8] sm:$0xff] %v7041
      %7044 = vrot.lane.b32.xlu0 %v6886, 111
      %v7045 = vpop.permute.xlu0 %7044
      %7046 = vrot.lane.b32.xlu0 %v6887, 111
      %v7047 = vpop.permute.xlu0 %7046
      %v7048 = vsel %vm561, %v7045, %v7047
      %v7049 = vsel %vm561, %v7047, %v7045
      %v7050 = vld [vmem:[%s566] sm:$0x3]
      %v7052 = vlaneseq
      %v7053 = vshrl.u32 %v7052, 7
      %v7054 = vsub.s32 0, %v7053
      %v7055 = vrot.slane %v7050, %v7054
      %v7056 = vlaneseq
      %v7057 = vshrl.u32 %v7056, 7
      %v7058 = vsub.s32 1, %v7057
      %v7059 = vrot.slane %v7050, %v7058
      %v7062 = vmul.f32 %v7048, %v7055
      %v7063 = vmul.f32 %v7049, %v7059
      %7064 = vst [vmem:[#allocation2 + $0x350] sm:$0xff] %v7062
      %7065 = vst [vmem:[#allocation2 + $0x358] sm:$0xff] %v7063
      %s7066 = scalar_lea.vmem %s1, 896
      %v7067 = vld [vmem:[%s7066] sm:$0xff]
      %v7068 = vld [vmem:[%s7066 + $0x8] sm:$0xff]
      %v7069 = vld [vmem:[%s7066 + $0x10] sm:$0xff]
      %v7070 = vld [vmem:[%s7066 + $0x18] sm:$0xff]
      %v7071 = vld [vmem:[%s7066 + $0x20] sm:$0xff]
      %v7072 = vld [vmem:[%s7066 + $0x28] sm:$0xff]
      %v7073 = vld [vmem:[%s7066 + $0x30] sm:$0xff]
      %v7074 = vld [vmem:[%s7066 + $0x38] sm:$0xff]
      %v7075 = vld [vmem:[#allocation2] sm:$0xff]
      %v7076 = vld [vmem:[#allocation2 + $0x8] sm:$0xff]
      %v7077 = vld [vmem:[#allocation2 + $0x10] sm:$0xff]
      %v7078 = vld [vmem:[#allocation2 + $0x18] sm:$0xff]
      %v7079 = vld [vmem:[#allocation2 + $0x20] sm:$0xff]
      %v7080 = vld [vmem:[#allocation2 + $0x28] sm:$0xff]
      %v7081 = vld [vmem:[#allocation2 + $0x30] sm:$0xff]
      %v7082 = vld [vmem:[#allocation2 + $0x38] sm:$0xff]
      %v7083 = vld [vmem:[#allocation2 + $0x40] sm:$0xff]
      %v7084 = vld [vmem:[#allocation2 + $0x48] sm:$0xff]
      %v7085 = vld [vmem:[#allocation2 + $0x50] sm:$0xff]
      %v7086 = vld [vmem:[#allocation2 + $0x58] sm:$0xff]
      %v7087 = vld [vmem:[#allocation2 + $0x60] sm:$0xff]
      %v7088 = vld [vmem:[#allocation2 + $0x68] sm:$0xff]
      %v7089 = vld [vmem:[#allocation2 + $0x70] sm:$0xff]
      %v7090 = vld [vmem:[#allocation2 + $0x78] sm:$0xff]
      %v7091 = vld [vmem:[#allocation2 + $0x80] sm:$0xff]
      %v7092 = vld [vmem:[#allocation2 + $0x88] sm:$0xff]
      %v7093 = vld [vmem:[#allocation2 + $0x90] sm:$0xff]
      %v7094 = vld [vmem:[#allocation2 + $0x98] sm:$0xff]
      %v7095 = vld [vmem:[#allocation2 + $0xa0] sm:$0xff]
      %v7096 = vld [vmem:[#allocation2 + $0xa8] sm:$0xff]
      %v7097 = vld [vmem:[#allocation2 + $0xb0] sm:$0xff]
      %v7098 = vld [vmem:[#allocation2 + $0xb8] sm:$0xff]
      %v7099 = vld [vmem:[#allocation2 + $0xc0] sm:$0xff]
      %v7100 = vld [vmem:[#allocation2 + $0xc8] sm:$0xff]
      %v7101 = vld [vmem:[#allocation2 + $0xd0] sm:$0xff]
      %v7102 = vld [vmem:[#allocation2 + $0xd8] sm:$0xff]
      %v7103 = vld [vmem:[#allocation2 + $0xe0] sm:$0xff]
      %v7104 = vld [vmem:[#allocation2 + $0xe8] sm:$0xff]
      %v7105 = vld [vmem:[#allocation2 + $0xf0] sm:$0xff]
      %v7106 = vld [vmem:[#allocation2 + $0xf8] sm:$0xff]
      %v7107 = vld [vmem:[#allocation2 + $0x100] sm:$0xff]
      %v7108 = vld [vmem:[#allocation2 + $0x108] sm:$0xff]
      %v7109 = vld [vmem:[#allocation2 + $0x110] sm:$0xff]
      %v7110 = vld [vmem:[#allocation2 + $0x118] sm:$0xff]
      %v7111 = vld [vmem:[#allocation2 + $0x120] sm:$0xff]
      %v7112 = vld [vmem:[#allocation2 + $0x128] sm:$0xff]
      %v7113 = vld [vmem:[#allocation2 + $0x130] sm:$0xff]
      %v7114 = vld [vmem:[#allocation2 + $0x138] sm:$0xff]
      %v7115 = vld [vmem:[#allocation2 + $0x140] sm:$0xff]
      %v7116 = vld [vmem:[#allocation2 + $0x148] sm:$0xff]
      %v7117 = vld [vmem:[#allocation2 + $0x150] sm:$0xff]
      %v7118 = vld [vmem:[#allocation2 + $0x158] sm:$0xff]
      %v7119 = vld [vmem:[#allocation2 + $0x160] sm:$0xff]
      %v7120 = vld [vmem:[#allocation2 + $0x168] sm:$0xff]
      %v7121 = vld [vmem:[#allocation2 + $0x170] sm:$0xff]
      %v7122 = vld [vmem:[#allocation2 + $0x178] sm:$0xff]
      %v7123 = vld [vmem:[#allocation2 + $0x180] sm:$0xff]
      %v7124 = vld [vmem:[#allocation2 + $0x188] sm:$0xff]
      %v7125 = vld [vmem:[#allocation2 + $0x190] sm:$0xff]
      %v7126 = vld [vmem:[#allocation2 + $0x198] sm:$0xff]
      %v7127 = vld [vmem:[#allocation2 + $0x1a0] sm:$0xff]
      %v7128 = vld [vmem:[#allocation2 + $0x1a8] sm:$0xff]
      %v7129 = vld [vmem:[#allocation2 + $0x1b0] sm:$0xff]
      %v7130 = vld [vmem:[#allocation2 + $0x1b8] sm:$0xff]
      %v7131 = vld [vmem:[#allocation2 + $0x1c0] sm:$0xff]
      %v7132 = vld [vmem:[#allocation2 + $0x1c8] sm:$0xff]
      %v7133 = vld [vmem:[#allocation2 + $0x1d0] sm:$0xff]
      %v7134 = vld [vmem:[#allocation2 + $0x1d8] sm:$0xff]
      %v7135 = vld [vmem:[#allocation2 + $0x1e0] sm:$0xff]
      %v7136 = vld [vmem:[#allocation2 + $0x1e8] sm:$0xff]
      %v7137 = vld [vmem:[#allocation2 + $0x1f0] sm:$0xff]
      %v7138 = vld [vmem:[#allocation2 + $0x1f8] sm:$0xff]
      %v7139 = vld [vmem:[#allocation2 + $0x200] sm:$0xff]
      %v7140 = vld [vmem:[#allocation2 + $0x208] sm:$0xff]
      %v7141 = vld [vmem:[#allocation2 + $0x210] sm:$0xff]
      %v7142 = vld [vmem:[#allocation2 + $0x218] sm:$0xff]
      %v7143 = vld [vmem:[#allocation2 + $0x220] sm:$0xff]
      %v7144 = vld [vmem:[#allocation2 + $0x228] sm:$0xff]
      %v7145 = vld [vmem:[#allocation2 + $0x230] sm:$0xff]
      %v7146 = vld [vmem:[#allocation2 + $0x238] sm:$0xff]
      %v7147 = vld [vmem:[#allocation2 + $0x240] sm:$0xff]
      %v7148 = vld [vmem:[#allocation2 + $0x248] sm:$0xff]
      %v7149 = vld [vmem:[#allocation2 + $0x250] sm:$0xff]
      %v7150 = vld [vmem:[#allocation2 + $0x258] sm:$0xff]
      %v7151 = vld [vmem:[#allocation2 + $0x260] sm:$0xff]
      %v7152 = vld [vmem:[#allocation2 + $0x268] sm:$0xff]
      %v7153 = vld [vmem:[#allocation2 + $0x270] sm:$0xff]
      %v7154 = vld [vmem:[#allocation2 + $0x278] sm:$0xff]
      %v7155 = vld [vmem:[#allocation2 + $0x280] sm:$0xff]
      %v7156 = vld [vmem:[#allocation2 + $0x288] sm:$0xff]
      %v7157 = vld [vmem:[#allocation2 + $0x290] sm:$0xff]
      %v7158 = vld [vmem:[#allocation2 + $0x298] sm:$0xff]
      %v7159 = vld [vmem:[#allocation2 + $0x2a0] sm:$0xff]
      %v7160 = vld [vmem:[#allocation2 + $0x2a8] sm:$0xff]
      %v7161 = vld [vmem:[#allocation2 + $0x2b0] sm:$0xff]
      %v7162 = vld [vmem:[#allocation2 + $0x2b8] sm:$0xff]
      %v7163 = vld [vmem:[#allocation2 + $0x2c0] sm:$0xff]
      %v7164 = vld [vmem:[#allocation2 + $0x2c8] sm:$0xff]
      %v7165 = vld [vmem:[#allocation2 + $0x2d0] sm:$0xff]
      %v7166 = vld [vmem:[#allocation2 + $0x2d8] sm:$0xff]
      %v7167 = vld [vmem:[#allocation2 + $0x2e0] sm:$0xff]
      %v7168 = vld [vmem:[#allocation2 + $0x2e8] sm:$0xff]
      %v7169 = vld [vmem:[#allocation2 + $0x2f0] sm:$0xff]
      %v7170 = vld [vmem:[#allocation2 + $0x2f8] sm:$0xff]
      %v7171 = vld [vmem:[#allocation2 + $0x300] sm:$0xff]
      %v7172 = vld [vmem:[#allocation2 + $0x308] sm:$0xff]
      %v7173 = vld [vmem:[#allocation2 + $0x310] sm:$0xff]
      %v7174 = vld [vmem:[#allocation2 + $0x318] sm:$0xff]
      %v7175 = vld [vmem:[#allocation2 + $0x320] sm:$0xff]
      %v7176 = vld [vmem:[#allocation2 + $0x328] sm:$0xff]
      %v7177 = vld [vmem:[#allocation2 + $0x330] sm:$0xff]
      %v7178 = vld [vmem:[#allocation2 + $0x338] sm:$0xff]
      %v7179 = vld [vmem:[#allocation2 + $0x340] sm:$0xff]
      %v7180 = vld [vmem:[#allocation2 + $0x348] sm:$0xff]
      %v7181 = vld [vmem:[#allocation2 + $0x350] sm:$0xff]
      %v7182 = vld [vmem:[#allocation2 + $0x358] sm:$0xff]
      %s7183 = scalar_lea.vmem %s2, 224
      %v7184 = vld [vmem:[%s7183] sm:$0xff]
      %v7185 = vld [vmem:[%s7183 + $0x8] sm:$0xff]
      %7187 = vset.pattern.permute.xlu0 0
      %7188 = vperm.xlu0 %7187, %v7184
      %v7189 = vpop.permute.xlu0 %7188
      %7192 = vset.pattern.permute.xlu0 0
      %7193 = vperm.xlu0 %7192, %v7185
      %v7194 = vpop.permute.xlu0 %7193
      %v7197 = vsel %vm705, %v7070, 0
      %v7200 = vsel %vm705, %v7074, 0
      %7202 = vmatprep.subr.mxu0 %v7106
      %7203 = vmatpush1.msra.mxu0 %v7105
      %7204 = vmatprep.subr.mxu0 %v7104
      %7205 = vmatpush1.msra.mxu0 %v7103
      %7206 = vmatprep.subr.mxu0 %v7102
      %7207 = vmatpush1.msra.mxu0 %v7101
      %7208 = vmatprep.subr.mxu0 %v7100
      %7209 = vmatpush1.msra.mxu0 %v7099
      %7210 = vmatprep.subr.mxu0 %v7098
      %7211 = vmatpush1.msra.mxu0 %v7097
      %7212 = vmatprep.subr.mxu0 %v7096
      %7213 = vmatpush1.msra.mxu0 %v7095
      %7214 = vmatprep.subr.mxu0 %v7094
      %7215 = vmatpush1.msra.mxu0 %v7093
      %7216 = vmatprep.subr.mxu0 %v7092
      %7217 = vmatpush1.msra.mxu0 %v7091
      %7218 = vmatprep.subr.mxu0 %v7090
      %7219 = vmatpush1.msra.mxu0 %v7089
      %7220 = vmatprep.subr.mxu0 %v7088
      %7221 = vmatpush1.msra.mxu0 %v7087
      %7222 = vmatprep.subr.mxu0 %v7086
      %7223 = vmatpush1.msra.mxu0 %v7085
      %7224 = vmatprep.subr.mxu0 %v7084
      %7225 = vmatpush1.msra.mxu0 %v7083
      %7226 = vmatprep.subr.mxu0 %v7082
      %7227 = vmatpush1.msra.mxu0 %v7081
      %7228 = vmatprep.subr.mxu0 %v7080
      %7229 = vmatpush1.msra.mxu0 %v7079
      %7230 = vmatprep.subr.mxu0 %v7078
      %7231 = vmatpush1.msra.mxu0 %v7077
      %7232 = vmatprep.subr.mxu0 %v7076
      %7233 = vmatpush1.msra.mxu0 %v7075
      %7234 = vmatprep.subr.mxu0 %v7138
      %7235 = vmatpush2.msra.mxu0 %v7137
      %7236 = vmatprep.subr.mxu0 %v7136
      %7237 = vmatpush2.msra.mxu0 %v7135
      %7238 = vmatprep.subr.mxu0 %v7134
      %7239 = vmatpush2.msra.mxu0 %v7133
      %7240 = vmatprep.subr.mxu0 %v7132
      %7241 = vmatpush2.msra.mxu0 %v7131
      %7242 = vmatprep.subr.mxu0 %v7130
      %7243 = vmatpush2.msra.mxu0 %v7129
      %7244 = vmatprep.subr.mxu0 %v7128
      %7245 = vmatpush2.msra.mxu0 %v7127
      %7246 = vmatprep.subr.mxu0 %v7126
      %7247 = vmatpush2.msra.mxu0 %v7125
      %7248 = vmatprep.subr.mxu0 %v7124
      %7249 = vmatpush2.msra.mxu0 %v7123
      %7250 = vmatprep.subr.mxu0 %v7122
      %7251 = vmatpush2.msra.mxu0 %v7121
      %7252 = vmatprep.subr.mxu0 %v7120
      %7253 = vmatpush2.msra.mxu0 %v7119
      %7254 = vmatprep.subr.mxu0 %v7118
      %7255 = vmatpush2.msra.mxu0 %v7117
      %7256 = vmatprep.subr.mxu0 %v7116
      %7257 = vmatpush2.msra.mxu0 %v7115
      %7258 = vmatprep.subr.mxu0 %v7114
      %7259 = vmatpush2.msra.mxu0 %v7113
      %7260 = vmatprep.subr.mxu0 %v7112
      %7261 = vmatpush2.msra.mxu0 %v7111
      %7262 = vmatprep.subr.mxu0 %v7110
      %7263 = vmatpush2.msra.mxu0 %v7109
      %7264 = vmatprep.subr.mxu0 %v7108
      %7265 = vmatpush2.msra.mxu0 %v7107
      %7266 = vmatprep.mubr.f32.mxu0 %v7068
      %7267 = vmatmul.mubr.f32.gmra.mxu0 %v7067
      %v7268 = vpop.f32.mrf.mxu0
      %v7269 = vadd.f32 %v7189, %v7268
      %v7270 = vpop.f32.mrf.mxu0
      %v7271 = vadd.f32 %v7189, %v7270
      %7272 = vmatprep.mubr.f32.mxu0 %v7072
      %7273 = vmatmul.mubr.f32.gmra.mxu0 %v7071
      %v7274 = vpop.f32.mrf.mxu0
      %v7275 = vadd.f32 %v7194, %v7274
      %v7276 = vpop.f32.mrf.mxu0
      %v7277 = vadd.f32 %v7194, %v7276
      %7278 = vdwg.mxu0
      %7279 = vmatprep.subr.mxu0 %v7170
      %7280 = vmatpush1.msra.mxu0 %v7169
      %7281 = vmatprep.subr.mxu0 %v7168
      %7282 = vmatpush1.msra.mxu0 %v7167
      %7283 = vmatprep.subr.mxu0 %v7166
      %7284 = vmatpush1.msra.mxu0 %v7165
      %7285 = vmatprep.subr.mxu0 %v7164
      %7286 = vmatpush1.msra.mxu0 %v7163
      %7287 = vmatprep.subr.mxu0 %v7162
      %7288 = vmatpush1.msra.mxu0 %v7161
      %7289 = vmatprep.subr.mxu0 %v7160
      %7290 = vmatpush1.msra.mxu0 %v7159
      %7291 = vmatprep.subr.mxu0 %v7158
      %7292 = vmatpush1.msra.mxu0 %v7157
      %7293 = vmatprep.subr.mxu0 %v7156
      %7294 = vmatpush1.msra.mxu0 %v7155
      %7295 = vmatprep.subr.mxu0 %v7154
      %7296 = vmatpush1.msra.mxu0 %v7153
      %7297 = vmatprep.subr.mxu0 %v7152
      %7298 = vmatpush1.msra.mxu0 %v7151
      %7299 = vmatprep.subr.mxu0 %v7150
      %7300 = vmatpush1.msra.mxu0 %v7149
      %7301 = vmatprep.subr.mxu0 %v7148
      %7302 = vmatpush1.msra.mxu0 %v7147
      %7303 = vmatprep.subr.mxu0 %v7146
      %7304 = vmatpush1.msra.mxu0 %v7145
      %7305 = vmatprep.subr.mxu0 %v7144
      %7306 = vmatpush1.msra.mxu0 %v7143
      %7307 = vmatprep.subr.mxu0 %v7142
      %7308 = vmatpush1.msra.mxu0 %v7141
      %7309 = vmatprep.subr.mxu0 %v7140
      %7310 = vmatpush1.msra.mxu0 %v7139
      %7311 = vmatprep.subr.mxu0 0.0
      %7312 = vmatpush2.msra.mxu0 0.0
      %7313 = vmatprep.subr.mxu0 0.0
      %7314 = vmatpush2.msra.mxu0 0.0
      %7315 = vmatprep.subr.mxu0 0.0
      %7316 = vmatpush2.msra.mxu0 0.0
      %7317 = vmatprep.subr.mxu0 0.0
      %7318 = vmatpush2.msra.mxu0 0.0
      %7319 = vmatprep.subr.mxu0 0.0
      %7320 = vmatpush2.msra.mxu0 0.0
      %7321 = vmatprep.subr.mxu0 0.0
      %7322 = vmatpush2.msra.mxu0 0.0
      %7323 = vmatprep.subr.mxu0 0.0
      %7324 = vmatpush2.msra.mxu0 0.0
      %7325 = vmatprep.subr.mxu0 0.0
      %7326 = vmatpush2.msra.mxu0 0.0
      %7327 = vmatprep.subr.mxu0 0.0
      %7328 = vmatpush2.msra.mxu0 0.0
      %7329 = vmatprep.subr.mxu0 0.0
      %7330 = vmatpush2.msra.mxu0 0.0
      %7331 = vmatprep.subr.mxu0 %v7182
      %7332 = vmatpush2.msra.mxu0 %v7181
      %7333 = vmatprep.subr.mxu0 %v7180
      %7334 = vmatpush2.msra.mxu0 %v7179
      %7335 = vmatprep.subr.mxu0 %v7178
      %7336 = vmatpush2.msra.mxu0 %v7177
      %7337 = vmatprep.subr.mxu0 %v7176
      %7338 = vmatpush2.msra.mxu0 %v7175
      %7339 = vmatprep.subr.mxu0 %v7174
      %7340 = vmatpush2.msra.mxu0 %v7173
      %7341 = vmatprep.subr.mxu0 %v7172
      %7342 = vmatpush2.msra.mxu0 %v7171
      %7343 = vmatprep.mubr.f32.mxu0 %v7197
      %7344 = vmatmul.mubr.f32.gmra.mxu0 %v7069
      %v7345 = vpop.f32.mrf.mxu0
      %v7346 = vadd.f32 %v7269, %v7345
      %v7347 = vpop.f32.mrf.mxu0
      %v7348 = vadd.f32 %v7271, %v7347
      %7349 = vmatprep.mubr.f32.mxu0 %v7200
      %7350 = vmatmul.mubr.f32.gmra.mxu0 %v7073
      %v7351 = vpop.f32.mrf.mxu0
      %v7352 = vadd.f32 %v7275, %v7351
      %v7353 = vpop.f32.mrf.mxu0
      %v7354 = vadd.f32 %v7277, %v7353
      %7355 = vdwg.mxu0
      %v7356 = vmul.f32 %v7346, 0.2
      %v7357 = vmul.f32 %v7348, 0.2
      %v7358 = vmul.f32 %v7352, 0.2
      %v7359 = vmul.f32 %v7354, 0.2
      %v7360 = vadd.f32 %v7356, %v5014
      %v7361 = vadd.f32 %v7357, %v5015
      %v7362 = vadd.f32 %v7358, %v5016
      %v7363 = vadd.f32 %v7359, %v5017
      %v7364 = vmul.f32 %v7360, 0.2
      %v7365 = vmul.f32 %v7361, 0.2
      %v7366 = vmul.f32 %v7362, 0.2
      %v7367 = vmul.f32 %v7363, 0.2
      %v7368 = vld [vmem:[%s192] sm:$0xff]
      %v7369 = vld [vmem:[%s192 + $0x8] sm:$0xff]
      %v7370 = vld [vmem:[%s192 + $0x10] sm:$0xff]
      %v7371 = vld [vmem:[%s192 + $0x18] sm:$0xff]
      %v7372 = vadd.f32 %v7364, %v7368
      %v7373 = vadd.f32 %v7365, %v7369
      %v7374 = vadd.f32 %v7366, %v7370
      %v7375 = vadd.f32 %v7367, %v7371
      %7376 = vst [vmem:[%s197] sm:$0xff] %v7372
      %7377 = vst [vmem:[%s197 + $0x8] sm:$0xff] %v7373
      %7378 = vst [vmem:[%s197 + $0x10] sm:$0xff] %v7374
      %7379 = vst [vmem:[%s197 + $0x18] sm:$0xff] %v7375
      %p7380 = scmp.lt.s32.totalorder %s15, 1
      %s7381 = scalar_select %p7380, %s15, 1
      %s7382 = smul.addr %s7381, 4
      %s7383 = smul.addr %s7382, 8
      %s7384 = scalar_lea.vmem %s4, %s7383
      // Predicated region
      $region37: #{rrdb_forward.1} parent=35 // pred_check
        %p7385 = pneg %p122
      $region38: #{rrdb_forward.1} parent=35 // pred_check_branch
        %7387 = sbr.rel (%p7385) target = $region40
      $region39: #{rrdb_forward.1} parent=35 // pred_region
        _
      $region40: #{rrdb_forward.1} parent=35 // pred_fallthru
        _
    $region36: #{rrdb_forward.1} parent=5 // pred_fallthru
      _
    %p7388 = scmp.le.s32.totalorder 2, %s10
    // Predicated region
    $region41: #{rrdb_forward.1} parent=5 // pred_check
      %p7389 = pneg %p7388
    $region42: #{rrdb_forward.1} parent=5 // pred_check_branch
      %7391 = sbr.rel (%p7389) target = $region44
    $region43: #{rrdb_forward.1} parent=5 // pred_region
      %s7392 = ssub.s32 %s10, 2
      // Predicated region
      $region45: #{rrdb_forward.1} parent=43 // pred_check
        %p7393 = pneg %p128
      $region46: #{rrdb_forward.1} parent=43 // pred_check_branch
        %7395 = sbr.rel (%p7393) target = $region48
      $region47: #{rrdb_forward.1} parent=43 // pred_region
        %p7396 = scmp.lt.s32.totalorder %s16, 1
        %s7397 = scalar_select %p7396, %s16, 1
        %s7398 = smul.addr %s7397, 4
        %s7399 = smul.addr %s7398, 8
        %s7400 = scalar_lea.vmem %s4, %s7399
      $region48: #{rrdb_forward.1} parent=43 // pred_fallthru
        _
    $region44: #{rrdb_forward.1} parent=5 // pred_fallthru
      _
  $region6: #{rrdb_forward.1} parent=0 // loop_footer
    %s14 = sadd.s32 1, %s10
  $region7: #{rrdb_forward.1} parent=0 // loop_footer_branch
    %9 = sbr.rel target = $region3
  $region8: #{rrdb_forward.1} parent=0 // loop_exit
    _

</llo_original>
